<compile_context>
chip_gen: v6e
topology: v6e:2x2x1
jax: 0.10.0
libtpu: 0.0.40
codegen_flags: <defaults>
</compile_context>

<pallas_src>
import functools

import jax
import jax.numpy as jnp
from jax.experimental import pallas as pl
from jax.experimental.pallas import tpu as pltpu


# ----------------------------------------------------------------------------
# Tiling helpers
# ----------------------------------------------------------------------------
def _largest_divisor(n, target, mult):
    """Largest d | n with d <= target and d % mult == 0 (falls back to n)."""
    best = None
    for d in range(1, min(n, target) + 1):
        if n % d == 0 and d % mult == 0:
            best = d
    return best if best is not None else n


def _pick_row_tile(OH, OW, target_rows):
    """Largest TOH | OH with TOH*OW <= target_rows and (TOH*OW) % 8 == 0."""
    best = None
    for t in range(1, OH + 1):
        if OH % t == 0 and t * OW <= target_rows and (t * OW) % 8 == 0:
            best = t
    if best is not None:
        return best
    if OW % 8 == 0:
        return 1                       # one output row per tile
    return OH                          # full-extent block is always legal


# ----------------------------------------------------------------------------
# Kernel bodies
# ----------------------------------------------------------------------------
def _load_tap(x_ref, h0, w0, toh, ow, stride):
    """One (TOH, OW, Cin) tap window from the resident padded NHWC image."""
    if stride == 1:
        return x_ref[0, pl.ds(h0, toh), pl.ds(w0, ow), :]
    # TODO(synk): stride>1 uses strided tap loads; a one-time space-to-depth
    # pre-split of the padded input would turn these into unit-stride loads.
    return x_ref[0, pl.ds(h0, toh, stride), pl.ds(w0, ow, stride), :]


def _conv_tile(x_ref, w_ref, patch_ref, *, KH, KW, TOH, OW, stride, dilation,
               pack_taps):
    """f32 [TOH*OW, TCout] conv result for the current (n, cout, row) step."""
    cin = x_ref.shape[-1]
    tm = TOH * OW
    h_base = pl.program_id(2) * (TOH * stride)

    if pack_taps:
        # In-VMEM im2col: each tap strip lands in its column slot of the
        # packed patch tile, then ONE MXU matmul with contraction depth
        # K = KH*KW*Cin is issued (vs KH*KW matmuls with K = Cin each).
        # The scratch is f32 so the partial-lane column stores stay on the
        # plain 32-bit store path.
        for kh in range(KH):
            for kw in range(KW):
                xt = _load_tap(x_ref, h_base + kh * dilation, kw * dilation,
                               TOH, OW, stride)
                col = (kh * KW + kw) * cin
                patch_ref[:, pl.ds(col, cin)] = (
                    xt.reshape(tm, cin).astype(jnp.float32))
        lhs = patch_ref[...].astype(jnp.bfloat16)
        return jnp.dot(lhs, w_ref[...], preferred_element_type=jnp.float32)

    # Cin already >= one MXU pass deep: per-tap matmuls with an f32 carry.
    acc = jnp.zeros((tm, w_ref.shape[-1]), jnp.float32)
    for kh in range(KH):
        for kw in range(KW):
            xt = _load_tap(x_ref, h_base + kh * dilation, kw * dilation,
                           TOH, OW, stride)
            acc = acc + jnp.dot(xt.reshape(tm, cin), w_ref[kh * KW + kw],
                                preferred_element_type=jnp.float32)
    return acc


def _conv_stats_kernel(x_ref, w_ref, y_ref, s_ref, sq_ref, *scratch,
                       KH, KW, TOH, OW, stride, dilation, pack_taps):
    """Training kernel 1: conv tile (bf16 out) + per-channel sum / sumsq."""
    patch_ref = scratch[0] if scratch else None
    acc = _conv_tile(x_ref, w_ref, patch_ref, KH=KH, KW=KW, TOH=TOH, OW=OW,
                     stride=stride, dilation=dilation, pack_taps=pack_taps)
    y_ref[0] = acc.astype(y_ref.dtype)

    # BN batch-statistic partials, accumulated across the row-tile axis.
    @pl.when(pl.program_id(2) == 0)
    def _init():
        s_ref[...] = jnp.zeros_like(s_ref)
        sq_ref[...] = jnp.zeros_like(sq_ref)

    s_ref[0] += jnp.sum(acc, axis=0, keepdims=True)
    sq_ref[0] += jnp.sum(acc * acc, axis=0, keepdims=True)


def _conv_affine_kernel(x_ref, w_ref, scale_ref, shift_ref, o_ref, *scratch,
                        KH, KW, TOH, OW, stride, dilation, pack_taps):
    """Eval kernel 1: conv tile + BN affine epilogue (kernel 2 is skipped)."""
    patch_ref = scratch[0] if scratch else None
    acc = _conv_tile(x_ref, w_ref, patch_ref, KH=KH, KW=KW, TOH=TOH, OW=OW,
                     stride=stride, dilation=dilation, pack_taps=pack_taps)
    o_ref[0] = (acc * scale_ref[...] + shift_ref[...]).astype(o_ref.dtype)


def _bn_affine_kernel(y_ref, scale_ref, shift_ref, o_ref):
    """Training kernel 2: per-channel scale/shift, lane-dense Cout_p blocks."""
    z = y_ref[0].astype(jnp.float32) * scale_ref[...] + shift_ref[...]
    o_ref[0] = z.astype(o_ref.dtype)


# ----------------------------------------------------------------------------
# Wrapper
# ----------------------------------------------------------------------------
def conv2d_bn_forward(x_nchw, conv_w, bn_gamma, bn_beta,
                      running_mean, running_var, *,
                      stride=1, pad=0, dilation=1, groups=1,
                      eps=1e-5, training=True):
    """Forward pass of Conv2dBN (act_layer=None -> Identity)."""
    assert groups == 1, "TODO(synk): grouped / depthwise conv not implemented"
    N, Cin, H, W = x_nchw.shape
    Cout, Cin_w, KH, KW = conv_w.shape
    assert Cin_w == Cin

    # NCHW -> NHWC (glue) + spatial zero padding; bf16 feeds the MXU.
    # TODO(synk): if the surrounding network can run NHWC end-to-end, this
    # transpose and the final NHWC->NCHW one are two avoidable HBM passes.
    x = jnp.transpose(x_nchw, (0, 2, 3, 1)).astype(jnp.bfloat16)
    if pad > 0:
        x = jnp.pad(x, ((0, 0), (pad, pad), (pad, pad), (0, 0)))
    Hp, Wp = H + 2 * pad, W + 2 * pad
    OH = (Hp - dilation * (KH - 1) - 1) // stride + 1
    OW = (Wp - dilation * (KW - 1) - 1) // stride + 1
    OHW = OH * OW

    # --- Tiling --------------------------------------------------------------
    # Lane-dense Cout; 256-wide Cout tiles when possible (v6e/v7x MXU is
    # 2x256^2), 128 otherwise (v5e).  Row tiles are whole output rows so each
    # tile's input window is a contiguous slice of the resident image; a
    # <=256-row x <=256-lane f32 result tile keeps the accumulator near the
    # vreg file and the per-step VMEM footprint small (v7x 64 MiB safe).
    Cout_p = -(-Cout // 128) * 128
    TCout = 256 if Cout_p % 256 == 0 else 128
    TOH = _pick_row_tile(OH, OW, target_rows=256)
    TM = TOH * OW
    grid = (N, Cout_p // TCout, OH // TOH)
    dim_sem = ("parallel", "parallel", "arbitrary")

    # Pack the KH*KW taps into the MXU contraction dim when Cin alone would
    # leave the systolic array mostly idle.
    pack_taps = (Cin < 128) and (KH * KW > 1)
    k_pack = KH * KW * Cin
    conv_cfg = dict(KH=KH, KW=KW, TOH=TOH, OW=OW, stride=stride,
                    dilation=dilation)

    w_hwio = jnp.transpose(conv_w, (2, 3, 1, 0))      # [KH, KW, Cin, Cout]
    x_spec = pl.BlockSpec((1, Hp, Wp, Cin), lambda n, c, r: (n, 0, 0, 0))

    def build_w_and_spec(pack):
        if pack:
            w = w_hwio.reshape(KH * KW * Cin, Cout)
            w = jnp.pad(w, ((0, 0), (0, Cout_p - Cout))).astype(jnp.bfloat16)
            spec = pl.BlockSpec((k_pack, TCout), lambda n, c, r: (0, c))
        else:
            w = w_hwio.reshape(KH * KW, Cin, Cout)
            w = jnp.pad(w, ((0, 0), (0, 0),
                            (0, Cout_p - Cout))).astype(jnp.bfloat16)
            spec = pl.BlockSpec((KH * KW, Cin, TCout),
                                lambda n, c, r: (0, 0, c))
        return w, spec

    def scratch_for(pack):
        return [pltpu.VMEM((TM, k_pack), jnp.float32)] if pack else []

    def run_training(pack):
        w, w_spec = build_w_and_spec(pack)
        kern = functools.partial(_conv_stats_kernel, pack_taps=pack,
                                 **conv_cfg)
        return pl.pallas_call(
            kern,
            out_shape=(jax.ShapeDtypeStruct((N, OHW, Cout_p), jnp.bfloat16),
                       jax.ShapeDtypeStruct((N, 1, Cout_p), jnp.float32),
                       jax.ShapeDtypeStruct((N, 1, Cout_p), jnp.float32)),
            grid_spec=pltpu.PrefetchScalarGridSpec(
                num_scalar_prefetch=0, grid=grid,
                in_specs=[x_spec, w_spec],
                out_specs=(
                    pl.BlockSpec((1, TM, TCout), lambda n, c, r: (n, r, c)),
                    pl.BlockSpec((1, 1, TCout), lambda n, c, r: (n, 0, c)),
                    pl.BlockSpec((1, 1, TCout), lambda n, c, r: (n, 0, c))),
                scratch_shapes=scratch_for(pack)),
            compiler_params=pltpu.CompilerParams(
                dimension_semantics=dim_sem),
        )(x, w)

    def run_eval(pack, scale_p, shift_p):
        w, w_spec = build_w_and_spec(pack)
        kern = functools.partial(_conv_affine_kernel, pack_taps=pack,
                                 **conv_cfg)
        return pl.pallas_call(
            kern,
            out_shape=jax.ShapeDtypeStruct((N, OHW, Cout_p), jnp.float32),
            grid_spec=pltpu.PrefetchScalarGridSpec(
                num_scalar_prefetch=0, grid=grid,
                in_specs=[x_spec, w_spec,
                          pl.BlockSpec((1, TCout), lambda n, c, r: (0, c)),
                          pl.BlockSpec((1, TCout), lambda n, c, r: (0, c))],
                out_specs=pl.BlockSpec((1, TM, TCout),
                                       lambda n, c, r: (n, r, c)),
                scratch_shapes=scratch_for(pack)),
            compiler_params=pltpu.CompilerParams(
                dimension_semantics=dim_sem),
        )(x, w, scale_p, shift_p)

    def run(fn, *args):
        if pack_taps:
            try:
                return fn(True, *args)
            except Exception:
                # Defensive: fall back to per-tap (K=Cin) matmuls if this
                # Mosaic build cannot lower the partial-lane patch stores.
                return fn(False, *args)
        return fn(False, *args)

    if training:
        # --- Kernel 1: fused im2col + conv + BN batch-stat partials ---------
        y, ysum, ysq = run(run_training)

        # Tiny per-channel math in plain JAX (biased batch stats, matching
        # PyTorch's training-mode normalization).
        m_tot = N * OHW
        mean = jnp.sum(ysum, axis=(0, 1)) / m_tot
        var = jnp.sum(ysq, axis=(0, 1)) / m_tot - mean * mean
        var = jnp.maximum(var, 0.0)   # E[y^2]-mean^2 can cancel slightly <0
        # TODO(synk): running_mean/var are not updated (stateless forward);
        # PyTorch would also track running stats with unbiased variance.
        gamma_p = jnp.pad(bn_gamma.astype(jnp.float32), (0, Cout_p - Cout))
        beta_p = jnp.pad(bn_beta.astype(jnp.float32), (0, Cout_p - Cout))
        inv_std = jax.lax.rsqrt(var + eps)
        scale = (gamma_p * inv_std).reshape(1, Cout_p)
        shift = (beta_p - mean * gamma_p * inv_std).reshape(1, Cout_p)

        # --- Kernel 2: elementwise BN apply, row-tiled, lane-dense ----------
        TM2 = _largest_divisor(OHW, target=2048, mult=8)
        out = pl.pallas_call(
            _bn_affine_kernel,
            out_shape=jax.ShapeDtypeStruct((N, OHW, Cout_p), jnp.float32),
            grid_spec=pltpu.PrefetchScalarGridSpec(
                num_scalar_prefetch=0, grid=(N, OHW // TM2),
                in_specs=[pl.BlockSpec((1, TM2, Cout_p),
                                       lambda n, r: (n, r, 0)),
                          pl.BlockSpec((1, Cout_p), lambda n, r: (0, 0)),
                          pl.BlockSpec((1, Cout_p), lambda n, r: (0, 0))],
                out_specs=pl.BlockSpec((1, TM2, Cout_p),
                                       lambda n, r: (n, r, 0))),
            compiler_params=pltpu.CompilerParams(
                dimension_semantics=("parallel", "arbitrary")),
        )(y, scale, shift)
    else:
        # Eval: BN folded into kernel 1's epilogue; no second HBM pass.
        inv_std = jax.lax.rsqrt(running_var.astype(jnp.float32) + eps)
        scale = bn_gamma.astype(jnp.float32) * inv_std
        shift = (bn_beta.astype(jnp.float32)
                 - running_mean.astype(jnp.float32) * scale)
        scale_p = jnp.pad(scale, (0, Cout_p - Cout)).reshape(1, Cout_p)
        shift_p = jnp.pad(shift, (0, Cout_p - Cout)).reshape(1, Cout_p)
        out = run(run_eval, scale_p, shift_p)

    # Kernels write the padded (lane-dense) Cout_p; the slice below fuses
    # with the reshape / final transpose in XLA.  act_layer=None -> Identity.
    out = out[..., :Cout].reshape(N, OH, OW, Cout)
    return jnp.transpose(out, (0, 3, 1, 2))


# ----------------------------------------------------------------------------
# Pure-JAX reference
# ----------------------------------------------------------------------------
def _reference_forward(x, conv_w, bn_gamma, bn_beta, *, stride, pad, dilation,
                       eps=1e-5, training=True,
                       running_mean=None, running_var=None):
    """bf16-input conv (f32 accum) + BatchNorm2d (batch or running stats)."""
    y = jax.lax.conv_general_dilated(
        x.astype(jnp.bfloat16), conv_w.astype(jnp.bfloat16),
        window_strides=(stride, stride),
        padding=[(pad, pad), (pad, pad)],
        rhs_dilation=(dilation, dilation),
        dimension_numbers=("NCHW", "OIHW", "NCHW"),
        preferred_element_type=jnp.float32)
    if training:
        mean = jnp.mean(y, axis=(0, 2, 3), keepdims=True)
        var = jnp.mean((y - mean) ** 2, axis=(0, 2, 3), keepdims=True)
    else:
        mean = running_mean.reshape(1, -1, 1, 1)
        var = running_var.reshape(1, -1, 1, 1)
    g = bn_gamma.reshape(1, -1, 1, 1)
    b = bn_beta.reshape(1, -1, 1, 1)
    return (y - mean) * jax.lax.rsqrt(var + eps) * g + b


if __name__ == "__main__":
    key = jax.random.PRNGKey(0)
    N, Cin, H, W = 2, 4, 16, 16
    Cout, KH, KW = 8, 3, 3
    stride, pad, dilation = 1, 1, 1

    kx, kw, km, kv = jax.random.split(key, 4)
    x = jax.random.normal(kx, (N, Cin, H, W), jnp.float32)

    # Deterministic parameter init matching Conv2dBN.__init__:
    #   conv weight ~ N(0, sqrt(2/fan_out)), fan_out = KH*KW*out_ch, no bias
    #   bn.weight = bn_weight_init (1), bn.bias = 0
    fan_out = KH * KW * Cout
    conv_w = jax.random.normal(kw, (Cout, Cin, KH, KW), jnp.float32) * \
        jnp.sqrt(2.0 / fan_out)
    bn_gamma = jnp.ones((Cout,), jnp.float32)
    bn_beta = jnp.zeros((Cout,), jnp.float32)
    running_mean = 0.1 * jax.random.normal(km, (Cout,), jnp.float32)
    running_var = 0.5 + jax.random.uniform(kv, (Cout,), jnp.float32)

    # --- Training mode: conv + batch-statistics BN (kernel 1 + kernel 2) ----
    out_tr = conv2d_bn_forward(x, conv_w, bn_gamma, bn_beta,
                               running_mean, running_var,
                               stride=stride, pad=pad, dilation=dilation,
                               training=True)
    jax.block_until_ready(out_tr)
    ref_tr = _reference_forward(x, conv_w, bn_gamma, bn_beta,
                                stride=stride, pad=pad, dilation=dilation,
                                training=True)
    assert out_tr.shape == ref_tr.shape
    err_tr = float(jnp.max(jnp.abs(out_tr - ref_tr)))
    # bf16 MXU inputs + the bf16 conv intermediate bound the error to a few
    # 1e-3 of the (unit-variance) normalized output.
    assert err_tr < 2e-2, f"training max abs err {err_tr}"

    # --- Eval mode: BN applied in kernel 1's epilogue, kernel 2 skipped -----
    out_ev = conv2d_bn_forward(x, conv_w, bn_gamma, bn_beta,
                               running_mean, running_var,
                               stride=stride, pad=pad, dilation=dilation,
                               training=False)
    jax.block_until_ready(out_ev)
    ref_ev = _reference_forward(x, conv_w, bn_gamma, bn_beta,
                                stride=stride, pad=pad, dilation=dilation,
                                training=False,
                                running_mean=running_mean,
                                running_var=running_var)
    err_ev = float(jnp.max(jnp.abs(out_ev - ref_ev)))
    assert err_ev < 2e-2, f"eval max abs err {err_ev}"

    print("KERNEL_OK")
</pallas_src>

<mosaic_0001>
module attributes {stable_mosaic.version = 11 : i64} {
  func.func @_conv_stats_kernel(%arg0: i32, %arg1: i32, %arg2: i32, %arg3: memref<1x18x18x4xbf16, #tpu.memory_space<vmem>>, %arg4: memref<36x128xbf16, #tpu.memory_space<vmem>>, %arg5: memref<1x256x128xbf16, #tpu.memory_space<vmem>>, %arg6: memref<1x1x128xf32, #tpu.memory_space<vmem>>, %arg7: memref<1x1x128xf32, #tpu.memory_space<vmem>>, %arg8: memref<256x36xf32, #tpu.memory_space<vmem>>) attributes {dimension_semantics = [#tpu.dimension_semantics<parallel>, #tpu.dimension_semantics<parallel>, #tpu.dimension_semantics<arbitrary>], iteration_bounds = array<i64: 2, 1, 1>, scalar_prefetch = 0 : i64, scratch_operands = 1 : i64, tpu.core_type = #tpu.core_type<tc>, window_params = [{transform_indices = @transform_0, window_bounds = array<i64: 1, 18, 18, 4>}, {transform_indices = @transform_1, window_bounds = array<i64: 36, 128>}, {transform_indices = @transform_2, window_bounds = array<i64: 1, 256, 128>}, {transform_indices = @transform_3, window_bounds = array<i64: 1, 1, 128>}, {transform_indices = @transform_4, window_bounds = array<i64: 1, 1, 128>}]} {
    %c16_i32 = arith.constant 16 : i32
    %0 = arith.muli %arg2, %c16_i32 : i32
    %c0_i32 = arith.constant 0 : i32
    %1 = arith.addi %0, %c0_i32 : i32
    %c0 = arith.constant 0 : index
    %2 = arith.index_cast %1 : i32 to index
    %c0_0 = arith.constant 0 : index
    %c0_1 = arith.constant 0 : index
    %3 = vector.load %arg3[%c0, %2, %c0_0, %c0_1] : memref<1x18x18x4xbf16, #tpu.memory_space<vmem>>, vector<1x16x16x4xbf16>
    %4 = vector.shape_cast %3 : vector<1x16x16x4xbf16> to vector<16x16x4xbf16>
    %5 = vector.shape_cast %4 : vector<16x16x4xbf16> to vector<256x4xbf16>
    %6 = arith.extf %5 : vector<256x4xbf16> to vector<256x4xf32>
    %c0_2 = arith.constant 0 : index
    %c0_3 = arith.constant 0 : index
    %7 = vector.load %arg8[%c0_2, %c0_3] : memref<256x36xf32, #tpu.memory_space<vmem>>, vector<256x4xf32>
    tpu.vector_store %arg8[%c0_2, %c0_3], %6 {strides = array<i32>} : memref<256x36xf32, #tpu.memory_space<vmem>>, vector<256x4xf32>,
    %c0_i32_4 = arith.constant 0 : i32
    %8 = arith.addi %0, %c0_i32_4 : i32
    %c0_5 = arith.constant 0 : index
    %9 = arith.index_cast %8 : i32 to index
    %c1 = arith.constant 1 : index
    %c0_6 = arith.constant 0 : index
    %10 = vector.load %arg3[%c0_5, %9, %c1, %c0_6] : memref<1x18x18x4xbf16, #tpu.memory_space<vmem>>, vector<1x16x16x4xbf16>
    %11 = vector.shape_cast %10 : vector<1x16x16x4xbf16> to vector<16x16x4xbf16>
    %12 = vector.shape_cast %11 : vector<16x16x4xbf16> to vector<256x4xbf16>
    %13 = arith.extf %12 : vector<256x4xbf16> to vector<256x4xf32>
    %c0_7 = arith.constant 0 : index
    %c4 = arith.constant 4 : index
    %14 = vector.load %arg8[%c0_7, %c4] : memref<256x36xf32, #tpu.memory_space<vmem>>, vector<256x4xf32>
    tpu.vector_store %arg8[%c0_7, %c4], %13 {strides = array<i32>} : memref<256x36xf32, #tpu.memory_space<vmem>>, vector<256x4xf32>,
    %c0_i32_8 = arith.constant 0 : i32
    %15 = arith.addi %0, %c0_i32_8 : i32
    %c0_9 = arith.constant 0 : index
    %16 = arith.index_cast %15 : i32 to index
    %c2 = arith.constant 2 : index
    %c0_10 = arith.constant 0 : index
    %17 = vector.load %arg3[%c0_9, %16, %c2, %c0_10] : memref<1x18x18x4xbf16, #tpu.memory_space<vmem>>, vector<1x16x16x4xbf16>
    %18 = vector.shape_cast %17 : vector<1x16x16x4xbf16> to vector<16x16x4xbf16>
    %19 = vector.shape_cast %18 : vector<16x16x4xbf16> to vector<256x4xbf16>
    %20 = arith.extf %19 : vector<256x4xbf16> to vector<256x4xf32>
    %c0_11 = arith.constant 0 : index
    %c8 = arith.constant 8 : index
    %21 = vector.load %arg8[%c0_11, %c8] : memref<256x36xf32, #tpu.memory_space<vmem>>, vector<256x4xf32>
    tpu.vector_store %arg8[%c0_11, %c8], %20 {strides = array<i32>} : memref<256x36xf32, #tpu.memory_space<vmem>>, vector<256x4xf32>,
    %c1_i32 = arith.constant 1 : i32
    %22 = arith.addi %0, %c1_i32 : i32
    %c0_12 = arith.constant 0 : index
    %23 = arith.index_cast %22 : i32 to index
    %c0_13 = arith.constant 0 : index
    %c0_14 = arith.constant 0 : index
    %24 = vector.load %arg3[%c0_12, %23, %c0_13, %c0_14] : memref<1x18x18x4xbf16, #tpu.memory_space<vmem>>, vector<1x16x16x4xbf16>
    %25 = vector.shape_cast %24 : vector<1x16x16x4xbf16> to vector<16x16x4xbf16>
    %26 = vector.shape_cast %25 : vector<16x16x4xbf16> to vector<256x4xbf16>
    %27 = arith.extf %26 : vector<256x4xbf16> to vector<256x4xf32>
    %c0_15 = arith.constant 0 : index
    %c12 = arith.constant 12 : index
    %28 = vector.load %arg8[%c0_15, %c12] : memref<256x36xf32, #tpu.memory_space<vmem>>, vector<256x4xf32>
    tpu.vector_store %arg8[%c0_15, %c12], %27 {strides = array<i32>} : memref<256x36xf32, #tpu.memory_space<vmem>>, vector<256x4xf32>,
    %c1_i32_16 = arith.constant 1 : i32
    %29 = arith.addi %0, %c1_i32_16 : i32
    %c0_17 = arith.constant 0 : index
    %30 = arith.index_cast %29 : i32 to index
    %c1_18 = arith.constant 1 : index
    %c0_19 = arith.constant 0 : index
    %31 = vector.load %arg3[%c0_17, %30, %c1_18, %c0_19] : memref<1x18x18x4xbf16, #tpu.memory_space<vmem>>, vector<1x16x16x4xbf16>
    %32 = vector.shape_cast %31 : vector<1x16x16x4xbf16> to vector<16x16x4xbf16>
    %33 = vector.shape_cast %32 : vector<16x16x4xbf16> to vector<256x4xbf16>
    %34 = arith.extf %33 : vector<256x4xbf16> to vector<256x4xf32>
    %c0_20 = arith.constant 0 : index
    %c16 = arith.constant 16 : index
    %35 = vector.load %arg8[%c0_20, %c16] : memref<256x36xf32, #tpu.memory_space<vmem>>, vector<256x4xf32>
    tpu.vector_store %arg8[%c0_20, %c16], %34 {strides = array<i32>} : memref<256x36xf32, #tpu.memory_space<vmem>>, vector<256x4xf32>,
    %c1_i32_21 = arith.constant 1 : i32
    %36 = arith.addi %0, %c1_i32_21 : i32
    %c0_22 = arith.constant 0 : index
    %37 = arith.index_cast %36 : i32 to index
    %c2_23 = arith.constant 2 : index
    %c0_24 = arith.constant 0 : index
    %38 = vector.load %arg3[%c0_22, %37, %c2_23, %c0_24] : memref<1x18x18x4xbf16, #tpu.memory_space<vmem>>, vector<1x16x16x4xbf16>
    %39 = vector.shape_cast %38 : vector<1x16x16x4xbf16> to vector<16x16x4xbf16>
    %40 = vector.shape_cast %39 : vector<16x16x4xbf16> to vector<256x4xbf16>
    %41 = arith.extf %40 : vector<256x4xbf16> to vector<256x4xf32>
    %c0_25 = arith.constant 0 : index
    %c20 = arith.constant 20 : index
    %42 = vector.load %arg8[%c0_25, %c20] : memref<256x36xf32, #tpu.memory_space<vmem>>, vector<256x4xf32>
    tpu.vector_store %arg8[%c0_25, %c20], %41 {strides = array<i32>} : memref<256x36xf32, #tpu.memory_space<vmem>>, vector<256x4xf32>,
    %c2_i32 = arith.constant 2 : i32
    %43 = arith.addi %0, %c2_i32 : i32
    %c0_26 = arith.constant 0 : index
    %44 = arith.index_cast %43 : i32 to index
    %c0_27 = arith.constant 0 : index
    %c0_28 = arith.constant 0 : index
    %45 = vector.load %arg3[%c0_26, %44, %c0_27, %c0_28] : memref<1x18x18x4xbf16, #tpu.memory_space<vmem>>, vector<1x16x16x4xbf16>
    %46 = vector.shape_cast %45 : vector<1x16x16x4xbf16> to vector<16x16x4xbf16>
    %47 = vector.shape_cast %46 : vector<16x16x4xbf16> to vector<256x4xbf16>
    %48 = arith.extf %47 : vector<256x4xbf16> to vector<256x4xf32>
    %c0_29 = arith.constant 0 : index
    %c24 = arith.constant 24 : index
    %49 = vector.load %arg8[%c0_29, %c24] : memref<256x36xf32, #tpu.memory_space<vmem>>, vector<256x4xf32>
    tpu.vector_store %arg8[%c0_29, %c24], %48 {strides = array<i32>} : memref<256x36xf32, #tpu.memory_space<vmem>>, vector<256x4xf32>,
    %c2_i32_30 = arith.constant 2 : i32
    %50 = arith.addi %0, %c2_i32_30 : i32
    %c0_31 = arith.constant 0 : index
    %51 = arith.index_cast %50 : i32 to index
    %c1_32 = arith.constant 1 : index
    %c0_33 = arith.constant 0 : index
    %52 = vector.load %arg3[%c0_31, %51, %c1_32, %c0_33] : memref<1x18x18x4xbf16, #tpu.memory_space<vmem>>, vector<1x16x16x4xbf16>
    %53 = vector.shape_cast %52 : vector<1x16x16x4xbf16> to vector<16x16x4xbf16>
    %54 = vector.shape_cast %53 : vector<16x16x4xbf16> to vector<256x4xbf16>
    %55 = arith.extf %54 : vector<256x4xbf16> to vector<256x4xf32>
    %c0_34 = arith.constant 0 : index
    %c28 = arith.constant 28 : index
    %56 = vector.load %arg8[%c0_34, %c28] : memref<256x36xf32, #tpu.memory_space<vmem>>, vector<256x4xf32>
    tpu.vector_store %arg8[%c0_34, %c28], %55 {strides = array<i32>} : memref<256x36xf32, #tpu.memory_space<vmem>>, vector<256x4xf32>,
    %c2_i32_35 = arith.constant 2 : i32
    %57 = arith.addi %0, %c2_i32_35 : i32
    %c0_36 = arith.constant 0 : index
    %58 = arith.index_cast %57 : i32 to index
    %c2_37 = arith.constant 2 : index
    %c0_38 = arith.constant 0 : index
    %59 = vector.load %arg3[%c0_36, %58, %c2_37, %c0_38] : memref<1x18x18x4xbf16, #tpu.memory_space<vmem>>, vector<1x16x16x4xbf16>
    %60 = vector.shape_cast %59 : vector<1x16x16x4xbf16> to vector<16x16x4xbf16>
    %61 = vector.shape_cast %60 : vector<16x16x4xbf16> to vector<256x4xbf16>
    %62 = arith.extf %61 : vector<256x4xbf16> to vector<256x4xf32>
    %c0_39 = arith.constant 0 : index
    %c32 = arith.constant 32 : index
    %63 = vector.load %arg8[%c0_39, %c32] : memref<256x36xf32, #tpu.memory_space<vmem>>, vector<256x4xf32>
    tpu.vector_store %arg8[%c0_39, %c32], %62 {strides = array<i32>} : memref<256x36xf32, #tpu.memory_space<vmem>>, vector<256x4xf32>,
    %c0_40 = arith.constant 0 : index
    %c0_41 = arith.constant 0 : index
    %64 = vector.load %arg8[%c0_40, %c0_41] : memref<256x36xf32, #tpu.memory_space<vmem>>, vector<256x36xf32>
    %65 = arith.truncf %64 : vector<256x36xf32> to vector<256x36xbf16>
    %c0_42 = arith.constant 0 : index
    %c0_43 = arith.constant 0 : index
    %66 = vector.load %arg4[%c0_42, %c0_43] : memref<36x128xbf16, #tpu.memory_space<vmem>>, vector<36x128xbf16>
    %cst = arith.constant dense<0.000000e+00> : vector<256x128xf32>
    %67 = tpu.matmul %65, %66, %cst {dimension_numbers = #tpu.dot_dimension_numbers<[1], [0], [0], [1], [0, 0, 1, 1], [], []>} : vector<256x36xbf16>, vector<36x128xbf16>, vector<256x128xf32> -> vector<256x128xf32>
    %68 = arith.truncf %67 : vector<256x128xf32> to vector<256x128xbf16>
    %c0_44 = arith.constant 0 : index
    %c0_45 = arith.constant 0 : index
    %c0_46 = arith.constant 0 : index
    %69 = vector.load %arg5[%c0_44, %c0_45, %c0_46] : memref<1x256x128xbf16, #tpu.memory_space<vmem>>, vector<1x256x128xbf16>
    %70 = vector.shape_cast %69 : vector<1x256x128xbf16> to vector<256x128xbf16>
    %71 = vector.shape_cast %68 : vector<256x128xbf16> to vector<1x256x128xbf16>
    tpu.vector_store %arg5[%c0_44, %c0_45, %c0_46], %71 {strides = array<i32>} : memref<1x256x128xbf16, #tpu.memory_space<vmem>>, vector<1x256x128xbf16>,
    %c0_i32_47 = arith.constant 0 : i32
    %72 = arith.cmpi eq, %arg2, %c0_i32_47 : i32
    %73 = arith.extui %72 : i1 to i32
    %c0_i32_48 = arith.constant 0 : i32
    %74 = arith.cmpi ne, %73, %c0_i32_48 : i32
    scf.if %74 {
      %cst_63 = arith.constant 0.000000e+00 : f32
      %92 = vector.broadcast %cst_63 : f32 to vector<1x1x128xf32>
      %c0_64 = arith.constant 0 : index
      %c0_65 = arith.constant 0 : index
      %c0_66 = arith.constant 0 : index
      %93 = vector.load %arg6[%c0_64, %c0_65, %c0_66] : memref<1x1x128xf32, #tpu.memory_space<vmem>>, vector<1x1x128xf32>
      tpu.vector_store %arg6[%c0_64, %c0_65, %c0_66], %92 {strides = array<i32>} : memref<1x1x128xf32, #tpu.memory_space<vmem>>, vector<1x1x128xf32>,
      %cst_67 = arith.constant 0.000000e+00 : f32
      %94 = vector.broadcast %cst_67 : f32 to vector<1x1x128xf32>
      %c0_68 = arith.constant 0 : index
      %c0_69 = arith.constant 0 : index
      %c0_70 = arith.constant 0 : index
      %95 = vector.load %arg7[%c0_68, %c0_69, %c0_70] : memref<1x1x128xf32, #tpu.memory_space<vmem>>, vector<1x1x128xf32>
      tpu.vector_store %arg7[%c0_68, %c0_69, %c0_70], %94 {strides = array<i32>} : memref<1x1x128xf32, #tpu.memory_space<vmem>>, vector<1x1x128xf32>,
    } else {
    }
    %c0_49 = arith.constant 0 : index
    %c0_50 = arith.constant 0 : index
    %c0_51 = arith.constant 0 : index
    %75 = vector.load %arg6[%c0_49, %c0_50, %c0_51] : memref<1x1x128xf32, #tpu.memory_space<vmem>>, vector<1x1x128xf32>
    %76 = vector.shape_cast %75 : vector<1x1x128xf32> to vector<1x128xf32>
    %cst_52 = arith.constant dense<0.000000e+00> : vector<128xf32>
    %77 = vector.multi_reduction <add>, %67, %cst_52 [0] : vector<256x128xf32> to vector<128xf32>
    %78 = vector.shape_cast %77 : vector<128xf32> to vector<1x128xf32>
    %79 = arith.addf %76, %78 : vector<1x128xf32>
    %c0_53 = arith.constant 0 : index
    %c0_54 = arith.constant 0 : index
    %c0_55 = arith.constant 0 : index
    %80 = vector.load %arg6[%c0_53, %c0_54, %c0_55] : memref<1x1x128xf32, #tpu.memory_space<vmem>>, vector<1x1x128xf32>
    %81 = vector.shape_cast %80 : vector<1x1x128xf32> to vector<1x128xf32>
    %82 = vector.shape_cast %79 : vector<1x128xf32> to vector<1x1x128xf32>
    tpu.vector_store %arg6[%c0_53, %c0_54, %c0_55], %82 {strides = array<i32>} : memref<1x1x128xf32, #tpu.memory_space<vmem>>, vector<1x1x128xf32>,
    %c0_56 = arith.constant 0 : index
    %c0_57 = arith.constant 0 : index
    %c0_58 = arith.constant 0 : index
    %83 = vector.load %arg7[%c0_56, %c0_57, %c0_58] : memref<1x1x128xf32, #tpu.memory_space<vmem>>, vector<1x1x128xf32>
    %84 = vector.shape_cast %83 : vector<1x1x128xf32> to vector<1x128xf32>
    %85 = arith.mulf %67, %67 : vector<256x128xf32>
    %cst_59 = arith.constant dense<0.000000e+00> : vector<128xf32>
    %86 = vector.multi_reduction <add>, %85, %cst_59 [0] : vector<256x128xf32> to vector<128xf32>
    %87 = vector.shape_cast %86 : vector<128xf32> to vector<1x128xf32>
    %88 = arith.addf %84, %87 : vector<1x128xf32>
    %c0_60 = arith.constant 0 : index
    %c0_61 = arith.constant 0 : index
    %c0_62 = arith.constant 0 : index
    %89 = vector.load %arg7[%c0_60, %c0_61, %c0_62] : memref<1x1x128xf32, #tpu.memory_space<vmem>>, vector<1x1x128xf32>
    %90 = vector.shape_cast %89 : vector<1x1x128xf32> to vector<1x128xf32>
    %91 = vector.shape_cast %88 : vector<1x128xf32> to vector<1x1x128xf32>
    tpu.vector_store %arg7[%c0_60, %c0_61, %c0_62], %91 {strides = array<i32>} : memref<1x1x128xf32, #tpu.memory_space<vmem>>, vector<1x1x128xf32>,
    return
  }
  func.func @transform_0(%arg0: i32, %arg1: i32, %arg2: i32) -> (i32, i32, i32, i32) {
    %c0_i32 = arith.constant 0 : i32
    %c0_i32_0 = arith.constant 0 : i32
    %c0_i32_1 = arith.constant 0 : i32
    %c0_i32_2 = arith.constant 0 : i32
    return %arg0, %c0_i32, %c0_i32_0, %c0_i32_1 : i32, i32, i32, i32
  }
  func.func @transform_1(%arg0: i32, %arg1: i32, %arg2: i32) -> (i32, i32) {
    %c0_i32 = arith.constant 0 : i32
    %c0_i32_0 = arith.constant 0 : i32
    return %c0_i32, %arg1 : i32, i32
  }
  func.func @transform_2(%arg0: i32, %arg1: i32, %arg2: i32) -> (i32, i32, i32) {
    %c0_i32 = arith.constant 0 : i32
    return %arg0, %arg2, %arg1 : i32, i32, i32
  }
  func.func @transform_3(%arg0: i32, %arg1: i32, %arg2: i32) -> (i32, i32, i32) {
    %c0_i32 = arith.constant 0 : i32
    %c0_i32_0 = arith.constant 0 : i32
    return %arg0, %c0_i32, %arg1 : i32, i32, i32
  }
  func.func @transform_4(%arg0: i32, %arg1: i32, %arg2: i32) -> (i32, i32, i32) {
    %c0_i32 = arith.constant 0 : i32
    %c0_i32_0 = arith.constant 0 : i32
    return %arg0, %c0_i32, %arg1 : i32, i32, i32
  }
}

module attributes {stable_mosaic.version = 11 : i64} {
  func.func @_conv_stats_kernel(%arg0: i32, %arg1: i32, %arg2: i32, %arg3: memref<1x18x18x4xbf16, #tpu.memory_space<vmem>>, %arg4: memref<9x4x128xbf16, #tpu.memory_space<vmem>>, %arg5: memref<1x256x128xbf16, #tpu.memory_space<vmem>>, %arg6: memref<1x1x128xf32, #tpu.memory_space<vmem>>, %arg7: memref<1x1x128xf32, #tpu.memory_space<vmem>>) attributes {dimension_semantics = [#tpu.dimension_semantics<parallel>, #tpu.dimension_semantics<parallel>, #tpu.dimension_semantics<arbitrary>], iteration_bounds = array<i64: 2, 1, 1>, scalar_prefetch = 0 : i64, scratch_operands = 0 : i64, tpu.core_type = #tpu.core_type<tc>, window_params = [{transform_indices = @transform_0, window_bounds = array<i64: 1, 18, 18, 4>}, {transform_indices = @transform_1, window_bounds = array<i64: 9, 4, 128>}, {transform_indices = @transform_2, window_bounds = array<i64: 1, 256, 128>}, {transform_indices = @transform_3, window_bounds = array<i64: 1, 1, 128>}, {transform_indices = @transform_4, window_bounds = array<i64: 1, 1, 128>}]} {
    %c16_i32 = arith.constant 16 : i32
    %0 = arith.muli %arg2, %c16_i32 : i32
    %cst = arith.constant 0.000000e+00 : f32
    %1 = vector.broadcast %cst : f32 to vector<256x128xf32>
    %c0_i32 = arith.constant 0 : i32
    %2 = arith.addi %0, %c0_i32 : i32
    %c0 = arith.constant 0 : index
    %3 = arith.index_cast %2 : i32 to index
    %c0_0 = arith.constant 0 : index
    %c0_1 = arith.constant 0 : index
    %4 = vector.load %arg3[%c0, %3, %c0_0, %c0_1] : memref<1x18x18x4xbf16, #tpu.memory_space<vmem>>, vector<1x16x16x4xbf16>
    %5 = vector.shape_cast %4 : vector<1x16x16x4xbf16> to vector<16x16x4xbf16>
    %6 = vector.shape_cast %5 : vector<16x16x4xbf16> to vector<256x4xbf16>
    %c0_2 = arith.constant 0 : index
    %c0_3 = arith.constant 0 : index
    %c0_4 = arith.constant 0 : index
    %7 = vector.load %arg4[%c0_2, %c0_3, %c0_4] : memref<9x4x128xbf16, #tpu.memory_space<vmem>>, vector<1x4x128xbf16>
    %8 = vector.shape_cast %7 : vector<1x4x128xbf16> to vector<4x128xbf16>
    %cst_5 = arith.constant dense<0.000000e+00> : vector<256x128xf32>
    %9 = tpu.matmul %6, %8, %cst_5 {dimension_numbers = #tpu.dot_dimension_numbers<[1], [0], [0], [1], [0, 0, 1, 1], [], []>} : vector<256x4xbf16>, vector<4x128xbf16>, vector<256x128xf32> -> vector<256x128xf32>
    %10 = arith.addf %1, %9 : vector<256x128xf32>
    %c0_i32_6 = arith.constant 0 : i32
    %11 = arith.addi %0, %c0_i32_6 : i32
    %c0_7 = arith.constant 0 : index
    %12 = arith.index_cast %11 : i32 to index
    %c1 = arith.constant 1 : index
    %c0_8 = arith.constant 0 : index
    %13 = vector.load %arg3[%c0_7, %12, %c1, %c0_8] : memref<1x18x18x4xbf16, #tpu.memory_space<vmem>>, vector<1x16x16x4xbf16>
    %14 = vector.shape_cast %13 : vector<1x16x16x4xbf16> to vector<16x16x4xbf16>
    %15 = vector.shape_cast %14 : vector<16x16x4xbf16> to vector<256x4xbf16>
    %c1_9 = arith.constant 1 : index
    %c0_10 = arith.constant 0 : index
    %c0_11 = arith.constant 0 : index
    %16 = vector.load %arg4[%c1_9, %c0_10, %c0_11] : memref<9x4x128xbf16, #tpu.memory_space<vmem>>, vector<1x4x128xbf16>
    %17 = vector.shape_cast %16 : vector<1x4x128xbf16> to vector<4x128xbf16>
    %cst_12 = arith.constant dense<0.000000e+00> : vector<256x128xf32>
    %18 = tpu.matmul %15, %17, %cst_12 {dimension_numbers = #tpu.dot_dimension_numbers<[1], [0], [0], [1], [0, 0, 1, 1], [], []>} : vector<256x4xbf16>, vector<4x128xbf16>, vector<256x128xf32> -> vector<256x128xf32>
    %19 = arith.addf %10, %18 : vector<256x128xf32>
    %c0_i32_13 = arith.constant 0 : i32
    %20 = arith.addi %0, %c0_i32_13 : i32
    %c0_14 = arith.constant 0 : index
    %21 = arith.index_cast %20 : i32 to index
    %c2 = arith.constant 2 : index
    %c0_15 = arith.constant 0 : index
    %22 = vector.load %arg3[%c0_14, %21, %c2, %c0_15] : memref<1x18x18x4xbf16, #tpu.memory_space<vmem>>, vector<1x16x16x4xbf16>
    %23 = vector.shape_cast %22 : vector<1x16x16x4xbf16> to vector<16x16x4xbf16>
    %24 = vector.shape_cast %23 : vector<16x16x4xbf16> to vector<256x4xbf16>
    %c2_16 = arith.constant 2 : index
    %c0_17 = arith.constant 0 : index
    %c0_18 = arith.constant 0 : index
    %25 = vector.load %arg4[%c2_16, %c0_17, %c0_18] : memref<9x4x128xbf16, #tpu.memory_space<vmem>>, vector<1x4x128xbf16>
    %26 = vector.shape_cast %25 : vector<1x4x128xbf16> to vector<4x128xbf16>
    %cst_19 = arith.constant dense<0.000000e+00> : vector<256x128xf32>
    %27 = tpu.matmul %24, %26, %cst_19 {dimension_numbers = #tpu.dot_dimension_numbers<[1], [0], [0], [1], [0, 0, 1, 1], [], []>} : vector<256x4xbf16>, vector<4x128xbf16>, vector<256x128xf32> -> vector<256x128xf32>
    %28 = arith.addf %19, %27 : vector<256x128xf32>
    %c1_i32 = arith.constant 1 : i32
    %29 = arith.addi %0, %c1_i32 : i32
    %c0_20 = arith.constant 0 : index
    %30 = arith.index_cast %29 : i32 to index
    %c0_21 = arith.constant 0 : index
    %c0_22 = arith.constant 0 : index
    %31 = vector.load %arg3[%c0_20, %30, %c0_21, %c0_22] : memref<1x18x18x4xbf16, #tpu.memory_space<vmem>>, vector<1x16x16x4xbf16>
    %32 = vector.shape_cast %31 : vector<1x16x16x4xbf16> to vector<16x16x4xbf16>
    %33 = vector.shape_cast %32 : vector<16x16x4xbf16> to vector<256x4xbf16>
    %c3 = arith.constant 3 : index
    %c0_23 = arith.constant 0 : index
    %c0_24 = arith.constant 0 : index
    %34 = vector.load %arg4[%c3, %c0_23, %c0_24] : memref<9x4x128xbf16, #tpu.memory_space<vmem>>, vector<1x4x128xbf16>
    %35 = vector.shape_cast %34 : vector<1x4x128xbf16> to vector<4x128xbf16>
    %cst_25 = arith.constant dense<0.000000e+00> : vector<256x128xf32>
    %36 = tpu.matmul %33, %35, %cst_25 {dimension_numbers = #tpu.dot_dimension_numbers<[1], [0], [0], [1], [0, 0, 1, 1], [], []>} : vector<256x4xbf16>, vector<4x128xbf16>, vector<256x128xf32> -> vector<256x128xf32>
    %37 = arith.addf %28, %36 : vector<256x128xf32>
    %c1_i32_26 = arith.constant 1 : i32
    %38 = arith.addi %0, %c1_i32_26 : i32
    %c0_27 = arith.constant 0 : index
    %39 = arith.index_cast %38 : i32 to index
    %c1_28 = arith.constant 1 : index
    %c0_29 = arith.constant 0 : index
    %40 = vector.load %arg3[%c0_27, %39, %c1_28, %c0_29] : memref<1x18x18x4xbf16, #tpu.memory_space<vmem>>, vector<1x16x16x4xbf16>
    %41 = vector.shape_cast %40 : vector<1x16x16x4xbf16> to vector<16x16x4xbf16>
    %42 = vector.shape_cast %41 : vector<16x16x4xbf16> to vector<256x4xbf16>
    %c4 = arith.constant 4 : index
    %c0_30 = arith.constant 0 : index
    %c0_31 = arith.constant 0 : index
    %43 = vector.load %arg4[%c4, %c0_30, %c0_31] : memref<9x4x128xbf16, #tpu.memory_space<vmem>>, vector<1x4x128xbf16>
    %44 = vector.shape_cast %43 : vector<1x4x128xbf16> to vector<4x128xbf16>
    %cst_32 = arith.constant dense<0.000000e+00> : vector<256x128xf32>
    %45 = tpu.matmul %42, %44, %cst_32 {dimension_numbers = #tpu.dot_dimension_numbers<[1], [0], [0], [1], [0, 0, 1, 1], [], []>} : vector<256x4xbf16>, vector<4x128xbf16>, vector<256x128xf32> -> vector<256x128xf32>
    %46 = arith.addf %37, %45 : vector<256x128xf32>
    %c1_i32_33 = arith.constant 1 : i32
    %47 = arith.addi %0, %c1_i32_33 : i32
    %c0_34 = arith.constant 0 : index
    %48 = arith.index_cast %47 : i32 to index
    %c2_35 = arith.constant 2 : index
    %c0_36 = arith.constant 0 : index
    %49 = vector.load %arg3[%c0_34, %48, %c2_35, %c0_36] : memref<1x18x18x4xbf16, #tpu.memory_space<vmem>>, vector<1x16x16x4xbf16>
    %50 = vector.shape_cast %49 : vector<1x16x16x4xbf16> to vector<16x16x4xbf16>
    %51 = vector.shape_cast %50 : vector<16x16x4xbf16> to vector<256x4xbf16>
    %c5 = arith.constant 5 : index
    %c0_37 = arith.constant 0 : index
    %c0_38 = arith.constant 0 : index
    %52 = vector.load %arg4[%c5, %c0_37, %c0_38] : memref<9x4x128xbf16, #tpu.memory_space<vmem>>, vector<1x4x128xbf16>
    %53 = vector.shape_cast %52 : vector<1x4x128xbf16> to vector<4x128xbf16>
    %cst_39 = arith.constant dense<0.000000e+00> : vector<256x128xf32>
    %54 = tpu.matmul %51, %53, %cst_39 {dimension_numbers = #tpu.dot_dimension_numbers<[1], [0], [0], [1], [0, 0, 1, 1], [], []>} : vector<256x4xbf16>, vector<4x128xbf16>, vector<256x128xf32> -> vector<256x128xf32>
    %55 = arith.addf %46, %54 : vector<256x128xf32>
    %c2_i32 = arith.constant 2 : i32
    %56 = arith.addi %0, %c2_i32 : i32
    %c0_40 = arith.constant 0 : index
    %57 = arith.index_cast %56 : i32 to index
    %c0_41 = arith.constant 0 : index
    %c0_42 = arith.constant 0 : index
    %58 = vector.load %arg3[%c0_40, %57, %c0_41, %c0_42] : memref<1x18x18x4xbf16, #tpu.memory_space<vmem>>, vector<1x16x16x4xbf16>
    %59 = vector.shape_cast %58 : vector<1x16x16x4xbf16> to vector<16x16x4xbf16>
    %60 = vector.shape_cast %59 : vector<16x16x4xbf16> to vector<256x4xbf16>
    %c6 = arith.constant 6 : index
    %c0_43 = arith.constant 0 : index
    %c0_44 = arith.constant 0 : index
    %61 = vector.load %arg4[%c6, %c0_43, %c0_44] : memref<9x4x128xbf16, #tpu.memory_space<vmem>>, vector<1x4x128xbf16>
    %62 = vector.shape_cast %61 : vector<1x4x128xbf16> to vector<4x128xbf16>
    %cst_45 = arith.constant dense<0.000000e+00> : vector<256x128xf32>
    %63 = tpu.matmul %60, %62, %cst_45 {dimension_numbers = #tpu.dot_dimension_numbers<[1], [0], [0], [1], [0, 0, 1, 1], [], []>} : vector<256x4xbf16>, vector<4x128xbf16>, vector<256x128xf32> -> vector<256x128xf32>
    %64 = arith.addf %55, %63 : vector<256x128xf32>
    %c2_i32_46 = arith.constant 2 : i32
    %65 = arith.addi %0, %c2_i32_46 : i32
    %c0_47 = arith.constant 0 : index
    %66 = arith.index_cast %65 : i32 to index
    %c1_48 = arith.constant 1 : index
    %c0_49 = arith.constant 0 : index
    %67 = vector.load %arg3[%c0_47, %66, %c1_48, %c0_49] : memref<1x18x18x4xbf16, #tpu.memory_space<vmem>>, vector<1x16x16x4xbf16>
    %68 = vector.shape_cast %67 : vector<1x16x16x4xbf16> to vector<16x16x4xbf16>
    %69 = vector.shape_cast %68 : vector<16x16x4xbf16> to vector<256x4xbf16>
    %c7 = arith.constant 7 : index
    %c0_50 = arith.constant 0 : index
    %c0_51 = arith.constant 0 : index
    %70 = vector.load %arg4[%c7, %c0_50, %c0_51] : memref<9x4x128xbf16, #tpu.memory_space<vmem>>, vector<1x4x128xbf16>
    %71 = vector.shape_cast %70 : vector<1x4x128xbf16> to vector<4x128xbf16>
    %cst_52 = arith.constant dense<0.000000e+00> : vector<256x128xf32>
    %72 = tpu.matmul %69, %71, %cst_52 {dimension_numbers = #tpu.dot_dimension_numbers<[1], [0], [0], [1], [0, 0, 1, 1], [], []>} : vector<256x4xbf16>, vector<4x128xbf16>, vector<256x128xf32> -> vector<256x128xf32>
    %73 = arith.addf %64, %72 : vector<256x128xf32>
    %c2_i32_53 = arith.constant 2 : i32
    %74 = arith.addi %0, %c2_i32_53 : i32
    %c0_54 = arith.constant 0 : index
    %75 = arith.index_cast %74 : i32 to index
    %c2_55 = arith.constant 2 : index
    %c0_56 = arith.constant 0 : index
    %76 = vector.load %arg3[%c0_54, %75, %c2_55, %c0_56] : memref<1x18x18x4xbf16, #tpu.memory_space<vmem>>, vector<1x16x16x4xbf16>
    %77 = vector.shape_cast %76 : vector<1x16x16x4xbf16> to vector<16x16x4xbf16>
    %78 = vector.shape_cast %77 : vector<16x16x4xbf16> to vector<256x4xbf16>
    %c8 = arith.constant 8 : index
    %c0_57 = arith.constant 0 : index
    %c0_58 = arith.constant 0 : index
    %79 = vector.load %arg4[%c8, %c0_57, %c0_58] : memref<9x4x128xbf16, #tpu.memory_space<vmem>>, vector<1x4x128xbf16>
    %80 = vector.shape_cast %79 : vector<1x4x128xbf16> to vector<4x128xbf16>
    %cst_59 = arith.constant dense<0.000000e+00> : vector<256x128xf32>
    %81 = tpu.matmul %78, %80, %cst_59 {dimension_numbers = #tpu.dot_dimension_numbers<[1], [0], [0], [1], [0, 0, 1, 1], [], []>} : vector<256x4xbf16>, vector<4x128xbf16>, vector<256x128xf32> -> vector<256x128xf32>
    %82 = arith.addf %73, %81 : vector<256x128xf32>
    %83 = arith.truncf %82 : vector<256x128xf32> to vector<256x128xbf16>
    %c0_60 = arith.constant 0 : index
    %c0_61 = arith.constant 0 : index
    %c0_62 = arith.constant 0 : index
    %84 = vector.load %arg5[%c0_60, %c0_61, %c0_62] : memref<1x256x128xbf16, #tpu.memory_space<vmem>>, vector<1x256x128xbf16>
    %85 = vector.shape_cast %84 : vector<1x256x128xbf16> to vector<256x128xbf16>
    %86 = vector.shape_cast %83 : vector<256x128xbf16> to vector<1x256x128xbf16>
    tpu.vector_store %arg5[%c0_60, %c0_61, %c0_62], %86 {strides = array<i32>} : memref<1x256x128xbf16, #tpu.memory_space<vmem>>, vector<1x256x128xbf16>,
    %c0_i32_63 = arith.constant 0 : i32
    %87 = arith.cmpi eq, %arg2, %c0_i32_63 : i32
    %88 = arith.extui %87 : i1 to i32
    %c0_i32_64 = arith.constant 0 : i32
    %89 = arith.cmpi ne, %88, %c0_i32_64 : i32
    scf.if %89 {
      %cst_79 = arith.constant 0.000000e+00 : f32
      %107 = vector.broadcast %cst_79 : f32 to vector<1x1x128xf32>
      %c0_80 = arith.constant 0 : index
      %c0_81 = arith.constant 0 : index
      %c0_82 = arith.constant 0 : index
      %108 = vector.load %arg6[%c0_80, %c0_81, %c0_82] : memref<1x1x128xf32, #tpu.memory_space<vmem>>, vector<1x1x128xf32>
      tpu.vector_store %arg6[%c0_80, %c0_81, %c0_82], %107 {strides = array<i32>} : memref<1x1x128xf32, #tpu.memory_space<vmem>>, vector<1x1x128xf32>,
      %cst_83 = arith.constant 0.000000e+00 : f32
      %109 = vector.broadcast %cst_83 : f32 to vector<1x1x128xf32>
      %c0_84 = arith.constant 0 : index
      %c0_85 = arith.constant 0 : index
      %c0_86 = arith.constant 0 : index
      %110 = vector.load %arg7[%c0_84, %c0_85, %c0_86] : memref<1x1x128xf32, #tpu.memory_space<vmem>>, vector<1x1x128xf32>
      tpu.vector_store %arg7[%c0_84, %c0_85, %c0_86], %109 {strides = array<i32>} : memref<1x1x128xf32, #tpu.memory_space<vmem>>, vector<1x1x128xf32>,
    } else {
    }
    %c0_65 = arith.constant 0 : index
    %c0_66 = arith.constant 0 : index
    %c0_67 = arith.constant 0 : index
    %90 = vector.load %arg6[%c0_65, %c0_66, %c0_67] : memref<1x1x128xf32, #tpu.memory_space<vmem>>, vector<1x1x128xf32>
    %91 = vector.shape_cast %90 : vector<1x1x128xf32> to vector<1x128xf32>
    %cst_68 = arith.constant dense<0.000000e+00> : vector<128xf32>
    %92 = vector.multi_reduction <add>, %82, %cst_68 [0] : vector<256x128xf32> to vector<128xf32>
    %93 = vector.shape_cast %92 : vector<128xf32> to vector<1x128xf32>
    %94 = arith.addf %91, %93 : vector<1x128xf32>
    %c0_69 = arith.constant 0 : index
    %c0_70 = arith.constant 0 : index
    %c0_71 = arith.constant 0 : index
    %95 = vector.load %arg6[%c0_69, %c0_70, %c0_71] : memref<1x1x128xf32, #tpu.memory_space<vmem>>, vector<1x1x128xf32>
    %96 = vector.shape_cast %95 : vector<1x1x128xf32> to vector<1x128xf32>
    %97 = vector.shape_cast %94 : vector<1x128xf32> to vector<1x1x128xf32>
    tpu.vector_store %arg6[%c0_69, %c0_70, %c0_71], %97 {strides = array<i32>} : memref<1x1x128xf32, #tpu.memory_space<vmem>>, vector<1x1x128xf32>,
    %c0_72 = arith.constant 0 : index
    %c0_73 = arith.constant 0 : index
    %c0_74 = arith.constant 0 : index
    %98 = vector.load %arg7[%c0_72, %c0_73, %c0_74] : memref<1x1x128xf32, #tpu.memory_space<vmem>>, vector<1x1x128xf32>
    %99 = vector.shape_cast %98 : vector<1x1x128xf32> to vector<1x128xf32>
    %100 = arith.mulf %82, %82 : vector<256x128xf32>
    %cst_75 = arith.constant dense<0.000000e+00> : vector<128xf32>
    %101 = vector.multi_reduction <add>, %100, %cst_75 [0] : vector<256x128xf32> to vector<128xf32>
    %102 = vector.shape_cast %101 : vector<128xf32> to vector<1x128xf32>
    %103 = arith.addf %99, %102 : vector<1x128xf32>
    %c0_76 = arith.constant 0 : index
    %c0_77 = arith.constant 0 : index
    %c0_78 = arith.constant 0 : index
    %104 = vector.load %arg7[%c0_76, %c0_77, %c0_78] : memref<1x1x128xf32, #tpu.memory_space<vmem>>, vector<1x1x128xf32>
    %105 = vector.shape_cast %104 : vector<1x1x128xf32> to vector<1x128xf32>
    %106 = vector.shape_cast %103 : vector<1x128xf32> to vector<1x1x128xf32>
    tpu.vector_store %arg7[%c0_76, %c0_77, %c0_78], %106 {strides = array<i32>} : memref<1x1x128xf32, #tpu.memory_space<vmem>>, vector<1x1x128xf32>,
    return
  }
  func.func @transform_0(%arg0: i32, %arg1: i32, %arg2: i32) -> (i32, i32, i32, i32) {
    %c0_i32 = arith.constant 0 : i32
    %c0_i32_0 = arith.constant 0 : i32
    %c0_i32_1 = arith.constant 0 : i32
    %c0_i32_2 = arith.constant 0 : i32
    return %arg0, %c0_i32, %c0_i32_0, %c0_i32_1 : i32, i32, i32, i32
  }
  func.func @transform_1(%arg0: i32, %arg1: i32, %arg2: i32) -> (i32, i32, i32) {
    %c0_i32 = arith.constant 0 : i32
    %c0_i32_0 = arith.constant 0 : i32
    %c0_i32_1 = arith.constant 0 : i32
    return %c0_i32, %c0_i32_0, %arg1 : i32, i32, i32
  }
  func.func @transform_2(%arg0: i32, %arg1: i32, %arg2: i32) -> (i32, i32, i32) {
    %c0_i32 = arith.constant 0 : i32
    return %arg0, %arg2, %arg1 : i32, i32, i32
  }
  func.func @transform_3(%arg0: i32, %arg1: i32, %arg2: i32) -> (i32, i32, i32) {
    %c0_i32 = arith.constant 0 : i32
    %c0_i32_0 = arith.constant 0 : i32
    return %arg0, %c0_i32, %arg1 : i32, i32, i32
  }
  func.func @transform_4(%arg0: i32, %arg1: i32, %arg2: i32) -> (i32, i32, i32) {
    %c0_i32 = arith.constant 0 : i32
    %c0_i32_0 = arith.constant 0 : i32
    return %arg0, %c0_i32, %arg1 : i32, i32, i32
  }
}

</mosaic_0001>

<llo_original>
// kernel: tpu_custom_call.1
$region0: #{tpu_custom_call.1}
  #allocation0 [shape = 'u32[]', space=smem, size = 0x4, offset = 0x4, fixed_abs, tag = 'smem constant byte address 0x4 - core index']
  #allocation1 [shape = 'u32[144,128]{1,0:T(1,128)}', space=vmem, size = 0x12000, scoped, tag = 'internal scratch']
  #allocation2 [shape = 'f32[256,36]{1,0:T(8,128)}', space=vmem, size = 0x20000, scoped, tag = 'scratch operand']
  %s0 = inlined_call_operand.vmem [shape: bf16[2,18,18,4], index: 0, kind: input, shape index: {}]
  %s1 = inlined_call_operand.vmem [shape: bf16[36,128], index: 1, kind: input, shape index: {}]
  %s2 = inlined_call_operand.hbm [shape: bf16[2,256,128], index: 2, kind: output, shape index: {0}]
  %s3 = inlined_call_operand.hbm [shape: f32[2,1,128], index: 3, kind: output, shape index: {1}]
  %s4 = inlined_call_operand.hbm [shape: f32[2,1,128], index: 4, kind: output, shape index: {2}]
  %5 = xla_tuple %s2, %s3, %s4
  %s6 = sld [smem:[#allocation0]]
  $region61: #{tpu_custom_call.1} parent=0
    _
  %s8 = ssub.s32 1, %s6
  %s9 = scalar_select 0, %s8, %s6
  $region1: #{tpu_custom_call.1} parent=0
    #allocation3 [shape = 'u8[131072]{0}', space=vmem, size = 0x20000, scoped, tag = 'output window, operand 0']
    #allocation4 [shape = 's32[2]{0}', space=sflag, size = 0x8, scoped, tag = 'scoped memory for tpu_custom_call.1']
    #allocation5 [shape = 'u8[1024]{0}', space=vmem, size = 0x400, scoped, tag = 'output window, operand 1']
    #allocation6 [shape = 's32[2]{0}', space=sflag, size = 0x8, scoped, tag = 'scoped memory for tpu_custom_call.1']
    #allocation7 [shape = 'u8[1024]{0}', space=vmem, size = 0x400, scoped, tag = 'output window, operand 2']
    %10 = vsyncpa [#allocation4], 0
    %s11 = scalar_lea.sflag [#allocation4], 1
    %12 = vsyncpa %s11, 0
    %13 = vsyncpa [#allocation6], 0
    %s14 = scalar_lea.sflag [#allocation6], 1
    %15 = vsyncpa %s14, 0
    loop: start=0, step=1, limit=4
    $region2: #{tpu_custom_call.1} parent=1 // loop_pre_header
      _
    $region3: #{tpu_custom_call.1} parent=1 // loop_header
      %s17 = sphi 0, %s21
      %p18 = scmp.ge.s32.totalorder %s17, 4
      %s24 = sphi 0, %s43
      %s25 = sphi 0, %s39
      %s26 = sphi 0, %s35
      %s27 = sphi 0, %s24
      %s28 = sphi 0, %s25
      %s29 = sphi 0, %s26
      %s30 = sphi 0, %s27
      %s31 = sphi 0, %s28
      %s32 = sphi 0, %s29
      %s46 = sphi 0, %s48
      %s49 = sphi 0, %s46
      %s50 = sphi 0, %s49
      %s66 = sphi 0, %s50
      %s72 = sphi 0, %s74
      %s75 = sphi 0, %s72
      %s76 = sphi 0, %s75
      %s92 = sphi 0, %s76
      %s102 = sphi 0, %s104
      %s105 = sphi 0, %s102
      %s106 = sphi 0, %s105
      %s122 = sphi 0, %s106
      %s130 = sphi 0, %s132
      %s133 = sphi 0, %s130
      %s134 = sphi 0, %s133
      %s150 = sphi 0, %s134
      %s158 = sphi 0, %s160
      %s161 = sphi 0, %s158
      %s162 = sphi 0, %s161
      %s178 = sphi 0, %s162
    $region4: #{tpu_custom_call.1} parent=1 // loop_header_branch
      %20 = sbr.rel (%p18) target = $region8
    $region5: #{tpu_custom_call.1} parent=1 // loop_body
      %s22 = ssub.s32 %s17, 1
      %s23 = ssub.s32 %s17, 2
      %s33 = sadd.s32 1, %s26
      %p34 = scmp.ge.s32.totalorder %s33, 1
      %s35 = scalar_select %p34, 0, %s33
      %s36 = sadd.s32 1, %s25
      %s37 = scalar_select %p34, %s36, %s25
      %p38 = scmp.ge.s32.totalorder %s37, 1
      %s39 = scalar_select %p38, 0, %s37
      %s40 = sadd.s32 1, %s24
      %s41 = scalar_select %p38, %s40, %s24
      %p42 = scmp.ge.s32.totalorder %s41, 2
      %s43 = scalar_select %p42, 0, %s41
      %s44 = ssub.s32 %s24, %s43
      %p45 = scmp.eq.s32.totalorder %s44, 0
      %s47 = sadd.s32 %s46, 1
      %s48 = scalar_select %p45, %s46, %s47
      %p51 = pneg %p45
      %p52 = scmp.eq.s32.totalorder %s17, 1
      %p53 = por %p51, %p52
      %p54 = scmp.ne.s32.totalorder %s46, %s49
      %p55 = scmp.eq.s32.totalorder %s17, 0
      %p56 = por %p54, %p55
      %p57 = scmp.ne.s32.totalorder %s46, %s49
      %p58 = scmp.eq.s32.totalorder %s22, 1
      %p59 = por %p57, %p58
      %p60 = scmp.ne.s32.totalorder %s49, %s50
      %p61 = scmp.eq.s32.totalorder %s22, 0
      %p62 = por %p60, %p61
      %p63 = scmp.ne.s32.totalorder %s49, %s50
      %p64 = scmp.eq.s32.totalorder %s23, 1
      %p65 = por %p63, %p64
      %p67 = scmp.ne.s32.totalorder %s50, %s66
      %p68 = scmp.eq.s32.totalorder %s23, 0
      %p69 = por %p67, %p68
      %s70 = ssub.s32 %s25, %s39
      %p71 = scmp.eq.s32.totalorder %s70, 0
      %s73 = sadd.s32 %s72, 1
      %s74 = scalar_select %p71, %s72, %s73
      %p77 = pneg %p71
      %p78 = scmp.eq.s32.totalorder %s17, 1
      %p79 = por %p77, %p78
      %p80 = scmp.ne.s32.totalorder %s72, %s75
      %p81 = scmp.eq.s32.totalorder %s17, 0
      %p82 = por %p80, %p81
      %p83 = scmp.ne.s32.totalorder %s72, %s75
      %p84 = scmp.eq.s32.totalorder %s22, 1
      %p85 = por %p83, %p84
      %p86 = scmp.ne.s32.totalorder %s75, %s76
      %p87 = scmp.eq.s32.totalorder %s22, 0
      %p88 = por %p86, %p87
      %p89 = scmp.ne.s32.totalorder %s75, %s76
      %p90 = scmp.eq.s32.totalorder %s23, 1
      %p91 = por %p89, %p90
      %p93 = scmp.ne.s32.totalorder %s76, %s92
      %p94 = scmp.eq.s32.totalorder %s23, 0
      %p95 = por %p93, %p94
      %s96 = ssub.s32 %s24, %s43
      %s97 = ssub.s32 %s26, %s35
      %s98 = sor.u32 %s96, %s97
      %s99 = ssub.s32 %s25, %s39
      %s100 = sor.u32 %s98, %s99
      %p101 = scmp.eq.s32.totalorder %s100, 0
      %s103 = sadd.s32 %s102, 1
      %s104 = scalar_select %p101, %s102, %s103
      %p107 = pneg %p101
      %p108 = scmp.eq.s32.totalorder %s17, 1
      %p109 = por %p107, %p108
      %p110 = scmp.ne.s32.totalorder %s102, %s105
      %p111 = scmp.eq.s32.totalorder %s17, 0
      %p112 = por %p110, %p111
      %p113 = scmp.ne.s32.totalorder %s102, %s105
      %p114 = scmp.eq.s32.totalorder %s22, 1
      %p115 = por %p113, %p114
      %p116 = scmp.ne.s32.totalorder %s105, %s106
      %p117 = scmp.eq.s32.totalorder %s22, 0
      %p118 = por %p116, %p117
      %p119 = scmp.ne.s32.totalorder %s105, %s106
      %p120 = scmp.eq.s32.totalorder %s23, 1
      %p121 = por %p119, %p120
      %p123 = scmp.ne.s32.totalorder %s106, %s122
      %p124 = scmp.eq.s32.totalorder %s23, 0
      %p125 = por %p123, %p124
      %s126 = ssub.s32 %s24, %s43
      %s127 = ssub.s32 %s25, %s39
      %s128 = sor.u32 %s126, %s127
      %p129 = scmp.eq.s32.totalorder %s128, 0
      %s131 = sadd.s32 %s130, 1
      %s132 = scalar_select %p129, %s130, %s131
      %p135 = pneg %p129
      %p136 = scmp.eq.s32.totalorder %s17, 1
      %p137 = por %p135, %p136
      %p138 = scmp.ne.s32.totalorder %s130, %s133
      %p139 = scmp.eq.s32.totalorder %s17, 0
      %p140 = por %p138, %p139
      %p141 = scmp.ne.s32.totalorder %s130, %s133
      %p142 = scmp.eq.s32.totalorder %s22, 1
      %p143 = por %p141, %p142
      %p144 = scmp.ne.s32.totalorder %s133, %s134
      %p145 = scmp.eq.s32.totalorder %s22, 0
      %p146 = por %p144, %p145
      %p147 = scmp.ne.s32.totalorder %s133, %s134
      %p148 = scmp.eq.s32.totalorder %s23, 1
      %p149 = por %p147, %p148
      %p151 = scmp.ne.s32.totalorder %s134, %s150
      %p152 = scmp.eq.s32.totalorder %s23, 0
      %p153 = por %p151, %p152
      %s154 = ssub.s32 %s24, %s43
      %s155 = ssub.s32 %s25, %s39
      %s156 = sor.u32 %s154, %s155
      %p157 = scmp.eq.s32.totalorder %s156, 0
      %s159 = sadd.s32 %s158, 1
      %s160 = scalar_select %p157, %s158, %s159
      %p163 = pneg %p157
      %p164 = scmp.eq.s32.totalorder %s17, 1
      %p165 = por %p163, %p164
      %p166 = scmp.ne.s32.totalorder %s158, %s161
      %p167 = scmp.eq.s32.totalorder %s17, 0
      %p168 = por %p166, %p167
      %p169 = scmp.ne.s32.totalorder %s158, %s161
      %p170 = scmp.eq.s32.totalorder %s22, 1
      %p171 = por %p169, %p170
      %p172 = scmp.ne.s32.totalorder %s161, %s162
      %p173 = scmp.eq.s32.totalorder %s22, 0
      %p174 = por %p172, %p173
      %p175 = scmp.ne.s32.totalorder %s161, %s162
      %p176 = scmp.eq.s32.totalorder %s23, 1
      %p177 = por %p175, %p176
      %p179 = scmp.ne.s32.totalorder %s162, %s178
      %p180 = scmp.eq.s32.totalorder %s23, 0
      %p181 = por %p179, %p180
      %p182 = scmp.le.s32.totalorder 1, %s17
      %p183 = scmp.lt.s32.totalorder %s17, 3
      %p184 = pnand %p182, %p183
      %p185 = pneg %p184
      // Predicated region
      $region9: #{tpu_custom_call.1} parent=5 // pred_check
        _
      $region10: #{tpu_custom_call.1} parent=5 // pred_check_branch
        %187 = sbr.rel (%p184) target = $region12
      $region11: #{tpu_custom_call.1} parent=5 // pred_region
        %s188 = ssub.s32 %s17, 1
        // Predicated region
        $region13: #{tpu_custom_call.1} parent=11 // pred_check
          %p189 = pneg %p88
        $region14: #{tpu_custom_call.1} parent=11 // pred_check_branch
          %191 = sbr.rel (%p189) target = $region16
        $region15: #{tpu_custom_call.1} parent=11 // pred_region
          %p192 = scmp.lt.s32.totalorder %s28, 0
          %s193 = scalar_select %p192, %s28, 0
          %s194 = smul.addr %s193, 4
          %s195 = scalar_lea.vmem %s1, %s194
        $region16: #{tpu_custom_call.1} parent=11 // pred_fallthru
          _
      $region12: #{tpu_custom_call.1} parent=5 // pred_fallthru
        _
      %p196 = scmp.lt.s32.totalorder %s17, 2
      // Predicated region
      $region17: #{tpu_custom_call.1} parent=5 // pred_check
        %p197 = pneg %p196
      $region18: #{tpu_custom_call.1} parent=5 // pred_check_branch
        %199 = sbr.rel (%p197) target = $region20
      $region19: #{tpu_custom_call.1} parent=5 // pred_region
        // Predicated region
        $region21: #{tpu_custom_call.1} parent=19 // pred_check
          %p200 = pneg %p56
        $region22: #{tpu_custom_call.1} parent=19 // pred_check_branch
          %202 = sbr.rel (%p200) target = $region24
        $region23: #{tpu_custom_call.1} parent=19 // pred_region
          %p203 = scmp.lt.s32.totalorder %s24, 1
          %s204 = scalar_select %p203, %s24, 1
          %s205 = smul.addr %s204, 54
          %s206 = smul.addr %s205, 4
          %s207 = scalar_lea.vmem %s0, %s206
        $region24: #{tpu_custom_call.1} parent=19 // pred_fallthru
          _
      $region20: #{tpu_custom_call.1} parent=5 // pred_fallthru
        _
      %p208 = scmp.le.s32.totalorder 1, %s17
      %p209 = scmp.lt.s32.totalorder %s17, 3
      %p210 = pnand %p208, %p209
      %p211 = pneg %p210
      // Predicated region
      $region25: #{tpu_custom_call.1} parent=5 // pred_check
        _
      $region26: #{tpu_custom_call.1} parent=5 // pred_check_branch
        %213 = sbr.rel (%p210) target = $region28
      $region27: #{tpu_custom_call.1} parent=5 // pred_region
        %s214 = ssub.s32 %s17, 1
        %p215 = scmp.lt.s32.totalorder %s27, 1
        %s216 = scalar_select %p215, %s27, 1
        %s217 = smul.addr %s216, 54
        %s218 = smul.addr %s217, 4
        %s219 = scalar_lea.vmem %s0, %s218
        %p220 = pneg %p62
        %p221 = pneg %p59
        %p222 = scmp.lt.s32.totalorder %s28, 0
        %s223 = scalar_select %p222, %s28, 0
        %s224 = smul.addr %s223, 4
        %s225 = scalar_lea.vmem %s1, %s224
        %p226 = pneg %p88
        %p227 = pneg %p85
        %p228 = pneg %p118
        %p229 = pneg %p115
        %s230 = sand.u32 %s105, 1
        %s231 = scalar_lea.sflag [#allocation4], %s230
        %s232 = sand.u32 %s105, 1
        %s233 = smul.addr %s232, 128
        %s234 = scalar_lea.vmem [#allocation3], %s233
        %p235 = pneg %p146
        %p236 = pneg %p143
        %s237 = sand.u32 %s22, 1
        %s238 = scalar_lea.sflag [#allocation6], %s237
        %s239 = sand.u32 %s133, 1
        %s240 = scalar_lea.vmem [#allocation5], %s239
        %p241 = pneg %p174
        %p242 = pneg %p171
        %s243 = sand.u32 %s22, 1
        %s244 = scalar_lea.sflag [#allocation6], %s243
        %s245 = sand.u32 %s161, 1
        %s246 = scalar_lea.vmem [#allocation7], %s245
        %p247 = scmp.lt.s32.totalorder %s27, 1
        %s248 = scalar_select %p247, %s27, 1
        %s249 = smul.addr %s248, 54
        %s250 = smul.addr %s249, 4
        %s251 = scalar_lea.vmem %s0, %s250
        %p252 = scmp.lt.s32.totalorder %s28, 0
        %s253 = scalar_select %p252, %s28, 0
        %s254 = smul.addr %s253, 4
        %s255 = scalar_lea.vmem %s1, %s254
        %s256 = smul.u32 32, %s29
        %s258 = smul.u32 %s29, 16
        %s259 = smul.u32 %s258, 3
        %s260 = smul.addr %s259, 4
        %s261 = scalar_lea.vmem %s251, %s260
        %v262 = vld [vmem:[%s261] sm:$0xf]
        %v263 = vld [vmem:[%s261 + $0x4] sm:$0xf]
        %v264 = vld [vmem:[%s261 + $0xc] sm:$0xf]
        %v265 = vld [vmem:[%s261 + $0x10] sm:$0xf]
        %v266 = vld [vmem:[%s261 + $0x18] sm:$0xf]
        %v267 = vld [vmem:[%s261 + $0x1c] sm:$0xf]
        %v268 = vld [vmem:[%s261 + $0x24] sm:$0xf]
        %v269 = vld [vmem:[%s261 + $0x28] sm:$0xf]
        %v270 = vld [vmem:[%s261 + $0x30] sm:$0xf]
        %v271 = vld [vmem:[%s261 + $0x34] sm:$0xf]
        %v272 = vld [vmem:[%s261 + $0x3c] sm:$0xf]
        %v273 = vld [vmem:[%s261 + $0x40] sm:$0xf]
        %v274 = vld [vmem:[%s261 + $0x48] sm:$0xf]
        %v275 = vld [vmem:[%s261 + $0x4c] sm:$0xf]
        %v276 = vld [vmem:[%s261 + $0x54] sm:$0xf]
        %v277 = vld [vmem:[%s261 + $0x58] sm:$0xf]
        %v278 = vld [vmem:[%s261 + $0x60] sm:$0xf]
        %v279 = vld [vmem:[%s261 + $0x64] sm:$0xf]
        %v280 = vld [vmem:[%s261 + $0x6c] sm:$0xf]
        %v281 = vld [vmem:[%s261 + $0x70] sm:$0xf]
        %v282 = vld [vmem:[%s261 + $0x78] sm:$0xf]
        %v283 = vld [vmem:[%s261 + $0x7c] sm:$0xf]
        %v284 = vld [vmem:[%s261 + $0x84] sm:$0xf]
        %v285 = vld [vmem:[%s261 + $0x88] sm:$0xf]
        %v286 = vld [vmem:[%s261 + $0x90] sm:$0xf]
        %v287 = vld [vmem:[%s261 + $0x94] sm:$0xf]
        %v288 = vld [vmem:[%s261 + $0x9c] sm:$0xf]
        %v289 = vld [vmem:[%s261 + $0xa0] sm:$0xf]
        %v290 = vld [vmem:[%s261 + $0xa8] sm:$0xf]
        %v291 = vld [vmem:[%s261 + $0xac] sm:$0xf]
        %v292 = vld [vmem:[%s261 + $0xb4] sm:$0xf]
        %v293 = vld [vmem:[%s261 + $0xb8] sm:$0xf]
        %v294 = vunpack.c.l.bf16 %v262
        %v295 = vunpack.c.l.bf16 %v263
        %v296 = vunpack.c.l.bf16 %v264
        %v297 = vunpack.c.l.bf16 %v265
        %v298 = vunpack.c.l.bf16 %v266
        %v299 = vunpack.c.l.bf16 %v267
        %v300 = vunpack.c.l.bf16 %v268
        %v301 = vunpack.c.l.bf16 %v269
        %v302 = vunpack.c.l.bf16 %v270
        %v303 = vunpack.c.l.bf16 %v271
        %v304 = vunpack.c.l.bf16 %v272
        %v305 = vunpack.c.l.bf16 %v273
        %v306 = vunpack.c.l.bf16 %v274
        %v307 = vunpack.c.l.bf16 %v275
        %v308 = vunpack.c.l.bf16 %v276
        %v309 = vunpack.c.l.bf16 %v277
        %v310 = vunpack.c.l.bf16 %v278
        %v311 = vunpack.c.l.bf16 %v279
        %v312 = vunpack.c.l.bf16 %v280
        %v313 = vunpack.c.l.bf16 %v281
        %v314 = vunpack.c.l.bf16 %v282
        %v315 = vunpack.c.l.bf16 %v283
        %v316 = vunpack.c.l.bf16 %v284
        %v317 = vunpack.c.l.bf16 %v285
        %v318 = vunpack.c.l.bf16 %v286
        %v319 = vunpack.c.l.bf16 %v287
        %v320 = vunpack.c.l.bf16 %v288
        %v321 = vunpack.c.l.bf16 %v289
        %v322 = vunpack.c.l.bf16 %v290
        %v323 = vunpack.c.l.bf16 %v291
        %v324 = vunpack.c.l.bf16 %v292
        %v325 = vunpack.c.l.bf16 %v293
        %vm326 = vcmask 31744
        %327 = vst.msk [vmem:[#allocation2] sm:$0xff] %vm326, %v294
        %328 = vst.msk [vmem:[#allocation2 + $0x8] sm:$0xff] %vm326, %v295
        %329 = vst.msk [vmem:[#allocation2 + $0x10] sm:$0xff] %vm326, %v296
        %330 = vst.msk [vmem:[#allocation2 + $0x18] sm:$0xff] %vm326, %v297
        %331 = vst.msk [vmem:[#allocation2 + $0x20] sm:$0xff] %vm326, %v298
        %332 = vst.msk [vmem:[#allocation2 + $0x28] sm:$0xff] %vm326, %v299
        %333 = vst.msk [vmem:[#allocation2 + $0x30] sm:$0xff] %vm326, %v300
        %334 = vst.msk [vmem:[#allocation2 + $0x38] sm:$0xff] %vm326, %v301
        %335 = vst.msk [vmem:[#allocation2 + $0x40] sm:$0xff] %vm326, %v302
        %336 = vst.msk [vmem:[#allocation2 + $0x48] sm:$0xff] %vm326, %v303
        %337 = vst.msk [vmem:[#allocation2 + $0x50] sm:$0xff] %vm326, %v304
        %338 = vst.msk [vmem:[#allocation2 + $0x58] sm:$0xff] %vm326, %v305
        %339 = vst.msk [vmem:[#allocation2 + $0x60] sm:$0xff] %vm326, %v306
        %340 = vst.msk [vmem:[#allocation2 + $0x68] sm:$0xff] %vm326, %v307
        %341 = vst.msk [vmem:[#allocation2 + $0x70] sm:$0xff] %vm326, %v308
        %342 = vst.msk [vmem:[#allocation2 + $0x78] sm:$0xff] %vm326, %v309
        %343 = vst.msk [vmem:[#allocation2 + $0x80] sm:$0xff] %vm326, %v310
        %344 = vst.msk [vmem:[#allocation2 + $0x88] sm:$0xff] %vm326, %v311
        %345 = vst.msk [vmem:[#allocation2 + $0x90] sm:$0xff] %vm326, %v312
        %346 = vst.msk [vmem:[#allocation2 + $0x98] sm:$0xff] %vm326, %v313
        %347 = vst.msk [vmem:[#allocation2 + $0xa0] sm:$0xff] %vm326, %v314
        %348 = vst.msk [vmem:[#allocation2 + $0xa8] sm:$0xff] %vm326, %v315
        %349 = vst.msk [vmem:[#allocation2 + $0xb0] sm:$0xff] %vm326, %v316
        %350 = vst.msk [vmem:[#allocation2 + $0xb8] sm:$0xff] %vm326, %v317
        %351 = vst.msk [vmem:[#allocation2 + $0xc0] sm:$0xff] %vm326, %v318
        %352 = vst.msk [vmem:[#allocation2 + $0xc8] sm:$0xff] %vm326, %v319
        %353 = vst.msk [vmem:[#allocation2 + $0xd0] sm:$0xff] %vm326, %v320
        %354 = vst.msk [vmem:[#allocation2 + $0xd8] sm:$0xff] %vm326, %v321
        %355 = vst.msk [vmem:[#allocation2 + $0xe0] sm:$0xff] %vm326, %v322
        %356 = vst.msk [vmem:[#allocation2 + $0xe8] sm:$0xff] %vm326, %v323
        %357 = vst.msk [vmem:[#allocation2 + $0xf0] sm:$0xff] %vm326, %v324
        %358 = vst.msk [vmem:[#allocation2 + $0xf8] sm:$0xff] %vm326, %v325
        %v359 = vld [vmem:[%s261] sm:$0xf]
        %v360 = vld [vmem:[%s261 + $0x4] sm:$0xf]
        %v361 = vld [vmem:[%s261 + $0x8] sm:$0x1]
        %v362 = vld [vmem:[%s261 + $0xc] sm:$0xf]
        %v363 = vld [vmem:[%s261 + $0x10] sm:$0xf]
        %v364 = vld [vmem:[%s261 + $0x14] sm:$0x1]
        %v365 = vld [vmem:[%s261 + $0x18] sm:$0xf]
        %v366 = vld [vmem:[%s261 + $0x1c] sm:$0xf]
        %v367 = vld [vmem:[%s261 + $0x20] sm:$0x1]
        %v368 = vld [vmem:[%s261 + $0x24] sm:$0xf]
        %v369 = vld [vmem:[%s261 + $0x28] sm:$0xf]
        %v370 = vld [vmem:[%s261 + $0x2c] sm:$0x1]
        %v371 = vld [vmem:[%s261 + $0x30] sm:$0xf]
        %v372 = vld [vmem:[%s261 + $0x34] sm:$0xf]
        %v373 = vld [vmem:[%s261 + $0x38] sm:$0x1]
        %v374 = vld [vmem:[%s261 + $0x3c] sm:$0xf]
        %v375 = vld [vmem:[%s261 + $0x40] sm:$0xf]
        %v376 = vld [vmem:[%s261 + $0x44] sm:$0x1]
        %v377 = vld [vmem:[%s261 + $0x48] sm:$0xf]
        %v378 = vld [vmem:[%s261 + $0x4c] sm:$0xf]
        %v379 = vld [vmem:[%s261 + $0x50] sm:$0x1]
        %v380 = vld [vmem:[%s261 + $0x54] sm:$0xf]
        %v381 = vld [vmem:[%s261 + $0x58] sm:$0xf]
        %v382 = vld [vmem:[%s261 + $0x5c] sm:$0x1]
        %v383 = vld [vmem:[%s261 + $0x60] sm:$0xf]
        %v384 = vld [vmem:[%s261 + $0x64] sm:$0xf]
        %v385 = vld [vmem:[%s261 + $0x68] sm:$0x1]
        %v386 = vld [vmem:[%s261 + $0x6c] sm:$0xf]
        %v387 = vld [vmem:[%s261 + $0x70] sm:$0xf]
        %v388 = vld [vmem:[%s261 + $0x74] sm:$0x1]
        %v389 = vld [vmem:[%s261 + $0x78] sm:$0xf]
        %v390 = vld [vmem:[%s261 + $0x7c] sm:$0xf]
        %v391 = vld [vmem:[%s261 + $0x80] sm:$0x1]
        %v392 = vld [vmem:[%s261 + $0x84] sm:$0xf]
        %v393 = vld [vmem:[%s261 + $0x88] sm:$0xf]
        %v394 = vld [vmem:[%s261 + $0x8c] sm:$0x1]
        %v395 = vld [vmem:[%s261 + $0x90] sm:$0xf]
        %v396 = vld [vmem:[%s261 + $0x94] sm:$0xf]
        %v397 = vld [vmem:[%s261 + $0x98] sm:$0x1]
        %v398 = vld [vmem:[%s261 + $0x9c] sm:$0xf]
        %v399 = vld [vmem:[%s261 + $0xa0] sm:$0xf]
        %v400 = vld [vmem:[%s261 + $0xa4] sm:$0x1]
        %v401 = vld [vmem:[%s261 + $0xa8] sm:$0xf]
        %v402 = vld [vmem:[%s261 + $0xac] sm:$0xf]
        %v403 = vld [vmem:[%s261 + $0xb0] sm:$0x1]
        %v404 = vld [vmem:[%s261 + $0xb4] sm:$0xf]
        %v405 = vld [vmem:[%s261 + $0xb8] sm:$0xf]
        %v406 = vld [vmem:[%s261 + $0xbc] sm:$0x1]
        %vm407 = vsmask.f32 3328
        %vm408 = vsmask.f32 7440
        %vm409 = vmor %vm407, %vm408
        %v411 = vshrl.u32 %v359, 16
        %v413 = vrot.slane %v411, 4
        %v414 = vshll.u32 %v359, 16
        %v416 = vrot.slane %v414, 5
        %v417 = vor.u32 %v413, %v416
        %v418 = vrot.slane %v417, 4
        %v420 = vshll.u32 %v360, 16
        %v422 = vrot.slane %v420, 5
        %v423 = vsel %vm409, %v418, %v422
        %v424 = vshrl.u32 %v360, 16
        %v426 = vrot.slane %v424, 4
        %v427 = vor.u32 %v426, %v422
        %v428 = vrot.slane %v427, 4
        %v430 = vshll.u32 %v361, 16
        %v432 = vrot.slane %v430, 5
        %v433 = vsel %vm409, %v428, %v432
        %v435 = vshrl.u32 %v362, 16
        %v437 = vrot.slane %v435, 4
        %v438 = vshll.u32 %v362, 16
        %v440 = vrot.slane %v438, 5
        %v441 = vor.u32 %v437, %v440
        %v442 = vrot.slane %v441, 4
        %v444 = vshll.u32 %v363, 16
        %v446 = vrot.slane %v444, 5
        %v447 = vsel %vm409, %v442, %v446
        %v448 = vshrl.u32 %v363, 16
        %v450 = vrot.slane %v448, 4
        %v451 = vor.u32 %v450, %v446
        %v452 = vrot.slane %v451, 4
        %v454 = vshll.u32 %v364, 16
        %v456 = vrot.slane %v454, 5
        %v457 = vsel %vm409, %v452, %v456
        %v459 = vshrl.u32 %v365, 16
        %v461 = vrot.slane %v459, 4
        %v462 = vshll.u32 %v365, 16
        %v464 = vrot.slane %v462, 5
        %v465 = vor.u32 %v461, %v464
        %v466 = vrot.slane %v465, 4
        %v468 = vshll.u32 %v366, 16
        %v470 = vrot.slane %v468, 5
        %v471 = vsel %vm409, %v466, %v470
        %v472 = vshrl.u32 %v366, 16
        %v474 = vrot.slane %v472, 4
        %v475 = vor.u32 %v474, %v470
        %v476 = vrot.slane %v475, 4
        %v478 = vshll.u32 %v367, 16
        %v480 = vrot.slane %v478, 5
        %v481 = vsel %vm409, %v476, %v480
        %v483 = vshrl.u32 %v368, 16
        %v485 = vrot.slane %v483, 4
        %v486 = vshll.u32 %v368, 16
        %v488 = vrot.slane %v486, 5
        %v489 = vor.u32 %v485, %v488
        %v490 = vrot.slane %v489, 4
        %v492 = vshll.u32 %v369, 16
        %v494 = vrot.slane %v492, 5
        %v495 = vsel %vm409, %v490, %v494
        %v496 = vshrl.u32 %v369, 16
        %v498 = vrot.slane %v496, 4
        %v499 = vor.u32 %v498, %v494
        %v500 = vrot.slane %v499, 4
        %v502 = vshll.u32 %v370, 16
        %v504 = vrot.slane %v502, 5
        %v505 = vsel %vm409, %v500, %v504
        %v507 = vshrl.u32 %v371, 16
        %v509 = vrot.slane %v507, 4
        %v510 = vshll.u32 %v371, 16
        %v512 = vrot.slane %v510, 5
        %v513 = vor.u32 %v509, %v512
        %v514 = vrot.slane %v513, 4
        %v516 = vshll.u32 %v372, 16
        %v518 = vrot.slane %v516, 5
        %v519 = vsel %vm409, %v514, %v518
        %v520 = vshrl.u32 %v372, 16
        %v522 = vrot.slane %v520, 4
        %v523 = vor.u32 %v522, %v518
        %v524 = vrot.slane %v523, 4
        %v526 = vshll.u32 %v373, 16
        %v528 = vrot.slane %v526, 5
        %v529 = vsel %vm409, %v524, %v528
        %v531 = vshrl.u32 %v374, 16
        %v533 = vrot.slane %v531, 4
        %v534 = vshll.u32 %v374, 16
        %v536 = vrot.slane %v534, 5
        %v537 = vor.u32 %v533, %v536
        %v538 = vrot.slane %v537, 4
        %v540 = vshll.u32 %v375, 16
        %v542 = vrot.slane %v540, 5
        %v543 = vsel %vm409, %v538, %v542
        %v544 = vshrl.u32 %v375, 16
        %v546 = vrot.slane %v544, 4
        %v547 = vor.u32 %v546, %v542
        %v548 = vrot.slane %v547, 4
        %v550 = vshll.u32 %v376, 16
        %v552 = vrot.slane %v550, 5
        %v553 = vsel %vm409, %v548, %v552
        %v555 = vshrl.u32 %v377, 16
        %v557 = vrot.slane %v555, 4
        %v558 = vshll.u32 %v377, 16
        %v560 = vrot.slane %v558, 5
        %v561 = vor.u32 %v557, %v560
        %v562 = vrot.slane %v561, 4
        %v564 = vshll.u32 %v378, 16
        %v566 = vrot.slane %v564, 5
        %v567 = vsel %vm409, %v562, %v566
        %v568 = vshrl.u32 %v378, 16
        %v570 = vrot.slane %v568, 4
        %v571 = vor.u32 %v570, %v566
        %v572 = vrot.slane %v571, 4
        %v574 = vshll.u32 %v379, 16
        %v576 = vrot.slane %v574, 5
        %v577 = vsel %vm409, %v572, %v576
        %v579 = vshrl.u32 %v380, 16
        %v581 = vrot.slane %v579, 4
        %v582 = vshll.u32 %v380, 16
        %v584 = vrot.slane %v582, 5
        %v585 = vor.u32 %v581, %v584
        %v586 = vrot.slane %v585, 4
        %v588 = vshll.u32 %v381, 16
        %v590 = vrot.slane %v588, 5
        %v591 = vsel %vm409, %v586, %v590
        %v592 = vshrl.u32 %v381, 16
        %v594 = vrot.slane %v592, 4
        %v595 = vor.u32 %v594, %v590
        %v596 = vrot.slane %v595, 4
        %v598 = vshll.u32 %v382, 16
        %v600 = vrot.slane %v598, 5
        %v601 = vsel %vm409, %v596, %v600
        %v603 = vshrl.u32 %v383, 16
        %v605 = vrot.slane %v603, 4
        %v606 = vshll.u32 %v383, 16
        %v608 = vrot.slane %v606, 5
        %v609 = vor.u32 %v605, %v608
        %v610 = vrot.slane %v609, 4
        %v612 = vshll.u32 %v384, 16
        %v614 = vrot.slane %v612, 5
        %v615 = vsel %vm409, %v610, %v614
        %v616 = vshrl.u32 %v384, 16
        %v618 = vrot.slane %v616, 4
        %v619 = vor.u32 %v618, %v614
        %v620 = vrot.slane %v619, 4
        %v622 = vshll.u32 %v385, 16
        %v624 = vrot.slane %v622, 5
        %v625 = vsel %vm409, %v620, %v624
        %v627 = vshrl.u32 %v386, 16
        %v629 = vrot.slane %v627, 4
        %v630 = vshll.u32 %v386, 16
        %v632 = vrot.slane %v630, 5
        %v633 = vor.u32 %v629, %v632
        %v634 = vrot.slane %v633, 4
        %v636 = vshll.u32 %v387, 16
        %v638 = vrot.slane %v636, 5
        %v639 = vsel %vm409, %v634, %v638
        %v640 = vshrl.u32 %v387, 16
        %v642 = vrot.slane %v640, 4
        %v643 = vor.u32 %v642, %v638
        %v644 = vrot.slane %v643, 4
        %v646 = vshll.u32 %v388, 16
        %v648 = vrot.slane %v646, 5
        %v649 = vsel %vm409, %v644, %v648
        %v651 = vshrl.u32 %v389, 16
        %v653 = vrot.slane %v651, 4
        %v654 = vshll.u32 %v389, 16
        %v656 = vrot.slane %v654, 5
        %v657 = vor.u32 %v653, %v656
        %v658 = vrot.slane %v657, 4
        %v660 = vshll.u32 %v390, 16
        %v662 = vrot.slane %v660, 5
        %v663 = vsel %vm409, %v658, %v662
        %v664 = vshrl.u32 %v390, 16
        %v666 = vrot.slane %v664, 4
        %v667 = vor.u32 %v666, %v662
        %v668 = vrot.slane %v667, 4
        %v670 = vshll.u32 %v391, 16
        %v672 = vrot.slane %v670, 5
        %v673 = vsel %vm409, %v668, %v672
        %v675 = vshrl.u32 %v392, 16
        %v677 = vrot.slane %v675, 4
        %v678 = vshll.u32 %v392, 16
        %v680 = vrot.slane %v678, 5
        %v681 = vor.u32 %v677, %v680
        %v682 = vrot.slane %v681, 4
        %v684 = vshll.u32 %v393, 16
        %v686 = vrot.slane %v684, 5
        %v687 = vsel %vm409, %v682, %v686
        %v688 = vshrl.u32 %v393, 16
        %v690 = vrot.slane %v688, 4
        %v691 = vor.u32 %v690, %v686
        %v692 = vrot.slane %v691, 4
        %v694 = vshll.u32 %v394, 16
        %v696 = vrot.slane %v694, 5
        %v697 = vsel %vm409, %v692, %v696
        %v699 = vshrl.u32 %v395, 16
        %v701 = vrot.slane %v699, 4
        %v702 = vshll.u32 %v395, 16
        %v704 = vrot.slane %v702, 5
        %v705 = vor.u32 %v701, %v704
        %v706 = vrot.slane %v705, 4
        %v708 = vshll.u32 %v396, 16
        %v710 = vrot.slane %v708, 5
        %v711 = vsel %vm409, %v706, %v710
        %v712 = vshrl.u32 %v396, 16
        %v714 = vrot.slane %v712, 4
        %v715 = vor.u32 %v714, %v710
        %v716 = vrot.slane %v715, 4
        %v718 = vshll.u32 %v397, 16
        %v720 = vrot.slane %v718, 5
        %v721 = vsel %vm409, %v716, %v720
        %v723 = vshrl.u32 %v398, 16
        %v725 = vrot.slane %v723, 4
        %v726 = vshll.u32 %v398, 16
        %v728 = vrot.slane %v726, 5
        %v729 = vor.u32 %v725, %v728
        %v730 = vrot.slane %v729, 4
        %v732 = vshll.u32 %v399, 16
        %v734 = vrot.slane %v732, 5
        %v735 = vsel %vm409, %v730, %v734
        %v736 = vshrl.u32 %v399, 16
        %v738 = vrot.slane %v736, 4
        %v739 = vor.u32 %v738, %v734
        %v740 = vrot.slane %v739, 4
        %v742 = vshll.u32 %v400, 16
        %v744 = vrot.slane %v742, 5
        %v745 = vsel %vm409, %v740, %v744
        %v747 = vshrl.u32 %v401, 16
        %v749 = vrot.slane %v747, 4
        %v750 = vshll.u32 %v401, 16
        %v752 = vrot.slane %v750, 5
        %v753 = vor.u32 %v749, %v752
        %v754 = vrot.slane %v753, 4
        %v756 = vshll.u32 %v402, 16
        %v758 = vrot.slane %v756, 5
        %v759 = vsel %vm409, %v754, %v758
        %v760 = vshrl.u32 %v402, 16
        %v762 = vrot.slane %v760, 4
        %v763 = vor.u32 %v762, %v758
        %v764 = vrot.slane %v763, 4
        %v766 = vshll.u32 %v403, 16
        %v768 = vrot.slane %v766, 5
        %v769 = vsel %vm409, %v764, %v768
        %v771 = vshrl.u32 %v404, 16
        %v773 = vrot.slane %v771, 4
        %v774 = vshll.u32 %v404, 16
        %v776 = vrot.slane %v774, 5
        %v777 = vor.u32 %v773, %v776
        %v778 = vrot.slane %v777, 4
        %v780 = vshll.u32 %v405, 16
        %v782 = vrot.slane %v780, 5
        %v783 = vsel %vm409, %v778, %v782
        %v784 = vshrl.u32 %v405, 16
        %v786 = vrot.slane %v784, 4
        %v787 = vor.u32 %v786, %v782
        %v788 = vrot.slane %v787, 4
        %v790 = vshll.u32 %v406, 16
        %v792 = vrot.slane %v790, 5
        %v793 = vsel %vm409, %v788, %v792
        %v826 = vunpack.c.l.bf16 %v423
        %v827 = vunpack.c.l.bf16 %v433
        %v828 = vunpack.c.l.bf16 %v447
        %v829 = vunpack.c.l.bf16 %v457
        %v830 = vunpack.c.l.bf16 %v471
        %v831 = vunpack.c.l.bf16 %v481
        %v832 = vunpack.c.l.bf16 %v495
        %v833 = vunpack.c.l.bf16 %v505
        %v834 = vunpack.c.l.bf16 %v519
        %v835 = vunpack.c.l.bf16 %v529
        %v836 = vunpack.c.l.bf16 %v543
        %v837 = vunpack.c.l.bf16 %v553
        %v838 = vunpack.c.l.bf16 %v567
        %v839 = vunpack.c.l.bf16 %v577
        %v840 = vunpack.c.l.bf16 %v591
        %v841 = vunpack.c.l.bf16 %v601
        %v842 = vunpack.c.l.bf16 %v615
        %v843 = vunpack.c.l.bf16 %v625
        %v844 = vunpack.c.l.bf16 %v639
        %v845 = vunpack.c.l.bf16 %v649
        %v846 = vunpack.c.l.bf16 %v663
        %v847 = vunpack.c.l.bf16 %v673
        %v848 = vunpack.c.l.bf16 %v687
        %v849 = vunpack.c.l.bf16 %v697
        %v850 = vunpack.c.l.bf16 %v711
        %v851 = vunpack.c.l.bf16 %v721
        %v852 = vunpack.c.l.bf16 %v735
        %v853 = vunpack.c.l.bf16 %v745
        %v854 = vunpack.c.l.bf16 %v759
        %v855 = vunpack.c.l.bf16 %v769
        %v856 = vunpack.c.l.bf16 %v783
        %v857 = vunpack.c.l.bf16 %v793
        %890 = vrot.lane.b32.xlu0 %v826, 4
        %v891 = vpop.permute.xlu0 %890
        %892 = vrot.lane.b32.xlu0 %v827, 4
        %v893 = vpop.permute.xlu0 %892
        %894 = vrot.lane.b32.xlu0 %v828, 4
        %v895 = vpop.permute.xlu0 %894
        %896 = vrot.lane.b32.xlu0 %v829, 4
        %v897 = vpop.permute.xlu0 %896
        %898 = vrot.lane.b32.xlu0 %v830, 4
        %v899 = vpop.permute.xlu0 %898
        %900 = vrot.lane.b32.xlu0 %v831, 4
        %v901 = vpop.permute.xlu0 %900
        %902 = vrot.lane.b32.xlu0 %v832, 4
        %v903 = vpop.permute.xlu0 %902
        %904 = vrot.lane.b32.xlu0 %v833, 4
        %v905 = vpop.permute.xlu0 %904
        %906 = vrot.lane.b32.xlu0 %v834, 4
        %v907 = vpop.permute.xlu0 %906
        %908 = vrot.lane.b32.xlu0 %v835, 4
        %v909 = vpop.permute.xlu0 %908
        %910 = vrot.lane.b32.xlu0 %v836, 4
        %v911 = vpop.permute.xlu0 %910
        %912 = vrot.lane.b32.xlu0 %v837, 4
        %v913 = vpop.permute.xlu0 %912
        %914 = vrot.lane.b32.xlu0 %v838, 4
        %v915 = vpop.permute.xlu0 %914
        %916 = vrot.lane.b32.xlu0 %v839, 4
        %v917 = vpop.permute.xlu0 %916
        %918 = vrot.lane.b32.xlu0 %v840, 4
        %v919 = vpop.permute.xlu0 %918
        %920 = vrot.lane.b32.xlu0 %v841, 4
        %v921 = vpop.permute.xlu0 %920
        %922 = vrot.lane.b32.xlu0 %v842, 4
        %v923 = vpop.permute.xlu0 %922
        %924 = vrot.lane.b32.xlu0 %v843, 4
        %v925 = vpop.permute.xlu0 %924
        %926 = vrot.lane.b32.xlu0 %v844, 4
        %v927 = vpop.permute.xlu0 %926
        %928 = vrot.lane.b32.xlu0 %v845, 4
        %v929 = vpop.permute.xlu0 %928
        %930 = vrot.lane.b32.xlu0 %v846, 4
        %v931 = vpop.permute.xlu0 %930
        %932 = vrot.lane.b32.xlu0 %v847, 4
        %v933 = vpop.permute.xlu0 %932
        %934 = vrot.lane.b32.xlu0 %v848, 4
        %v935 = vpop.permute.xlu0 %934
        %936 = vrot.lane.b32.xlu0 %v849, 4
        %v937 = vpop.permute.xlu0 %936
        %938 = vrot.lane.b32.xlu0 %v850, 4
        %v939 = vpop.permute.xlu0 %938
        %940 = vrot.lane.b32.xlu0 %v851, 4
        %v941 = vpop.permute.xlu0 %940
        %942 = vrot.lane.b32.xlu0 %v852, 4
        %v943 = vpop.permute.xlu0 %942
        %944 = vrot.lane.b32.xlu0 %v853, 4
        %v945 = vpop.permute.xlu0 %944
        %946 = vrot.lane.b32.xlu0 %v854, 4
        %v947 = vpop.permute.xlu0 %946
        %948 = vrot.lane.b32.xlu0 %v855, 4
        %v949 = vpop.permute.xlu0 %948
        %950 = vrot.lane.b32.xlu0 %v856, 4
        %v951 = vpop.permute.xlu0 %950
        %952 = vrot.lane.b32.xlu0 %v857, 4
        %v953 = vpop.permute.xlu0 %952
        %vm986 = vcmask 64544
        %987 = vst.msk [vmem:[#allocation2] sm:$0xff] %vm986, %v891
        %988 = vst.msk [vmem:[#allocation2 + $0x8] sm:$0xff] %vm986, %v893
        %989 = vst.msk [vmem:[#allocation2 + $0x10] sm:$0xff] %vm986, %v895
        %990 = vst.msk [vmem:[#allocation2 + $0x18] sm:$0xff] %vm986, %v897
        %991 = vst.msk [vmem:[#allocation2 + $0x20] sm:$0xff] %vm986, %v899
        %992 = vst.msk [vmem:[#allocation2 + $0x28] sm:$0xff] %vm986, %v901
        %993 = vst.msk [vmem:[#allocation2 + $0x30] sm:$0xff] %vm986, %v903
        %994 = vst.msk [vmem:[#allocation2 + $0x38] sm:$0xff] %vm986, %v905
        %995 = vst.msk [vmem:[#allocation2 + $0x40] sm:$0xff] %vm986, %v907
        %996 = vst.msk [vmem:[#allocation2 + $0x48] sm:$0xff] %vm986, %v909
        %997 = vst.msk [vmem:[#allocation2 + $0x50] sm:$0xff] %vm986, %v911
        %998 = vst.msk [vmem:[#allocation2 + $0x58] sm:$0xff] %vm986, %v913
        %999 = vst.msk [vmem:[#allocation2 + $0x60] sm:$0xff] %vm986, %v915
        %1000 = vst.msk [vmem:[#allocation2 + $0x68] sm:$0xff] %vm986, %v917
        %1001 = vst.msk [vmem:[#allocation2 + $0x70] sm:$0xff] %vm986, %v919
        %1002 = vst.msk [vmem:[#allocation2 + $0x78] sm:$0xff] %vm986, %v921
        %1003 = vst.msk [vmem:[#allocation2 + $0x80] sm:$0xff] %vm986, %v923
        %1004 = vst.msk [vmem:[#allocation2 + $0x88] sm:$0xff] %vm986, %v925
        %1005 = vst.msk [vmem:[#allocation2 + $0x90] sm:$0xff] %vm986, %v927
        %1006 = vst.msk [vmem:[#allocation2 + $0x98] sm:$0xff] %vm986, %v929
        %1007 = vst.msk [vmem:[#allocation2 + $0xa0] sm:$0xff] %vm986, %v931
        %1008 = vst.msk [vmem:[#allocation2 + $0xa8] sm:$0xff] %vm986, %v933
        %1009 = vst.msk [vmem:[#allocation2 + $0xb0] sm:$0xff] %vm986, %v935
        %1010 = vst.msk [vmem:[#allocation2 + $0xb8] sm:$0xff] %vm986, %v937
        %1011 = vst.msk [vmem:[#allocation2 + $0xc0] sm:$0xff] %vm986, %v939
        %1012 = vst.msk [vmem:[#allocation2 + $0xc8] sm:$0xff] %vm986, %v941
        %1013 = vst.msk [vmem:[#allocation2 + $0xd0] sm:$0xff] %vm986, %v943
        %1014 = vst.msk [vmem:[#allocation2 + $0xd8] sm:$0xff] %vm986, %v945
        %1015 = vst.msk [vmem:[#allocation2 + $0xe0] sm:$0xff] %vm986, %v947
        %1016 = vst.msk [vmem:[#allocation2 + $0xe8] sm:$0xff] %vm986, %v949
        %1017 = vst.msk [vmem:[#allocation2 + $0xf0] sm:$0xff] %vm986, %v951
        %1018 = vst.msk [vmem:[#allocation2 + $0xf8] sm:$0xff] %vm986, %v953
        %v1019 = vld [vmem:[%s261] sm:$0xe]
        %v1020 = vld [vmem:[%s261 + $0x4] sm:$0xf]
        %v1021 = vld [vmem:[%s261 + $0x8] sm:$0x1]
        %v1022 = vld [vmem:[%s261 + $0xc] sm:$0xe]
        %v1023 = vld [vmem:[%s261 + $0x10] sm:$0xf]
        %v1024 = vld [vmem:[%s261 + $0x14] sm:$0x1]
        %v1025 = vld [vmem:[%s261 + $0x18] sm:$0xe]
        %v1026 = vld [vmem:[%s261 + $0x1c] sm:$0xf]
        %v1027 = vld [vmem:[%s261 + $0x20] sm:$0x1]
        %v1028 = vld [vmem:[%s261 + $0x24] sm:$0xe]
        %v1029 = vld [vmem:[%s261 + $0x28] sm:$0xf]
        %v1030 = vld [vmem:[%s261 + $0x2c] sm:$0x1]
        %v1031 = vld [vmem:[%s261 + $0x30] sm:$0xe]
        %v1032 = vld [vmem:[%s261 + $0x34] sm:$0xf]
        %v1033 = vld [vmem:[%s261 + $0x38] sm:$0x1]
        %v1034 = vld [vmem:[%s261 + $0x3c] sm:$0xe]
        %v1035 = vld [vmem:[%s261 + $0x40] sm:$0xf]
        %v1036 = vld [vmem:[%s261 + $0x44] sm:$0x1]
        %v1037 = vld [vmem:[%s261 + $0x48] sm:$0xe]
        %v1038 = vld [vmem:[%s261 + $0x4c] sm:$0xf]
        %v1039 = vld [vmem:[%s261 + $0x50] sm:$0x1]
        %v1040 = vld [vmem:[%s261 + $0x54] sm:$0xe]
        %v1041 = vld [vmem:[%s261 + $0x58] sm:$0xf]
        %v1042 = vld [vmem:[%s261 + $0x5c] sm:$0x1]
        %v1043 = vld [vmem:[%s261 + $0x60] sm:$0xe]
        %v1044 = vld [vmem:[%s261 + $0x64] sm:$0xf]
        %v1045 = vld [vmem:[%s261 + $0x68] sm:$0x1]
        %v1046 = vld [vmem:[%s261 + $0x6c] sm:$0xe]
        %v1047 = vld [vmem:[%s261 + $0x70] sm:$0xf]
        %v1048 = vld [vmem:[%s261 + $0x74] sm:$0x1]
        %v1049 = vld [vmem:[%s261 + $0x78] sm:$0xe]
        %v1050 = vld [vmem:[%s261 + $0x7c] sm:$0xf]
        %v1051 = vld [vmem:[%s261 + $0x80] sm:$0x1]
        %v1052 = vld [vmem:[%s261 + $0x84] sm:$0xe]
        %v1053 = vld [vmem:[%s261 + $0x88] sm:$0xf]
        %v1054 = vld [vmem:[%s261 + $0x8c] sm:$0x1]
        %v1055 = vld [vmem:[%s261 + $0x90] sm:$0xe]
        %v1056 = vld [vmem:[%s261 + $0x94] sm:$0xf]
        %v1057 = vld [vmem:[%s261 + $0x98] sm:$0x1]
        %v1058 = vld [vmem:[%s261 + $0x9c] sm:$0xe]
        %v1059 = vld [vmem:[%s261 + $0xa0] sm:$0xf]
        %v1060 = vld [vmem:[%s261 + $0xa4] sm:$0x1]
        %v1061 = vld [vmem:[%s261 + $0xa8] sm:$0xe]
        %v1062 = vld [vmem:[%s261 + $0xac] sm:$0xf]
        %v1063 = vld [vmem:[%s261 + $0xb0] sm:$0x1]
        %v1064 = vld [vmem:[%s261 + $0xb4] sm:$0xe]
        %v1065 = vld [vmem:[%s261 + $0xb8] sm:$0xf]
        %v1066 = vld [vmem:[%s261 + $0xbc] sm:$0x1]
        %vm1115 = vcmask 1042432
        %vm1116 = vcmask 1046532
        %vm1117 = vmor %vm1115, %vm1116
        %v1118 = vrot.slane %v1019, 5
        %v1119 = vrot.slane %v1118, 4
        %v1120 = vrot.slane %v1020, 5
        %v1121 = vsel %vm1117, %v1119, %v1120
        %v1122 = vrot.slane %v1120, 4
        %v1123 = vrot.slane %v1021, 5
        %v1124 = vsel %vm1117, %v1122, %v1123
        %v1125 = vrot.slane %v1022, 5
        %v1126 = vrot.slane %v1125, 4
        %v1127 = vrot.slane %v1023, 5
        %v1128 = vsel %vm1117, %v1126, %v1127
        %v1129 = vrot.slane %v1127, 4
        %v1130 = vrot.slane %v1024, 5
        %v1131 = vsel %vm1117, %v1129, %v1130
        %v1132 = vrot.slane %v1025, 5
        %v1133 = vrot.slane %v1132, 4
        %v1134 = vrot.slane %v1026, 5
        %v1135 = vsel %vm1117, %v1133, %v1134
        %v1136 = vrot.slane %v1134, 4
        %v1137 = vrot.slane %v1027, 5
        %v1138 = vsel %vm1117, %v1136, %v1137
        %v1139 = vrot.slane %v1028, 5
        %v1140 = vrot.slane %v1139, 4
        %v1141 = vrot.slane %v1029, 5
        %v1142 = vsel %vm1117, %v1140, %v1141
        %v1143 = vrot.slane %v1141, 4
        %v1144 = vrot.slane %v1030, 5
        %v1145 = vsel %vm1117, %v1143, %v1144
        %v1146 = vrot.slane %v1031, 5
        %v1147 = vrot.slane %v1146, 4
        %v1148 = vrot.slane %v1032, 5
        %v1149 = vsel %vm1117, %v1147, %v1148
        %v1150 = vrot.slane %v1148, 4
        %v1151 = vrot.slane %v1033, 5
        %v1152 = vsel %vm1117, %v1150, %v1151
        %v1153 = vrot.slane %v1034, 5
        %v1154 = vrot.slane %v1153, 4
        %v1155 = vrot.slane %v1035, 5
        %v1156 = vsel %vm1117, %v1154, %v1155
        %v1157 = vrot.slane %v1155, 4
        %v1158 = vrot.slane %v1036, 5
        %v1159 = vsel %vm1117, %v1157, %v1158
        %v1160 = vrot.slane %v1037, 5
        %v1161 = vrot.slane %v1160, 4
        %v1162 = vrot.slane %v1038, 5
        %v1163 = vsel %vm1117, %v1161, %v1162
        %v1164 = vrot.slane %v1162, 4
        %v1165 = vrot.slane %v1039, 5
        %v1166 = vsel %vm1117, %v1164, %v1165
        %v1167 = vrot.slane %v1040, 5
        %v1168 = vrot.slane %v1167, 4
        %v1169 = vrot.slane %v1041, 5
        %v1170 = vsel %vm1117, %v1168, %v1169
        %v1171 = vrot.slane %v1169, 4
        %v1172 = vrot.slane %v1042, 5
        %v1173 = vsel %vm1117, %v1171, %v1172
        %v1174 = vrot.slane %v1043, 5
        %v1175 = vrot.slane %v1174, 4
        %v1176 = vrot.slane %v1044, 5
        %v1177 = vsel %vm1117, %v1175, %v1176
        %v1178 = vrot.slane %v1176, 4
        %v1179 = vrot.slane %v1045, 5
        %v1180 = vsel %vm1117, %v1178, %v1179
        %v1181 = vrot.slane %v1046, 5
        %v1182 = vrot.slane %v1181, 4
        %v1183 = vrot.slane %v1047, 5
        %v1184 = vsel %vm1117, %v1182, %v1183
        %v1185 = vrot.slane %v1183, 4
        %v1186 = vrot.slane %v1048, 5
        %v1187 = vsel %vm1117, %v1185, %v1186
        %v1188 = vrot.slane %v1049, 5
        %v1189 = vrot.slane %v1188, 4
        %v1190 = vrot.slane %v1050, 5
        %v1191 = vsel %vm1117, %v1189, %v1190
        %v1192 = vrot.slane %v1190, 4
        %v1193 = vrot.slane %v1051, 5
        %v1194 = vsel %vm1117, %v1192, %v1193
        %v1195 = vrot.slane %v1052, 5
        %v1196 = vrot.slane %v1195, 4
        %v1197 = vrot.slane %v1053, 5
        %v1198 = vsel %vm1117, %v1196, %v1197
        %v1199 = vrot.slane %v1197, 4
        %v1200 = vrot.slane %v1054, 5
        %v1201 = vsel %vm1117, %v1199, %v1200
        %v1202 = vrot.slane %v1055, 5
        %v1203 = vrot.slane %v1202, 4
        %v1204 = vrot.slane %v1056, 5
        %v1205 = vsel %vm1117, %v1203, %v1204
        %v1206 = vrot.slane %v1204, 4
        %v1207 = vrot.slane %v1057, 5
        %v1208 = vsel %vm1117, %v1206, %v1207
        %v1209 = vrot.slane %v1058, 5
        %v1210 = vrot.slane %v1209, 4
        %v1211 = vrot.slane %v1059, 5
        %v1212 = vsel %vm1117, %v1210, %v1211
        %v1213 = vrot.slane %v1211, 4
        %v1214 = vrot.slane %v1060, 5
        %v1215 = vsel %vm1117, %v1213, %v1214
        %v1216 = vrot.slane %v1061, 5
        %v1217 = vrot.slane %v1216, 4
        %v1218 = vrot.slane %v1062, 5
        %v1219 = vsel %vm1117, %v1217, %v1218
        %v1220 = vrot.slane %v1218, 4
        %v1221 = vrot.slane %v1063, 5
        %v1222 = vsel %vm1117, %v1220, %v1221
        %v1223 = vrot.slane %v1064, 5
        %v1224 = vrot.slane %v1223, 4
        %v1225 = vrot.slane %v1065, 5
        %v1226 = vsel %vm1117, %v1224, %v1225
        %v1227 = vrot.slane %v1225, 4
        %v1228 = vrot.slane %v1066, 5
        %v1229 = vsel %vm1117, %v1227, %v1228
        %v1262 = vunpack.c.l.bf16 %v1121
        %v1263 = vunpack.c.l.bf16 %v1124
        %v1264 = vunpack.c.l.bf16 %v1128
        %v1265 = vunpack.c.l.bf16 %v1131
        %v1266 = vunpack.c.l.bf16 %v1135
        %v1267 = vunpack.c.l.bf16 %v1138
        %v1268 = vunpack.c.l.bf16 %v1142
        %v1269 = vunpack.c.l.bf16 %v1145
        %v1270 = vunpack.c.l.bf16 %v1149
        %v1271 = vunpack.c.l.bf16 %v1152
        %v1272 = vunpack.c.l.bf16 %v1156
        %v1273 = vunpack.c.l.bf16 %v1159
        %v1274 = vunpack.c.l.bf16 %v1163
        %v1275 = vunpack.c.l.bf16 %v1166
        %v1276 = vunpack.c.l.bf16 %v1170
        %v1277 = vunpack.c.l.bf16 %v1173
        %v1278 = vunpack.c.l.bf16 %v1177
        %v1279 = vunpack.c.l.bf16 %v1180
        %v1280 = vunpack.c.l.bf16 %v1184
        %v1281 = vunpack.c.l.bf16 %v1187
        %v1282 = vunpack.c.l.bf16 %v1191
        %v1283 = vunpack.c.l.bf16 %v1194
        %v1284 = vunpack.c.l.bf16 %v1198
        %v1285 = vunpack.c.l.bf16 %v1201
        %v1286 = vunpack.c.l.bf16 %v1205
        %v1287 = vunpack.c.l.bf16 %v1208
        %v1288 = vunpack.c.l.bf16 %v1212
        %v1289 = vunpack.c.l.bf16 %v1215
        %v1290 = vunpack.c.l.bf16 %v1219
        %v1291 = vunpack.c.l.bf16 %v1222
        %v1292 = vunpack.c.l.bf16 %v1226
        %v1293 = vunpack.c.l.bf16 %v1229
        %1326 = vrot.lane.b32.xlu0 %v1262, 8
        %v1327 = vpop.permute.xlu0 %1326
        %1328 = vrot.lane.b32.xlu0 %v1263, 8
        %v1329 = vpop.permute.xlu0 %1328
        %1330 = vrot.lane.b32.xlu0 %v1264, 8
        %v1331 = vpop.permute.xlu0 %1330
        %1332 = vrot.lane.b32.xlu0 %v1265, 8
        %v1333 = vpop.permute.xlu0 %1332
        %1334 = vrot.lane.b32.xlu0 %v1266, 8
        %v1335 = vpop.permute.xlu0 %1334
        %1336 = vrot.lane.b32.xlu0 %v1267, 8
        %v1337 = vpop.permute.xlu0 %1336
        %1338 = vrot.lane.b32.xlu0 %v1268, 8
        %v1339 = vpop.permute.xlu0 %1338
        %1340 = vrot.lane.b32.xlu0 %v1269, 8
        %v1341 = vpop.permute.xlu0 %1340
        %1342 = vrot.lane.b32.xlu0 %v1270, 8
        %v1343 = vpop.permute.xlu0 %1342
        %1344 = vrot.lane.b32.xlu0 %v1271, 8
        %v1345 = vpop.permute.xlu0 %1344
        %1346 = vrot.lane.b32.xlu0 %v1272, 8
        %v1347 = vpop.permute.xlu0 %1346
        %1348 = vrot.lane.b32.xlu0 %v1273, 8
        %v1349 = vpop.permute.xlu0 %1348
        %1350 = vrot.lane.b32.xlu0 %v1274, 8
        %v1351 = vpop.permute.xlu0 %1350
        %1352 = vrot.lane.b32.xlu0 %v1275, 8
        %v1353 = vpop.permute.xlu0 %1352
        %1354 = vrot.lane.b32.xlu0 %v1276, 8
        %v1355 = vpop.permute.xlu0 %1354
        %1356 = vrot.lane.b32.xlu0 %v1277, 8
        %v1357 = vpop.permute.xlu0 %1356
        %1358 = vrot.lane.b32.xlu0 %v1278, 8
        %v1359 = vpop.permute.xlu0 %1358
        %1360 = vrot.lane.b32.xlu0 %v1279, 8
        %v1361 = vpop.permute.xlu0 %1360
        %1362 = vrot.lane.b32.xlu0 %v1280, 8
        %v1363 = vpop.permute.xlu0 %1362
        %1364 = vrot.lane.b32.xlu0 %v1281, 8
        %v1365 = vpop.permute.xlu0 %1364
        %1366 = vrot.lane.b32.xlu0 %v1282, 8
        %v1367 = vpop.permute.xlu0 %1366
        %1368 = vrot.lane.b32.xlu0 %v1283, 8
        %v1369 = vpop.permute.xlu0 %1368
        %1370 = vrot.lane.b32.xlu0 %v1284, 8
        %v1371 = vpop.permute.xlu0 %1370
        %1372 = vrot.lane.b32.xlu0 %v1285, 8
        %v1373 = vpop.permute.xlu0 %1372
        %1374 = vrot.lane.b32.xlu0 %v1286, 8
        %v1375 = vpop.permute.xlu0 %1374
        %1376 = vrot.lane.b32.xlu0 %v1287, 8
        %v1377 = vpop.permute.xlu0 %1376
        %1378 = vrot.lane.b32.xlu0 %v1288, 8
        %v1379 = vpop.permute.xlu0 %1378
        %1380 = vrot.lane.b32.xlu0 %v1289, 8
        %v1381 = vpop.permute.xlu0 %1380
        %1382 = vrot.lane.b32.xlu0 %v1290, 8
        %v1383 = vpop.permute.xlu0 %1382
        %1384 = vrot.lane.b32.xlu0 %v1291, 8
        %v1385 = vpop.permute.xlu0 %1384
        %1386 = vrot.lane.b32.xlu0 %v1292, 8
        %v1387 = vpop.permute.xlu0 %1386
        %1388 = vrot.lane.b32.xlu0 %v1293, 8
        %v1389 = vpop.permute.xlu0 %1388
        %vm1422 = vcmask 97344
        %1423 = vst.msk [vmem:[#allocation2] sm:$0xff] %vm1422, %v1327
        %1424 = vst.msk [vmem:[#allocation2 + $0x8] sm:$0xff] %vm1422, %v1329
        %1425 = vst.msk [vmem:[#allocation2 + $0x10] sm:$0xff] %vm1422, %v1331
        %1426 = vst.msk [vmem:[#allocation2 + $0x18] sm:$0xff] %vm1422, %v1333
        %1427 = vst.msk [vmem:[#allocation2 + $0x20] sm:$0xff] %vm1422, %v1335
        %1428 = vst.msk [vmem:[#allocation2 + $0x28] sm:$0xff] %vm1422, %v1337
        %1429 = vst.msk [vmem:[#allocation2 + $0x30] sm:$0xff] %vm1422, %v1339
        %1430 = vst.msk [vmem:[#allocation2 + $0x38] sm:$0xff] %vm1422, %v1341
        %1431 = vst.msk [vmem:[#allocation2 + $0x40] sm:$0xff] %vm1422, %v1343
        %1432 = vst.msk [vmem:[#allocation2 + $0x48] sm:$0xff] %vm1422, %v1345
        %1433 = vst.msk [vmem:[#allocation2 + $0x50] sm:$0xff] %vm1422, %v1347
        %1434 = vst.msk [vmem:[#allocation2 + $0x58] sm:$0xff] %vm1422, %v1349
        %1435 = vst.msk [vmem:[#allocation2 + $0x60] sm:$0xff] %vm1422, %v1351
        %1436 = vst.msk [vmem:[#allocation2 + $0x68] sm:$0xff] %vm1422, %v1353
        %1437 = vst.msk [vmem:[#allocation2 + $0x70] sm:$0xff] %vm1422, %v1355
        %1438 = vst.msk [vmem:[#allocation2 + $0x78] sm:$0xff] %vm1422, %v1357
        %1439 = vst.msk [vmem:[#allocation2 + $0x80] sm:$0xff] %vm1422, %v1359
        %1440 = vst.msk [vmem:[#allocation2 + $0x88] sm:$0xff] %vm1422, %v1361
        %1441 = vst.msk [vmem:[#allocation2 + $0x90] sm:$0xff] %vm1422, %v1363
        %1442 = vst.msk [vmem:[#allocation2 + $0x98] sm:$0xff] %vm1422, %v1365
        %1443 = vst.msk [vmem:[#allocation2 + $0xa0] sm:$0xff] %vm1422, %v1367
        %1444 = vst.msk [vmem:[#allocation2 + $0xa8] sm:$0xff] %vm1422, %v1369
        %1445 = vst.msk [vmem:[#allocation2 + $0xb0] sm:$0xff] %vm1422, %v1371
        %1446 = vst.msk [vmem:[#allocation2 + $0xb8] sm:$0xff] %vm1422, %v1373
        %1447 = vst.msk [vmem:[#allocation2 + $0xc0] sm:$0xff] %vm1422, %v1375
        %1448 = vst.msk [vmem:[#allocation2 + $0xc8] sm:$0xff] %vm1422, %v1377
        %1449 = vst.msk [vmem:[#allocation2 + $0xd0] sm:$0xff] %vm1422, %v1379
        %1450 = vst.msk [vmem:[#allocation2 + $0xd8] sm:$0xff] %vm1422, %v1381
        %1451 = vst.msk [vmem:[#allocation2 + $0xe0] sm:$0xff] %vm1422, %v1383
        %1452 = vst.msk [vmem:[#allocation2 + $0xe8] sm:$0xff] %vm1422, %v1385
        %1453 = vst.msk [vmem:[#allocation2 + $0xf0] sm:$0xff] %vm1422, %v1387
        %1454 = vst.msk [vmem:[#allocation2 + $0xf8] sm:$0xff] %vm1422, %v1389
        %s1455 = sadd.s32 %s258, 1
        %s1456 = smul.u32 %s1455, 3
        %s1457 = smul.addr %s1456, 4
        %s1458 = scalar_lea.vmem %s251, %s1457
        %v1459 = vld [vmem:[%s1458] sm:$0xf]
        %v1460 = vld [vmem:[%s1458 + $0x4] sm:$0xf]
        %v1461 = vld [vmem:[%s1458 + $0xc] sm:$0xf]
        %v1462 = vld [vmem:[%s1458 + $0x10] sm:$0xf]
        %v1463 = vld [vmem:[%s1458 + $0x18] sm:$0xf]
        %v1464 = vld [vmem:[%s1458 + $0x1c] sm:$0xf]
        %v1465 = vld [vmem:[%s1458 + $0x24] sm:$0xf]
        %v1466 = vld [vmem:[%s1458 + $0x28] sm:$0xf]
        %v1467 = vld [vmem:[%s1458 + $0x30] sm:$0xf]
        %v1468 = vld [vmem:[%s1458 + $0x34] sm:$0xf]
        %v1469 = vld [vmem:[%s1458 + $0x3c] sm:$0xf]
        %v1470 = vld [vmem:[%s1458 + $0x40] sm:$0xf]
        %v1471 = vld [vmem:[%s1458 + $0x48] sm:$0xf]
        %v1472 = vld [vmem:[%s1458 + $0x4c] sm:$0xf]
        %v1473 = vld [vmem:[%s1458 + $0x54] sm:$0xf]
        %v1474 = vld [vmem:[%s1458 + $0x58] sm:$0xf]
        %v1475 = vld [vmem:[%s1458 + $0x60] sm:$0xf]
        %v1476 = vld [vmem:[%s1458 + $0x64] sm:$0xf]
        %v1477 = vld [vmem:[%s1458 + $0x6c] sm:$0xf]
        %v1478 = vld [vmem:[%s1458 + $0x70] sm:$0xf]
        %v1479 = vld [vmem:[%s1458 + $0x78] sm:$0xf]
        %v1480 = vld [vmem:[%s1458 + $0x7c] sm:$0xf]
        %v1481 = vld [vmem:[%s1458 + $0x84] sm:$0xf]
        %v1482 = vld [vmem:[%s1458 + $0x88] sm:$0xf]
        %v1483 = vld [vmem:[%s1458 + $0x90] sm:$0xf]
        %v1484 = vld [vmem:[%s1458 + $0x94] sm:$0xf]
        %v1485 = vld [vmem:[%s1458 + $0x9c] sm:$0xf]
        %v1486 = vld [vmem:[%s1458 + $0xa0] sm:$0xf]
        %v1487 = vld [vmem:[%s1458 + $0xa8] sm:$0xf]
        %v1488 = vld [vmem:[%s1458 + $0xac] sm:$0xf]
        %v1489 = vld [vmem:[%s1458 + $0xb4] sm:$0xf]
        %v1490 = vld [vmem:[%s1458 + $0xb8] sm:$0xf]
        %v1491 = vunpack.c.l.bf16 %v1459
        %v1492 = vunpack.c.l.bf16 %v1460
        %v1493 = vunpack.c.l.bf16 %v1461
        %v1494 = vunpack.c.l.bf16 %v1462
        %v1495 = vunpack.c.l.bf16 %v1463
        %v1496 = vunpack.c.l.bf16 %v1464
        %v1497 = vunpack.c.l.bf16 %v1465
        %v1498 = vunpack.c.l.bf16 %v1466
        %v1499 = vunpack.c.l.bf16 %v1467
        %v1500 = vunpack.c.l.bf16 %v1468
        %v1501 = vunpack.c.l.bf16 %v1469
        %v1502 = vunpack.c.l.bf16 %v1470
        %v1503 = vunpack.c.l.bf16 %v1471
        %v1504 = vunpack.c.l.bf16 %v1472
        %v1505 = vunpack.c.l.bf16 %v1473
        %v1506 = vunpack.c.l.bf16 %v1474
        %v1507 = vunpack.c.l.bf16 %v1475
        %v1508 = vunpack.c.l.bf16 %v1476
        %v1509 = vunpack.c.l.bf16 %v1477
        %v1510 = vunpack.c.l.bf16 %v1478
        %v1511 = vunpack.c.l.bf16 %v1479
        %v1512 = vunpack.c.l.bf16 %v1480
        %v1513 = vunpack.c.l.bf16 %v1481
        %v1514 = vunpack.c.l.bf16 %v1482
        %v1515 = vunpack.c.l.bf16 %v1483
        %v1516 = vunpack.c.l.bf16 %v1484
        %v1517 = vunpack.c.l.bf16 %v1485
        %v1518 = vunpack.c.l.bf16 %v1486
        %v1519 = vunpack.c.l.bf16 %v1487
        %v1520 = vunpack.c.l.bf16 %v1488
        %v1521 = vunpack.c.l.bf16 %v1489
        %v1522 = vunpack.c.l.bf16 %v1490
        %1555 = vrot.lane.b32.xlu0 %v1491, 12
        %v1556 = vpop.permute.xlu0 %1555
        %1557 = vrot.lane.b32.xlu0 %v1492, 12
        %v1558 = vpop.permute.xlu0 %1557
        %1559 = vrot.lane.b32.xlu0 %v1493, 12
        %v1560 = vpop.permute.xlu0 %1559
        %1561 = vrot.lane.b32.xlu0 %v1494, 12
        %v1562 = vpop.permute.xlu0 %1561
        %1563 = vrot.lane.b32.xlu0 %v1495, 12
        %v1564 = vpop.permute.xlu0 %1563
        %1565 = vrot.lane.b32.xlu0 %v1496, 12
        %v1566 = vpop.permute.xlu0 %1565
        %1567 = vrot.lane.b32.xlu0 %v1497, 12
        %v1568 = vpop.permute.xlu0 %1567
        %1569 = vrot.lane.b32.xlu0 %v1498, 12
        %v1570 = vpop.permute.xlu0 %1569
        %1571 = vrot.lane.b32.xlu0 %v1499, 12
        %v1572 = vpop.permute.xlu0 %1571
        %1573 = vrot.lane.b32.xlu0 %v1500, 12
        %v1574 = vpop.permute.xlu0 %1573
        %1575 = vrot.lane.b32.xlu0 %v1501, 12
        %v1576 = vpop.permute.xlu0 %1575
        %1577 = vrot.lane.b32.xlu0 %v1502, 12
        %v1578 = vpop.permute.xlu0 %1577
        %1579 = vrot.lane.b32.xlu0 %v1503, 12
        %v1580 = vpop.permute.xlu0 %1579
        %1581 = vrot.lane.b32.xlu0 %v1504, 12
        %v1582 = vpop.permute.xlu0 %1581
        %1583 = vrot.lane.b32.xlu0 %v1505, 12
        %v1584 = vpop.permute.xlu0 %1583
        %1585 = vrot.lane.b32.xlu0 %v1506, 12
        %v1586 = vpop.permute.xlu0 %1585
        %1587 = vrot.lane.b32.xlu0 %v1507, 12
        %v1588 = vpop.permute.xlu0 %1587
        %1589 = vrot.lane.b32.xlu0 %v1508, 12
        %v1590 = vpop.permute.xlu0 %1589
        %1591 = vrot.lane.b32.xlu0 %v1509, 12
        %v1592 = vpop.permute.xlu0 %1591
        %1593 = vrot.lane.b32.xlu0 %v1510, 12
        %v1594 = vpop.permute.xlu0 %1593
        %1595 = vrot.lane.b32.xlu0 %v1511, 12
        %v1596 = vpop.permute.xlu0 %1595
        %1597 = vrot.lane.b32.xlu0 %v1512, 12
        %v1598 = vpop.permute.xlu0 %1597
        %1599 = vrot.lane.b32.xlu0 %v1513, 12
        %v1600 = vpop.permute.xlu0 %1599
        %1601 = vrot.lane.b32.xlu0 %v1514, 12
        %v1602 = vpop.permute.xlu0 %1601
        %1603 = vrot.lane.b32.xlu0 %v1515, 12
        %v1604 = vpop.permute.xlu0 %1603
        %1605 = vrot.lane.b32.xlu0 %v1516, 12
        %v1606 = vpop.permute.xlu0 %1605
        %1607 = vrot.lane.b32.xlu0 %v1517, 12
        %v1608 = vpop.permute.xlu0 %1607
        %1609 = vrot.lane.b32.xlu0 %v1518, 12
        %v1610 = vpop.permute.xlu0 %1609
        %1611 = vrot.lane.b32.xlu0 %v1519, 12
        %v1612 = vpop.permute.xlu0 %1611
        %1613 = vrot.lane.b32.xlu0 %v1520, 12
        %v1614 = vpop.permute.xlu0 %1613
        %1615 = vrot.lane.b32.xlu0 %v1521, 12
        %v1616 = vpop.permute.xlu0 %1615
        %1617 = vrot.lane.b32.xlu0 %v1522, 12
        %v1618 = vpop.permute.xlu0 %1617
        %vm1651 = vcmask 130144
        %1652 = vst.msk [vmem:[#allocation2] sm:$0xff] %vm1651, %v1556
        %1653 = vst.msk [vmem:[#allocation2 + $0x8] sm:$0xff] %vm1651, %v1558
        %1654 = vst.msk [vmem:[#allocation2 + $0x10] sm:$0xff] %vm1651, %v1560
        %1655 = vst.msk [vmem:[#allocation2 + $0x18] sm:$0xff] %vm1651, %v1562
        %1656 = vst.msk [vmem:[#allocation2 + $0x20] sm:$0xff] %vm1651, %v1564
        %1657 = vst.msk [vmem:[#allocation2 + $0x28] sm:$0xff] %vm1651, %v1566
        %1658 = vst.msk [vmem:[#allocation2 + $0x30] sm:$0xff] %vm1651, %v1568
        %1659 = vst.msk [vmem:[#allocation2 + $0x38] sm:$0xff] %vm1651, %v1570
        %1660 = vst.msk [vmem:[#allocation2 + $0x40] sm:$0xff] %vm1651, %v1572
        %1661 = vst.msk [vmem:[#allocation2 + $0x48] sm:$0xff] %vm1651, %v1574
        %1662 = vst.msk [vmem:[#allocation2 + $0x50] sm:$0xff] %vm1651, %v1576
        %1663 = vst.msk [vmem:[#allocation2 + $0x58] sm:$0xff] %vm1651, %v1578
        %1664 = vst.msk [vmem:[#allocation2 + $0x60] sm:$0xff] %vm1651, %v1580
        %1665 = vst.msk [vmem:[#allocation2 + $0x68] sm:$0xff] %vm1651, %v1582
        %1666 = vst.msk [vmem:[#allocation2 + $0x70] sm:$0xff] %vm1651, %v1584
        %1667 = vst.msk [vmem:[#allocation2 + $0x78] sm:$0xff] %vm1651, %v1586
        %1668 = vst.msk [vmem:[#allocation2 + $0x80] sm:$0xff] %vm1651, %v1588
        %1669 = vst.msk [vmem:[#allocation2 + $0x88] sm:$0xff] %vm1651, %v1590
        %1670 = vst.msk [vmem:[#allocation2 + $0x90] sm:$0xff] %vm1651, %v1592
        %1671 = vst.msk [vmem:[#allocation2 + $0x98] sm:$0xff] %vm1651, %v1594
        %1672 = vst.msk [vmem:[#allocation2 + $0xa0] sm:$0xff] %vm1651, %v1596
        %1673 = vst.msk [vmem:[#allocation2 + $0xa8] sm:$0xff] %vm1651, %v1598
        %1674 = vst.msk [vmem:[#allocation2 + $0xb0] sm:$0xff] %vm1651, %v1600
        %1675 = vst.msk [vmem:[#allocation2 + $0xb8] sm:$0xff] %vm1651, %v1602
        %1676 = vst.msk [vmem:[#allocation2 + $0xc0] sm:$0xff] %vm1651, %v1604
        %1677 = vst.msk [vmem:[#allocation2 + $0xc8] sm:$0xff] %vm1651, %v1606
        %1678 = vst.msk [vmem:[#allocation2 + $0xd0] sm:$0xff] %vm1651, %v1608
        %1679 = vst.msk [vmem:[#allocation2 + $0xd8] sm:$0xff] %vm1651, %v1610
        %1680 = vst.msk [vmem:[#allocation2 + $0xe0] sm:$0xff] %vm1651, %v1612
        %1681 = vst.msk [vmem:[#allocation2 + $0xe8] sm:$0xff] %vm1651, %v1614
        %1682 = vst.msk [vmem:[#allocation2 + $0xf0] sm:$0xff] %vm1651, %v1616
        %1683 = vst.msk [vmem:[#allocation2 + $0xf8] sm:$0xff] %vm1651, %v1618
        %v1684 = vld [vmem:[%s1458] sm:$0xf]
        %v1685 = vld [vmem:[%s1458 + $0x4] sm:$0xf]
        %v1686 = vld [vmem:[%s1458 + $0x8] sm:$0x1]
        %v1687 = vld [vmem:[%s1458 + $0xc] sm:$0xf]
        %v1688 = vld [vmem:[%s1458 + $0x10] sm:$0xf]
        %v1689 = vld [vmem:[%s1458 + $0x14] sm:$0x1]
        %v1690 = vld [vmem:[%s1458 + $0x18] sm:$0xf]
        %v1691 = vld [vmem:[%s1458 + $0x1c] sm:$0xf]
        %v1692 = vld [vmem:[%s1458 + $0x20] sm:$0x1]
        %v1693 = vld [vmem:[%s1458 + $0x24] sm:$0xf]
        %v1694 = vld [vmem:[%s1458 + $0x28] sm:$0xf]
        %v1695 = vld [vmem:[%s1458 + $0x2c] sm:$0x1]
        %v1696 = vld [vmem:[%s1458 + $0x30] sm:$0xf]
        %v1697 = vld [vmem:[%s1458 + $0x34] sm:$0xf]
        %v1698 = vld [vmem:[%s1458 + $0x38] sm:$0x1]
        %v1699 = vld [vmem:[%s1458 + $0x3c] sm:$0xf]
        %v1700 = vld [vmem:[%s1458 + $0x40] sm:$0xf]
        %v1701 = vld [vmem:[%s1458 + $0x44] sm:$0x1]
        %v1702 = vld [vmem:[%s1458 + $0x48] sm:$0xf]
        %v1703 = vld [vmem:[%s1458 + $0x4c] sm:$0xf]
        %v1704 = vld [vmem:[%s1458 + $0x50] sm:$0x1]
        %v1705 = vld [vmem:[%s1458 + $0x54] sm:$0xf]
        %v1706 = vld [vmem:[%s1458 + $0x58] sm:$0xf]
        %v1707 = vld [vmem:[%s1458 + $0x5c] sm:$0x1]
        %v1708 = vld [vmem:[%s1458 + $0x60] sm:$0xf]
        %v1709 = vld [vmem:[%s1458 + $0x64] sm:$0xf]
        %v1710 = vld [vmem:[%s1458 + $0x68] sm:$0x1]
        %v1711 = vld [vmem:[%s1458 + $0x6c] sm:$0xf]
        %v1712 = vld [vmem:[%s1458 + $0x70] sm:$0xf]
        %v1713 = vld [vmem:[%s1458 + $0x74] sm:$0x1]
        %v1714 = vld [vmem:[%s1458 + $0x78] sm:$0xf]
        %v1715 = vld [vmem:[%s1458 + $0x7c] sm:$0xf]
        %v1716 = vld [vmem:[%s1458 + $0x80] sm:$0x1]
        %v1717 = vld [vmem:[%s1458 + $0x84] sm:$0xf]
        %v1718 = vld [vmem:[%s1458 + $0x88] sm:$0xf]
        %v1719 = vld [vmem:[%s1458 + $0x8c] sm:$0x1]
        %v1720 = vld [vmem:[%s1458 + $0x90] sm:$0xf]
        %v1721 = vld [vmem:[%s1458 + $0x94] sm:$0xf]
        %v1722 = vld [vmem:[%s1458 + $0x98] sm:$0x1]
        %v1723 = vld [vmem:[%s1458 + $0x9c] sm:$0xf]
        %v1724 = vld [vmem:[%s1458 + $0xa0] sm:$0xf]
        %v1725 = vld [vmem:[%s1458 + $0xa4] sm:$0x1]
        %v1726 = vld [vmem:[%s1458 + $0xa8] sm:$0xf]
        %v1727 = vld [vmem:[%s1458 + $0xac] sm:$0xf]
        %v1728 = vld [vmem:[%s1458 + $0xb0] sm:$0x1]
        %v1729 = vld [vmem:[%s1458 + $0xb4] sm:$0xf]
        %v1730 = vld [vmem:[%s1458 + $0xb8] sm:$0xf]
        %v1731 = vld [vmem:[%s1458 + $0xbc] sm:$0x1]
        %v1733 = vshrl.u32 %v1684, 16
        %v1735 = vrot.slane %v1733, 4
        %v1736 = vshll.u32 %v1684, 16
        %v1738 = vrot.slane %v1736, 5
        %v1739 = vor.u32 %v1735, %v1738
        %v1740 = vrot.slane %v1739, 4
        %v1742 = vshll.u32 %v1685, 16
        %v1744 = vrot.slane %v1742, 5
        %v1745 = vsel %vm409, %v1740, %v1744
        %v1746 = vshrl.u32 %v1685, 16
        %v1748 = vrot.slane %v1746, 4
        %v1749 = vor.u32 %v1748, %v1744
        %v1750 = vrot.slane %v1749, 4
        %v1752 = vshll.u32 %v1686, 16
        %v1754 = vrot.slane %v1752, 5
        %v1755 = vsel %vm409, %v1750, %v1754
        %v1757 = vshrl.u32 %v1687, 16
        %v1759 = vrot.slane %v1757, 4
        %v1760 = vshll.u32 %v1687, 16
        %v1762 = vrot.slane %v1760, 5
        %v1763 = vor.u32 %v1759, %v1762
        %v1764 = vrot.slane %v1763, 4
        %v1766 = vshll.u32 %v1688, 16
        %v1768 = vrot.slane %v1766, 5
        %v1769 = vsel %vm409, %v1764, %v1768
        %v1770 = vshrl.u32 %v1688, 16
        %v1772 = vrot.slane %v1770, 4
        %v1773 = vor.u32 %v1772, %v1768
        %v1774 = vrot.slane %v1773, 4
        %v1776 = vshll.u32 %v1689, 16
        %v1778 = vrot.slane %v1776, 5
        %v1779 = vsel %vm409, %v1774, %v1778
        %v1781 = vshrl.u32 %v1690, 16
        %v1783 = vrot.slane %v1781, 4
        %v1784 = vshll.u32 %v1690, 16
        %v1786 = vrot.slane %v1784, 5
        %v1787 = vor.u32 %v1783, %v1786
        %v1788 = vrot.slane %v1787, 4
        %v1790 = vshll.u32 %v1691, 16
        %v1792 = vrot.slane %v1790, 5
        %v1793 = vsel %vm409, %v1788, %v1792
        %v1794 = vshrl.u32 %v1691, 16
        %v1796 = vrot.slane %v1794, 4
        %v1797 = vor.u32 %v1796, %v1792
        %v1798 = vrot.slane %v1797, 4
        %v1800 = vshll.u32 %v1692, 16
        %v1802 = vrot.slane %v1800, 5
        %v1803 = vsel %vm409, %v1798, %v1802
        %v1805 = vshrl.u32 %v1693, 16
        %v1807 = vrot.slane %v1805, 4
        %v1808 = vshll.u32 %v1693, 16
        %v1810 = vrot.slane %v1808, 5
        %v1811 = vor.u32 %v1807, %v1810
        %v1812 = vrot.slane %v1811, 4
        %v1814 = vshll.u32 %v1694, 16
        %v1816 = vrot.slane %v1814, 5
        %v1817 = vsel %vm409, %v1812, %v1816
        %v1818 = vshrl.u32 %v1694, 16
        %v1820 = vrot.slane %v1818, 4
        %v1821 = vor.u32 %v1820, %v1816
        %v1822 = vrot.slane %v1821, 4
        %v1824 = vshll.u32 %v1695, 16
        %v1826 = vrot.slane %v1824, 5
        %v1827 = vsel %vm409, %v1822, %v1826
        %v1829 = vshrl.u32 %v1696, 16
        %v1831 = vrot.slane %v1829, 4
        %v1832 = vshll.u32 %v1696, 16
        %v1834 = vrot.slane %v1832, 5
        %v1835 = vor.u32 %v1831, %v1834
        %v1836 = vrot.slane %v1835, 4
        %v1838 = vshll.u32 %v1697, 16
        %v1840 = vrot.slane %v1838, 5
        %v1841 = vsel %vm409, %v1836, %v1840
        %v1842 = vshrl.u32 %v1697, 16
        %v1844 = vrot.slane %v1842, 4
        %v1845 = vor.u32 %v1844, %v1840
        %v1846 = vrot.slane %v1845, 4
        %v1848 = vshll.u32 %v1698, 16
        %v1850 = vrot.slane %v1848, 5
        %v1851 = vsel %vm409, %v1846, %v1850
        %v1853 = vshrl.u32 %v1699, 16
        %v1855 = vrot.slane %v1853, 4
        %v1856 = vshll.u32 %v1699, 16
        %v1858 = vrot.slane %v1856, 5
        %v1859 = vor.u32 %v1855, %v1858
        %v1860 = vrot.slane %v1859, 4
        %v1862 = vshll.u32 %v1700, 16
        %v1864 = vrot.slane %v1862, 5
        %v1865 = vsel %vm409, %v1860, %v1864
        %v1866 = vshrl.u32 %v1700, 16
        %v1868 = vrot.slane %v1866, 4
        %v1869 = vor.u32 %v1868, %v1864
        %v1870 = vrot.slane %v1869, 4
        %v1872 = vshll.u32 %v1701, 16
        %v1874 = vrot.slane %v1872, 5
        %v1875 = vsel %vm409, %v1870, %v1874
        %v1877 = vshrl.u32 %v1702, 16
        %v1879 = vrot.slane %v1877, 4
        %v1880 = vshll.u32 %v1702, 16
        %v1882 = vrot.slane %v1880, 5
        %v1883 = vor.u32 %v1879, %v1882
        %v1884 = vrot.slane %v1883, 4
        %v1886 = vshll.u32 %v1703, 16
        %v1888 = vrot.slane %v1886, 5
        %v1889 = vsel %vm409, %v1884, %v1888
        %v1890 = vshrl.u32 %v1703, 16
        %v1892 = vrot.slane %v1890, 4
        %v1893 = vor.u32 %v1892, %v1888
        %v1894 = vrot.slane %v1893, 4
        %v1896 = vshll.u32 %v1704, 16
        %v1898 = vrot.slane %v1896, 5
        %v1899 = vsel %vm409, %v1894, %v1898
        %v1901 = vshrl.u32 %v1705, 16
        %v1903 = vrot.slane %v1901, 4
        %v1904 = vshll.u32 %v1705, 16
        %v1906 = vrot.slane %v1904, 5
        %v1907 = vor.u32 %v1903, %v1906
        %v1908 = vrot.slane %v1907, 4
        %v1910 = vshll.u32 %v1706, 16
        %v1912 = vrot.slane %v1910, 5
        %v1913 = vsel %vm409, %v1908, %v1912
        %v1914 = vshrl.u32 %v1706, 16
        %v1916 = vrot.slane %v1914, 4
        %v1917 = vor.u32 %v1916, %v1912
        %v1918 = vrot.slane %v1917, 4
        %v1920 = vshll.u32 %v1707, 16
        %v1922 = vrot.slane %v1920, 5
        %v1923 = vsel %vm409, %v1918, %v1922
        %v1925 = vshrl.u32 %v1708, 16
        %v1927 = vrot.slane %v1925, 4
        %v1928 = vshll.u32 %v1708, 16
        %v1930 = vrot.slane %v1928, 5
        %v1931 = vor.u32 %v1927, %v1930
        %v1932 = vrot.slane %v1931, 4
        %v1934 = vshll.u32 %v1709, 16
        %v1936 = vrot.slane %v1934, 5
        %v1937 = vsel %vm409, %v1932, %v1936
        %v1938 = vshrl.u32 %v1709, 16
        %v1940 = vrot.slane %v1938, 4
        %v1941 = vor.u32 %v1940, %v1936
        %v1942 = vrot.slane %v1941, 4
        %v1944 = vshll.u32 %v1710, 16
        %v1946 = vrot.slane %v1944, 5
        %v1947 = vsel %vm409, %v1942, %v1946
        %v1949 = vshrl.u32 %v1711, 16
        %v1951 = vrot.slane %v1949, 4
        %v1952 = vshll.u32 %v1711, 16
        %v1954 = vrot.slane %v1952, 5
        %v1955 = vor.u32 %v1951, %v1954
        %v1956 = vrot.slane %v1955, 4
        %v1958 = vshll.u32 %v1712, 16
        %v1960 = vrot.slane %v1958, 5
        %v1961 = vsel %vm409, %v1956, %v1960
        %v1962 = vshrl.u32 %v1712, 16
        %v1964 = vrot.slane %v1962, 4
        %v1965 = vor.u32 %v1964, %v1960
        %v1966 = vrot.slane %v1965, 4
        %v1968 = vshll.u32 %v1713, 16
        %v1970 = vrot.slane %v1968, 5
        %v1971 = vsel %vm409, %v1966, %v1970
        %v1973 = vshrl.u32 %v1714, 16
        %v1975 = vrot.slane %v1973, 4
        %v1976 = vshll.u32 %v1714, 16
        %v1978 = vrot.slane %v1976, 5
        %v1979 = vor.u32 %v1975, %v1978
        %v1980 = vrot.slane %v1979, 4
        %v1982 = vshll.u32 %v1715, 16
        %v1984 = vrot.slane %v1982, 5
        %v1985 = vsel %vm409, %v1980, %v1984
        %v1986 = vshrl.u32 %v1715, 16
        %v1988 = vrot.slane %v1986, 4
        %v1989 = vor.u32 %v1988, %v1984
        %v1990 = vrot.slane %v1989, 4
        %v1992 = vshll.u32 %v1716, 16
        %v1994 = vrot.slane %v1992, 5
        %v1995 = vsel %vm409, %v1990, %v1994
        %v1997 = vshrl.u32 %v1717, 16
        %v1999 = vrot.slane %v1997, 4
        %v2000 = vshll.u32 %v1717, 16
        %v2002 = vrot.slane %v2000, 5
        %v2003 = vor.u32 %v1999, %v2002
        %v2004 = vrot.slane %v2003, 4
        %v2006 = vshll.u32 %v1718, 16
        %v2008 = vrot.slane %v2006, 5
        %v2009 = vsel %vm409, %v2004, %v2008
        %v2010 = vshrl.u32 %v1718, 16
        %v2012 = vrot.slane %v2010, 4
        %v2013 = vor.u32 %v2012, %v2008
        %v2014 = vrot.slane %v2013, 4
        %v2016 = vshll.u32 %v1719, 16
        %v2018 = vrot.slane %v2016, 5
        %v2019 = vsel %vm409, %v2014, %v2018
        %v2021 = vshrl.u32 %v1720, 16
        %v2023 = vrot.slane %v2021, 4
        %v2024 = vshll.u32 %v1720, 16
        %v2026 = vrot.slane %v2024, 5
        %v2027 = vor.u32 %v2023, %v2026
        %v2028 = vrot.slane %v2027, 4
        %v2030 = vshll.u32 %v1721, 16
        %v2032 = vrot.slane %v2030, 5
        %v2033 = vsel %vm409, %v2028, %v2032
        %v2034 = vshrl.u32 %v1721, 16
        %v2036 = vrot.slane %v2034, 4
        %v2037 = vor.u32 %v2036, %v2032
        %v2038 = vrot.slane %v2037, 4
        %v2040 = vshll.u32 %v1722, 16
        %v2042 = vrot.slane %v2040, 5
        %v2043 = vsel %vm409, %v2038, %v2042
        %v2045 = vshrl.u32 %v1723, 16
        %v2047 = vrot.slane %v2045, 4
        %v2048 = vshll.u32 %v1723, 16
        %v2050 = vrot.slane %v2048, 5
        %v2051 = vor.u32 %v2047, %v2050
        %v2052 = vrot.slane %v2051, 4
        %v2054 = vshll.u32 %v1724, 16
        %v2056 = vrot.slane %v2054, 5
        %v2057 = vsel %vm409, %v2052, %v2056
        %v2058 = vshrl.u32 %v1724, 16
        %v2060 = vrot.slane %v2058, 4
        %v2061 = vor.u32 %v2060, %v2056
        %v2062 = vrot.slane %v2061, 4
        %v2064 = vshll.u32 %v1725, 16
        %v2066 = vrot.slane %v2064, 5
        %v2067 = vsel %vm409, %v2062, %v2066
        %v2069 = vshrl.u32 %v1726, 16
        %v2071 = vrot.slane %v2069, 4
        %v2072 = vshll.u32 %v1726, 16
        %v2074 = vrot.slane %v2072, 5
        %v2075 = vor.u32 %v2071, %v2074
        %v2076 = vrot.slane %v2075, 4
        %v2078 = vshll.u32 %v1727, 16
        %v2080 = vrot.slane %v2078, 5
        %v2081 = vsel %vm409, %v2076, %v2080
        %v2082 = vshrl.u32 %v1727, 16
        %v2084 = vrot.slane %v2082, 4
        %v2085 = vor.u32 %v2084, %v2080
        %v2086 = vrot.slane %v2085, 4
        %v2088 = vshll.u32 %v1728, 16
        %v2090 = vrot.slane %v2088, 5
        %v2091 = vsel %vm409, %v2086, %v2090
        %v2093 = vshrl.u32 %v1729, 16
        %v2095 = vrot.slane %v2093, 4
        %v2096 = vshll.u32 %v1729, 16
        %v2098 = vrot.slane %v2096, 5
        %v2099 = vor.u32 %v2095, %v2098
        %v2100 = vrot.slane %v2099, 4
        %v2102 = vshll.u32 %v1730, 16
        %v2104 = vrot.slane %v2102, 5
        %v2105 = vsel %vm409, %v2100, %v2104
        %v2106 = vshrl.u32 %v1730, 16
        %v2108 = vrot.slane %v2106, 4
        %v2109 = vor.u32 %v2108, %v2104
        %v2110 = vrot.slane %v2109, 4
        %v2112 = vshll.u32 %v1731, 16
        %v2114 = vrot.slane %v2112, 5
        %v2115 = vsel %vm409, %v2110, %v2114
        %v2148 = vunpack.c.l.bf16 %v1745
        %v2149 = vunpack.c.l.bf16 %v1755
        %v2150 = vunpack.c.l.bf16 %v1769
        %v2151 = vunpack.c.l.bf16 %v1779
        %v2152 = vunpack.c.l.bf16 %v1793
        %v2153 = vunpack.c.l.bf16 %v1803
        %v2154 = vunpack.c.l.bf16 %v1817
        %v2155 = vunpack.c.l.bf16 %v1827
        %v2156 = vunpack.c.l.bf16 %v1841
        %v2157 = vunpack.c.l.bf16 %v1851
        %v2158 = vunpack.c.l.bf16 %v1865
        %v2159 = vunpack.c.l.bf16 %v1875
        %v2160 = vunpack.c.l.bf16 %v1889
        %v2161 = vunpack.c.l.bf16 %v1899
        %v2162 = vunpack.c.l.bf16 %v1913
        %v2163 = vunpack.c.l.bf16 %v1923
        %v2164 = vunpack.c.l.bf16 %v1937
        %v2165 = vunpack.c.l.bf16 %v1947
        %v2166 = vunpack.c.l.bf16 %v1961
        %v2167 = vunpack.c.l.bf16 %v1971
        %v2168 = vunpack.c.l.bf16 %v1985
        %v2169 = vunpack.c.l.bf16 %v1995
        %v2170 = vunpack.c.l.bf16 %v2009
        %v2171 = vunpack.c.l.bf16 %v2019
        %v2172 = vunpack.c.l.bf16 %v2033
        %v2173 = vunpack.c.l.bf16 %v2043
        %v2174 = vunpack.c.l.bf16 %v2057
        %v2175 = vunpack.c.l.bf16 %v2067
        %v2176 = vunpack.c.l.bf16 %v2081
        %v2177 = vunpack.c.l.bf16 %v2091
        %v2178 = vunpack.c.l.bf16 %v2105
        %v2179 = vunpack.c.l.bf16 %v2115
        %2212 = vrot.lane.b32.xlu0 %v2148, 16
        %v2213 = vpop.permute.xlu0 %2212
        %2214 = vrot.lane.b32.xlu0 %v2149, 16
        %v2215 = vpop.permute.xlu0 %2214
        %2216 = vrot.lane.b32.xlu0 %v2150, 16
        %v2217 = vpop.permute.xlu0 %2216
        %2218 = vrot.lane.b32.xlu0 %v2151, 16
        %v2219 = vpop.permute.xlu0 %2218
        %2220 = vrot.lane.b32.xlu0 %v2152, 16
        %v2221 = vpop.permute.xlu0 %2220
        %2222 = vrot.lane.b32.xlu0 %v2153, 16
        %v2223 = vpop.permute.xlu0 %2222
        %2224 = vrot.lane.b32.xlu0 %v2154, 16
        %v2225 = vpop.permute.xlu0 %2224
        %2226 = vrot.lane.b32.xlu0 %v2155, 16
        %v2227 = vpop.permute.xlu0 %2226
        %2228 = vrot.lane.b32.xlu0 %v2156, 16
        %v2229 = vpop.permute.xlu0 %2228
        %2230 = vrot.lane.b32.xlu0 %v2157, 16
        %v2231 = vpop.permute.xlu0 %2230
        %2232 = vrot.lane.b32.xlu0 %v2158, 16
        %v2233 = vpop.permute.xlu0 %2232
        %2234 = vrot.lane.b32.xlu0 %v2159, 16
        %v2235 = vpop.permute.xlu0 %2234
        %2236 = vrot.lane.b32.xlu0 %v2160, 16
        %v2237 = vpop.permute.xlu0 %2236
        %2238 = vrot.lane.b32.xlu0 %v2161, 16
        %v2239 = vpop.permute.xlu0 %2238
        %2240 = vrot.lane.b32.xlu0 %v2162, 16
        %v2241 = vpop.permute.xlu0 %2240
        %2242 = vrot.lane.b32.xlu0 %v2163, 16
        %v2243 = vpop.permute.xlu0 %2242
        %2244 = vrot.lane.b32.xlu0 %v2164, 16
        %v2245 = vpop.permute.xlu0 %2244
        %2246 = vrot.lane.b32.xlu0 %v2165, 16
        %v2247 = vpop.permute.xlu0 %2246
        %2248 = vrot.lane.b32.xlu0 %v2166, 16
        %v2249 = vpop.permute.xlu0 %2248
        %2250 = vrot.lane.b32.xlu0 %v2167, 16
        %v2251 = vpop.permute.xlu0 %2250
        %2252 = vrot.lane.b32.xlu0 %v2168, 16
        %v2253 = vpop.permute.xlu0 %2252
        %2254 = vrot.lane.b32.xlu0 %v2169, 16
        %v2255 = vpop.permute.xlu0 %2254
        %2256 = vrot.lane.b32.xlu0 %v2170, 16
        %v2257 = vpop.permute.xlu0 %2256
        %2258 = vrot.lane.b32.xlu0 %v2171, 16
        %v2259 = vpop.permute.xlu0 %2258
        %2260 = vrot.lane.b32.xlu0 %v2172, 16
        %v2261 = vpop.permute.xlu0 %2260
        %2262 = vrot.lane.b32.xlu0 %v2173, 16
        %v2263 = vpop.permute.xlu0 %2262
        %2264 = vrot.lane.b32.xlu0 %v2174, 16
        %v2265 = vpop.permute.xlu0 %2264
        %2266 = vrot.lane.b32.xlu0 %v2175, 16
        %v2267 = vpop.permute.xlu0 %2266
        %2268 = vrot.lane.b32.xlu0 %v2176, 16
        %v2269 = vpop.permute.xlu0 %2268
        %2270 = vrot.lane.b32.xlu0 %v2177, 16
        %v2271 = vpop.permute.xlu0 %2270
        %2272 = vrot.lane.b32.xlu0 %v2178, 16
        %v2273 = vpop.permute.xlu0 %2272
        %2274 = vrot.lane.b32.xlu0 %v2179, 16
        %v2275 = vpop.permute.xlu0 %2274
        %vm2308 = vcmask 162944
        %2309 = vst.msk [vmem:[#allocation2] sm:$0xff] %vm2308, %v2213
        %2310 = vst.msk [vmem:[#allocation2 + $0x8] sm:$0xff] %vm2308, %v2215
        %2311 = vst.msk [vmem:[#allocation2 + $0x10] sm:$0xff] %vm2308, %v2217
        %2312 = vst.msk [vmem:[#allocation2 + $0x18] sm:$0xff] %vm2308, %v2219
        %2313 = vst.msk [vmem:[#allocation2 + $0x20] sm:$0xff] %vm2308, %v2221
        %2314 = vst.msk [vmem:[#allocation2 + $0x28] sm:$0xff] %vm2308, %v2223
        %2315 = vst.msk [vmem:[#allocation2 + $0x30] sm:$0xff] %vm2308, %v2225
        %2316 = vst.msk [vmem:[#allocation2 + $0x38] sm:$0xff] %vm2308, %v2227
        %2317 = vst.msk [vmem:[#allocation2 + $0x40] sm:$0xff] %vm2308, %v2229
        %2318 = vst.msk [vmem:[#allocation2 + $0x48] sm:$0xff] %vm2308, %v2231
        %2319 = vst.msk [vmem:[#allocation2 + $0x50] sm:$0xff] %vm2308, %v2233
        %2320 = vst.msk [vmem:[#allocation2 + $0x58] sm:$0xff] %vm2308, %v2235
        %2321 = vst.msk [vmem:[#allocation2 + $0x60] sm:$0xff] %vm2308, %v2237
        %2322 = vst.msk [vmem:[#allocation2 + $0x68] sm:$0xff] %vm2308, %v2239
        %2323 = vst.msk [vmem:[#allocation2 + $0x70] sm:$0xff] %vm2308, %v2241
        %2324 = vst.msk [vmem:[#allocation2 + $0x78] sm:$0xff] %vm2308, %v2243
        %2325 = vst.msk [vmem:[#allocation2 + $0x80] sm:$0xff] %vm2308, %v2245
        %2326 = vst.msk [vmem:[#allocation2 + $0x88] sm:$0xff] %vm2308, %v2247
        %2327 = vst.msk [vmem:[#allocation2 + $0x90] sm:$0xff] %vm2308, %v2249
        %2328 = vst.msk [vmem:[#allocation2 + $0x98] sm:$0xff] %vm2308, %v2251
        %2329 = vst.msk [vmem:[#allocation2 + $0xa0] sm:$0xff] %vm2308, %v2253
        %2330 = vst.msk [vmem:[#allocation2 + $0xa8] sm:$0xff] %vm2308, %v2255
        %2331 = vst.msk [vmem:[#allocation2 + $0xb0] sm:$0xff] %vm2308, %v2257
        %2332 = vst.msk [vmem:[#allocation2 + $0xb8] sm:$0xff] %vm2308, %v2259
        %2333 = vst.msk [vmem:[#allocation2 + $0xc0] sm:$0xff] %vm2308, %v2261
        %2334 = vst.msk [vmem:[#allocation2 + $0xc8] sm:$0xff] %vm2308, %v2263
        %2335 = vst.msk [vmem:[#allocation2 + $0xd0] sm:$0xff] %vm2308, %v2265
        %2336 = vst.msk [vmem:[#allocation2 + $0xd8] sm:$0xff] %vm2308, %v2267
        %2337 = vst.msk [vmem:[#allocation2 + $0xe0] sm:$0xff] %vm2308, %v2269
        %2338 = vst.msk [vmem:[#allocation2 + $0xe8] sm:$0xff] %vm2308, %v2271
        %2339 = vst.msk [vmem:[#allocation2 + $0xf0] sm:$0xff] %vm2308, %v2273
        %2340 = vst.msk [vmem:[#allocation2 + $0xf8] sm:$0xff] %vm2308, %v2275
        %v2341 = vld [vmem:[%s1458] sm:$0xe]
        %v2342 = vld [vmem:[%s1458 + $0x4] sm:$0xf]
        %v2343 = vld [vmem:[%s1458 + $0x8] sm:$0x1]
        %v2344 = vld [vmem:[%s1458 + $0xc] sm:$0xe]
        %v2345 = vld [vmem:[%s1458 + $0x10] sm:$0xf]
        %v2346 = vld [vmem:[%s1458 + $0x14] sm:$0x1]
        %v2347 = vld [vmem:[%s1458 + $0x18] sm:$0xe]
        %v2348 = vld [vmem:[%s1458 + $0x1c] sm:$0xf]
        %v2349 = vld [vmem:[%s1458 + $0x20] sm:$0x1]
        %v2350 = vld [vmem:[%s1458 + $0x24] sm:$0xe]
        %v2351 = vld [vmem:[%s1458 + $0x28] sm:$0xf]
        %v2352 = vld [vmem:[%s1458 + $0x2c] sm:$0x1]
        %v2353 = vld [vmem:[%s1458 + $0x30] sm:$0xe]
        %v2354 = vld [vmem:[%s1458 + $0x34] sm:$0xf]
        %v2355 = vld [vmem:[%s1458 + $0x38] sm:$0x1]
        %v2356 = vld [vmem:[%s1458 + $0x3c] sm:$0xe]
        %v2357 = vld [vmem:[%s1458 + $0x40] sm:$0xf]
        %v2358 = vld [vmem:[%s1458 + $0x44] sm:$0x1]
        %v2359 = vld [vmem:[%s1458 + $0x48] sm:$0xe]
        %v2360 = vld [vmem:[%s1458 + $0x4c] sm:$0xf]
        %v2361 = vld [vmem:[%s1458 + $0x50] sm:$0x1]
        %v2362 = vld [vmem:[%s1458 + $0x54] sm:$0xe]
        %v2363 = vld [vmem:[%s1458 + $0x58] sm:$0xf]
        %v2364 = vld [vmem:[%s1458 + $0x5c] sm:$0x1]
        %v2365 = vld [vmem:[%s1458 + $0x60] sm:$0xe]
        %v2366 = vld [vmem:[%s1458 + $0x64] sm:$0xf]
        %v2367 = vld [vmem:[%s1458 + $0x68] sm:$0x1]
        %v2368 = vld [vmem:[%s1458 + $0x6c] sm:$0xe]
        %v2369 = vld [vmem:[%s1458 + $0x70] sm:$0xf]
        %v2370 = vld [vmem:[%s1458 + $0x74] sm:$0x1]
        %v2371 = vld [vmem:[%s1458 + $0x78] sm:$0xe]
        %v2372 = vld [vmem:[%s1458 + $0x7c] sm:$0xf]
        %v2373 = vld [vmem:[%s1458 + $0x80] sm:$0x1]
        %v2374 = vld [vmem:[%s1458 + $0x84] sm:$0xe]
        %v2375 = vld [vmem:[%s1458 + $0x88] sm:$0xf]
        %v2376 = vld [vmem:[%s1458 + $0x8c] sm:$0x1]
        %v2377 = vld [vmem:[%s1458 + $0x90] sm:$0xe]
        %v2378 = vld [vmem:[%s1458 + $0x94] sm:$0xf]
        %v2379 = vld [vmem:[%s1458 + $0x98] sm:$0x1]
        %v2380 = vld [vmem:[%s1458 + $0x9c] sm:$0xe]
        %v2381 = vld [vmem:[%s1458 + $0xa0] sm:$0xf]
        %v2382 = vld [vmem:[%s1458 + $0xa4] sm:$0x1]
        %v2383 = vld [vmem:[%s1458 + $0xa8] sm:$0xe]
        %v2384 = vld [vmem:[%s1458 + $0xac] sm:$0xf]
        %v2385 = vld [vmem:[%s1458 + $0xb0] sm:$0x1]
        %v2386 = vld [vmem:[%s1458 + $0xb4] sm:$0xe]
        %v2387 = vld [vmem:[%s1458 + $0xb8] sm:$0xf]
        %v2388 = vld [vmem:[%s1458 + $0xbc] sm:$0x1]
        %v2437 = vrot.slane %v2341, 5
        %v2438 = vrot.slane %v2437, 4
        %v2439 = vrot.slane %v2342, 5
        %v2440 = vsel %vm1117, %v2438, %v2439
        %v2441 = vrot.slane %v2439, 4
        %v2442 = vrot.slane %v2343, 5
        %v2443 = vsel %vm1117, %v2441, %v2442
        %v2444 = vrot.slane %v2344, 5
        %v2445 = vrot.slane %v2444, 4
        %v2446 = vrot.slane %v2345, 5
        %v2447 = vsel %vm1117, %v2445, %v2446
        %v2448 = vrot.slane %v2446, 4
        %v2449 = vrot.slane %v2346, 5
        %v2450 = vsel %vm1117, %v2448, %v2449
        %v2451 = vrot.slane %v2347, 5
        %v2452 = vrot.slane %v2451, 4
        %v2453 = vrot.slane %v2348, 5
        %v2454 = vsel %vm1117, %v2452, %v2453
        %v2455 = vrot.slane %v2453, 4
        %v2456 = vrot.slane %v2349, 5
        %v2457 = vsel %vm1117, %v2455, %v2456
        %v2458 = vrot.slane %v2350, 5
        %v2459 = vrot.slane %v2458, 4
        %v2460 = vrot.slane %v2351, 5
        %v2461 = vsel %vm1117, %v2459, %v2460
        %v2462 = vrot.slane %v2460, 4
        %v2463 = vrot.slane %v2352, 5
        %v2464 = vsel %vm1117, %v2462, %v2463
        %v2465 = vrot.slane %v2353, 5
        %v2466 = vrot.slane %v2465, 4
        %v2467 = vrot.slane %v2354, 5
        %v2468 = vsel %vm1117, %v2466, %v2467
        %v2469 = vrot.slane %v2467, 4
        %v2470 = vrot.slane %v2355, 5
        %v2471 = vsel %vm1117, %v2469, %v2470
        %v2472 = vrot.slane %v2356, 5
        %v2473 = vrot.slane %v2472, 4
        %v2474 = vrot.slane %v2357, 5
        %v2475 = vsel %vm1117, %v2473, %v2474
        %v2476 = vrot.slane %v2474, 4
        %v2477 = vrot.slane %v2358, 5
        %v2478 = vsel %vm1117, %v2476, %v2477
        %v2479 = vrot.slane %v2359, 5
        %v2480 = vrot.slane %v2479, 4
        %v2481 = vrot.slane %v2360, 5
        %v2482 = vsel %vm1117, %v2480, %v2481
        %v2483 = vrot.slane %v2481, 4
        %v2484 = vrot.slane %v2361, 5
        %v2485 = vsel %vm1117, %v2483, %v2484
        %v2486 = vrot.slane %v2362, 5
        %v2487 = vrot.slane %v2486, 4
        %v2488 = vrot.slane %v2363, 5
        %v2489 = vsel %vm1117, %v2487, %v2488
        %v2490 = vrot.slane %v2488, 4
        %v2491 = vrot.slane %v2364, 5
        %v2492 = vsel %vm1117, %v2490, %v2491
        %v2493 = vrot.slane %v2365, 5
        %v2494 = vrot.slane %v2493, 4
        %v2495 = vrot.slane %v2366, 5
        %v2496 = vsel %vm1117, %v2494, %v2495
        %v2497 = vrot.slane %v2495, 4
        %v2498 = vrot.slane %v2367, 5
        %v2499 = vsel %vm1117, %v2497, %v2498
        %v2500 = vrot.slane %v2368, 5
        %v2501 = vrot.slane %v2500, 4
        %v2502 = vrot.slane %v2369, 5
        %v2503 = vsel %vm1117, %v2501, %v2502
        %v2504 = vrot.slane %v2502, 4
        %v2505 = vrot.slane %v2370, 5
        %v2506 = vsel %vm1117, %v2504, %v2505
        %v2507 = vrot.slane %v2371, 5
        %v2508 = vrot.slane %v2507, 4
        %v2509 = vrot.slane %v2372, 5
        %v2510 = vsel %vm1117, %v2508, %v2509
        %v2511 = vrot.slane %v2509, 4
        %v2512 = vrot.slane %v2373, 5
        %v2513 = vsel %vm1117, %v2511, %v2512
        %v2514 = vrot.slane %v2374, 5
        %v2515 = vrot.slane %v2514, 4
        %v2516 = vrot.slane %v2375, 5
        %v2517 = vsel %vm1117, %v2515, %v2516
        %v2518 = vrot.slane %v2516, 4
        %v2519 = vrot.slane %v2376, 5
        %v2520 = vsel %vm1117, %v2518, %v2519
        %v2521 = vrot.slane %v2377, 5
        %v2522 = vrot.slane %v2521, 4
        %v2523 = vrot.slane %v2378, 5
        %v2524 = vsel %vm1117, %v2522, %v2523
        %v2525 = vrot.slane %v2523, 4
        %v2526 = vrot.slane %v2379, 5
        %v2527 = vsel %vm1117, %v2525, %v2526
        %v2528 = vrot.slane %v2380, 5
        %v2529 = vrot.slane %v2528, 4
        %v2530 = vrot.slane %v2381, 5
        %v2531 = vsel %vm1117, %v2529, %v2530
        %v2532 = vrot.slane %v2530, 4
        %v2533 = vrot.slane %v2382, 5
        %v2534 = vsel %vm1117, %v2532, %v2533
        %v2535 = vrot.slane %v2383, 5
        %v2536 = vrot.slane %v2535, 4
        %v2537 = vrot.slane %v2384, 5
        %v2538 = vsel %vm1117, %v2536, %v2537
        %v2539 = vrot.slane %v2537, 4
        %v2540 = vrot.slane %v2385, 5
        %v2541 = vsel %vm1117, %v2539, %v2540
        %v2542 = vrot.slane %v2386, 5
        %v2543 = vrot.slane %v2542, 4
        %v2544 = vrot.slane %v2387, 5
        %v2545 = vsel %vm1117, %v2543, %v2544
        %v2546 = vrot.slane %v2544, 4
        %v2547 = vrot.slane %v2388, 5
        %v2548 = vsel %vm1117, %v2546, %v2547
        %v2581 = vunpack.c.l.bf16 %v2440
        %v2582 = vunpack.c.l.bf16 %v2443
        %v2583 = vunpack.c.l.bf16 %v2447
        %v2584 = vunpack.c.l.bf16 %v2450
        %v2585 = vunpack.c.l.bf16 %v2454
        %v2586 = vunpack.c.l.bf16 %v2457
        %v2587 = vunpack.c.l.bf16 %v2461
        %v2588 = vunpack.c.l.bf16 %v2464
        %v2589 = vunpack.c.l.bf16 %v2468
        %v2590 = vunpack.c.l.bf16 %v2471
        %v2591 = vunpack.c.l.bf16 %v2475
        %v2592 = vunpack.c.l.bf16 %v2478
        %v2593 = vunpack.c.l.bf16 %v2482
        %v2594 = vunpack.c.l.bf16 %v2485
        %v2595 = vunpack.c.l.bf16 %v2489
        %v2596 = vunpack.c.l.bf16 %v2492
        %v2597 = vunpack.c.l.bf16 %v2496
        %v2598 = vunpack.c.l.bf16 %v2499
        %v2599 = vunpack.c.l.bf16 %v2503
        %v2600 = vunpack.c.l.bf16 %v2506
        %v2601 = vunpack.c.l.bf16 %v2510
        %v2602 = vunpack.c.l.bf16 %v2513
        %v2603 = vunpack.c.l.bf16 %v2517
        %v2604 = vunpack.c.l.bf16 %v2520
        %v2605 = vunpack.c.l.bf16 %v2524
        %v2606 = vunpack.c.l.bf16 %v2527
        %v2607 = vunpack.c.l.bf16 %v2531
        %v2608 = vunpack.c.l.bf16 %v2534
        %v2609 = vunpack.c.l.bf16 %v2538
        %v2610 = vunpack.c.l.bf16 %v2541
        %v2611 = vunpack.c.l.bf16 %v2545
        %v2612 = vunpack.c.l.bf16 %v2548
        %2645 = vrot.lane.b32.xlu0 %v2581, 20
        %v2646 = vpop.permute.xlu0 %2645
        %2647 = vrot.lane.b32.xlu0 %v2582, 20
        %v2648 = vpop.permute.xlu0 %2647
        %2649 = vrot.lane.b32.xlu0 %v2583, 20
        %v2650 = vpop.permute.xlu0 %2649
        %2651 = vrot.lane.b32.xlu0 %v2584, 20
        %v2652 = vpop.permute.xlu0 %2651
        %2653 = vrot.lane.b32.xlu0 %v2585, 20
        %v2654 = vpop.permute.xlu0 %2653
        %2655 = vrot.lane.b32.xlu0 %v2586, 20
        %v2656 = vpop.permute.xlu0 %2655
        %2657 = vrot.lane.b32.xlu0 %v2587, 20
        %v2658 = vpop.permute.xlu0 %2657
        %2659 = vrot.lane.b32.xlu0 %v2588, 20
        %v2660 = vpop.permute.xlu0 %2659
        %2661 = vrot.lane.b32.xlu0 %v2589, 20
        %v2662 = vpop.permute.xlu0 %2661
        %2663 = vrot.lane.b32.xlu0 %v2590, 20
        %v2664 = vpop.permute.xlu0 %2663
        %2665 = vrot.lane.b32.xlu0 %v2591, 20
        %v2666 = vpop.permute.xlu0 %2665
        %2667 = vrot.lane.b32.xlu0 %v2592, 20
        %v2668 = vpop.permute.xlu0 %2667
        %2669 = vrot.lane.b32.xlu0 %v2593, 20
        %v2670 = vpop.permute.xlu0 %2669
        %2671 = vrot.lane.b32.xlu0 %v2594, 20
        %v2672 = vpop.permute.xlu0 %2671
        %2673 = vrot.lane.b32.xlu0 %v2595, 20
        %v2674 = vpop.permute.xlu0 %2673
        %2675 = vrot.lane.b32.xlu0 %v2596, 20
        %v2676 = vpop.permute.xlu0 %2675
        %2677 = vrot.lane.b32.xlu0 %v2597, 20
        %v2678 = vpop.permute.xlu0 %2677
        %2679 = vrot.lane.b32.xlu0 %v2598, 20
        %v2680 = vpop.permute.xlu0 %2679
        %2681 = vrot.lane.b32.xlu0 %v2599, 20
        %v2682 = vpop.permute.xlu0 %2681
        %2683 = vrot.lane.b32.xlu0 %v2600, 20
        %v2684 = vpop.permute.xlu0 %2683
        %2685 = vrot.lane.b32.xlu0 %v2601, 20
        %v2686 = vpop.permute.xlu0 %2685
        %2687 = vrot.lane.b32.xlu0 %v2602, 20
        %v2688 = vpop.permute.xlu0 %2687
        %2689 = vrot.lane.b32.xlu0 %v2603, 20
        %v2690 = vpop.permute.xlu0 %2689
        %2691 = vrot.lane.b32.xlu0 %v2604, 20
        %v2692 = vpop.permute.xlu0 %2691
        %2693 = vrot.lane.b32.xlu0 %v2605, 20
        %v2694 = vpop.permute.xlu0 %2693
        %2695 = vrot.lane.b32.xlu0 %v2606, 20
        %v2696 = vpop.permute.xlu0 %2695
        %2697 = vrot.lane.b32.xlu0 %v2607, 20
        %v2698 = vpop.permute.xlu0 %2697
        %2699 = vrot.lane.b32.xlu0 %v2608, 20
        %v2700 = vpop.permute.xlu0 %2699
        %2701 = vrot.lane.b32.xlu0 %v2609, 20
        %v2702 = vpop.permute.xlu0 %2701
        %2703 = vrot.lane.b32.xlu0 %v2610, 20
        %v2704 = vpop.permute.xlu0 %2703
        %2705 = vrot.lane.b32.xlu0 %v2611, 20
        %v2706 = vpop.permute.xlu0 %2705
        %2707 = vrot.lane.b32.xlu0 %v2612, 20
        %v2708 = vpop.permute.xlu0 %2707
        %vm2741 = vcmask 195744
        %2742 = vst.msk [vmem:[#allocation2] sm:$0xff] %vm2741, %v2646
        %2743 = vst.msk [vmem:[#allocation2 + $0x8] sm:$0xff] %vm2741, %v2648
        %2744 = vst.msk [vmem:[#allocation2 + $0x10] sm:$0xff] %vm2741, %v2650
        %2745 = vst.msk [vmem:[#allocation2 + $0x18] sm:$0xff] %vm2741, %v2652
        %2746 = vst.msk [vmem:[#allocation2 + $0x20] sm:$0xff] %vm2741, %v2654
        %2747 = vst.msk [vmem:[#allocation2 + $0x28] sm:$0xff] %vm2741, %v2656
        %2748 = vst.msk [vmem:[#allocation2 + $0x30] sm:$0xff] %vm2741, %v2658
        %2749 = vst.msk [vmem:[#allocation2 + $0x38] sm:$0xff] %vm2741, %v2660
        %2750 = vst.msk [vmem:[#allocation2 + $0x40] sm:$0xff] %vm2741, %v2662
        %2751 = vst.msk [vmem:[#allocation2 + $0x48] sm:$0xff] %vm2741, %v2664
        %2752 = vst.msk [vmem:[#allocation2 + $0x50] sm:$0xff] %vm2741, %v2666
        %2753 = vst.msk [vmem:[#allocation2 + $0x58] sm:$0xff] %vm2741, %v2668
        %2754 = vst.msk [vmem:[#allocation2 + $0x60] sm:$0xff] %vm2741, %v2670
        %2755 = vst.msk [vmem:[#allocation2 + $0x68] sm:$0xff] %vm2741, %v2672
        %2756 = vst.msk [vmem:[#allocation2 + $0x70] sm:$0xff] %vm2741, %v2674
        %2757 = vst.msk [vmem:[#allocation2 + $0x78] sm:$0xff] %vm2741, %v2676
        %2758 = vst.msk [vmem:[#allocation2 + $0x80] sm:$0xff] %vm2741, %v2678
        %2759 = vst.msk [vmem:[#allocation2 + $0x88] sm:$0xff] %vm2741, %v2680
        %2760 = vst.msk [vmem:[#allocation2 + $0x90] sm:$0xff] %vm2741, %v2682
        %2761 = vst.msk [vmem:[#allocation2 + $0x98] sm:$0xff] %vm2741, %v2684
        %2762 = vst.msk [vmem:[#allocation2 + $0xa0] sm:$0xff] %vm2741, %v2686
        %2763 = vst.msk [vmem:[#allocation2 + $0xa8] sm:$0xff] %vm2741, %v2688
        %2764 = vst.msk [vmem:[#allocation2 + $0xb0] sm:$0xff] %vm2741, %v2690
        %2765 = vst.msk [vmem:[#allocation2 + $0xb8] sm:$0xff] %vm2741, %v2692
        %2766 = vst.msk [vmem:[#allocation2 + $0xc0] sm:$0xff] %vm2741, %v2694
        %2767 = vst.msk [vmem:[#allocation2 + $0xc8] sm:$0xff] %vm2741, %v2696
        %2768 = vst.msk [vmem:[#allocation2 + $0xd0] sm:$0xff] %vm2741, %v2698
        %2769 = vst.msk [vmem:[#allocation2 + $0xd8] sm:$0xff] %vm2741, %v2700
        %2770 = vst.msk [vmem:[#allocation2 + $0xe0] sm:$0xff] %vm2741, %v2702
        %2771 = vst.msk [vmem:[#allocation2 + $0xe8] sm:$0xff] %vm2741, %v2704
        %2772 = vst.msk [vmem:[#allocation2 + $0xf0] sm:$0xff] %vm2741, %v2706
        %2773 = vst.msk [vmem:[#allocation2 + $0xf8] sm:$0xff] %vm2741, %v2708
        %s2774 = sadd.s32 %s258, 2
        %s2775 = smul.u32 %s2774, 3
        %s2776 = smul.addr %s2775, 4
        %s2777 = scalar_lea.vmem %s251, %s2776
        %v2778 = vld [vmem:[%s2777] sm:$0xf]
        %v2779 = vld [vmem:[%s2777 + $0x4] sm:$0xf]
        %v2780 = vld [vmem:[%s2777 + $0xc] sm:$0xf]
        %v2781 = vld [vmem:[%s2777 + $0x10] sm:$0xf]
        %v2782 = vld [vmem:[%s2777 + $0x18] sm:$0xf]
        %v2783 = vld [vmem:[%s2777 + $0x1c] sm:$0xf]
        %v2784 = vld [vmem:[%s2777 + $0x24] sm:$0xf]
        %v2785 = vld [vmem:[%s2777 + $0x28] sm:$0xf]
        %v2786 = vld [vmem:[%s2777 + $0x30] sm:$0xf]
        %v2787 = vld [vmem:[%s2777 + $0x34] sm:$0xf]
        %v2788 = vld [vmem:[%s2777 + $0x3c] sm:$0xf]
        %v2789 = vld [vmem:[%s2777 + $0x40] sm:$0xf]
        %v2790 = vld [vmem:[%s2777 + $0x48] sm:$0xf]
        %v2791 = vld [vmem:[%s2777 + $0x4c] sm:$0xf]
        %v2792 = vld [vmem:[%s2777 + $0x54] sm:$0xf]
        %v2793 = vld [vmem:[%s2777 + $0x58] sm:$0xf]
        %v2794 = vld [vmem:[%s2777 + $0x60] sm:$0xf]
        %v2795 = vld [vmem:[%s2777 + $0x64] sm:$0xf]
        %v2796 = vld [vmem:[%s2777 + $0x6c] sm:$0xf]
        %v2797 = vld [vmem:[%s2777 + $0x70] sm:$0xf]
        %v2798 = vld [vmem:[%s2777 + $0x78] sm:$0xf]
        %v2799 = vld [vmem:[%s2777 + $0x7c] sm:$0xf]
        %v2800 = vld [vmem:[%s2777 + $0x84] sm:$0xf]
        %v2801 = vld [vmem:[%s2777 + $0x88] sm:$0xf]
        %v2802 = vld [vmem:[%s2777 + $0x90] sm:$0xf]
        %v2803 = vld [vmem:[%s2777 + $0x94] sm:$0xf]
        %v2804 = vld [vmem:[%s2777 + $0x9c] sm:$0xf]
        %v2805 = vld [vmem:[%s2777 + $0xa0] sm:$0xf]
        %v2806 = vld [vmem:[%s2777 + $0xa8] sm:$0xf]
        %v2807 = vld [vmem:[%s2777 + $0xac] sm:$0xf]
        %v2808 = vld [vmem:[%s2777 + $0xb4] sm:$0xf]
        %v2809 = vld [vmem:[%s2777 + $0xb8] sm:$0xf]
        %v2810 = vunpack.c.l.bf16 %v2778
        %v2811 = vunpack.c.l.bf16 %v2779
        %v2812 = vunpack.c.l.bf16 %v2780
        %v2813 = vunpack.c.l.bf16 %v2781
        %v2814 = vunpack.c.l.bf16 %v2782
        %v2815 = vunpack.c.l.bf16 %v2783
        %v2816 = vunpack.c.l.bf16 %v2784
        %v2817 = vunpack.c.l.bf16 %v2785
        %v2818 = vunpack.c.l.bf16 %v2786
        %v2819 = vunpack.c.l.bf16 %v2787
        %v2820 = vunpack.c.l.bf16 %v2788
        %v2821 = vunpack.c.l.bf16 %v2789
        %v2822 = vunpack.c.l.bf16 %v2790
        %v2823 = vunpack.c.l.bf16 %v2791
        %v2824 = vunpack.c.l.bf16 %v2792
        %v2825 = vunpack.c.l.bf16 %v2793
        %v2826 = vunpack.c.l.bf16 %v2794
        %v2827 = vunpack.c.l.bf16 %v2795
        %v2828 = vunpack.c.l.bf16 %v2796
        %v2829 = vunpack.c.l.bf16 %v2797
        %v2830 = vunpack.c.l.bf16 %v2798
        %v2831 = vunpack.c.l.bf16 %v2799
        %v2832 = vunpack.c.l.bf16 %v2800
        %v2833 = vunpack.c.l.bf16 %v2801
        %v2834 = vunpack.c.l.bf16 %v2802
        %v2835 = vunpack.c.l.bf16 %v2803
        %v2836 = vunpack.c.l.bf16 %v2804
        %v2837 = vunpack.c.l.bf16 %v2805
        %v2838 = vunpack.c.l.bf16 %v2806
        %v2839 = vunpack.c.l.bf16 %v2807
        %v2840 = vunpack.c.l.bf16 %v2808
        %v2841 = vunpack.c.l.bf16 %v2809
        %2874 = vrot.lane.b32.xlu0 %v2810, 24
        %v2875 = vpop.permute.xlu0 %2874
        %2876 = vrot.lane.b32.xlu0 %v2811, 24
        %v2877 = vpop.permute.xlu0 %2876
        %2878 = vrot.lane.b32.xlu0 %v2812, 24
        %v2879 = vpop.permute.xlu0 %2878
        %2880 = vrot.lane.b32.xlu0 %v2813, 24
        %v2881 = vpop.permute.xlu0 %2880
        %2882 = vrot.lane.b32.xlu0 %v2814, 24
        %v2883 = vpop.permute.xlu0 %2882
        %2884 = vrot.lane.b32.xlu0 %v2815, 24
        %v2885 = vpop.permute.xlu0 %2884
        %2886 = vrot.lane.b32.xlu0 %v2816, 24
        %v2887 = vpop.permute.xlu0 %2886
        %2888 = vrot.lane.b32.xlu0 %v2817, 24
        %v2889 = vpop.permute.xlu0 %2888
        %2890 = vrot.lane.b32.xlu0 %v2818, 24
        %v2891 = vpop.permute.xlu0 %2890
        %2892 = vrot.lane.b32.xlu0 %v2819, 24
        %v2893 = vpop.permute.xlu0 %2892
        %2894 = vrot.lane.b32.xlu0 %v2820, 24
        %v2895 = vpop.permute.xlu0 %2894
        %2896 = vrot.lane.b32.xlu0 %v2821, 24
        %v2897 = vpop.permute.xlu0 %2896
        %2898 = vrot.lane.b32.xlu0 %v2822, 24
        %v2899 = vpop.permute.xlu0 %2898
        %2900 = vrot.lane.b32.xlu0 %v2823, 24
        %v2901 = vpop.permute.xlu0 %2900
        %2902 = vrot.lane.b32.xlu0 %v2824, 24
        %v2903 = vpop.permute.xlu0 %2902
        %2904 = vrot.lane.b32.xlu0 %v2825, 24
        %v2905 = vpop.permute.xlu0 %2904
        %2906 = vrot.lane.b32.xlu0 %v2826, 24
        %v2907 = vpop.permute.xlu0 %2906
        %2908 = vrot.lane.b32.xlu0 %v2827, 24
        %v2909 = vpop.permute.xlu0 %2908
        %2910 = vrot.lane.b32.xlu0 %v2828, 24
        %v2911 = vpop.permute.xlu0 %2910
        %2912 = vrot.lane.b32.xlu0 %v2829, 24
        %v2913 = vpop.permute.xlu0 %2912
        %2914 = vrot.lane.b32.xlu0 %v2830, 24
        %v2915 = vpop.permute.xlu0 %2914
        %2916 = vrot.lane.b32.xlu0 %v2831, 24
        %v2917 = vpop.permute.xlu0 %2916
        %2918 = vrot.lane.b32.xlu0 %v2832, 24
        %v2919 = vpop.permute.xlu0 %2918
        %2920 = vrot.lane.b32.xlu0 %v2833, 24
        %v2921 = vpop.permute.xlu0 %2920
        %2922 = vrot.lane.b32.xlu0 %v2834, 24
        %v2923 = vpop.permute.xlu0 %2922
        %2924 = vrot.lane.b32.xlu0 %v2835, 24
        %v2925 = vpop.permute.xlu0 %2924
        %2926 = vrot.lane.b32.xlu0 %v2836, 24
        %v2927 = vpop.permute.xlu0 %2926
        %2928 = vrot.lane.b32.xlu0 %v2837, 24
        %v2929 = vpop.permute.xlu0 %2928
        %2930 = vrot.lane.b32.xlu0 %v2838, 24
        %v2931 = vpop.permute.xlu0 %2930
        %2932 = vrot.lane.b32.xlu0 %v2839, 24
        %v2933 = vpop.permute.xlu0 %2932
        %2934 = vrot.lane.b32.xlu0 %v2840, 24
        %v2935 = vpop.permute.xlu0 %2934
        %2936 = vrot.lane.b32.xlu0 %v2841, 24
        %v2937 = vpop.permute.xlu0 %2936
        %vm2970 = vcmask 228544
        %2971 = vst.msk [vmem:[#allocation2] sm:$0xff] %vm2970, %v2875
        %2972 = vst.msk [vmem:[#allocation2 + $0x8] sm:$0xff] %vm2970, %v2877
        %2973 = vst.msk [vmem:[#allocation2 + $0x10] sm:$0xff] %vm2970, %v2879
        %2974 = vst.msk [vmem:[#allocation2 + $0x18] sm:$0xff] %vm2970, %v2881
        %2975 = vst.msk [vmem:[#allocation2 + $0x20] sm:$0xff] %vm2970, %v2883
        %2976 = vst.msk [vmem:[#allocation2 + $0x28] sm:$0xff] %vm2970, %v2885
        %2977 = vst.msk [vmem:[#allocation2 + $0x30] sm:$0xff] %vm2970, %v2887
        %2978 = vst.msk [vmem:[#allocation2 + $0x38] sm:$0xff] %vm2970, %v2889
        %2979 = vst.msk [vmem:[#allocation2 + $0x40] sm:$0xff] %vm2970, %v2891
        %2980 = vst.msk [vmem:[#allocation2 + $0x48] sm:$0xff] %vm2970, %v2893
        %2981 = vst.msk [vmem:[#allocation2 + $0x50] sm:$0xff] %vm2970, %v2895
        %2982 = vst.msk [vmem:[#allocation2 + $0x58] sm:$0xff] %vm2970, %v2897
        %2983 = vst.msk [vmem:[#allocation2 + $0x60] sm:$0xff] %vm2970, %v2899
        %2984 = vst.msk [vmem:[#allocation2 + $0x68] sm:$0xff] %vm2970, %v2901
        %2985 = vst.msk [vmem:[#allocation2 + $0x70] sm:$0xff] %vm2970, %v2903
        %2986 = vst.msk [vmem:[#allocation2 + $0x78] sm:$0xff] %vm2970, %v2905
        %2987 = vst.msk [vmem:[#allocation2 + $0x80] sm:$0xff] %vm2970, %v2907
        %2988 = vst.msk [vmem:[#allocation2 + $0x88] sm:$0xff] %vm2970, %v2909
        %2989 = vst.msk [vmem:[#allocation2 + $0x90] sm:$0xff] %vm2970, %v2911
        %2990 = vst.msk [vmem:[#allocation2 + $0x98] sm:$0xff] %vm2970, %v2913
        %2991 = vst.msk [vmem:[#allocation2 + $0xa0] sm:$0xff] %vm2970, %v2915
        %2992 = vst.msk [vmem:[#allocation2 + $0xa8] sm:$0xff] %vm2970, %v2917
        %2993 = vst.msk [vmem:[#allocation2 + $0xb0] sm:$0xff] %vm2970, %v2919
        %2994 = vst.msk [vmem:[#allocation2 + $0xb8] sm:$0xff] %vm2970, %v2921
        %2995 = vst.msk [vmem:[#allocation2 + $0xc0] sm:$0xff] %vm2970, %v2923
        %2996 = vst.msk [vmem:[#allocation2 + $0xc8] sm:$0xff] %vm2970, %v2925
        %2997 = vst.msk [vmem:[#allocation2 + $0xd0] sm:$0xff] %vm2970, %v2927
        %2998 = vst.msk [vmem:[#allocation2 + $0xd8] sm:$0xff] %vm2970, %v2929
        %2999 = vst.msk [vmem:[#allocation2 + $0xe0] sm:$0xff] %vm2970, %v2931
        %3000 = vst.msk [vmem:[#allocation2 + $0xe8] sm:$0xff] %vm2970, %v2933
        %3001 = vst.msk [vmem:[#allocation2 + $0xf0] sm:$0xff] %vm2970, %v2935
        %3002 = vst.msk [vmem:[#allocation2 + $0xf8] sm:$0xff] %vm2970, %v2937
        %v3003 = vld [vmem:[%s2777] sm:$0xf]
        %v3004 = vld [vmem:[%s2777 + $0x4] sm:$0xf]
        %v3005 = vld [vmem:[%s2777 + $0x8] sm:$0x1]
        %v3006 = vld [vmem:[%s2777 + $0xc] sm:$0xf]
        %v3007 = vld [vmem:[%s2777 + $0x10] sm:$0xf]
        %v3008 = vld [vmem:[%s2777 + $0x14] sm:$0x1]
        %v3009 = vld [vmem:[%s2777 + $0x18] sm:$0xf]
        %v3010 = vld [vmem:[%s2777 + $0x1c] sm:$0xf]
        %v3011 = vld [vmem:[%s2777 + $0x20] sm:$0x1]
        %v3012 = vld [vmem:[%s2777 + $0x24] sm:$0xf]
        %v3013 = vld [vmem:[%s2777 + $0x28] sm:$0xf]
        %v3014 = vld [vmem:[%s2777 + $0x2c] sm:$0x1]
        %v3015 = vld [vmem:[%s2777 + $0x30] sm:$0xf]
        %v3016 = vld [vmem:[%s2777 + $0x34] sm:$0xf]
        %v3017 = vld [vmem:[%s2777 + $0x38] sm:$0x1]
        %v3018 = vld [vmem:[%s2777 + $0x3c] sm:$0xf]
        %v3019 = vld [vmem:[%s2777 + $0x40] sm:$0xf]
        %v3020 = vld [vmem:[%s2777 + $0x44] sm:$0x1]
        %v3021 = vld [vmem:[%s2777 + $0x48] sm:$0xf]
        %v3022 = vld [vmem:[%s2777 + $0x4c] sm:$0xf]
        %v3023 = vld [vmem:[%s2777 + $0x50] sm:$0x1]
        %v3024 = vld [vmem:[%s2777 + $0x54] sm:$0xf]
        %v3025 = vld [vmem:[%s2777 + $0x58] sm:$0xf]
        %v3026 = vld [vmem:[%s2777 + $0x5c] sm:$0x1]
        %v3027 = vld [vmem:[%s2777 + $0x60] sm:$0xf]
        %v3028 = vld [vmem:[%s2777 + $0x64] sm:$0xf]
        %v3029 = vld [vmem:[%s2777 + $0x68] sm:$0x1]
        %v3030 = vld [vmem:[%s2777 + $0x6c] sm:$0xf]
        %v3031 = vld [vmem:[%s2777 + $0x70] sm:$0xf]
        %v3032 = vld [vmem:[%s2777 + $0x74] sm:$0x1]
        %v3033 = vld [vmem:[%s2777 + $0x78] sm:$0xf]
        %v3034 = vld [vmem:[%s2777 + $0x7c] sm:$0xf]
        %v3035 = vld [vmem:[%s2777 + $0x80] sm:$0x1]
        %v3036 = vld [vmem:[%s2777 + $0x84] sm:$0xf]
        %v3037 = vld [vmem:[%s2777 + $0x88] sm:$0xf]
        %v3038 = vld [vmem:[%s2777 + $0x8c] sm:$0x1]
        %v3039 = vld [vmem:[%s2777 + $0x90] sm:$0xf]
        %v3040 = vld [vmem:[%s2777 + $0x94] sm:$0xf]
        %v3041 = vld [vmem:[%s2777 + $0x98] sm:$0x1]
        %v3042 = vld [vmem:[%s2777 + $0x9c] sm:$0xf]
        %v3043 = vld [vmem:[%s2777 + $0xa0] sm:$0xf]
        %v3044 = vld [vmem:[%s2777 + $0xa4] sm:$0x1]
        %v3045 = vld [vmem:[%s2777 + $0xa8] sm:$0xf]
        %v3046 = vld [vmem:[%s2777 + $0xac] sm:$0xf]
        %v3047 = vld [vmem:[%s2777 + $0xb0] sm:$0x1]
        %v3048 = vld [vmem:[%s2777 + $0xb4] sm:$0xf]
        %v3049 = vld [vmem:[%s2777 + $0xb8] sm:$0xf]
        %v3050 = vld [vmem:[%s2777 + $0xbc] sm:$0x1]
        %v3052 = vshrl.u32 %v3003, 16
        %v3054 = vrot.slane %v3052, 4
        %v3055 = vshll.u32 %v3003, 16
        %v3057 = vrot.slane %v3055, 5
        %v3058 = vor.u32 %v3054, %v3057
        %v3059 = vrot.slane %v3058, 4
        %v3061 = vshll.u32 %v3004, 16
        %v3063 = vrot.slane %v3061, 5
        %v3064 = vsel %vm409, %v3059, %v3063
        %v3065 = vshrl.u32 %v3004, 16
        %v3067 = vrot.slane %v3065, 4
        %v3068 = vor.u32 %v3067, %v3063
        %v3069 = vrot.slane %v3068, 4
        %v3071 = vshll.u32 %v3005, 16
        %v3073 = vrot.slane %v3071, 5
        %v3074 = vsel %vm409, %v3069, %v3073
        %v3076 = vshrl.u32 %v3006, 16
        %v3078 = vrot.slane %v3076, 4
        %v3079 = vshll.u32 %v3006, 16
        %v3081 = vrot.slane %v3079, 5
        %v3082 = vor.u32 %v3078, %v3081
        %v3083 = vrot.slane %v3082, 4
        %v3085 = vshll.u32 %v3007, 16
        %v3087 = vrot.slane %v3085, 5
        %v3088 = vsel %vm409, %v3083, %v3087
        %v3089 = vshrl.u32 %v3007, 16
        %v3091 = vrot.slane %v3089, 4
        %v3092 = vor.u32 %v3091, %v3087
        %v3093 = vrot.slane %v3092, 4
        %v3095 = vshll.u32 %v3008, 16
        %v3097 = vrot.slane %v3095, 5
        %v3098 = vsel %vm409, %v3093, %v3097
        %v3100 = vshrl.u32 %v3009, 16
        %v3102 = vrot.slane %v3100, 4
        %v3103 = vshll.u32 %v3009, 16
        %v3105 = vrot.slane %v3103, 5
        %v3106 = vor.u32 %v3102, %v3105
        %v3107 = vrot.slane %v3106, 4
        %v3109 = vshll.u32 %v3010, 16
        %v3111 = vrot.slane %v3109, 5
        %v3112 = vsel %vm409, %v3107, %v3111
        %v3113 = vshrl.u32 %v3010, 16
        %v3115 = vrot.slane %v3113, 4
        %v3116 = vor.u32 %v3115, %v3111
        %v3117 = vrot.slane %v3116, 4
        %v3119 = vshll.u32 %v3011, 16
        %v3121 = vrot.slane %v3119, 5
        %v3122 = vsel %vm409, %v3117, %v3121
        %v3124 = vshrl.u32 %v3012, 16
        %v3126 = vrot.slane %v3124, 4
        %v3127 = vshll.u32 %v3012, 16
        %v3129 = vrot.slane %v3127, 5
        %v3130 = vor.u32 %v3126, %v3129
        %v3131 = vrot.slane %v3130, 4
        %v3133 = vshll.u32 %v3013, 16
        %v3135 = vrot.slane %v3133, 5
        %v3136 = vsel %vm409, %v3131, %v3135
        %v3137 = vshrl.u32 %v3013, 16
        %v3139 = vrot.slane %v3137, 4
        %v3140 = vor.u32 %v3139, %v3135
        %v3141 = vrot.slane %v3140, 4
        %v3143 = vshll.u32 %v3014, 16
        %v3145 = vrot.slane %v3143, 5
        %v3146 = vsel %vm409, %v3141, %v3145
        %v3148 = vshrl.u32 %v3015, 16
        %v3150 = vrot.slane %v3148, 4
        %v3151 = vshll.u32 %v3015, 16
        %v3153 = vrot.slane %v3151, 5
        %v3154 = vor.u32 %v3150, %v3153
        %v3155 = vrot.slane %v3154, 4
        %v3157 = vshll.u32 %v3016, 16
        %v3159 = vrot.slane %v3157, 5
        %v3160 = vsel %vm409, %v3155, %v3159
        %v3161 = vshrl.u32 %v3016, 16
        %v3163 = vrot.slane %v3161, 4
        %v3164 = vor.u32 %v3163, %v3159
        %v3165 = vrot.slane %v3164, 4
        %v3167 = vshll.u32 %v3017, 16
        %v3169 = vrot.slane %v3167, 5
        %v3170 = vsel %vm409, %v3165, %v3169
        %v3172 = vshrl.u32 %v3018, 16
        %v3174 = vrot.slane %v3172, 4
        %v3175 = vshll.u32 %v3018, 16
        %v3177 = vrot.slane %v3175, 5
        %v3178 = vor.u32 %v3174, %v3177
        %v3179 = vrot.slane %v3178, 4
        %v3181 = vshll.u32 %v3019, 16
        %v3183 = vrot.slane %v3181, 5
        %v3184 = vsel %vm409, %v3179, %v3183
        %v3185 = vshrl.u32 %v3019, 16
        %v3187 = vrot.slane %v3185, 4
        %v3188 = vor.u32 %v3187, %v3183
        %v3189 = vrot.slane %v3188, 4
        %v3191 = vshll.u32 %v3020, 16
        %v3193 = vrot.slane %v3191, 5
        %v3194 = vsel %vm409, %v3189, %v3193
        %v3196 = vshrl.u32 %v3021, 16
        %v3198 = vrot.slane %v3196, 4
        %v3199 = vshll.u32 %v3021, 16
        %v3201 = vrot.slane %v3199, 5
        %v3202 = vor.u32 %v3198, %v3201
        %v3203 = vrot.slane %v3202, 4
        %v3205 = vshll.u32 %v3022, 16
        %v3207 = vrot.slane %v3205, 5
        %v3208 = vsel %vm409, %v3203, %v3207
        %v3209 = vshrl.u32 %v3022, 16
        %v3211 = vrot.slane %v3209, 4
        %v3212 = vor.u32 %v3211, %v3207
        %v3213 = vrot.slane %v3212, 4
        %v3215 = vshll.u32 %v3023, 16
        %v3217 = vrot.slane %v3215, 5
        %v3218 = vsel %vm409, %v3213, %v3217
        %v3220 = vshrl.u32 %v3024, 16
        %v3222 = vrot.slane %v3220, 4
        %v3223 = vshll.u32 %v3024, 16
        %v3225 = vrot.slane %v3223, 5
        %v3226 = vor.u32 %v3222, %v3225
        %v3227 = vrot.slane %v3226, 4
        %v3229 = vshll.u32 %v3025, 16
        %v3231 = vrot.slane %v3229, 5
        %v3232 = vsel %vm409, %v3227, %v3231
        %v3233 = vshrl.u32 %v3025, 16
        %v3235 = vrot.slane %v3233, 4
        %v3236 = vor.u32 %v3235, %v3231
        %v3237 = vrot.slane %v3236, 4
        %v3239 = vshll.u32 %v3026, 16
        %v3241 = vrot.slane %v3239, 5
        %v3242 = vsel %vm409, %v3237, %v3241
        %v3244 = vshrl.u32 %v3027, 16
        %v3246 = vrot.slane %v3244, 4
        %v3247 = vshll.u32 %v3027, 16
        %v3249 = vrot.slane %v3247, 5
        %v3250 = vor.u32 %v3246, %v3249
        %v3251 = vrot.slane %v3250, 4
        %v3253 = vshll.u32 %v3028, 16
        %v3255 = vrot.slane %v3253, 5
        %v3256 = vsel %vm409, %v3251, %v3255
        %v3257 = vshrl.u32 %v3028, 16
        %v3259 = vrot.slane %v3257, 4
        %v3260 = vor.u32 %v3259, %v3255
        %v3261 = vrot.slane %v3260, 4
        %v3263 = vshll.u32 %v3029, 16
        %v3265 = vrot.slane %v3263, 5
        %v3266 = vsel %vm409, %v3261, %v3265
        %v3268 = vshrl.u32 %v3030, 16
        %v3270 = vrot.slane %v3268, 4
        %v3271 = vshll.u32 %v3030, 16
        %v3273 = vrot.slane %v3271, 5
        %v3274 = vor.u32 %v3270, %v3273
        %v3275 = vrot.slane %v3274, 4
        %v3277 = vshll.u32 %v3031, 16
        %v3279 = vrot.slane %v3277, 5
        %v3280 = vsel %vm409, %v3275, %v3279
        %v3281 = vshrl.u32 %v3031, 16
        %v3283 = vrot.slane %v3281, 4
        %v3284 = vor.u32 %v3283, %v3279
        %v3285 = vrot.slane %v3284, 4
        %v3287 = vshll.u32 %v3032, 16
        %v3289 = vrot.slane %v3287, 5
        %v3290 = vsel %vm409, %v3285, %v3289
        %v3292 = vshrl.u32 %v3033, 16
        %v3294 = vrot.slane %v3292, 4
        %v3295 = vshll.u32 %v3033, 16
        %v3297 = vrot.slane %v3295, 5
        %v3298 = vor.u32 %v3294, %v3297
        %v3299 = vrot.slane %v3298, 4
        %v3301 = vshll.u32 %v3034, 16
        %v3303 = vrot.slane %v3301, 5
        %v3304 = vsel %vm409, %v3299, %v3303
        %v3305 = vshrl.u32 %v3034, 16
        %v3307 = vrot.slane %v3305, 4
        %v3308 = vor.u32 %v3307, %v3303
        %v3309 = vrot.slane %v3308, 4
        %v3311 = vshll.u32 %v3035, 16
        %v3313 = vrot.slane %v3311, 5
        %v3314 = vsel %vm409, %v3309, %v3313
        %v3316 = vshrl.u32 %v3036, 16
        %v3318 = vrot.slane %v3316, 4
        %v3319 = vshll.u32 %v3036, 16
        %v3321 = vrot.slane %v3319, 5
        %v3322 = vor.u32 %v3318, %v3321
        %v3323 = vrot.slane %v3322, 4
        %v3325 = vshll.u32 %v3037, 16
        %v3327 = vrot.slane %v3325, 5
        %v3328 = vsel %vm409, %v3323, %v3327
        %v3329 = vshrl.u32 %v3037, 16
        %v3331 = vrot.slane %v3329, 4
        %v3332 = vor.u32 %v3331, %v3327
        %v3333 = vrot.slane %v3332, 4
        %v3335 = vshll.u32 %v3038, 16
        %v3337 = vrot.slane %v3335, 5
        %v3338 = vsel %vm409, %v3333, %v3337
        %v3340 = vshrl.u32 %v3039, 16
        %v3342 = vrot.slane %v3340, 4
        %v3343 = vshll.u32 %v3039, 16
        %v3345 = vrot.slane %v3343, 5
        %v3346 = vor.u32 %v3342, %v3345
        %v3347 = vrot.slane %v3346, 4
        %v3349 = vshll.u32 %v3040, 16
        %v3351 = vrot.slane %v3349, 5
        %v3352 = vsel %vm409, %v3347, %v3351
        %v3353 = vshrl.u32 %v3040, 16
        %v3355 = vrot.slane %v3353, 4
        %v3356 = vor.u32 %v3355, %v3351
        %v3357 = vrot.slane %v3356, 4
        %v3359 = vshll.u32 %v3041, 16
        %v3361 = vrot.slane %v3359, 5
        %v3362 = vsel %vm409, %v3357, %v3361
        %v3364 = vshrl.u32 %v3042, 16
        %v3366 = vrot.slane %v3364, 4
        %v3367 = vshll.u32 %v3042, 16
        %v3369 = vrot.slane %v3367, 5
        %v3370 = vor.u32 %v3366, %v3369
        %v3371 = vrot.slane %v3370, 4
        %v3373 = vshll.u32 %v3043, 16
        %v3375 = vrot.slane %v3373, 5
        %v3376 = vsel %vm409, %v3371, %v3375
        %v3377 = vshrl.u32 %v3043, 16
        %v3379 = vrot.slane %v3377, 4
        %v3380 = vor.u32 %v3379, %v3375
        %v3381 = vrot.slane %v3380, 4
        %v3383 = vshll.u32 %v3044, 16
        %v3385 = vrot.slane %v3383, 5
        %v3386 = vsel %vm409, %v3381, %v3385
        %v3388 = vshrl.u32 %v3045, 16
        %v3390 = vrot.slane %v3388, 4
        %v3391 = vshll.u32 %v3045, 16
        %v3393 = vrot.slane %v3391, 5
        %v3394 = vor.u32 %v3390, %v3393
        %v3395 = vrot.slane %v3394, 4
        %v3397 = vshll.u32 %v3046, 16
        %v3399 = vrot.slane %v3397, 5
        %v3400 = vsel %vm409, %v3395, %v3399
        %v3401 = vshrl.u32 %v3046, 16
        %v3403 = vrot.slane %v3401, 4
        %v3404 = vor.u32 %v3403, %v3399
        %v3405 = vrot.slane %v3404, 4
        %v3407 = vshll.u32 %v3047, 16
        %v3409 = vrot.slane %v3407, 5
        %v3410 = vsel %vm409, %v3405, %v3409
        %v3412 = vshrl.u32 %v3048, 16
        %v3414 = vrot.slane %v3412, 4
        %v3415 = vshll.u32 %v3048, 16
        %v3417 = vrot.slane %v3415, 5
        %v3418 = vor.u32 %v3414, %v3417
        %v3419 = vrot.slane %v3418, 4
        %v3421 = vshll.u32 %v3049, 16
        %v3423 = vrot.slane %v3421, 5
        %v3424 = vsel %vm409, %v3419, %v3423
        %v3425 = vshrl.u32 %v3049, 16
        %v3427 = vrot.slane %v3425, 4
        %v3428 = vor.u32 %v3427, %v3423
        %v3429 = vrot.slane %v3428, 4
        %v3431 = vshll.u32 %v3050, 16
        %v3433 = vrot.slane %v3431, 5
        %v3434 = vsel %vm409, %v3429, %v3433
        %v3467 = vunpack.c.l.bf16 %v3064
        %v3468 = vunpack.c.l.bf16 %v3074
        %v3469 = vunpack.c.l.bf16 %v3088
        %v3470 = vunpack.c.l.bf16 %v3098
        %v3471 = vunpack.c.l.bf16 %v3112
        %v3472 = vunpack.c.l.bf16 %v3122
        %v3473 = vunpack.c.l.bf16 %v3136
        %v3474 = vunpack.c.l.bf16 %v3146
        %v3475 = vunpack.c.l.bf16 %v3160
        %v3476 = vunpack.c.l.bf16 %v3170
        %v3477 = vunpack.c.l.bf16 %v3184
        %v3478 = vunpack.c.l.bf16 %v3194
        %v3479 = vunpack.c.l.bf16 %v3208
        %v3480 = vunpack.c.l.bf16 %v3218
        %v3481 = vunpack.c.l.bf16 %v3232
        %v3482 = vunpack.c.l.bf16 %v3242
        %v3483 = vunpack.c.l.bf16 %v3256
        %v3484 = vunpack.c.l.bf16 %v3266
        %v3485 = vunpack.c.l.bf16 %v3280
        %v3486 = vunpack.c.l.bf16 %v3290
        %v3487 = vunpack.c.l.bf16 %v3304
        %v3488 = vunpack.c.l.bf16 %v3314
        %v3489 = vunpack.c.l.bf16 %v3328
        %v3490 = vunpack.c.l.bf16 %v3338
        %v3491 = vunpack.c.l.bf16 %v3352
        %v3492 = vunpack.c.l.bf16 %v3362
        %v3493 = vunpack.c.l.bf16 %v3376
        %v3494 = vunpack.c.l.bf16 %v3386
        %v3495 = vunpack.c.l.bf16 %v3400
        %v3496 = vunpack.c.l.bf16 %v3410
        %v3497 = vunpack.c.l.bf16 %v3424
        %v3498 = vunpack.c.l.bf16 %v3434
        %3531 = vrot.lane.b32.xlu0 %v3467, 28
        %v3532 = vpop.permute.xlu0 %3531
        %3533 = vrot.lane.b32.xlu0 %v3468, 28
        %v3534 = vpop.permute.xlu0 %3533
        %3535 = vrot.lane.b32.xlu0 %v3469, 28
        %v3536 = vpop.permute.xlu0 %3535
        %3537 = vrot.lane.b32.xlu0 %v3470, 28
        %v3538 = vpop.permute.xlu0 %3537
        %3539 = vrot.lane.b32.xlu0 %v3471, 28
        %v3540 = vpop.permute.xlu0 %3539
        %3541 = vrot.lane.b32.xlu0 %v3472, 28
        %v3542 = vpop.permute.xlu0 %3541
        %3543 = vrot.lane.b32.xlu0 %v3473, 28
        %v3544 = vpop.permute.xlu0 %3543
        %3545 = vrot.lane.b32.xlu0 %v3474, 28
        %v3546 = vpop.permute.xlu0 %3545
        %3547 = vrot.lane.b32.xlu0 %v3475, 28
        %v3548 = vpop.permute.xlu0 %3547
        %3549 = vrot.lane.b32.xlu0 %v3476, 28
        %v3550 = vpop.permute.xlu0 %3549
        %3551 = vrot.lane.b32.xlu0 %v3477, 28
        %v3552 = vpop.permute.xlu0 %3551
        %3553 = vrot.lane.b32.xlu0 %v3478, 28
        %v3554 = vpop.permute.xlu0 %3553
        %3555 = vrot.lane.b32.xlu0 %v3479, 28
        %v3556 = vpop.permute.xlu0 %3555
        %3557 = vrot.lane.b32.xlu0 %v3480, 28
        %v3558 = vpop.permute.xlu0 %3557
        %3559 = vrot.lane.b32.xlu0 %v3481, 28
        %v3560 = vpop.permute.xlu0 %3559
        %3561 = vrot.lane.b32.xlu0 %v3482, 28
        %v3562 = vpop.permute.xlu0 %3561
        %3563 = vrot.lane.b32.xlu0 %v3483, 28
        %v3564 = vpop.permute.xlu0 %3563
        %3565 = vrot.lane.b32.xlu0 %v3484, 28
        %v3566 = vpop.permute.xlu0 %3565
        %3567 = vrot.lane.b32.xlu0 %v3485, 28
        %v3568 = vpop.permute.xlu0 %3567
        %3569 = vrot.lane.b32.xlu0 %v3486, 28
        %v3570 = vpop.permute.xlu0 %3569
        %3571 = vrot.lane.b32.xlu0 %v3487, 28
        %v3572 = vpop.permute.xlu0 %3571
        %3573 = vrot.lane.b32.xlu0 %v3488, 28
        %v3574 = vpop.permute.xlu0 %3573
        %3575 = vrot.lane.b32.xlu0 %v3489, 28
        %v3576 = vpop.permute.xlu0 %3575
        %3577 = vrot.lane.b32.xlu0 %v3490, 28
        %v3578 = vpop.permute.xlu0 %3577
        %3579 = vrot.lane.b32.xlu0 %v3491, 28
        %v3580 = vpop.permute.xlu0 %3579
        %3581 = vrot.lane.b32.xlu0 %v3492, 28
        %v3582 = vpop.permute.xlu0 %3581
        %3583 = vrot.lane.b32.xlu0 %v3493, 28
        %v3584 = vpop.permute.xlu0 %3583
        %3585 = vrot.lane.b32.xlu0 %v3494, 28
        %v3586 = vpop.permute.xlu0 %3585
        %3587 = vrot.lane.b32.xlu0 %v3495, 28
        %v3588 = vpop.permute.xlu0 %3587
        %3589 = vrot.lane.b32.xlu0 %v3496, 28
        %v3590 = vpop.permute.xlu0 %3589
        %3591 = vrot.lane.b32.xlu0 %v3497, 28
        %v3592 = vpop.permute.xlu0 %3591
        %3593 = vrot.lane.b32.xlu0 %v3498, 28
        %v3594 = vpop.permute.xlu0 %3593
        %vm3627 = vcmask 261344
        %3628 = vst.msk [vmem:[#allocation2] sm:$0xff] %vm3627, %v3532
        %3629 = vst.msk [vmem:[#allocation2 + $0x8] sm:$0xff] %vm3627, %v3534
        %3630 = vst.msk [vmem:[#allocation2 + $0x10] sm:$0xff] %vm3627, %v3536
        %3631 = vst.msk [vmem:[#allocation2 + $0x18] sm:$0xff] %vm3627, %v3538
        %3632 = vst.msk [vmem:[#allocation2 + $0x20] sm:$0xff] %vm3627, %v3540
        %3633 = vst.msk [vmem:[#allocation2 + $0x28] sm:$0xff] %vm3627, %v3542
        %3634 = vst.msk [vmem:[#allocation2 + $0x30] sm:$0xff] %vm3627, %v3544
        %3635 = vst.msk [vmem:[#allocation2 + $0x38] sm:$0xff] %vm3627, %v3546
        %3636 = vst.msk [vmem:[#allocation2 + $0x40] sm:$0xff] %vm3627, %v3548
        %3637 = vst.msk [vmem:[#allocation2 + $0x48] sm:$0xff] %vm3627, %v3550
        %3638 = vst.msk [vmem:[#allocation2 + $0x50] sm:$0xff] %vm3627, %v3552
        %3639 = vst.msk [vmem:[#allocation2 + $0x58] sm:$0xff] %vm3627, %v3554
        %3640 = vst.msk [vmem:[#allocation2 + $0x60] sm:$0xff] %vm3627, %v3556
        %3641 = vst.msk [vmem:[#allocation2 + $0x68] sm:$0xff] %vm3627, %v3558
        %3642 = vst.msk [vmem:[#allocation2 + $0x70] sm:$0xff] %vm3627, %v3560
        %3643 = vst.msk [vmem:[#allocation2 + $0x78] sm:$0xff] %vm3627, %v3562
        %3644 = vst.msk [vmem:[#allocation2 + $0x80] sm:$0xff] %vm3627, %v3564
        %3645 = vst.msk [vmem:[#allocation2 + $0x88] sm:$0xff] %vm3627, %v3566
        %3646 = vst.msk [vmem:[#allocation2 + $0x90] sm:$0xff] %vm3627, %v3568
        %3647 = vst.msk [vmem:[#allocation2 + $0x98] sm:$0xff] %vm3627, %v3570
        %3648 = vst.msk [vmem:[#allocation2 + $0xa0] sm:$0xff] %vm3627, %v3572
        %3649 = vst.msk [vmem:[#allocation2 + $0xa8] sm:$0xff] %vm3627, %v3574
        %3650 = vst.msk [vmem:[#allocation2 + $0xb0] sm:$0xff] %vm3627, %v3576
        %3651 = vst.msk [vmem:[#allocation2 + $0xb8] sm:$0xff] %vm3627, %v3578
        %3652 = vst.msk [vmem:[#allocation2 + $0xc0] sm:$0xff] %vm3627, %v3580
        %3653 = vst.msk [vmem:[#allocation2 + $0xc8] sm:$0xff] %vm3627, %v3582
        %3654 = vst.msk [vmem:[#allocation2 + $0xd0] sm:$0xff] %vm3627, %v3584
        %3655 = vst.msk [vmem:[#allocation2 + $0xd8] sm:$0xff] %vm3627, %v3586
        %3656 = vst.msk [vmem:[#allocation2 + $0xe0] sm:$0xff] %vm3627, %v3588
        %3657 = vst.msk [vmem:[#allocation2 + $0xe8] sm:$0xff] %vm3627, %v3590
        %3658 = vst.msk [vmem:[#allocation2 + $0xf0] sm:$0xff] %vm3627, %v3592
        %3659 = vst.msk [vmem:[#allocation2 + $0xf8] sm:$0xff] %vm3627, %v3594
        %v3660 = vld [vmem:[%s2777] sm:$0xe]
        %v3661 = vld [vmem:[%s2777 + $0x4] sm:$0xf]
        %v3662 = vld [vmem:[%s2777 + $0x8] sm:$0x1]
        %v3663 = vld [vmem:[%s2777 + $0xc] sm:$0xe]
        %v3664 = vld [vmem:[%s2777 + $0x10] sm:$0xf]
        %v3665 = vld [vmem:[%s2777 + $0x14] sm:$0x1]
        %v3666 = vld [vmem:[%s2777 + $0x18] sm:$0xe]
        %v3667 = vld [vmem:[%s2777 + $0x1c] sm:$0xf]
        %v3668 = vld [vmem:[%s2777 + $0x20] sm:$0x1]
        %v3669 = vld [vmem:[%s2777 + $0x24] sm:$0xe]
        %v3670 = vld [vmem:[%s2777 + $0x28] sm:$0xf]
        %v3671 = vld [vmem:[%s2777 + $0x2c] sm:$0x1]
        %v3672 = vld [vmem:[%s2777 + $0x30] sm:$0xe]
        %v3673 = vld [vmem:[%s2777 + $0x34] sm:$0xf]
        %v3674 = vld [vmem:[%s2777 + $0x38] sm:$0x1]
        %v3675 = vld [vmem:[%s2777 + $0x3c] sm:$0xe]
        %v3676 = vld [vmem:[%s2777 + $0x40] sm:$0xf]
        %v3677 = vld [vmem:[%s2777 + $0x44] sm:$0x1]
        %v3678 = vld [vmem:[%s2777 + $0x48] sm:$0xe]
        %v3679 = vld [vmem:[%s2777 + $0x4c] sm:$0xf]
        %v3680 = vld [vmem:[%s2777 + $0x50] sm:$0x1]
        %v3681 = vld [vmem:[%s2777 + $0x54] sm:$0xe]
        %v3682 = vld [vmem:[%s2777 + $0x58] sm:$0xf]
        %v3683 = vld [vmem:[%s2777 + $0x5c] sm:$0x1]
        %v3684 = vld [vmem:[%s2777 + $0x60] sm:$0xe]
        %v3685 = vld [vmem:[%s2777 + $0x64] sm:$0xf]
        %v3686 = vld [vmem:[%s2777 + $0x68] sm:$0x1]
        %v3687 = vld [vmem:[%s2777 + $0x6c] sm:$0xe]
        %v3688 = vld [vmem:[%s2777 + $0x70] sm:$0xf]
        %v3689 = vld [vmem:[%s2777 + $0x74] sm:$0x1]
        %v3690 = vld [vmem:[%s2777 + $0x78] sm:$0xe]
        %v3691 = vld [vmem:[%s2777 + $0x7c] sm:$0xf]
        %v3692 = vld [vmem:[%s2777 + $0x80] sm:$0x1]
        %v3693 = vld [vmem:[%s2777 + $0x84] sm:$0xe]
        %v3694 = vld [vmem:[%s2777 + $0x88] sm:$0xf]
        %v3695 = vld [vmem:[%s2777 + $0x8c] sm:$0x1]
        %v3696 = vld [vmem:[%s2777 + $0x90] sm:$0xe]
        %v3697 = vld [vmem:[%s2777 + $0x94] sm:$0xf]
        %v3698 = vld [vmem:[%s2777 + $0x98] sm:$0x1]
        %v3699 = vld [vmem:[%s2777 + $0x9c] sm:$0xe]
        %v3700 = vld [vmem:[%s2777 + $0xa0] sm:$0xf]
        %v3701 = vld [vmem:[%s2777 + $0xa4] sm:$0x1]
        %v3702 = vld [vmem:[%s2777 + $0xa8] sm:$0xe]
        %v3703 = vld [vmem:[%s2777 + $0xac] sm:$0xf]
        %v3704 = vld [vmem:[%s2777 + $0xb0] sm:$0x1]
        %v3705 = vld [vmem:[%s2777 + $0xb4] sm:$0xe]
        %v3706 = vld [vmem:[%s2777 + $0xb8] sm:$0xf]
        %v3707 = vld [vmem:[%s2777 + $0xbc] sm:$0x1]
        %v3756 = vrot.slane %v3660, 5
        %v3757 = vrot.slane %v3756, 4
        %v3758 = vrot.slane %v3661, 5
        %v3759 = vsel %vm1117, %v3757, %v3758
        %v3760 = vrot.slane %v3758, 4
        %v3761 = vrot.slane %v3662, 5
        %v3762 = vsel %vm1117, %v3760, %v3761
        %v3763 = vrot.slane %v3663, 5
        %v3764 = vrot.slane %v3763, 4
        %v3765 = vrot.slane %v3664, 5
        %v3766 = vsel %vm1117, %v3764, %v3765
        %v3767 = vrot.slane %v3765, 4
        %v3768 = vrot.slane %v3665, 5
        %v3769 = vsel %vm1117, %v3767, %v3768
        %v3770 = vrot.slane %v3666, 5
        %v3771 = vrot.slane %v3770, 4
        %v3772 = vrot.slane %v3667, 5
        %v3773 = vsel %vm1117, %v3771, %v3772
        %v3774 = vrot.slane %v3772, 4
        %v3775 = vrot.slane %v3668, 5
        %v3776 = vsel %vm1117, %v3774, %v3775
        %v3777 = vrot.slane %v3669, 5
        %v3778 = vrot.slane %v3777, 4
        %v3779 = vrot.slane %v3670, 5
        %v3780 = vsel %vm1117, %v3778, %v3779
        %v3781 = vrot.slane %v3779, 4
        %v3782 = vrot.slane %v3671, 5
        %v3783 = vsel %vm1117, %v3781, %v3782
        %v3784 = vrot.slane %v3672, 5
        %v3785 = vrot.slane %v3784, 4
        %v3786 = vrot.slane %v3673, 5
        %v3787 = vsel %vm1117, %v3785, %v3786
        %v3788 = vrot.slane %v3786, 4
        %v3789 = vrot.slane %v3674, 5
        %v3790 = vsel %vm1117, %v3788, %v3789
        %v3791 = vrot.slane %v3675, 5
        %v3792 = vrot.slane %v3791, 4
        %v3793 = vrot.slane %v3676, 5
        %v3794 = vsel %vm1117, %v3792, %v3793
        %v3795 = vrot.slane %v3793, 4
        %v3796 = vrot.slane %v3677, 5
        %v3797 = vsel %vm1117, %v3795, %v3796
        %v3798 = vrot.slane %v3678, 5
        %v3799 = vrot.slane %v3798, 4
        %v3800 = vrot.slane %v3679, 5
        %v3801 = vsel %vm1117, %v3799, %v3800
        %v3802 = vrot.slane %v3800, 4
        %v3803 = vrot.slane %v3680, 5
        %v3804 = vsel %vm1117, %v3802, %v3803
        %v3805 = vrot.slane %v3681, 5
        %v3806 = vrot.slane %v3805, 4
        %v3807 = vrot.slane %v3682, 5
        %v3808 = vsel %vm1117, %v3806, %v3807
        %v3809 = vrot.slane %v3807, 4
        %v3810 = vrot.slane %v3683, 5
        %v3811 = vsel %vm1117, %v3809, %v3810
        %v3812 = vrot.slane %v3684, 5
        %v3813 = vrot.slane %v3812, 4
        %v3814 = vrot.slane %v3685, 5
        %v3815 = vsel %vm1117, %v3813, %v3814
        %v3816 = vrot.slane %v3814, 4
        %v3817 = vrot.slane %v3686, 5
        %v3818 = vsel %vm1117, %v3816, %v3817
        %v3819 = vrot.slane %v3687, 5
        %v3820 = vrot.slane %v3819, 4
        %v3821 = vrot.slane %v3688, 5
        %v3822 = vsel %vm1117, %v3820, %v3821
        %v3823 = vrot.slane %v3821, 4
        %v3824 = vrot.slane %v3689, 5
        %v3825 = vsel %vm1117, %v3823, %v3824
        %v3826 = vrot.slane %v3690, 5
        %v3827 = vrot.slane %v3826, 4
        %v3828 = vrot.slane %v3691, 5
        %v3829 = vsel %vm1117, %v3827, %v3828
        %v3830 = vrot.slane %v3828, 4
        %v3831 = vrot.slane %v3692, 5
        %v3832 = vsel %vm1117, %v3830, %v3831
        %v3833 = vrot.slane %v3693, 5
        %v3834 = vrot.slane %v3833, 4
        %v3835 = vrot.slane %v3694, 5
        %v3836 = vsel %vm1117, %v3834, %v3835
        %v3837 = vrot.slane %v3835, 4
        %v3838 = vrot.slane %v3695, 5
        %v3839 = vsel %vm1117, %v3837, %v3838
        %v3840 = vrot.slane %v3696, 5
        %v3841 = vrot.slane %v3840, 4
        %v3842 = vrot.slane %v3697, 5
        %v3843 = vsel %vm1117, %v3841, %v3842
        %v3844 = vrot.slane %v3842, 4
        %v3845 = vrot.slane %v3698, 5
        %v3846 = vsel %vm1117, %v3844, %v3845
        %v3847 = vrot.slane %v3699, 5
        %v3848 = vrot.slane %v3847, 4
        %v3849 = vrot.slane %v3700, 5
        %v3850 = vsel %vm1117, %v3848, %v3849
        %v3851 = vrot.slane %v3849, 4
        %v3852 = vrot.slane %v3701, 5
        %v3853 = vsel %vm1117, %v3851, %v3852
        %v3854 = vrot.slane %v3702, 5
        %v3855 = vrot.slane %v3854, 4
        %v3856 = vrot.slane %v3703, 5
        %v3857 = vsel %vm1117, %v3855, %v3856
        %v3858 = vrot.slane %v3856, 4
        %v3859 = vrot.slane %v3704, 5
        %v3860 = vsel %vm1117, %v3858, %v3859
        %v3861 = vrot.slane %v3705, 5
        %v3862 = vrot.slane %v3861, 4
        %v3863 = vrot.slane %v3706, 5
        %v3864 = vsel %vm1117, %v3862, %v3863
        %v3865 = vrot.slane %v3863, 4
        %v3866 = vrot.slane %v3707, 5
        %v3867 = vsel %vm1117, %v3865, %v3866
        %v3900 = vunpack.c.l.bf16 %v3759
        %v3901 = vunpack.c.l.bf16 %v3762
        %v3902 = vunpack.c.l.bf16 %v3766
        %v3903 = vunpack.c.l.bf16 %v3769
        %v3904 = vunpack.c.l.bf16 %v3773
        %v3905 = vunpack.c.l.bf16 %v3776
        %v3906 = vunpack.c.l.bf16 %v3780
        %v3907 = vunpack.c.l.bf16 %v3783
        %v3908 = vunpack.c.l.bf16 %v3787
        %v3909 = vunpack.c.l.bf16 %v3790
        %v3910 = vunpack.c.l.bf16 %v3794
        %v3911 = vunpack.c.l.bf16 %v3797
        %v3912 = vunpack.c.l.bf16 %v3801
        %v3913 = vunpack.c.l.bf16 %v3804
        %v3914 = vunpack.c.l.bf16 %v3808
        %v3915 = vunpack.c.l.bf16 %v3811
        %v3916 = vunpack.c.l.bf16 %v3815
        %v3917 = vunpack.c.l.bf16 %v3818
        %v3918 = vunpack.c.l.bf16 %v3822
        %v3919 = vunpack.c.l.bf16 %v3825
        %v3920 = vunpack.c.l.bf16 %v3829
        %v3921 = vunpack.c.l.bf16 %v3832
        %v3922 = vunpack.c.l.bf16 %v3836
        %v3923 = vunpack.c.l.bf16 %v3839
        %v3924 = vunpack.c.l.bf16 %v3843
        %v3925 = vunpack.c.l.bf16 %v3846
        %v3926 = vunpack.c.l.bf16 %v3850
        %v3927 = vunpack.c.l.bf16 %v3853
        %v3928 = vunpack.c.l.bf16 %v3857
        %v3929 = vunpack.c.l.bf16 %v3860
        %v3930 = vunpack.c.l.bf16 %v3864
        %v3931 = vunpack.c.l.bf16 %v3867
        %3964 = vrot.lane.b32.xlu0 %v3900, 32
        %v3965 = vpop.permute.xlu0 %3964
        %3966 = vrot.lane.b32.xlu0 %v3901, 32
        %v3967 = vpop.permute.xlu0 %3966
        %3968 = vrot.lane.b32.xlu0 %v3902, 32
        %v3969 = vpop.permute.xlu0 %3968
        %3970 = vrot.lane.b32.xlu0 %v3903, 32
        %v3971 = vpop.permute.xlu0 %3970
        %3972 = vrot.lane.b32.xlu0 %v3904, 32
        %v3973 = vpop.permute.xlu0 %3972
        %3974 = vrot.lane.b32.xlu0 %v3905, 32
        %v3975 = vpop.permute.xlu0 %3974
        %3976 = vrot.lane.b32.xlu0 %v3906, 32
        %v3977 = vpop.permute.xlu0 %3976
        %3978 = vrot.lane.b32.xlu0 %v3907, 32
        %v3979 = vpop.permute.xlu0 %3978
        %3980 = vrot.lane.b32.xlu0 %v3908, 32
        %v3981 = vpop.permute.xlu0 %3980
        %3982 = vrot.lane.b32.xlu0 %v3909, 32
        %v3983 = vpop.permute.xlu0 %3982
        %3984 = vrot.lane.b32.xlu0 %v3910, 32
        %v3985 = vpop.permute.xlu0 %3984
        %3986 = vrot.lane.b32.xlu0 %v3911, 32
        %v3987 = vpop.permute.xlu0 %3986
        %3988 = vrot.lane.b32.xlu0 %v3912, 32
        %v3989 = vpop.permute.xlu0 %3988
        %3990 = vrot.lane.b32.xlu0 %v3913, 32
        %v3991 = vpop.permute.xlu0 %3990
        %3992 = vrot.lane.b32.xlu0 %v3914, 32
        %v3993 = vpop.permute.xlu0 %3992
        %3994 = vrot.lane.b32.xlu0 %v3915, 32
        %v3995 = vpop.permute.xlu0 %3994
        %3996 = vrot.lane.b32.xlu0 %v3916, 32
        %v3997 = vpop.permute.xlu0 %3996
        %3998 = vrot.lane.b32.xlu0 %v3917, 32
        %v3999 = vpop.permute.xlu0 %3998
        %4000 = vrot.lane.b32.xlu0 %v3918, 32
        %v4001 = vpop.permute.xlu0 %4000
        %4002 = vrot.lane.b32.xlu0 %v3919, 32
        %v4003 = vpop.permute.xlu0 %4002
        %4004 = vrot.lane.b32.xlu0 %v3920, 32
        %v4005 = vpop.permute.xlu0 %4004
        %4006 = vrot.lane.b32.xlu0 %v3921, 32
        %v4007 = vpop.permute.xlu0 %4006
        %4008 = vrot.lane.b32.xlu0 %v3922, 32
        %v4009 = vpop.permute.xlu0 %4008
        %4010 = vrot.lane.b32.xlu0 %v3923, 32
        %v4011 = vpop.permute.xlu0 %4010
        %4012 = vrot.lane.b32.xlu0 %v3924, 32
        %v4013 = vpop.permute.xlu0 %4012
        %4014 = vrot.lane.b32.xlu0 %v3925, 32
        %v4015 = vpop.permute.xlu0 %4014
        %4016 = vrot.lane.b32.xlu0 %v3926, 32
        %v4017 = vpop.permute.xlu0 %4016
        %4018 = vrot.lane.b32.xlu0 %v3927, 32
        %v4019 = vpop.permute.xlu0 %4018
        %4020 = vrot.lane.b32.xlu0 %v3928, 32
        %v4021 = vpop.permute.xlu0 %4020
        %4022 = vrot.lane.b32.xlu0 %v3929, 32
        %v4023 = vpop.permute.xlu0 %4022
        %4024 = vrot.lane.b32.xlu0 %v3930, 32
        %v4025 = vpop.permute.xlu0 %4024
        %4026 = vrot.lane.b32.xlu0 %v3931, 32
        %v4027 = vpop.permute.xlu0 %4026
        %vm4060 = vcmask 294144
        %4061 = vst.msk [vmem:[#allocation2] sm:$0xff] %vm4060, %v3965
        %4062 = vst.msk [vmem:[#allocation2 + $0x8] sm:$0xff] %vm4060, %v3967
        %4063 = vst.msk [vmem:[#allocation2 + $0x10] sm:$0xff] %vm4060, %v3969
        %4064 = vst.msk [vmem:[#allocation2 + $0x18] sm:$0xff] %vm4060, %v3971
        %4065 = vst.msk [vmem:[#allocation2 + $0x20] sm:$0xff] %vm4060, %v3973
        %4066 = vst.msk [vmem:[#allocation2 + $0x28] sm:$0xff] %vm4060, %v3975
        %4067 = vst.msk [vmem:[#allocation2 + $0x30] sm:$0xff] %vm4060, %v3977
        %4068 = vst.msk [vmem:[#allocation2 + $0x38] sm:$0xff] %vm4060, %v3979
        %4069 = vst.msk [vmem:[#allocation2 + $0x40] sm:$0xff] %vm4060, %v3981
        %4070 = vst.msk [vmem:[#allocation2 + $0x48] sm:$0xff] %vm4060, %v3983
        %4071 = vst.msk [vmem:[#allocation2 + $0x50] sm:$0xff] %vm4060, %v3985
        %4072 = vst.msk [vmem:[#allocation2 + $0x58] sm:$0xff] %vm4060, %v3987
        %4073 = vst.msk [vmem:[#allocation2 + $0x60] sm:$0xff] %vm4060, %v3989
        %4074 = vst.msk [vmem:[#allocation2 + $0x68] sm:$0xff] %vm4060, %v3991
        %4075 = vst.msk [vmem:[#allocation2 + $0x70] sm:$0xff] %vm4060, %v3993
        %4076 = vst.msk [vmem:[#allocation2 + $0x78] sm:$0xff] %vm4060, %v3995
        %4077 = vst.msk [vmem:[#allocation2 + $0x80] sm:$0xff] %vm4060, %v3997
        %4078 = vst.msk [vmem:[#allocation2 + $0x88] sm:$0xff] %vm4060, %v3999
        %4079 = vst.msk [vmem:[#allocation2 + $0x90] sm:$0xff] %vm4060, %v4001
        %4080 = vst.msk [vmem:[#allocation2 + $0x98] sm:$0xff] %vm4060, %v4003
        %4081 = vst.msk [vmem:[#allocation2 + $0xa0] sm:$0xff] %vm4060, %v4005
        %4082 = vst.msk [vmem:[#allocation2 + $0xa8] sm:$0xff] %vm4060, %v4007
        %4083 = vst.msk [vmem:[#allocation2 + $0xb0] sm:$0xff] %vm4060, %v4009
        %4084 = vst.msk [vmem:[#allocation2 + $0xb8] sm:$0xff] %vm4060, %v4011
        %4085 = vst.msk [vmem:[#allocation2 + $0xc0] sm:$0xff] %vm4060, %v4013
        %4086 = vst.msk [vmem:[#allocation2 + $0xc8] sm:$0xff] %vm4060, %v4015
        %4087 = vst.msk [vmem:[#allocation2 + $0xd0] sm:$0xff] %vm4060, %v4017
        %4088 = vst.msk [vmem:[#allocation2 + $0xd8] sm:$0xff] %vm4060, %v4019
        %4089 = vst.msk [vmem:[#allocation2 + $0xe0] sm:$0xff] %vm4060, %v4021
        %4090 = vst.msk [vmem:[#allocation2 + $0xe8] sm:$0xff] %vm4060, %v4023
        %4091 = vst.msk [vmem:[#allocation2 + $0xf0] sm:$0xff] %vm4060, %v4025
        %4092 = vst.msk [vmem:[#allocation2 + $0xf8] sm:$0xff] %vm4060, %v4027
        %v4093 = vld [vmem:[#allocation2] sm:$0xff]
        %v4094 = vld [vmem:[#allocation2 + $0x8] sm:$0xff]
        %v4095 = vld [vmem:[#allocation2 + $0x10] sm:$0xff]
        %v4096 = vld [vmem:[#allocation2 + $0x18] sm:$0xff]
        %v4097 = vld [vmem:[#allocation2 + $0x20] sm:$0xff]
        %v4098 = vld [vmem:[#allocation2 + $0x28] sm:$0xff]
        %v4099 = vld [vmem:[#allocation2 + $0x30] sm:$0xff]
        %v4100 = vld [vmem:[#allocation2 + $0x38] sm:$0xff]
        %v4101 = vld [vmem:[#allocation2 + $0x40] sm:$0xff]
        %v4102 = vld [vmem:[#allocation2 + $0x48] sm:$0xff]
        %v4103 = vld [vmem:[#allocation2 + $0x50] sm:$0xff]
        %v4104 = vld [vmem:[#allocation2 + $0x58] sm:$0xff]
        %v4105 = vld [vmem:[#allocation2 + $0x60] sm:$0xff]
        %v4106 = vld [vmem:[#allocation2 + $0x68] sm:$0xff]
        %v4107 = vld [vmem:[#allocation2 + $0x70] sm:$0xff]
        %v4108 = vld [vmem:[#allocation2 + $0x78] sm:$0xff]
        %v4109 = vld [vmem:[#allocation2 + $0x80] sm:$0xff]
        %v4110 = vld [vmem:[#allocation2 + $0x88] sm:$0xff]
        %v4111 = vld [vmem:[#allocation2 + $0x90] sm:$0xff]
        %v4112 = vld [vmem:[#allocation2 + $0x98] sm:$0xff]
        %v4113 = vld [vmem:[#allocation2 + $0xa0] sm:$0xff]
        %v4114 = vld [vmem:[#allocation2 + $0xa8] sm:$0xff]
        %v4115 = vld [vmem:[#allocation2 + $0xb0] sm:$0xff]
        %v4116 = vld [vmem:[#allocation2 + $0xb8] sm:$0xff]
        %v4117 = vld [vmem:[#allocation2 + $0xc0] sm:$0xff]
        %v4118 = vld [vmem:[#allocation2 + $0xc8] sm:$0xff]
        %v4119 = vld [vmem:[#allocation2 + $0xd0] sm:$0xff]
        %v4120 = vld [vmem:[#allocation2 + $0xd8] sm:$0xff]
        %v4121 = vld [vmem:[#allocation2 + $0xe0] sm:$0xff]
        %v4122 = vld [vmem:[#allocation2 + $0xe8] sm:$0xff]
        %v4123 = vld [vmem:[#allocation2 + $0xf0] sm:$0xff]
        %v4124 = vld [vmem:[#allocation2 + $0xf8] sm:$0xff]
        %v4125 = vpack.c.bf16 %v4094, %v4093
        %v4126 = vpack.c.bf16 %v4096, %v4095
        %v4127 = vpack.c.bf16 %v4098, %v4097
        %v4128 = vpack.c.bf16 %v4100, %v4099
        %v4129 = vpack.c.bf16 %v4102, %v4101
        %v4130 = vpack.c.bf16 %v4104, %v4103
        %v4131 = vpack.c.bf16 %v4106, %v4105
        %v4132 = vpack.c.bf16 %v4108, %v4107
        %v4133 = vpack.c.bf16 %v4110, %v4109
        %v4134 = vpack.c.bf16 %v4112, %v4111
        %v4135 = vpack.c.bf16 %v4114, %v4113
        %v4136 = vpack.c.bf16 %v4116, %v4115
        %v4137 = vpack.c.bf16 %v4118, %v4117
        %v4138 = vpack.c.bf16 %v4120, %v4119
        %v4139 = vpack.c.bf16 %v4122, %v4121
        %v4140 = vpack.c.bf16 %v4124, %v4123
        %v4141 = vld [vmem:[%s255] sm:$0xf]
        %v4142 = vld [vmem:[%s255 + $0x4] sm:$0xf]
        %v4143 = vld [vmem:[%s255 + $0x8] sm:$0xf]
        %v4144 = vld [vmem:[%s255 + $0xc] sm:$0xf]
        %v4145 = vld [vmem:[%s255 + $0x10] sm:$0x3]
        %v4151 = vunpack.c.l.b16 %v4141
        %v4152 = vunpack.c.l.b16 %v4142
        %v4153 = vunpack.c.l.b16 %v4143
        %v4154 = vunpack.c.l.b16 %v4144
        %v4155 = vunpack.c.l.b16 %v4145
        %v4156 = vpack.c.b16 %v4152, %v4151
        %v4157 = vpack.c.b16 %v4154, %v4153
        %v4158 = vpack.c.b16 %v4155, %v4155
        %vm4161 = vcmask 293888
        %v4163 = vsel %vm4161, %v4125, 0
        %v4166 = vsel %vm4161, %v4126, 0
        %v4169 = vsel %vm4161, %v4127, 0
        %v4172 = vsel %vm4161, %v4128, 0
        %v4175 = vsel %vm4161, %v4129, 0
        %v4178 = vsel %vm4161, %v4130, 0
        %v4181 = vsel %vm4161, %v4131, 0
        %v4184 = vsel %vm4161, %v4132, 0
        %v4187 = vsel %vm4161, %v4133, 0
        %v4190 = vsel %vm4161, %v4134, 0
        %v4193 = vsel %vm4161, %v4135, 0
        %v4196 = vsel %vm4161, %v4136, 0
        %v4199 = vsel %vm4161, %v4137, 0
        %v4202 = vsel %vm4161, %v4138, 0
        %v4205 = vsel %vm4161, %v4139, 0
        %v4208 = vsel %vm4161, %v4140, 0
        %vm4210 = vcmask 1041408
        %v4212 = vsel %vm4210, %v4158, 0
        %4214 = vmatprep.subr.bf16.mxu0 0
        %4215 = vmatpush1.bf16.msra.mxu0 0
        %4216 = vmatprep.subr.bf16.mxu0 0
        %4217 = vmatpush1.bf16.msra.mxu0 0
        %4218 = vmatprep.subr.bf16.mxu0 0
        %4219 = vmatpush1.bf16.msra.mxu0 0
        %4220 = vmatprep.subr.bf16.mxu0 0
        %4221 = vmatpush1.bf16.msra.mxu0 0
        %4222 = vmatprep.subr.bf16.mxu0 0
        %4223 = vmatpush1.bf16.msra.mxu0 0
        %4224 = vmatprep.subr.bf16.mxu0 0
        %4225 = vmatpush1.bf16.msra.mxu0 %v4212
        %4226 = vmatprep.subr.bf16.mxu0 0
        %4227 = vmatpush1.bf16.msra.mxu0 %v4157
        %4228 = vmatprep.subr.bf16.mxu0 0
        %4229 = vmatpush1.bf16.msra.mxu0 %v4156
        %4230 = vmatprep.subr.bf16.mxu0 0
        %4231 = vmatpush2.bf16.msra.mxu0 0
        %4232 = vmatprep.subr.bf16.mxu0 0
        %4233 = vmatpush2.bf16.msra.mxu0 0
        %4234 = vmatprep.subr.bf16.mxu0 0
        %4235 = vmatpush2.bf16.msra.mxu0 0
        %4236 = vmatprep.subr.bf16.mxu0 0
        %4237 = vmatpush2.bf16.msra.mxu0 0
        %4238 = vmatprep.subr.bf16.mxu0 0
        %4239 = vmatpush2.bf16.msra.mxu0 0
        %4240 = vmatprep.subr.bf16.mxu0 0
        %4241 = vmatpush2.bf16.msra.mxu0 0
        %4242 = vmatprep.subr.bf16.mxu0 0
        %4243 = vmatpush2.bf16.msra.mxu0 0
        %4244 = vmatprep.subr.bf16.mxu0 0
        %4245 = vmatpush2.bf16.msra.mxu0 0
        %4246 = vmatprep.mubr.bf16.mxu0 0
        %4247 = vmatmul.mubr.bf16.gmra.mxu0 %v4163
        %v4248 = vpop.f32.mrf.mxu0
        %v4249 = vadd.f32 0.0, %v4248
        %v4250 = vpop.f32.mrf.mxu0
        %v4251 = vpop.f32.mrf.mxu0
        %v4252 = vadd.f32 0.0, %v4251
        %v4253 = vpop.f32.mrf.mxu0
        %4254 = vmatprep.mubr.bf16.mxu0 0
        %4255 = vmatmul.mubr.bf16.gmra.mxu0 %v4166
        %v4256 = vpop.f32.mrf.mxu0
        %v4257 = vadd.f32 0.0, %v4256
        %v4258 = vpop.f32.mrf.mxu0
        %v4259 = vpop.f32.mrf.mxu0
        %v4260 = vadd.f32 0.0, %v4259
        %v4261 = vpop.f32.mrf.mxu0
        %4262 = vmatprep.mubr.bf16.mxu0 0
        %4263 = vmatmul.mubr.bf16.gmra.mxu0 %v4169
        %v4264 = vpop.f32.mrf.mxu0
        %v4265 = vadd.f32 0.0, %v4264
        %v4266 = vpop.f32.mrf.mxu0
        %v4267 = vpop.f32.mrf.mxu0
        %v4268 = vadd.f32 0.0, %v4267
        %v4269 = vpop.f32.mrf.mxu0
        %4270 = vmatprep.mubr.bf16.mxu0 0
        %4271 = vmatmul.mubr.bf16.gmra.mxu0 %v4172
        %v4272 = vpop.f32.mrf.mxu0
        %v4273 = vadd.f32 0.0, %v4272
        %v4274 = vpop.f32.mrf.mxu0
        %v4275 = vpop.f32.mrf.mxu0
        %v4276 = vadd.f32 0.0, %v4275
        %v4277 = vpop.f32.mrf.mxu0
        %4278 = vmatprep.mubr.bf16.mxu0 0
        %4279 = vmatmul.mubr.bf16.gmra.mxu0 %v4175
        %v4280 = vpop.f32.mrf.mxu0
        %v4281 = vadd.f32 0.0, %v4280
        %v4282 = vpop.f32.mrf.mxu0
        %v4283 = vpop.f32.mrf.mxu0
        %v4284 = vadd.f32 0.0, %v4283
        %v4285 = vpop.f32.mrf.mxu0
        %4286 = vmatprep.mubr.bf16.mxu0 0
        %4287 = vmatmul.mubr.bf16.gmra.mxu0 %v4178
        %v4288 = vpop.f32.mrf.mxu0
        %v4289 = vadd.f32 0.0, %v4288
        %v4290 = vpop.f32.mrf.mxu0
        %v4291 = vpop.f32.mrf.mxu0
        %v4292 = vadd.f32 0.0, %v4291
        %v4293 = vpop.f32.mrf.mxu0
        %4294 = vmatprep.mubr.bf16.mxu0 0
        %4295 = vmatmul.mubr.bf16.gmra.mxu0 %v4181
        %v4296 = vpop.f32.mrf.mxu0
        %v4297 = vadd.f32 0.0, %v4296
        %v4298 = vpop.f32.mrf.mxu0
        %v4299 = vpop.f32.mrf.mxu0
        %v4300 = vadd.f32 0.0, %v4299
        %v4301 = vpop.f32.mrf.mxu0
        %4302 = vmatprep.mubr.bf16.mxu0 0
        %4303 = vmatmul.mubr.bf16.gmra.mxu0 %v4184
        %v4304 = vpop.f32.mrf.mxu0
        %v4305 = vadd.f32 0.0, %v4304
        %v4306 = vpop.f32.mrf.mxu0
        %v4307 = vpop.f32.mrf.mxu0
        %v4308 = vadd.f32 0.0, %v4307
        %v4309 = vpop.f32.mrf.mxu0
        %4310 = vmatprep.mubr.bf16.mxu0 0
        %4311 = vmatmul.mubr.bf16.gmra.mxu0 %v4187
        %v4312 = vpop.f32.mrf.mxu0
        %v4313 = vadd.f32 0.0, %v4312
        %v4314 = vpop.f32.mrf.mxu0
        %v4315 = vpop.f32.mrf.mxu0
        %v4316 = vadd.f32 0.0, %v4315
        %v4317 = vpop.f32.mrf.mxu0
        %4318 = vmatprep.mubr.bf16.mxu0 0
        %4319 = vmatmul.mubr.bf16.gmra.mxu0 %v4190
        %v4320 = vpop.f32.mrf.mxu0
        %v4321 = vadd.f32 0.0, %v4320
        %v4322 = vpop.f32.mrf.mxu0
        %v4323 = vpop.f32.mrf.mxu0
        %v4324 = vadd.f32 0.0, %v4323
        %v4325 = vpop.f32.mrf.mxu0
        %4326 = vmatprep.mubr.bf16.mxu0 0
        %4327 = vmatmul.mubr.bf16.gmra.mxu0 %v4193
        %v4328 = vpop.f32.mrf.mxu0
        %v4329 = vadd.f32 0.0, %v4328
        %v4330 = vpop.f32.mrf.mxu0
        %v4331 = vpop.f32.mrf.mxu0
        %v4332 = vadd.f32 0.0, %v4331
        %v4333 = vpop.f32.mrf.mxu0
        %4334 = vmatprep.mubr.bf16.mxu0 0
        %4335 = vmatmul.mubr.bf16.gmra.mxu0 %v4196
        %v4336 = vpop.f32.mrf.mxu0
        %v4337 = vadd.f32 0.0, %v4336
        %v4338 = vpop.f32.mrf.mxu0
        %v4339 = vpop.f32.mrf.mxu0
        %v4340 = vadd.f32 0.0, %v4339
        %v4341 = vpop.f32.mrf.mxu0
        %4342 = vmatprep.mubr.bf16.mxu0 0
        %4343 = vmatmul.mubr.bf16.gmra.mxu0 %v4199
        %v4344 = vpop.f32.mrf.mxu0
        %v4345 = vadd.f32 0.0, %v4344
        %v4346 = vpop.f32.mrf.mxu0
        %v4347 = vpop.f32.mrf.mxu0
        %v4348 = vadd.f32 0.0, %v4347
        %v4349 = vpop.f32.mrf.mxu0
        %4350 = vmatprep.mubr.bf16.mxu0 0
        %4351 = vmatmul.mubr.bf16.gmra.mxu0 %v4202
        %v4352 = vpop.f32.mrf.mxu0
        %v4353 = vadd.f32 0.0, %v4352
        %v4354 = vpop.f32.mrf.mxu0
        %v4355 = vpop.f32.mrf.mxu0
        %v4356 = vadd.f32 0.0, %v4355
        %v4357 = vpop.f32.mrf.mxu0
        %4358 = vmatprep.mubr.bf16.mxu0 0
        %4359 = vmatmul.mubr.bf16.gmra.mxu0 %v4205
        %v4360 = vpop.f32.mrf.mxu0
        %v4361 = vadd.f32 0.0, %v4360
        %v4362 = vpop.f32.mrf.mxu0
        %v4363 = vpop.f32.mrf.mxu0
        %v4364 = vadd.f32 0.0, %v4363
        %v4365 = vpop.f32.mrf.mxu0
        %4366 = vmatprep.mubr.bf16.mxu0 0
        %4367 = vmatmul.mubr.bf16.gmra.mxu0 %v4208
        %v4368 = vpop.f32.mrf.mxu0
        %v4369 = vadd.f32 0.0, %v4368
        %v4370 = vpop.f32.mrf.mxu0
        %v4371 = vpop.f32.mrf.mxu0
        %v4372 = vadd.f32 0.0, %v4371
        %v4373 = vpop.f32.mrf.mxu0
        %4374 = vdwg.mxu0
        %v4375 = vpack.c.bf16 %v4252, %v4249
        %v4376 = vpack.c.bf16 %v4260, %v4257
        %v4377 = vpack.c.bf16 %v4268, %v4265
        %v4378 = vpack.c.bf16 %v4276, %v4273
        %v4379 = vpack.c.bf16 %v4284, %v4281
        %v4380 = vpack.c.bf16 %v4292, %v4289
        %v4381 = vpack.c.bf16 %v4300, %v4297
        %v4382 = vpack.c.bf16 %v4308, %v4305
        %v4383 = vpack.c.bf16 %v4316, %v4313
        %v4384 = vpack.c.bf16 %v4324, %v4321
        %v4385 = vpack.c.bf16 %v4332, %v4329
        %v4386 = vpack.c.bf16 %v4340, %v4337
        %v4387 = vpack.c.bf16 %v4348, %v4345
        %v4388 = vpack.c.bf16 %v4356, %v4353
        %v4389 = vpack.c.bf16 %v4364, %v4361
        %v4390 = vpack.c.bf16 %v4372, %v4369
        %v4407 = vunpack.c.l.b16 %v4375
        %v4408 = vunpack.c.h.b16 %v4375
        %v4409 = vunpack.c.l.b16 %v4376
        %v4410 = vunpack.c.h.b16 %v4376
        %v4411 = vunpack.c.l.b16 %v4377
        %v4412 = vunpack.c.h.b16 %v4377
        %v4413 = vunpack.c.l.b16 %v4378
        %v4414 = vunpack.c.h.b16 %v4378
        %v4415 = vunpack.c.l.b16 %v4379
        %v4416 = vunpack.c.h.b16 %v4379
        %v4417 = vunpack.c.l.b16 %v4380
        %v4418 = vunpack.c.h.b16 %v4380
        %v4419 = vunpack.c.l.b16 %v4381
        %v4420 = vunpack.c.h.b16 %v4381
        %v4421 = vunpack.c.l.b16 %v4382
        %v4422 = vunpack.c.h.b16 %v4382
        %v4423 = vunpack.c.l.b16 %v4383
        %v4424 = vunpack.c.h.b16 %v4383
        %v4425 = vunpack.c.l.b16 %v4384
        %v4426 = vunpack.c.h.b16 %v4384
        %v4427 = vunpack.c.l.b16 %v4385
        %v4428 = vunpack.c.h.b16 %v4385
        %v4429 = vunpack.c.l.b16 %v4386
        %v4430 = vunpack.c.h.b16 %v4386
        %v4431 = vunpack.c.l.b16 %v4387
        %v4432 = vunpack.c.h.b16 %v4387
        %v4433 = vunpack.c.l.b16 %v4388
        %v4434 = vunpack.c.h.b16 %v4388
        %v4435 = vunpack.c.l.b16 %v4389
        %v4436 = vunpack.c.h.b16 %v4389
        %v4437 = vunpack.c.l.b16 %v4390
        %v4438 = vunpack.c.h.b16 %v4390
        %v4439 = vpack.c.b16 %v4407, %v4407
        %v4440 = vpack.c.b16 %v4408, %v4408
        %v4441 = vpack.c.b16 %v4409, %v4409
        %v4442 = vpack.c.b16 %v4410, %v4410
        %v4443 = vpack.c.b16 %v4411, %v4411
        %v4444 = vpack.c.b16 %v4412, %v4412
        %v4445 = vpack.c.b16 %v4413, %v4413
        %v4446 = vpack.c.b16 %v4414, %v4414
        %v4447 = vpack.c.b16 %v4415, %v4415
        %v4448 = vpack.c.b16 %v4416, %v4416
        %v4449 = vpack.c.b16 %v4417, %v4417
        %v4450 = vpack.c.b16 %v4418, %v4418
        %v4451 = vpack.c.b16 %v4419, %v4419
        %v4452 = vpack.c.b16 %v4420, %v4420
        %v4453 = vpack.c.b16 %v4421, %v4421
        %v4454 = vpack.c.b16 %v4422, %v4422
        %v4455 = vpack.c.b16 %v4423, %v4423
        %v4456 = vpack.c.b16 %v4424, %v4424
        %v4457 = vpack.c.b16 %v4425, %v4425
        %v4458 = vpack.c.b16 %v4426, %v4426
        %v4459 = vpack.c.b16 %v4427, %v4427
        %v4460 = vpack.c.b16 %v4428, %v4428
        %v4461 = vpack.c.b16 %v4429, %v4429
        %v4462 = vpack.c.b16 %v4430, %v4430
        %v4463 = vpack.c.b16 %v4431, %v4431
        %v4464 = vpack.c.b16 %v4432, %v4432
        %v4465 = vpack.c.b16 %v4433, %v4433
        %v4466 = vpack.c.b16 %v4434, %v4434
        %v4467 = vpack.c.b16 %v4435, %v4435
        %v4468 = vpack.c.b16 %v4436, %v4436
        %v4469 = vpack.c.b16 %v4437, %v4437
        %v4470 = vpack.c.b16 %v4438, %v4438
        %4503 = vst [vmem:[%s234] sm:$0xf] %v4439
        %4504 = vst [vmem:[%s234 + $0x4] sm:$0xf] %v4440
        %4505 = vst [vmem:[%s234 + $0x8] sm:$0xf] %v4441
        %4506 = vst [vmem:[%s234 + $0xc] sm:$0xf] %v4442
        %4507 = vst [vmem:[%s234 + $0x10] sm:$0xf] %v4443
        %4508 = vst [vmem:[%s234 + $0x14] sm:$0xf] %v4444
        %4509 = vst [vmem:[%s234 + $0x18] sm:$0xf] %v4445
        %4510 = vst [vmem:[%s234 + $0x1c] sm:$0xf] %v4446
        %4511 = vst [vmem:[%s234 + $0x20] sm:$0xf] %v4447
        %4512 = vst [vmem:[%s234 + $0x24] sm:$0xf] %v4448
        %4513 = vst [vmem:[%s234 + $0x28] sm:$0xf] %v4449
        %4514 = vst [vmem:[%s234 + $0x2c] sm:$0xf] %v4450
        %4515 = vst [vmem:[%s234 + $0x30] sm:$0xf] %v4451
        %4516 = vst [vmem:[%s234 + $0x34] sm:$0xf] %v4452
        %4517 = vst [vmem:[%s234 + $0x38] sm:$0xf] %v4453
        %4518 = vst [vmem:[%s234 + $0x3c] sm:$0xf] %v4454
        %4519 = vst [vmem:[%s234 + $0x40] sm:$0xf] %v4455
        %4520 = vst [vmem:[%s234 + $0x44] sm:$0xf] %v4456
        %4521 = vst [vmem:[%s234 + $0x48] sm:$0xf] %v4457
        %4522 = vst [vmem:[%s234 + $0x4c] sm:$0xf] %v4458
        %4523 = vst [vmem:[%s234 + $0x50] sm:$0xf] %v4459
        %4524 = vst [vmem:[%s234 + $0x54] sm:$0xf] %v4460
        %4525 = vst [vmem:[%s234 + $0x58] sm:$0xf] %v4461
        %4526 = vst [vmem:[%s234 + $0x5c] sm:$0xf] %v4462
        %4527 = vst [vmem:[%s234 + $0x60] sm:$0xf] %v4463
        %4528 = vst [vmem:[%s234 + $0x64] sm:$0xf] %v4464
        %4529 = vst [vmem:[%s234 + $0x68] sm:$0xf] %v4465
        %4530 = vst [vmem:[%s234 + $0x6c] sm:$0xf] %v4466
        %4531 = vst [vmem:[%s234 + $0x70] sm:$0xf] %v4467
        %4532 = vst [vmem:[%s234 + $0x74] sm:$0xf] %v4468
        %4533 = vst [vmem:[%s234 + $0x78] sm:$0xf] %v4469
        %4534 = vst [vmem:[%s234 + $0x7c] sm:$0xf] %v4470
        %p4535 = scmp.eq.s32.totalorder %s29, 0
        // Predicated region
        $region29: #{tpu_custom_call.1} parent=27 // pred_check
          %p4536 = pneg %p4535
        $region30: #{tpu_custom_call.1} parent=27 // pred_check_branch
          %4538 = sbr.rel (%p4536) target = $region32
        $region31: #{tpu_custom_call.1} parent=27 // pred_region
          %4539 = vst [vmem:[%s240] sm:$0x1] 0.0
          %4540 = vst [vmem:[%s246] sm:$0x1] 0.0
        $region32: #{tpu_custom_call.1} parent=27 // pred_fallthru
          _
        %v4541 = vld [vmem:[%s240] sm:$0x1]
        %v4542 = vadd.f32 %v4249, %v4252
        %v4543 = vadd.f32 %v4542, %v4257
        %v4544 = vadd.f32 %v4543, %v4260
        %v4545 = vadd.f32 %v4544, %v4265
        %v4546 = vadd.f32 %v4545, %v4268
        %v4547 = vadd.f32 %v4546, %v4273
        %v4548 = vadd.f32 %v4547, %v4276
        %v4549 = vadd.f32 %v4548, %v4281
        %v4550 = vadd.f32 %v4549, %v4284
        %v4551 = vadd.f32 %v4550, %v4289
        %v4552 = vadd.f32 %v4551, %v4292
        %v4553 = vadd.f32 %v4552, %v4297
        %v4554 = vadd.f32 %v4553, %v4300
        %v4555 = vadd.f32 %v4554, %v4305
        %v4556 = vadd.f32 %v4555, %v4308
        %v4557 = vadd.f32 %v4556, %v4313
        %v4558 = vadd.f32 %v4557, %v4316
        %v4559 = vadd.f32 %v4558, %v4321
        %v4560 = vadd.f32 %v4559, %v4324
        %v4561 = vadd.f32 %v4560, %v4329
        %v4562 = vadd.f32 %v4561, %v4332
        %v4563 = vadd.f32 %v4562, %v4337
        %v4564 = vadd.f32 %v4563, %v4340
        %v4565 = vadd.f32 %v4564, %v4345
        %v4566 = vadd.f32 %v4565, %v4348
        %v4567 = vadd.f32 %v4566, %v4353
        %v4568 = vadd.f32 %v4567, %v4356
        %v4569 = vadd.f32 %v4568, %v4361
        %v4570 = vadd.f32 %v4569, %v4364
        %v4571 = vadd.f32 %v4570, %v4369
        %v4572 = vadd.f32 %v4571, %v4372
        %v4573 = vrot.slane %v4572, 4
        %v4574 = vadd.f32 %v4572, %v4573
        %v4575 = vrot.slane %v4574, 2
        %v4576 = vadd.f32 %v4574, %v4575
        %v4577 = vrot.slane %v4576, 1
        %v4578 = vadd.f32 %v4576, %v4577
        %v4579 = vadd.f32 %v4541, %v4578
        %4580 = vst [vmem:[%s240] sm:$0x1] %v4579
        %v4581 = vld [vmem:[%s246] sm:$0x1]
        %v4582 = vmul.f32 %v4249, %v4249
        %v4583 = vmul.f32 %v4252, %v4252
        %v4584 = vmul.f32 %v4257, %v4257
        %v4585 = vmul.f32 %v4260, %v4260
        %v4586 = vmul.f32 %v4265, %v4265
        %v4587 = vmul.f32 %v4268, %v4268
        %v4588 = vmul.f32 %v4273, %v4273
        %v4589 = vmul.f32 %v4276, %v4276
        %v4590 = vmul.f32 %v4281, %v4281
        %v4591 = vmul.f32 %v4284, %v4284
        %v4592 = vmul.f32 %v4289, %v4289
        %v4593 = vmul.f32 %v4292, %v4292
        %v4594 = vmul.f32 %v4297, %v4297
        %v4595 = vmul.f32 %v4300, %v4300
        %v4596 = vmul.f32 %v4305, %v4305
        %v4597 = vmul.f32 %v4308, %v4308
        %v4598 = vmul.f32 %v4313, %v4313
        %v4599 = vmul.f32 %v4316, %v4316
        %v4600 = vmul.f32 %v4321, %v4321
        %v4601 = vmul.f32 %v4324, %v4324
        %v4602 = vmul.f32 %v4329, %v4329
        %v4603 = vmul.f32 %v4332, %v4332
        %v4604 = vmul.f32 %v4337, %v4337
        %v4605 = vmul.f32 %v4340, %v4340
        %v4606 = vmul.f32 %v4345, %v4345
        %v4607 = vmul.f32 %v4348, %v4348
        %v4608 = vmul.f32 %v4353, %v4353
        %v4609 = vmul.f32 %v4356, %v4356
        %v4610 = vmul.f32 %v4361, %v4361
        %v4611 = vmul.f32 %v4364, %v4364
        %v4612 = vmul.f32 %v4369, %v4369
        %v4613 = vmul.f32 %v4372, %v4372
        %v4614 = vadd.f32 %v4582, %v4583
        %v4615 = vadd.f32 %v4614, %v4584
        %v4616 = vadd.f32 %v4615, %v4585
        %v4617 = vadd.f32 %v4616, %v4586
        %v4618 = vadd.f32 %v4617, %v4587
        %v4619 = vadd.f32 %v4618, %v4588
        %v4620 = vadd.f32 %v4619, %v4589
        %v4621 = vadd.f32 %v4620, %v4590
        %v4622 = vadd.f32 %v4621, %v4591
        %v4623 = vadd.f32 %v4622, %v4592
        %v4624 = vadd.f32 %v4623, %v4593
        %v4625 = vadd.f32 %v4624, %v4594
        %v4626 = vadd.f32 %v4625, %v4595
        %v4627 = vadd.f32 %v4626, %v4596
        %v4628 = vadd.f32 %v4627, %v4597
        %v4629 = vadd.f32 %v4628, %v4598
        %v4630 = vadd.f32 %v4629, %v4599
        %v4631 = vadd.f32 %v4630, %v4600
        %v4632 = vadd.f32 %v4631, %v4601
        %v4633 = vadd.f32 %v4632, %v4602
        %v4634 = vadd.f32 %v4633, %v4603
        %v4635 = vadd.f32 %v4634, %v4604
        %v4636 = vadd.f32 %v4635, %v4605
        %v4637 = vadd.f32 %v4636, %v4606
        %v4638 = vadd.f32 %v4637, %v4607
        %v4639 = vadd.f32 %v4638, %v4608
        %v4640 = vadd.f32 %v4639, %v4609
        %v4641 = vadd.f32 %v4640, %v4610
        %v4642 = vadd.f32 %v4641, %v4611
        %v4643 = vadd.f32 %v4642, %v4612
        %v4644 = vadd.f32 %v4643, %v4613
        %v4645 = vrot.slane %v4644, 4
        %v4646 = vadd.f32 %v4644, %v4645
        %v4647 = vrot.slane %v4646, 2
        %v4648 = vadd.f32 %v4646, %v4647
        %v4649 = vrot.slane %v4648, 1
        %v4650 = vadd.f32 %v4648, %v4649
        %v4651 = vadd.f32 %v4581, %v4650
        %4652 = vst [vmem:[%s246] sm:$0x1] %v4651
        %s4653 = sand.u32 %s105, 1
        %s4654 = scalar_lea.sflag [#allocation4], %s4653
        %s4655 = sand.u32 %s105, 1
        %s4656 = smul.addr %s4655, 128
        %s4657 = scalar_lea.vmem [#allocation3], %s4656
        %s4658 = sand.u32 %s22, 1
        %s4659 = scalar_lea.sflag [#allocation6], %s4658
        %s4660 = sand.u32 %s133, 1
        %s4661 = scalar_lea.vmem [#allocation5], %s4660
        %s4662 = sand.u32 %s22, 1
        %s4663 = scalar_lea.sflag [#allocation6], %s4662
        %s4664 = sand.u32 %s161, 1
        %s4665 = scalar_lea.vmem [#allocation7], %s4664
        // Predicated region
        $region33: #{tpu_custom_call.1} parent=27 // pred_check
          %p4666 = pneg %p115
        $region34: #{tpu_custom_call.1} parent=27 // pred_check_branch
          %4668 = sbr.rel (%p4666) target = $region36
        $region35: #{tpu_custom_call.1} parent=27 // pred_region
          %s4669 = smul.u32 32, %s29
          %s4671 = ssub.s32 2048, 2048
          %4672 = vsyncadd %s4654, %s4671
          %s4673 = sadd.s32 %s28, %s4669
          %s4674 = smul.addr %s27, 32
          %s4675 = sadd.s32 %s4673, %s4674
          %s4676 = smul.addr %s4675, 64
          %s4677 = scalar_lea.hbm %s2, %s4676
          %s4678 = sshll.u32 %s4657, 4
          %s4679 = int_to_ptr.vmem [resolvable:$true] %s4678
          %4684 = dma.vmem_to_hbm [thread:$0]  %s4679, 2048, %s4677, %s4654, 64, 64, 4
        $region36: #{tpu_custom_call.1} parent=27 // pred_fallthru
          _
        // Predicated region
        $region37: #{tpu_custom_call.1} parent=27 // pred_check
          %p4685 = pneg %p143
        $region38: #{tpu_custom_call.1} parent=27 // pred_check_branch
          %4687 = sbr.rel (%p4685) target = $region40
        $region39: #{tpu_custom_call.1} parent=27 // pred_region
          %s4689 = ssub.s32 16, 16
          %4690 = vsyncadd %s4659, %s4689
          %s4691 = sadd.s32 %s28, %s27
          %s4692 = smul.addr %s4691, 16
          %s4693 = scalar_lea.hbm %s3, %s4692
          %s4695 = sshll.u32 %s4661, 4
          %s4696 = int_to_ptr.vmem [resolvable:$true] %s4695
          %4698 = dma.vmem_to_hbm [thread:$0]  %s4696, 16, %s4693, %s4659
        $region40: #{tpu_custom_call.1} parent=27 // pred_fallthru
          _
        // Predicated region
        $region41: #{tpu_custom_call.1} parent=27 // pred_check
          %p4699 = pneg %p171
        $region42: #{tpu_custom_call.1} parent=27 // pred_check_branch
          %4701 = sbr.rel (%p4699) target = $region44
        $region43: #{tpu_custom_call.1} parent=27 // pred_region
          %s4703 = ssub.s32 16, 16
          %4704 = vsyncadd %s4663, %s4703
          %s4705 = sadd.s32 %s28, %s27
          %s4706 = smul.addr %s4705, 16
          %s4707 = scalar_lea.hbm %s4, %s4706
          %s4709 = sshll.u32 %s4665, 4
          %s4710 = int_to_ptr.vmem [resolvable:$true] %s4709
          %4712 = dma.vmem_to_hbm [thread:$0]  %s4710, 16, %s4707, %s4663
        $region44: #{tpu_custom_call.1} parent=27 // pred_fallthru
          _
      $region28: #{tpu_custom_call.1} parent=5 // pred_fallthru
        _
      %p4713 = scmp.le.s32.totalorder 2, %s17
      // Predicated region
      $region45: #{tpu_custom_call.1} parent=5 // pred_check
        %p4714 = pneg %p4713
      $region46: #{tpu_custom_call.1} parent=5 // pred_check_branch
        %4716 = sbr.rel (%p4714) target = $region48
      $region47: #{tpu_custom_call.1} parent=5 // pred_region
        %s4717 = ssub.s32 %s17, 2
        // Predicated region
        $region49: #{tpu_custom_call.1} parent=47 // pred_check
          %p4718 = pneg %p121
        $region50: #{tpu_custom_call.1} parent=47 // pred_check_branch
          %4720 = sbr.rel (%p4718) target = $region52
        $region51: #{tpu_custom_call.1} parent=47 // pred_region
          %s4721 = sand.u32 %s106, 1
          %s4722 = scalar_lea.sflag [#allocation4], %s4721
          %s4723 = sand.u32 %s106, 1
          %s4724 = smul.addr %s4723, 128
          %s4725 = scalar_lea.vmem [#allocation3], %s4724
          %4726 = dma.done %s4722, 2048
        $region52: #{tpu_custom_call.1} parent=47 // pred_fallthru
          _
        // Predicated region
        $region53: #{tpu_custom_call.1} parent=47 // pred_check
          %p4727 = pneg %p149
        $region54: #{tpu_custom_call.1} parent=47 // pred_check_branch
          %4729 = sbr.rel (%p4727) target = $region56
        $region55: #{tpu_custom_call.1} parent=47 // pred_region
          %s4730 = sand.u32 %s23, 1
          %s4731 = scalar_lea.sflag [#allocation6], %s4730
          %s4732 = sand.u32 %s134, 1
          %s4733 = scalar_lea.vmem [#allocation5], %s4732
          %4734 = dma.done %s4731, 16
        $region56: #{tpu_custom_call.1} parent=47 // pred_fallthru
          _
        // Predicated region
        $region57: #{tpu_custom_call.1} parent=47 // pred_check
          %p4735 = pneg %p177
        $region58: #{tpu_custom_call.1} parent=47 // pred_check_branch
          %4737 = sbr.rel (%p4735) target = $region60
        $region59: #{tpu_custom_call.1} parent=47 // pred_region
          %s4738 = sand.u32 %s23, 1
          %s4739 = scalar_lea.sflag [#allocation6], %s4738
          %s4740 = sand.u32 %s162, 1
          %s4741 = scalar_lea.vmem [#allocation7], %s4740
          %4742 = dma.done %s4739, 16
        $region60: #{tpu_custom_call.1} parent=47 // pred_fallthru
          _
      $region48: #{tpu_custom_call.1} parent=5 // pred_fallthru
        _
    $region6: #{tpu_custom_call.1} parent=1 // loop_footer
      %s21 = sadd.s32 1, %s17
    $region7: #{tpu_custom_call.1} parent=1 // loop_footer_branch
      %16 = sbr.rel target = $region3
    $region8: #{tpu_custom_call.1} parent=1 // loop_exit
      _
    %4743 = vsyncpa [#allocation4], 1
    %s4744 = scalar_lea.sflag [#allocation4], 1
    %4745 = vsyncpa %s4744, 1
    %4746 = vsyncpa [#allocation6], 1
    %s4747 = scalar_lea.sflag [#allocation6], 1
    %4748 = vsyncpa %s4747, 1

// kernel: tpu_custom_call.1
$region0: #{tpu_custom_call.1}
  #allocation0 [shape = 'u32[]', space=smem, size = 0x4, offset = 0x4, fixed_abs, tag = 'smem constant byte address 0x4 - core index']
  #allocation1 [shape = 'u32[144,128]{1,0:T(1,128)}', space=vmem, size = 0x12000, scoped, tag = 'internal scratch']
  %s0 = inlined_call_operand.vmem [shape: bf16[2,18,18,4], index: 0, kind: input, shape index: {}]
  %s1 = inlined_call_operand.vmem [shape: bf16[9,4,128], index: 1, kind: input, shape index: {}]
  %s2 = inlined_call_operand.hbm [shape: bf16[2,256,128], index: 2, kind: output, shape index: {0}]
  %s3 = inlined_call_operand.hbm [shape: f32[2,1,128], index: 3, kind: output, shape index: {1}]
  %s4 = inlined_call_operand.hbm [shape: f32[2,1,128], index: 4, kind: output, shape index: {2}]
  %5 = xla_tuple %s2, %s3, %s4
  %s6 = sld [smem:[#allocation0]]
  $region61: #{tpu_custom_call.1} parent=0
    _
  %s8 = ssub.s32 1, %s6
  %s9 = scalar_select 0, %s8, %s6
  $region1: #{tpu_custom_call.1} parent=0
    #allocation2 [shape = 'u8[131072]{0}', space=vmem, size = 0x20000, scoped, tag = 'output window, operand 0']
    #allocation3 [shape = 's32[2]{0}', space=sflag, size = 0x8, scoped, tag = 'scoped memory for tpu_custom_call.1']
    #allocation4 [shape = 'u8[1024]{0}', space=vmem, size = 0x400, scoped, tag = 'output window, operand 1']
    #allocation5 [shape = 's32[2]{0}', space=sflag, size = 0x8, scoped, tag = 'scoped memory for tpu_custom_call.1']
    #allocation6 [shape = 'u8[1024]{0}', space=vmem, size = 0x400, scoped, tag = 'output window, operand 2']
    %10 = vsyncpa [#allocation3], 0
    %s11 = scalar_lea.sflag [#allocation3], 1
    %12 = vsyncpa %s11, 0
    %13 = vsyncpa [#allocation5], 0
    %s14 = scalar_lea.sflag [#allocation5], 1
    %15 = vsyncpa %s14, 0
    loop: start=0, step=1, limit=4
    $region2: #{tpu_custom_call.1} parent=1 // loop_pre_header
      _
    $region3: #{tpu_custom_call.1} parent=1 // loop_header
      %s17 = sphi 0, %s21
      %p18 = scmp.ge.s32.totalorder %s17, 4
      %s24 = sphi 0, %s43
      %s25 = sphi 0, %s39
      %s26 = sphi 0, %s35
      %s27 = sphi 0, %s24
      %s28 = sphi 0, %s25
      %s29 = sphi 0, %s26
      %s30 = sphi 0, %s27
      %s31 = sphi 0, %s28
      %s32 = sphi 0, %s29
      %s46 = sphi 0, %s48
      %s49 = sphi 0, %s46
      %s50 = sphi 0, %s49
      %s66 = sphi 0, %s50
      %s72 = sphi 0, %s74
      %s75 = sphi 0, %s72
      %s76 = sphi 0, %s75
      %s92 = sphi 0, %s76
      %s102 = sphi 0, %s104
      %s105 = sphi 0, %s102
      %s106 = sphi 0, %s105
      %s122 = sphi 0, %s106
      %s130 = sphi 0, %s132
      %s133 = sphi 0, %s130
      %s134 = sphi 0, %s133
      %s150 = sphi 0, %s134
      %s158 = sphi 0, %s160
      %s161 = sphi 0, %s158
      %s162 = sphi 0, %s161
      %s178 = sphi 0, %s162
    $region4: #{tpu_custom_call.1} parent=1 // loop_header_branch
      %20 = sbr.rel (%p18) target = $region8
    $region5: #{tpu_custom_call.1} parent=1 // loop_body
      %s22 = ssub.s32 %s17, 1
      %s23 = ssub.s32 %s17, 2
      %s33 = sadd.s32 1, %s26
      %p34 = scmp.ge.s32.totalorder %s33, 1
      %s35 = scalar_select %p34, 0, %s33
      %s36 = sadd.s32 1, %s25
      %s37 = scalar_select %p34, %s36, %s25
      %p38 = scmp.ge.s32.totalorder %s37, 1
      %s39 = scalar_select %p38, 0, %s37
      %s40 = sadd.s32 1, %s24
      %s41 = scalar_select %p38, %s40, %s24
      %p42 = scmp.ge.s32.totalorder %s41, 2
      %s43 = scalar_select %p42, 0, %s41
      %s44 = ssub.s32 %s24, %s43
      %p45 = scmp.eq.s32.totalorder %s44, 0
      %s47 = sadd.s32 %s46, 1
      %s48 = scalar_select %p45, %s46, %s47
      %p51 = pneg %p45
      %p52 = scmp.eq.s32.totalorder %s17, 1
      %p53 = por %p51, %p52
      %p54 = scmp.ne.s32.totalorder %s46, %s49
      %p55 = scmp.eq.s32.totalorder %s17, 0
      %p56 = por %p54, %p55
      %p57 = scmp.ne.s32.totalorder %s46, %s49
      %p58 = scmp.eq.s32.totalorder %s22, 1
      %p59 = por %p57, %p58
      %p60 = scmp.ne.s32.totalorder %s49, %s50
      %p61 = scmp.eq.s32.totalorder %s22, 0
      %p62 = por %p60, %p61
      %p63 = scmp.ne.s32.totalorder %s49, %s50
      %p64 = scmp.eq.s32.totalorder %s23, 1
      %p65 = por %p63, %p64
      %p67 = scmp.ne.s32.totalorder %s50, %s66
      %p68 = scmp.eq.s32.totalorder %s23, 0
      %p69 = por %p67, %p68
      %s70 = ssub.s32 %s25, %s39
      %p71 = scmp.eq.s32.totalorder %s70, 0
      %s73 = sadd.s32 %s72, 1
      %s74 = scalar_select %p71, %s72, %s73
      %p77 = pneg %p71
      %p78 = scmp.eq.s32.totalorder %s17, 1
      %p79 = por %p77, %p78
      %p80 = scmp.ne.s32.totalorder %s72, %s75
      %p81 = scmp.eq.s32.totalorder %s17, 0
      %p82 = por %p80, %p81
      %p83 = scmp.ne.s32.totalorder %s72, %s75
      %p84 = scmp.eq.s32.totalorder %s22, 1
      %p85 = por %p83, %p84
      %p86 = scmp.ne.s32.totalorder %s75, %s76
      %p87 = scmp.eq.s32.totalorder %s22, 0
      %p88 = por %p86, %p87
      %p89 = scmp.ne.s32.totalorder %s75, %s76
      %p90 = scmp.eq.s32.totalorder %s23, 1
      %p91 = por %p89, %p90
      %p93 = scmp.ne.s32.totalorder %s76, %s92
      %p94 = scmp.eq.s32.totalorder %s23, 0
      %p95 = por %p93, %p94
      %s96 = ssub.s32 %s24, %s43
      %s97 = ssub.s32 %s26, %s35
      %s98 = sor.u32 %s96, %s97
      %s99 = ssub.s32 %s25, %s39
      %s100 = sor.u32 %s98, %s99
      %p101 = scmp.eq.s32.totalorder %s100, 0
      %s103 = sadd.s32 %s102, 1
      %s104 = scalar_select %p101, %s102, %s103
      %p107 = pneg %p101
      %p108 = scmp.eq.s32.totalorder %s17, 1
      %p109 = por %p107, %p108
      %p110 = scmp.ne.s32.totalorder %s102, %s105
      %p111 = scmp.eq.s32.totalorder %s17, 0
      %p112 = por %p110, %p111
      %p113 = scmp.ne.s32.totalorder %s102, %s105
      %p114 = scmp.eq.s32.totalorder %s22, 1
      %p115 = por %p113, %p114
      %p116 = scmp.ne.s32.totalorder %s105, %s106
      %p117 = scmp.eq.s32.totalorder %s22, 0
      %p118 = por %p116, %p117
      %p119 = scmp.ne.s32.totalorder %s105, %s106
      %p120 = scmp.eq.s32.totalorder %s23, 1
      %p121 = por %p119, %p120
      %p123 = scmp.ne.s32.totalorder %s106, %s122
      %p124 = scmp.eq.s32.totalorder %s23, 0
      %p125 = por %p123, %p124
      %s126 = ssub.s32 %s24, %s43
      %s127 = ssub.s32 %s25, %s39
      %s128 = sor.u32 %s126, %s127
      %p129 = scmp.eq.s32.totalorder %s128, 0
      %s131 = sadd.s32 %s130, 1
      %s132 = scalar_select %p129, %s130, %s131
      %p135 = pneg %p129
      %p136 = scmp.eq.s32.totalorder %s17, 1
      %p137 = por %p135, %p136
      %p138 = scmp.ne.s32.totalorder %s130, %s133
      %p139 = scmp.eq.s32.totalorder %s17, 0
      %p140 = por %p138, %p139
      %p141 = scmp.ne.s32.totalorder %s130, %s133
      %p142 = scmp.eq.s32.totalorder %s22, 1
      %p143 = por %p141, %p142
      %p144 = scmp.ne.s32.totalorder %s133, %s134
      %p145 = scmp.eq.s32.totalorder %s22, 0
      %p146 = por %p144, %p145
      %p147 = scmp.ne.s32.totalorder %s133, %s134
      %p148 = scmp.eq.s32.totalorder %s23, 1
      %p149 = por %p147, %p148
      %p151 = scmp.ne.s32.totalorder %s134, %s150
      %p152 = scmp.eq.s32.totalorder %s23, 0
      %p153 = por %p151, %p152
      %s154 = ssub.s32 %s24, %s43
      %s155 = ssub.s32 %s25, %s39
      %s156 = sor.u32 %s154, %s155
      %p157 = scmp.eq.s32.totalorder %s156, 0
      %s159 = sadd.s32 %s158, 1
      %s160 = scalar_select %p157, %s158, %s159
      %p163 = pneg %p157
      %p164 = scmp.eq.s32.totalorder %s17, 1
      %p165 = por %p163, %p164
      %p166 = scmp.ne.s32.totalorder %s158, %s161
      %p167 = scmp.eq.s32.totalorder %s17, 0
      %p168 = por %p166, %p167
      %p169 = scmp.ne.s32.totalorder %s158, %s161
      %p170 = scmp.eq.s32.totalorder %s22, 1
      %p171 = por %p169, %p170
      %p172 = scmp.ne.s32.totalorder %s161, %s162
      %p173 = scmp.eq.s32.totalorder %s22, 0
      %p174 = por %p172, %p173
      %p175 = scmp.ne.s32.totalorder %s161, %s162
      %p176 = scmp.eq.s32.totalorder %s23, 1
      %p177 = por %p175, %p176
      %p179 = scmp.ne.s32.totalorder %s162, %s178
      %p180 = scmp.eq.s32.totalorder %s23, 0
      %p181 = por %p179, %p180
      %p182 = scmp.le.s32.totalorder 1, %s17
      %p183 = scmp.lt.s32.totalorder %s17, 3
      %p184 = pnand %p182, %p183
      %p185 = pneg %p184
      // Predicated region
      $region9: #{tpu_custom_call.1} parent=5 // pred_check
        _
      $region10: #{tpu_custom_call.1} parent=5 // pred_check_branch
        %187 = sbr.rel (%p184) target = $region12
      $region11: #{tpu_custom_call.1} parent=5 // pred_region
        %s188 = ssub.s32 %s17, 1
        // Predicated region
        $region13: #{tpu_custom_call.1} parent=11 // pred_check
          %p189 = pneg %p88
        $region14: #{tpu_custom_call.1} parent=11 // pred_check_branch
          %191 = sbr.rel (%p189) target = $region16
        $region15: #{tpu_custom_call.1} parent=11 // pred_region
          %p192 = scmp.lt.s32.totalorder %s28, 0
          %s193 = scalar_select %p192, %s28, 0
          %s194 = smul.addr %s193, 2
          %s195 = scalar_lea.vmem %s1, %s194
        $region16: #{tpu_custom_call.1} parent=11 // pred_fallthru
          _
      $region12: #{tpu_custom_call.1} parent=5 // pred_fallthru
        _
      %p196 = scmp.lt.s32.totalorder %s17, 2
      // Predicated region
      $region17: #{tpu_custom_call.1} parent=5 // pred_check
        %p197 = pneg %p196
      $region18: #{tpu_custom_call.1} parent=5 // pred_check_branch
        %199 = sbr.rel (%p197) target = $region20
      $region19: #{tpu_custom_call.1} parent=5 // pred_region
        // Predicated region
        $region21: #{tpu_custom_call.1} parent=19 // pred_check
          %p200 = pneg %p56
        $region22: #{tpu_custom_call.1} parent=19 // pred_check_branch
          %202 = sbr.rel (%p200) target = $region24
        $region23: #{tpu_custom_call.1} parent=19 // pred_region
          %p203 = scmp.lt.s32.totalorder %s24, 1
          %s204 = scalar_select %p203, %s24, 1
          %s205 = smul.addr %s204, 54
          %s206 = smul.addr %s205, 4
          %s207 = scalar_lea.vmem %s0, %s206
        $region24: #{tpu_custom_call.1} parent=19 // pred_fallthru
          _
      $region20: #{tpu_custom_call.1} parent=5 // pred_fallthru
        _
      %p208 = scmp.le.s32.totalorder 1, %s17
      %p209 = scmp.lt.s32.totalorder %s17, 3
      %p210 = pnand %p208, %p209
      %p211 = pneg %p210
      // Predicated region
      $region25: #{tpu_custom_call.1} parent=5 // pred_check
        _
      $region26: #{tpu_custom_call.1} parent=5 // pred_check_branch
        %213 = sbr.rel (%p210) target = $region28
      $region27: #{tpu_custom_call.1} parent=5 // pred_region
        %s214 = ssub.s32 %s17, 1
        %p215 = scmp.lt.s32.totalorder %s27, 1
        %s216 = scalar_select %p215, %s27, 1
        %s217 = smul.addr %s216, 54
        %s218 = smul.addr %s217, 4
        %s219 = scalar_lea.vmem %s0, %s218
        %p220 = pneg %p62
        %p221 = pneg %p59
        %p222 = scmp.lt.s32.totalorder %s28, 0
        %s223 = scalar_select %p222, %s28, 0
        %s224 = smul.addr %s223, 2
        %s225 = scalar_lea.vmem %s1, %s224
        %p226 = pneg %p88
        %p227 = pneg %p85
        %p228 = pneg %p118
        %p229 = pneg %p115
        %s230 = sand.u32 %s105, 1
        %s231 = scalar_lea.sflag [#allocation3], %s230
        %s232 = sand.u32 %s105, 1
        %s233 = smul.addr %s232, 128
        %s234 = scalar_lea.vmem [#allocation2], %s233
        %p235 = pneg %p146
        %p236 = pneg %p143
        %s237 = sand.u32 %s22, 1
        %s238 = scalar_lea.sflag [#allocation5], %s237
        %s239 = sand.u32 %s133, 1
        %s240 = scalar_lea.vmem [#allocation4], %s239
        %p241 = pneg %p174
        %p242 = pneg %p171
        %s243 = sand.u32 %s22, 1
        %s244 = scalar_lea.sflag [#allocation5], %s243
        %s245 = sand.u32 %s161, 1
        %s246 = scalar_lea.vmem [#allocation6], %s245
        %p247 = scmp.lt.s32.totalorder %s27, 1
        %s248 = scalar_select %p247, %s27, 1
        %s249 = smul.addr %s248, 54
        %s250 = smul.addr %s249, 4
        %s251 = scalar_lea.vmem %s0, %s250
        %p252 = scmp.lt.s32.totalorder %s28, 0
        %s253 = scalar_select %p252, %s28, 0
        %s254 = smul.addr %s253, 2
        %s255 = scalar_lea.vmem %s1, %s254
        %s256 = smul.u32 32, %s29
        %s258 = smul.u32 %s29, 16
        %s259 = smul.u32 %s258, 3
        %s260 = smul.addr %s259, 4
        %s261 = scalar_lea.vmem %s251, %s260
        %v262 = vld [vmem:[%s261] sm:$0xf]
        %v263 = vld [vmem:[%s261 + $0x4] sm:$0xf]
        %v264 = vld [vmem:[%s261 + $0xc] sm:$0xf]
        %v265 = vld [vmem:[%s261 + $0x10] sm:$0xf]
        %v266 = vld [vmem:[%s261 + $0x18] sm:$0xf]
        %v267 = vld [vmem:[%s261 + $0x1c] sm:$0xf]
        %v268 = vld [vmem:[%s261 + $0x24] sm:$0xf]
        %v269 = vld [vmem:[%s261 + $0x28] sm:$0xf]
        %v270 = vld [vmem:[%s261 + $0x30] sm:$0xf]
        %v271 = vld [vmem:[%s261 + $0x34] sm:$0xf]
        %v272 = vld [vmem:[%s261 + $0x3c] sm:$0xf]
        %v273 = vld [vmem:[%s261 + $0x40] sm:$0xf]
        %v274 = vld [vmem:[%s261 + $0x48] sm:$0xf]
        %v275 = vld [vmem:[%s261 + $0x4c] sm:$0xf]
        %v276 = vld [vmem:[%s261 + $0x54] sm:$0xf]
        %v277 = vld [vmem:[%s261 + $0x58] sm:$0xf]
        %v278 = vld [vmem:[%s261 + $0x60] sm:$0xf]
        %v279 = vld [vmem:[%s261 + $0x64] sm:$0xf]
        %v280 = vld [vmem:[%s261 + $0x6c] sm:$0xf]
        %v281 = vld [vmem:[%s261 + $0x70] sm:$0xf]
        %v282 = vld [vmem:[%s261 + $0x78] sm:$0xf]
        %v283 = vld [vmem:[%s261 + $0x7c] sm:$0xf]
        %v284 = vld [vmem:[%s261 + $0x84] sm:$0xf]
        %v285 = vld [vmem:[%s261 + $0x88] sm:$0xf]
        %v286 = vld [vmem:[%s261 + $0x90] sm:$0xf]
        %v287 = vld [vmem:[%s261 + $0x94] sm:$0xf]
        %v288 = vld [vmem:[%s261 + $0x9c] sm:$0xf]
        %v289 = vld [vmem:[%s261 + $0xa0] sm:$0xf]
        %v290 = vld [vmem:[%s261 + $0xa8] sm:$0xf]
        %v291 = vld [vmem:[%s261 + $0xac] sm:$0xf]
        %v292 = vld [vmem:[%s261 + $0xb4] sm:$0xf]
        %v293 = vld [vmem:[%s261 + $0xb8] sm:$0xf]
        %v294 = vld [vmem:[%s255] sm:$0x3]
        %v295 = vld [vmem:[%s261 + $0x8] sm:$0x1]
        %v296 = vld [vmem:[%s261 + $0x14] sm:$0x1]
        %v297 = vld [vmem:[%s261 + $0x20] sm:$0x1]
        %v298 = vld [vmem:[%s261 + $0x2c] sm:$0x1]
        %v299 = vld [vmem:[%s261 + $0x38] sm:$0x1]
        %v300 = vld [vmem:[%s261 + $0x44] sm:$0x1]
        %v301 = vld [vmem:[%s261 + $0x50] sm:$0x1]
        %v302 = vld [vmem:[%s261 + $0x5c] sm:$0x1]
        %v303 = vld [vmem:[%s261 + $0x68] sm:$0x1]
        %v304 = vld [vmem:[%s261 + $0x74] sm:$0x1]
        %v305 = vld [vmem:[%s261 + $0x80] sm:$0x1]
        %v306 = vld [vmem:[%s261 + $0x8c] sm:$0x1]
        %v307 = vld [vmem:[%s261 + $0x98] sm:$0x1]
        %v308 = vld [vmem:[%s261 + $0xa4] sm:$0x1]
        %v309 = vld [vmem:[%s261 + $0xb0] sm:$0x1]
        %v310 = vld [vmem:[%s261 + $0xbc] sm:$0x1]
        %vm311 = vsmask.f32 3328
        %vm312 = vsmask.f32 7440
        %vm313 = vmor %vm311, %vm312
        %v315 = vshrl.u32 %v262, 16
        %v317 = vrot.slane %v315, 4
        %v318 = vshll.u32 %v262, 16
        %v320 = vrot.slane %v318, 5
        %v321 = vor.u32 %v317, %v320
        %v322 = vrot.slane %v321, 4
        %v324 = vshll.u32 %v263, 16
        %v326 = vrot.slane %v324, 5
        %v327 = vsel %vm313, %v322, %v326
        %v328 = vshrl.u32 %v263, 16
        %v330 = vrot.slane %v328, 4
        %v331 = vor.u32 %v330, %v326
        %v332 = vrot.slane %v331, 4
        %v334 = vshll.u32 %v295, 16
        %v336 = vrot.slane %v334, 5
        %v337 = vsel %vm313, %v332, %v336
        %v339 = vshrl.u32 %v264, 16
        %v341 = vrot.slane %v339, 4
        %v342 = vshll.u32 %v264, 16
        %v344 = vrot.slane %v342, 5
        %v345 = vor.u32 %v341, %v344
        %v346 = vrot.slane %v345, 4
        %v348 = vshll.u32 %v265, 16
        %v350 = vrot.slane %v348, 5
        %v351 = vsel %vm313, %v346, %v350
        %v352 = vshrl.u32 %v265, 16
        %v354 = vrot.slane %v352, 4
        %v355 = vor.u32 %v354, %v350
        %v356 = vrot.slane %v355, 4
        %v358 = vshll.u32 %v296, 16
        %v360 = vrot.slane %v358, 5
        %v361 = vsel %vm313, %v356, %v360
        %v363 = vshrl.u32 %v266, 16
        %v365 = vrot.slane %v363, 4
        %v366 = vshll.u32 %v266, 16
        %v368 = vrot.slane %v366, 5
        %v369 = vor.u32 %v365, %v368
        %v370 = vrot.slane %v369, 4
        %v372 = vshll.u32 %v267, 16
        %v374 = vrot.slane %v372, 5
        %v375 = vsel %vm313, %v370, %v374
        %v376 = vshrl.u32 %v267, 16
        %v378 = vrot.slane %v376, 4
        %v379 = vor.u32 %v378, %v374
        %v380 = vrot.slane %v379, 4
        %v382 = vshll.u32 %v297, 16
        %v384 = vrot.slane %v382, 5
        %v385 = vsel %vm313, %v380, %v384
        %v387 = vshrl.u32 %v268, 16
        %v389 = vrot.slane %v387, 4
        %v390 = vshll.u32 %v268, 16
        %v392 = vrot.slane %v390, 5
        %v393 = vor.u32 %v389, %v392
        %v394 = vrot.slane %v393, 4
        %v396 = vshll.u32 %v269, 16
        %v398 = vrot.slane %v396, 5
        %v399 = vsel %vm313, %v394, %v398
        %v400 = vshrl.u32 %v269, 16
        %v402 = vrot.slane %v400, 4
        %v403 = vor.u32 %v402, %v398
        %v404 = vrot.slane %v403, 4
        %v406 = vshll.u32 %v298, 16
        %v408 = vrot.slane %v406, 5
        %v409 = vsel %vm313, %v404, %v408
        %v411 = vshrl.u32 %v270, 16
        %v413 = vrot.slane %v411, 4
        %v414 = vshll.u32 %v270, 16
        %v416 = vrot.slane %v414, 5
        %v417 = vor.u32 %v413, %v416
        %v418 = vrot.slane %v417, 4
        %v420 = vshll.u32 %v271, 16
        %v422 = vrot.slane %v420, 5
        %v423 = vsel %vm313, %v418, %v422
        %v424 = vshrl.u32 %v271, 16
        %v426 = vrot.slane %v424, 4
        %v427 = vor.u32 %v426, %v422
        %v428 = vrot.slane %v427, 4
        %v430 = vshll.u32 %v299, 16
        %v432 = vrot.slane %v430, 5
        %v433 = vsel %vm313, %v428, %v432
        %v435 = vshrl.u32 %v272, 16
        %v437 = vrot.slane %v435, 4
        %v438 = vshll.u32 %v272, 16
        %v440 = vrot.slane %v438, 5
        %v441 = vor.u32 %v437, %v440
        %v442 = vrot.slane %v441, 4
        %v444 = vshll.u32 %v273, 16
        %v446 = vrot.slane %v444, 5
        %v447 = vsel %vm313, %v442, %v446
        %v448 = vshrl.u32 %v273, 16
        %v450 = vrot.slane %v448, 4
        %v451 = vor.u32 %v450, %v446
        %v452 = vrot.slane %v451, 4
        %v454 = vshll.u32 %v300, 16
        %v456 = vrot.slane %v454, 5
        %v457 = vsel %vm313, %v452, %v456
        %v459 = vshrl.u32 %v274, 16
        %v461 = vrot.slane %v459, 4
        %v462 = vshll.u32 %v274, 16
        %v464 = vrot.slane %v462, 5
        %v465 = vor.u32 %v461, %v464
        %v466 = vrot.slane %v465, 4
        %v468 = vshll.u32 %v275, 16
        %v470 = vrot.slane %v468, 5
        %v471 = vsel %vm313, %v466, %v470
        %v472 = vshrl.u32 %v275, 16
        %v474 = vrot.slane %v472, 4
        %v475 = vor.u32 %v474, %v470
        %v476 = vrot.slane %v475, 4
        %v478 = vshll.u32 %v301, 16
        %v480 = vrot.slane %v478, 5
        %v481 = vsel %vm313, %v476, %v480
        %v483 = vshrl.u32 %v276, 16
        %v485 = vrot.slane %v483, 4
        %v486 = vshll.u32 %v276, 16
        %v488 = vrot.slane %v486, 5
        %v489 = vor.u32 %v485, %v488
        %v490 = vrot.slane %v489, 4
        %v492 = vshll.u32 %v277, 16
        %v494 = vrot.slane %v492, 5
        %v495 = vsel %vm313, %v490, %v494
        %v496 = vshrl.u32 %v277, 16
        %v498 = vrot.slane %v496, 4
        %v499 = vor.u32 %v498, %v494
        %v500 = vrot.slane %v499, 4
        %v502 = vshll.u32 %v302, 16
        %v504 = vrot.slane %v502, 5
        %v505 = vsel %vm313, %v500, %v504
        %v507 = vshrl.u32 %v278, 16
        %v509 = vrot.slane %v507, 4
        %v510 = vshll.u32 %v278, 16
        %v512 = vrot.slane %v510, 5
        %v513 = vor.u32 %v509, %v512
        %v514 = vrot.slane %v513, 4
        %v516 = vshll.u32 %v279, 16
        %v518 = vrot.slane %v516, 5
        %v519 = vsel %vm313, %v514, %v518
        %v520 = vshrl.u32 %v279, 16
        %v522 = vrot.slane %v520, 4
        %v523 = vor.u32 %v522, %v518
        %v524 = vrot.slane %v523, 4
        %v526 = vshll.u32 %v303, 16
        %v528 = vrot.slane %v526, 5
        %v529 = vsel %vm313, %v524, %v528
        %v531 = vshrl.u32 %v280, 16
        %v533 = vrot.slane %v531, 4
        %v534 = vshll.u32 %v280, 16
        %v536 = vrot.slane %v534, 5
        %v537 = vor.u32 %v533, %v536
        %v538 = vrot.slane %v537, 4
        %v540 = vshll.u32 %v281, 16
        %v542 = vrot.slane %v540, 5
        %v543 = vsel %vm313, %v538, %v542
        %v544 = vshrl.u32 %v281, 16
        %v546 = vrot.slane %v544, 4
        %v547 = vor.u32 %v546, %v542
        %v548 = vrot.slane %v547, 4
        %v550 = vshll.u32 %v304, 16
        %v552 = vrot.slane %v550, 5
        %v553 = vsel %vm313, %v548, %v552
        %v555 = vshrl.u32 %v282, 16
        %v557 = vrot.slane %v555, 4
        %v558 = vshll.u32 %v282, 16
        %v560 = vrot.slane %v558, 5
        %v561 = vor.u32 %v557, %v560
        %v562 = vrot.slane %v561, 4
        %v564 = vshll.u32 %v283, 16
        %v566 = vrot.slane %v564, 5
        %v567 = vsel %vm313, %v562, %v566
        %v568 = vshrl.u32 %v283, 16
        %v570 = vrot.slane %v568, 4
        %v571 = vor.u32 %v570, %v566
        %v572 = vrot.slane %v571, 4
        %v574 = vshll.u32 %v305, 16
        %v576 = vrot.slane %v574, 5
        %v577 = vsel %vm313, %v572, %v576
        %v579 = vshrl.u32 %v284, 16
        %v581 = vrot.slane %v579, 4
        %v582 = vshll.u32 %v284, 16
        %v584 = vrot.slane %v582, 5
        %v585 = vor.u32 %v581, %v584
        %v586 = vrot.slane %v585, 4
        %v588 = vshll.u32 %v285, 16
        %v590 = vrot.slane %v588, 5
        %v591 = vsel %vm313, %v586, %v590
        %v592 = vshrl.u32 %v285, 16
        %v594 = vrot.slane %v592, 4
        %v595 = vor.u32 %v594, %v590
        %v596 = vrot.slane %v595, 4
        %v598 = vshll.u32 %v306, 16
        %v600 = vrot.slane %v598, 5
        %v601 = vsel %vm313, %v596, %v600
        %v603 = vshrl.u32 %v286, 16
        %v605 = vrot.slane %v603, 4
        %v606 = vshll.u32 %v286, 16
        %v608 = vrot.slane %v606, 5
        %v609 = vor.u32 %v605, %v608
        %v610 = vrot.slane %v609, 4
        %v612 = vshll.u32 %v287, 16
        %v614 = vrot.slane %v612, 5
        %v615 = vsel %vm313, %v610, %v614
        %v616 = vshrl.u32 %v287, 16
        %v618 = vrot.slane %v616, 4
        %v619 = vor.u32 %v618, %v614
        %v620 = vrot.slane %v619, 4
        %v622 = vshll.u32 %v307, 16
        %v624 = vrot.slane %v622, 5
        %v625 = vsel %vm313, %v620, %v624
        %v627 = vshrl.u32 %v288, 16
        %v629 = vrot.slane %v627, 4
        %v630 = vshll.u32 %v288, 16
        %v632 = vrot.slane %v630, 5
        %v633 = vor.u32 %v629, %v632
        %v634 = vrot.slane %v633, 4
        %v636 = vshll.u32 %v289, 16
        %v638 = vrot.slane %v636, 5
        %v639 = vsel %vm313, %v634, %v638
        %v640 = vshrl.u32 %v289, 16
        %v642 = vrot.slane %v640, 4
        %v643 = vor.u32 %v642, %v638
        %v644 = vrot.slane %v643, 4
        %v646 = vshll.u32 %v308, 16
        %v648 = vrot.slane %v646, 5
        %v649 = vsel %vm313, %v644, %v648
        %v651 = vshrl.u32 %v290, 16
        %v653 = vrot.slane %v651, 4
        %v654 = vshll.u32 %v290, 16
        %v656 = vrot.slane %v654, 5
        %v657 = vor.u32 %v653, %v656
        %v658 = vrot.slane %v657, 4
        %v660 = vshll.u32 %v291, 16
        %v662 = vrot.slane %v660, 5
        %v663 = vsel %vm313, %v658, %v662
        %v664 = vshrl.u32 %v291, 16
        %v666 = vrot.slane %v664, 4
        %v667 = vor.u32 %v666, %v662
        %v668 = vrot.slane %v667, 4
        %v670 = vshll.u32 %v309, 16
        %v672 = vrot.slane %v670, 5
        %v673 = vsel %vm313, %v668, %v672
        %v675 = vshrl.u32 %v292, 16
        %v677 = vrot.slane %v675, 4
        %v678 = vshll.u32 %v292, 16
        %v680 = vrot.slane %v678, 5
        %v681 = vor.u32 %v677, %v680
        %v682 = vrot.slane %v681, 4
        %v684 = vshll.u32 %v293, 16
        %v686 = vrot.slane %v684, 5
        %v687 = vsel %vm313, %v682, %v686
        %v688 = vshrl.u32 %v293, 16
        %v690 = vrot.slane %v688, 4
        %v691 = vor.u32 %v690, %v686
        %v692 = vrot.slane %v691, 4
        %v694 = vshll.u32 %v310, 16
        %v696 = vrot.slane %v694, 5
        %v697 = vsel %vm313, %v692, %v696
        %s698 = scalar_lea.vmem %s255, 2
        %v699 = vld [vmem:[%s698] sm:$0x3]
        %v700 = vunpack.c.l.b16 %v327
        %v701 = vunpack.c.l.b16 %v337
        %v702 = vunpack.c.l.b16 %v351
        %v703 = vunpack.c.l.b16 %v361
        %v704 = vunpack.c.l.b16 %v375
        %v705 = vunpack.c.l.b16 %v385
        %v706 = vunpack.c.l.b16 %v399
        %v707 = vunpack.c.l.b16 %v409
        %v708 = vunpack.c.l.b16 %v423
        %v709 = vunpack.c.l.b16 %v433
        %v710 = vunpack.c.l.b16 %v447
        %v711 = vunpack.c.l.b16 %v457
        %v712 = vunpack.c.l.b16 %v471
        %v713 = vunpack.c.l.b16 %v481
        %v714 = vunpack.c.l.b16 %v495
        %v715 = vunpack.c.l.b16 %v505
        %v716 = vunpack.c.l.b16 %v519
        %v717 = vunpack.c.l.b16 %v529
        %v718 = vunpack.c.l.b16 %v543
        %v719 = vunpack.c.l.b16 %v553
        %v720 = vunpack.c.l.b16 %v567
        %v721 = vunpack.c.l.b16 %v577
        %v722 = vunpack.c.l.b16 %v591
        %v723 = vunpack.c.l.b16 %v601
        %v724 = vunpack.c.l.b16 %v615
        %v725 = vunpack.c.l.b16 %v625
        %v726 = vunpack.c.l.b16 %v639
        %v727 = vunpack.c.l.b16 %v649
        %v728 = vunpack.c.l.b16 %v663
        %v729 = vunpack.c.l.b16 %v673
        %v730 = vunpack.c.l.b16 %v687
        %v731 = vunpack.c.l.b16 %v697
        %v732 = vpack.c.b16 %v701, %v700
        %v733 = vpack.c.b16 %v703, %v702
        %v734 = vpack.c.b16 %v705, %v704
        %v735 = vpack.c.b16 %v707, %v706
        %v736 = vpack.c.b16 %v709, %v708
        %v737 = vpack.c.b16 %v711, %v710
        %v738 = vpack.c.b16 %v713, %v712
        %v739 = vpack.c.b16 %v715, %v714
        %v740 = vpack.c.b16 %v717, %v716
        %v741 = vpack.c.b16 %v719, %v718
        %v742 = vpack.c.b16 %v721, %v720
        %v743 = vpack.c.b16 %v723, %v722
        %v744 = vpack.c.b16 %v725, %v724
        %v745 = vpack.c.b16 %v727, %v726
        %v746 = vpack.c.b16 %v729, %v728
        %v747 = vpack.c.b16 %v731, %v730
        %vm748 = vcmask 31744
        %v750 = vsel %vm748, %v732, 0
        %v753 = vsel %vm748, %v733, 0
        %v756 = vsel %vm748, %v734, 0
        %v759 = vsel %vm748, %v735, 0
        %v762 = vsel %vm748, %v736, 0
        %v765 = vsel %vm748, %v737, 0
        %v768 = vsel %vm748, %v738, 0
        %v771 = vsel %vm748, %v739, 0
        %v774 = vsel %vm748, %v740, 0
        %v777 = vsel %vm748, %v741, 0
        %v780 = vsel %vm748, %v742, 0
        %v783 = vsel %vm748, %v743, 0
        %v786 = vsel %vm748, %v744, 0
        %v789 = vsel %vm748, %v745, 0
        %v792 = vsel %vm748, %v746, 0
        %v795 = vsel %vm748, %v747, 0
        %vm797 = vcmask 1041408
        %v799 = vsel %vm797, %v699, 0
        %801 = vmatprep.subr.bf16.mxu0 0
        %802 = vmatpush1.bf16.msra.mxu0 0
        %803 = vmatprep.subr.bf16.mxu0 0
        %804 = vmatpush1.bf16.msra.mxu0 0
        %805 = vmatprep.subr.bf16.mxu0 0
        %806 = vmatpush1.bf16.msra.mxu0 0
        %807 = vmatprep.subr.bf16.mxu0 0
        %808 = vmatpush1.bf16.msra.mxu0 0
        %809 = vmatprep.subr.bf16.mxu0 0
        %810 = vmatpush1.bf16.msra.mxu0 0
        %811 = vmatprep.subr.bf16.mxu0 0
        %812 = vmatpush1.bf16.msra.mxu0 0
        %813 = vmatprep.subr.bf16.mxu0 0
        %814 = vmatpush1.bf16.msra.mxu0 0
        %815 = vmatprep.subr.bf16.mxu0 0
        %816 = vmatpush1.bf16.msra.mxu0 %v799
        %817 = vmatprep.subr.bf16.mxu0 0
        %818 = vmatpush2.bf16.msra.mxu0 0
        %819 = vmatprep.subr.bf16.mxu0 0
        %820 = vmatpush2.bf16.msra.mxu0 0
        %821 = vmatprep.subr.bf16.mxu0 0
        %822 = vmatpush2.bf16.msra.mxu0 0
        %823 = vmatprep.subr.bf16.mxu0 0
        %824 = vmatpush2.bf16.msra.mxu0 0
        %825 = vmatprep.subr.bf16.mxu0 0
        %826 = vmatpush2.bf16.msra.mxu0 0
        %827 = vmatprep.subr.bf16.mxu0 0
        %828 = vmatpush2.bf16.msra.mxu0 0
        %829 = vmatprep.subr.bf16.mxu0 0
        %830 = vmatpush2.bf16.msra.mxu0 0
        %831 = vmatprep.subr.bf16.mxu0 0
        %832 = vmatpush2.bf16.msra.mxu0 0
        %833 = vmatprep.mubr.bf16.mxu0 0
        %834 = vmatmul.mubr.bf16.gmra.mxu0 %v750
        %v835 = vpop.f32.mrf.mxu0
        %v836 = vadd.f32 0.0, %v835
        %v837 = vpop.f32.mrf.mxu0
        %v838 = vpop.f32.mrf.mxu0
        %v839 = vadd.f32 0.0, %v838
        %v840 = vpop.f32.mrf.mxu0
        %841 = vmatprep.mubr.bf16.mxu0 0
        %842 = vmatmul.mubr.bf16.gmra.mxu0 %v753
        %v843 = vpop.f32.mrf.mxu0
        %v844 = vadd.f32 0.0, %v843
        %v845 = vpop.f32.mrf.mxu0
        %v846 = vpop.f32.mrf.mxu0
        %v847 = vadd.f32 0.0, %v846
        %v848 = vpop.f32.mrf.mxu0
        %849 = vmatprep.mubr.bf16.mxu0 0
        %850 = vmatmul.mubr.bf16.gmra.mxu0 %v756
        %v851 = vpop.f32.mrf.mxu0
        %v852 = vadd.f32 0.0, %v851
        %v853 = vpop.f32.mrf.mxu0
        %v854 = vpop.f32.mrf.mxu0
        %v855 = vadd.f32 0.0, %v854
        %v856 = vpop.f32.mrf.mxu0
        %857 = vmatprep.mubr.bf16.mxu0 0
        %858 = vmatmul.mubr.bf16.gmra.mxu0 %v759
        %v859 = vpop.f32.mrf.mxu0
        %v860 = vadd.f32 0.0, %v859
        %v861 = vpop.f32.mrf.mxu0
        %v862 = vpop.f32.mrf.mxu0
        %v863 = vadd.f32 0.0, %v862
        %v864 = vpop.f32.mrf.mxu0
        %865 = vmatprep.mubr.bf16.mxu0 0
        %866 = vmatmul.mubr.bf16.gmra.mxu0 %v762
        %v867 = vpop.f32.mrf.mxu0
        %v868 = vadd.f32 0.0, %v867
        %v869 = vpop.f32.mrf.mxu0
        %v870 = vpop.f32.mrf.mxu0
        %v871 = vadd.f32 0.0, %v870
        %v872 = vpop.f32.mrf.mxu0
        %873 = vmatprep.mubr.bf16.mxu0 0
        %874 = vmatmul.mubr.bf16.gmra.mxu0 %v765
        %v875 = vpop.f32.mrf.mxu0
        %v876 = vadd.f32 0.0, %v875
        %v877 = vpop.f32.mrf.mxu0
        %v878 = vpop.f32.mrf.mxu0
        %v879 = vadd.f32 0.0, %v878
        %v880 = vpop.f32.mrf.mxu0
        %881 = vmatprep.mubr.bf16.mxu0 0
        %882 = vmatmul.mubr.bf16.gmra.mxu0 %v768
        %v883 = vpop.f32.mrf.mxu0
        %v884 = vadd.f32 0.0, %v883
        %v885 = vpop.f32.mrf.mxu0
        %v886 = vpop.f32.mrf.mxu0
        %v887 = vadd.f32 0.0, %v886
        %v888 = vpop.f32.mrf.mxu0
        %889 = vmatprep.mubr.bf16.mxu0 0
        %890 = vmatmul.mubr.bf16.gmra.mxu0 %v771
        %v891 = vpop.f32.mrf.mxu0
        %v892 = vadd.f32 0.0, %v891
        %v893 = vpop.f32.mrf.mxu0
        %v894 = vpop.f32.mrf.mxu0
        %v895 = vadd.f32 0.0, %v894
        %v896 = vpop.f32.mrf.mxu0
        %897 = vmatprep.mubr.bf16.mxu0 0
        %898 = vmatmul.mubr.bf16.gmra.mxu0 %v774
        %v899 = vpop.f32.mrf.mxu0
        %v900 = vadd.f32 0.0, %v899
        %v901 = vpop.f32.mrf.mxu0
        %v902 = vpop.f32.mrf.mxu0
        %v903 = vadd.f32 0.0, %v902
        %v904 = vpop.f32.mrf.mxu0
        %905 = vmatprep.mubr.bf16.mxu0 0
        %906 = vmatmul.mubr.bf16.gmra.mxu0 %v777
        %v907 = vpop.f32.mrf.mxu0
        %v908 = vadd.f32 0.0, %v907
        %v909 = vpop.f32.mrf.mxu0
        %v910 = vpop.f32.mrf.mxu0
        %v911 = vadd.f32 0.0, %v910
        %v912 = vpop.f32.mrf.mxu0
        %913 = vmatprep.mubr.bf16.mxu0 0
        %914 = vmatmul.mubr.bf16.gmra.mxu0 %v780
        %v915 = vpop.f32.mrf.mxu0
        %v916 = vadd.f32 0.0, %v915
        %v917 = vpop.f32.mrf.mxu0
        %v918 = vpop.f32.mrf.mxu0
        %v919 = vadd.f32 0.0, %v918
        %v920 = vpop.f32.mrf.mxu0
        %921 = vmatprep.mubr.bf16.mxu0 0
        %922 = vmatmul.mubr.bf16.gmra.mxu0 %v783
        %v923 = vpop.f32.mrf.mxu0
        %v924 = vadd.f32 0.0, %v923
        %v925 = vpop.f32.mrf.mxu0
        %v926 = vpop.f32.mrf.mxu0
        %v927 = vadd.f32 0.0, %v926
        %v928 = vpop.f32.mrf.mxu0
        %929 = vmatprep.mubr.bf16.mxu0 0
        %930 = vmatmul.mubr.bf16.gmra.mxu0 %v786
        %v931 = vpop.f32.mrf.mxu0
        %v932 = vadd.f32 0.0, %v931
        %v933 = vpop.f32.mrf.mxu0
        %v934 = vpop.f32.mrf.mxu0
        %v935 = vadd.f32 0.0, %v934
        %v936 = vpop.f32.mrf.mxu0
        %937 = vmatprep.mubr.bf16.mxu0 0
        %938 = vmatmul.mubr.bf16.gmra.mxu0 %v789
        %v939 = vpop.f32.mrf.mxu0
        %v940 = vadd.f32 0.0, %v939
        %v941 = vpop.f32.mrf.mxu0
        %v942 = vpop.f32.mrf.mxu0
        %v943 = vadd.f32 0.0, %v942
        %v944 = vpop.f32.mrf.mxu0
        %945 = vmatprep.mubr.bf16.mxu0 0
        %946 = vmatmul.mubr.bf16.gmra.mxu0 %v792
        %v947 = vpop.f32.mrf.mxu0
        %v948 = vadd.f32 0.0, %v947
        %v949 = vpop.f32.mrf.mxu0
        %v950 = vpop.f32.mrf.mxu0
        %v951 = vadd.f32 0.0, %v950
        %v952 = vpop.f32.mrf.mxu0
        %953 = vmatprep.mubr.bf16.mxu0 0
        %954 = vmatmul.mubr.bf16.gmra.mxu0 %v795
        %v955 = vpop.f32.mrf.mxu0
        %v956 = vadd.f32 0.0, %v955
        %v957 = vpop.f32.mrf.mxu0
        %v958 = vpop.f32.mrf.mxu0
        %v959 = vadd.f32 0.0, %v958
        %v960 = vpop.f32.mrf.mxu0
        %961 = vdwg.mxu0
        %v994 = vunpack.c.l.b16 %v262
        %v995 = vunpack.c.l.b16 %v263
        %v996 = vunpack.c.l.b16 %v264
        %v997 = vunpack.c.l.b16 %v265
        %v998 = vunpack.c.l.b16 %v266
        %v999 = vunpack.c.l.b16 %v267
        %v1000 = vunpack.c.l.b16 %v268
        %v1001 = vunpack.c.l.b16 %v269
        %v1002 = vunpack.c.l.b16 %v270
        %v1003 = vunpack.c.l.b16 %v271
        %v1004 = vunpack.c.l.b16 %v272
        %v1005 = vunpack.c.l.b16 %v273
        %v1006 = vunpack.c.l.b16 %v274
        %v1007 = vunpack.c.l.b16 %v275
        %v1008 = vunpack.c.l.b16 %v276
        %v1009 = vunpack.c.l.b16 %v277
        %v1010 = vunpack.c.l.b16 %v278
        %v1011 = vunpack.c.l.b16 %v279
        %v1012 = vunpack.c.l.b16 %v280
        %v1013 = vunpack.c.l.b16 %v281
        %v1014 = vunpack.c.l.b16 %v282
        %v1015 = vunpack.c.l.b16 %v283
        %v1016 = vunpack.c.l.b16 %v284
        %v1017 = vunpack.c.l.b16 %v285
        %v1018 = vunpack.c.l.b16 %v286
        %v1019 = vunpack.c.l.b16 %v287
        %v1020 = vunpack.c.l.b16 %v288
        %v1021 = vunpack.c.l.b16 %v289
        %v1022 = vunpack.c.l.b16 %v290
        %v1023 = vunpack.c.l.b16 %v291
        %v1024 = vunpack.c.l.b16 %v292
        %v1025 = vunpack.c.l.b16 %v293
        %v1026 = vpack.c.b16 %v995, %v994
        %v1027 = vpack.c.b16 %v997, %v996
        %v1028 = vpack.c.b16 %v999, %v998
        %v1029 = vpack.c.b16 %v1001, %v1000
        %v1030 = vpack.c.b16 %v1003, %v1002
        %v1031 = vpack.c.b16 %v1005, %v1004
        %v1032 = vpack.c.b16 %v1007, %v1006
        %v1033 = vpack.c.b16 %v1009, %v1008
        %v1034 = vpack.c.b16 %v1011, %v1010
        %v1035 = vpack.c.b16 %v1013, %v1012
        %v1036 = vpack.c.b16 %v1015, %v1014
        %v1037 = vpack.c.b16 %v1017, %v1016
        %v1038 = vpack.c.b16 %v1019, %v1018
        %v1039 = vpack.c.b16 %v1021, %v1020
        %v1040 = vpack.c.b16 %v1023, %v1022
        %v1041 = vpack.c.b16 %v1025, %v1024
        %v1043 = vsel %vm748, %v1026, 0
        %v1046 = vsel %vm748, %v1027, 0
        %v1049 = vsel %vm748, %v1028, 0
        %v1052 = vsel %vm748, %v1029, 0
        %v1055 = vsel %vm748, %v1030, 0
        %v1058 = vsel %vm748, %v1031, 0
        %v1061 = vsel %vm748, %v1032, 0
        %v1064 = vsel %vm748, %v1033, 0
        %v1067 = vsel %vm748, %v1034, 0
        %v1070 = vsel %vm748, %v1035, 0
        %v1073 = vsel %vm748, %v1036, 0
        %v1076 = vsel %vm748, %v1037, 0
        %v1079 = vsel %vm748, %v1038, 0
        %v1082 = vsel %vm748, %v1039, 0
        %v1085 = vsel %vm748, %v1040, 0
        %v1088 = vsel %vm748, %v1041, 0
        %v1091 = vsel %vm797, %v294, 0
        %1093 = vmatprep.subr.bf16.mxu0 0
        %1094 = vmatpush1.bf16.msra.mxu0 0
        %1095 = vmatprep.subr.bf16.mxu0 0
        %1096 = vmatpush1.bf16.msra.mxu0 0
        %1097 = vmatprep.subr.bf16.mxu0 0
        %1098 = vmatpush1.bf16.msra.mxu0 0
        %1099 = vmatprep.subr.bf16.mxu0 0
        %1100 = vmatpush1.bf16.msra.mxu0 0
        %1101 = vmatprep.subr.bf16.mxu0 0
        %1102 = vmatpush1.bf16.msra.mxu0 0
        %1103 = vmatprep.subr.bf16.mxu0 0
        %1104 = vmatpush1.bf16.msra.mxu0 0
        %1105 = vmatprep.subr.bf16.mxu0 0
        %1106 = vmatpush1.bf16.msra.mxu0 0
        %1107 = vmatprep.subr.bf16.mxu0 0
        %1108 = vmatpush1.bf16.msra.mxu0 %v1091
        %1109 = vmatprep.subr.bf16.mxu0 0
        %1110 = vmatpush2.bf16.msra.mxu0 0
        %1111 = vmatprep.subr.bf16.mxu0 0
        %1112 = vmatpush2.bf16.msra.mxu0 0
        %1113 = vmatprep.subr.bf16.mxu0 0
        %1114 = vmatpush2.bf16.msra.mxu0 0
        %1115 = vmatprep.subr.bf16.mxu0 0
        %1116 = vmatpush2.bf16.msra.mxu0 0
        %1117 = vmatprep.subr.bf16.mxu0 0
        %1118 = vmatpush2.bf16.msra.mxu0 0
        %1119 = vmatprep.subr.bf16.mxu0 0
        %1120 = vmatpush2.bf16.msra.mxu0 0
        %1121 = vmatprep.subr.bf16.mxu0 0
        %1122 = vmatpush2.bf16.msra.mxu0 0
        %1123 = vmatprep.subr.bf16.mxu0 0
        %1124 = vmatpush2.bf16.msra.mxu0 0
        %1125 = vmatprep.mubr.bf16.mxu0 0
        %1126 = vmatmul.mubr.bf16.gmra.mxu0 %v1043
        %v1127 = vpop.f32.mrf.mxu0
        %v1128 = vadd.f32 %v836, %v1127
        %v1129 = vpop.f32.mrf.mxu0
        %v1130 = vpop.f32.mrf.mxu0
        %v1131 = vadd.f32 %v839, %v1130
        %v1132 = vpop.f32.mrf.mxu0
        %1133 = vmatprep.mubr.bf16.mxu0 0
        %1134 = vmatmul.mubr.bf16.gmra.mxu0 %v1046
        %v1135 = vpop.f32.mrf.mxu0
        %v1136 = vadd.f32 %v844, %v1135
        %v1137 = vpop.f32.mrf.mxu0
        %v1138 = vpop.f32.mrf.mxu0
        %v1139 = vadd.f32 %v847, %v1138
        %v1140 = vpop.f32.mrf.mxu0
        %1141 = vmatprep.mubr.bf16.mxu0 0
        %1142 = vmatmul.mubr.bf16.gmra.mxu0 %v1049
        %v1143 = vpop.f32.mrf.mxu0
        %v1144 = vadd.f32 %v852, %v1143
        %v1145 = vpop.f32.mrf.mxu0
        %v1146 = vpop.f32.mrf.mxu0
        %v1147 = vadd.f32 %v855, %v1146
        %v1148 = vpop.f32.mrf.mxu0
        %1149 = vmatprep.mubr.bf16.mxu0 0
        %1150 = vmatmul.mubr.bf16.gmra.mxu0 %v1052
        %v1151 = vpop.f32.mrf.mxu0
        %v1152 = vadd.f32 %v860, %v1151
        %v1153 = vpop.f32.mrf.mxu0
        %v1154 = vpop.f32.mrf.mxu0
        %v1155 = vadd.f32 %v863, %v1154
        %v1156 = vpop.f32.mrf.mxu0
        %1157 = vmatprep.mubr.bf16.mxu0 0
        %1158 = vmatmul.mubr.bf16.gmra.mxu0 %v1055
        %v1159 = vpop.f32.mrf.mxu0
        %v1160 = vadd.f32 %v868, %v1159
        %v1161 = vpop.f32.mrf.mxu0
        %v1162 = vpop.f32.mrf.mxu0
        %v1163 = vadd.f32 %v871, %v1162
        %v1164 = vpop.f32.mrf.mxu0
        %1165 = vmatprep.mubr.bf16.mxu0 0
        %1166 = vmatmul.mubr.bf16.gmra.mxu0 %v1058
        %v1167 = vpop.f32.mrf.mxu0
        %v1168 = vadd.f32 %v876, %v1167
        %v1169 = vpop.f32.mrf.mxu0
        %v1170 = vpop.f32.mrf.mxu0
        %v1171 = vadd.f32 %v879, %v1170
        %v1172 = vpop.f32.mrf.mxu0
        %1173 = vmatprep.mubr.bf16.mxu0 0
        %1174 = vmatmul.mubr.bf16.gmra.mxu0 %v1061
        %v1175 = vpop.f32.mrf.mxu0
        %v1176 = vadd.f32 %v884, %v1175
        %v1177 = vpop.f32.mrf.mxu0
        %v1178 = vpop.f32.mrf.mxu0
        %v1179 = vadd.f32 %v887, %v1178
        %v1180 = vpop.f32.mrf.mxu0
        %1181 = vmatprep.mubr.bf16.mxu0 0
        %1182 = vmatmul.mubr.bf16.gmra.mxu0 %v1064
        %v1183 = vpop.f32.mrf.mxu0
        %v1184 = vadd.f32 %v892, %v1183
        %v1185 = vpop.f32.mrf.mxu0
        %v1186 = vpop.f32.mrf.mxu0
        %v1187 = vadd.f32 %v895, %v1186
        %v1188 = vpop.f32.mrf.mxu0
        %1189 = vmatprep.mubr.bf16.mxu0 0
        %1190 = vmatmul.mubr.bf16.gmra.mxu0 %v1067
        %v1191 = vpop.f32.mrf.mxu0
        %v1192 = vadd.f32 %v900, %v1191
        %v1193 = vpop.f32.mrf.mxu0
        %v1194 = vpop.f32.mrf.mxu0
        %v1195 = vadd.f32 %v903, %v1194
        %v1196 = vpop.f32.mrf.mxu0
        %1197 = vmatprep.mubr.bf16.mxu0 0
        %1198 = vmatmul.mubr.bf16.gmra.mxu0 %v1070
        %v1199 = vpop.f32.mrf.mxu0
        %v1200 = vadd.f32 %v908, %v1199
        %v1201 = vpop.f32.mrf.mxu0
        %v1202 = vpop.f32.mrf.mxu0
        %v1203 = vadd.f32 %v911, %v1202
        %v1204 = vpop.f32.mrf.mxu0
        %1205 = vmatprep.mubr.bf16.mxu0 0
        %1206 = vmatmul.mubr.bf16.gmra.mxu0 %v1073
        %v1207 = vpop.f32.mrf.mxu0
        %v1208 = vadd.f32 %v916, %v1207
        %v1209 = vpop.f32.mrf.mxu0
        %v1210 = vpop.f32.mrf.mxu0
        %v1211 = vadd.f32 %v919, %v1210
        %v1212 = vpop.f32.mrf.mxu0
        %1213 = vmatprep.mubr.bf16.mxu0 0
        %1214 = vmatmul.mubr.bf16.gmra.mxu0 %v1076
        %v1215 = vpop.f32.mrf.mxu0
        %v1216 = vadd.f32 %v924, %v1215
        %v1217 = vpop.f32.mrf.mxu0
        %v1218 = vpop.f32.mrf.mxu0
        %v1219 = vadd.f32 %v927, %v1218
        %v1220 = vpop.f32.mrf.mxu0
        %1221 = vmatprep.mubr.bf16.mxu0 0
        %1222 = vmatmul.mubr.bf16.gmra.mxu0 %v1079
        %v1223 = vpop.f32.mrf.mxu0
        %v1224 = vadd.f32 %v932, %v1223
        %v1225 = vpop.f32.mrf.mxu0
        %v1226 = vpop.f32.mrf.mxu0
        %v1227 = vadd.f32 %v935, %v1226
        %v1228 = vpop.f32.mrf.mxu0
        %1229 = vmatprep.mubr.bf16.mxu0 0
        %1230 = vmatmul.mubr.bf16.gmra.mxu0 %v1082
        %v1231 = vpop.f32.mrf.mxu0
        %v1232 = vadd.f32 %v940, %v1231
        %v1233 = vpop.f32.mrf.mxu0
        %v1234 = vpop.f32.mrf.mxu0
        %v1235 = vadd.f32 %v943, %v1234
        %v1236 = vpop.f32.mrf.mxu0
        %1237 = vmatprep.mubr.bf16.mxu0 0
        %1238 = vmatmul.mubr.bf16.gmra.mxu0 %v1085
        %v1239 = vpop.f32.mrf.mxu0
        %v1240 = vadd.f32 %v948, %v1239
        %v1241 = vpop.f32.mrf.mxu0
        %v1242 = vpop.f32.mrf.mxu0
        %v1243 = vadd.f32 %v951, %v1242
        %v1244 = vpop.f32.mrf.mxu0
        %1245 = vmatprep.mubr.bf16.mxu0 0
        %1246 = vmatmul.mubr.bf16.gmra.mxu0 %v1088
        %v1247 = vpop.f32.mrf.mxu0
        %v1248 = vadd.f32 %v956, %v1247
        %v1249 = vpop.f32.mrf.mxu0
        %v1250 = vpop.f32.mrf.mxu0
        %v1251 = vadd.f32 %v959, %v1250
        %v1252 = vpop.f32.mrf.mxu0
        %1253 = vdwg.mxu0
        %v1254 = vld [vmem:[%s261] sm:$0xe]
        %v1255 = vld [vmem:[%s261 + $0xc] sm:$0xe]
        %v1256 = vld [vmem:[%s261 + $0x18] sm:$0xe]
        %v1257 = vld [vmem:[%s261 + $0x24] sm:$0xe]
        %v1258 = vld [vmem:[%s261 + $0x30] sm:$0xe]
        %v1259 = vld [vmem:[%s261 + $0x3c] sm:$0xe]
        %v1260 = vld [vmem:[%s261 + $0x48] sm:$0xe]
        %v1261 = vld [vmem:[%s261 + $0x54] sm:$0xe]
        %v1262 = vld [vmem:[%s261 + $0x60] sm:$0xe]
        %v1263 = vld [vmem:[%s261 + $0x6c] sm:$0xe]
        %v1264 = vld [vmem:[%s261 + $0x78] sm:$0xe]
        %v1265 = vld [vmem:[%s261 + $0x84] sm:$0xe]
        %v1266 = vld [vmem:[%s261 + $0x90] sm:$0xe]
        %v1267 = vld [vmem:[%s261 + $0x9c] sm:$0xe]
        %v1268 = vld [vmem:[%s261 + $0xa8] sm:$0xe]
        %v1269 = vld [vmem:[%s261 + $0xb4] sm:$0xe]
        %vm1302 = vcmask 1042432
        %vm1303 = vcmask 1046532
        %vm1304 = vmor %vm1302, %vm1303
        %v1305 = vrot.slane %v1254, 5
        %v1306 = vrot.slane %v1305, 4
        %v1307 = vrot.slane %v263, 5
        %v1308 = vsel %vm1304, %v1306, %v1307
        %v1309 = vrot.slane %v1307, 4
        %v1310 = vrot.slane %v295, 5
        %v1311 = vsel %vm1304, %v1309, %v1310
        %v1312 = vrot.slane %v1255, 5
        %v1313 = vrot.slane %v1312, 4
        %v1314 = vrot.slane %v265, 5
        %v1315 = vsel %vm1304, %v1313, %v1314
        %v1316 = vrot.slane %v1314, 4
        %v1317 = vrot.slane %v296, 5
        %v1318 = vsel %vm1304, %v1316, %v1317
        %v1319 = vrot.slane %v1256, 5
        %v1320 = vrot.slane %v1319, 4
        %v1321 = vrot.slane %v267, 5
        %v1322 = vsel %vm1304, %v1320, %v1321
        %v1323 = vrot.slane %v1321, 4
        %v1324 = vrot.slane %v297, 5
        %v1325 = vsel %vm1304, %v1323, %v1324
        %v1326 = vrot.slane %v1257, 5
        %v1327 = vrot.slane %v1326, 4
        %v1328 = vrot.slane %v269, 5
        %v1329 = vsel %vm1304, %v1327, %v1328
        %v1330 = vrot.slane %v1328, 4
        %v1331 = vrot.slane %v298, 5
        %v1332 = vsel %vm1304, %v1330, %v1331
        %v1333 = vrot.slane %v1258, 5
        %v1334 = vrot.slane %v1333, 4
        %v1335 = vrot.slane %v271, 5
        %v1336 = vsel %vm1304, %v1334, %v1335
        %v1337 = vrot.slane %v1335, 4
        %v1338 = vrot.slane %v299, 5
        %v1339 = vsel %vm1304, %v1337, %v1338
        %v1340 = vrot.slane %v1259, 5
        %v1341 = vrot.slane %v1340, 4
        %v1342 = vrot.slane %v273, 5
        %v1343 = vsel %vm1304, %v1341, %v1342
        %v1344 = vrot.slane %v1342, 4
        %v1345 = vrot.slane %v300, 5
        %v1346 = vsel %vm1304, %v1344, %v1345
        %v1347 = vrot.slane %v1260, 5
        %v1348 = vrot.slane %v1347, 4
        %v1349 = vrot.slane %v275, 5
        %v1350 = vsel %vm1304, %v1348, %v1349
        %v1351 = vrot.slane %v1349, 4
        %v1352 = vrot.slane %v301, 5
        %v1353 = vsel %vm1304, %v1351, %v1352
        %v1354 = vrot.slane %v1261, 5
        %v1355 = vrot.slane %v1354, 4
        %v1356 = vrot.slane %v277, 5
        %v1357 = vsel %vm1304, %v1355, %v1356
        %v1358 = vrot.slane %v1356, 4
        %v1359 = vrot.slane %v302, 5
        %v1360 = vsel %vm1304, %v1358, %v1359
        %v1361 = vrot.slane %v1262, 5
        %v1362 = vrot.slane %v1361, 4
        %v1363 = vrot.slane %v279, 5
        %v1364 = vsel %vm1304, %v1362, %v1363
        %v1365 = vrot.slane %v1363, 4
        %v1366 = vrot.slane %v303, 5
        %v1367 = vsel %vm1304, %v1365, %v1366
        %v1368 = vrot.slane %v1263, 5
        %v1369 = vrot.slane %v1368, 4
        %v1370 = vrot.slane %v281, 5
        %v1371 = vsel %vm1304, %v1369, %v1370
        %v1372 = vrot.slane %v1370, 4
        %v1373 = vrot.slane %v304, 5
        %v1374 = vsel %vm1304, %v1372, %v1373
        %v1375 = vrot.slane %v1264, 5
        %v1376 = vrot.slane %v1375, 4
        %v1377 = vrot.slane %v283, 5
        %v1378 = vsel %vm1304, %v1376, %v1377
        %v1379 = vrot.slane %v1377, 4
        %v1380 = vrot.slane %v305, 5
        %v1381 = vsel %vm1304, %v1379, %v1380
        %v1382 = vrot.slane %v1265, 5
        %v1383 = vrot.slane %v1382, 4
        %v1384 = vrot.slane %v285, 5
        %v1385 = vsel %vm1304, %v1383, %v1384
        %v1386 = vrot.slane %v1384, 4
        %v1387 = vrot.slane %v306, 5
        %v1388 = vsel %vm1304, %v1386, %v1387
        %v1389 = vrot.slane %v1266, 5
        %v1390 = vrot.slane %v1389, 4
        %v1391 = vrot.slane %v287, 5
        %v1392 = vsel %vm1304, %v1390, %v1391
        %v1393 = vrot.slane %v1391, 4
        %v1394 = vrot.slane %v307, 5
        %v1395 = vsel %vm1304, %v1393, %v1394
        %v1396 = vrot.slane %v1267, 5
        %v1397 = vrot.slane %v1396, 4
        %v1398 = vrot.slane %v289, 5
        %v1399 = vsel %vm1304, %v1397, %v1398
        %v1400 = vrot.slane %v1398, 4
        %v1401 = vrot.slane %v308, 5
        %v1402 = vsel %vm1304, %v1400, %v1401
        %v1403 = vrot.slane %v1268, 5
        %v1404 = vrot.slane %v1403, 4
        %v1405 = vrot.slane %v291, 5
        %v1406 = vsel %vm1304, %v1404, %v1405
        %v1407 = vrot.slane %v1405, 4
        %v1408 = vrot.slane %v309, 5
        %v1409 = vsel %vm1304, %v1407, %v1408
        %v1410 = vrot.slane %v1269, 5
        %v1411 = vrot.slane %v1410, 4
        %v1412 = vrot.slane %v293, 5
        %v1413 = vsel %vm1304, %v1411, %v1412
        %v1414 = vrot.slane %v1412, 4
        %v1415 = vrot.slane %v310, 5
        %v1416 = vsel %vm1304, %v1414, %v1415
        %s1417 = scalar_lea.vmem %s255, 4
        %v1418 = vld [vmem:[%s1417] sm:$0x3]
        %v1419 = vunpack.c.l.b16 %v1308
        %v1420 = vunpack.c.l.b16 %v1311
        %v1421 = vunpack.c.l.b16 %v1315
        %v1422 = vunpack.c.l.b16 %v1318
        %v1423 = vunpack.c.l.b16 %v1322
        %v1424 = vunpack.c.l.b16 %v1325
        %v1425 = vunpack.c.l.b16 %v1329
        %v1426 = vunpack.c.l.b16 %v1332
        %v1427 = vunpack.c.l.b16 %v1336
        %v1428 = vunpack.c.l.b16 %v1339
        %v1429 = vunpack.c.l.b16 %v1343
        %v1430 = vunpack.c.l.b16 %v1346
        %v1431 = vunpack.c.l.b16 %v1350
        %v1432 = vunpack.c.l.b16 %v1353
        %v1433 = vunpack.c.l.b16 %v1357
        %v1434 = vunpack.c.l.b16 %v1360
        %v1435 = vunpack.c.l.b16 %v1364
        %v1436 = vunpack.c.l.b16 %v1367
        %v1437 = vunpack.c.l.b16 %v1371
        %v1438 = vunpack.c.l.b16 %v1374
        %v1439 = vunpack.c.l.b16 %v1378
        %v1440 = vunpack.c.l.b16 %v1381
        %v1441 = vunpack.c.l.b16 %v1385
        %v1442 = vunpack.c.l.b16 %v1388
        %v1443 = vunpack.c.l.b16 %v1392
        %v1444 = vunpack.c.l.b16 %v1395
        %v1445 = vunpack.c.l.b16 %v1399
        %v1446 = vunpack.c.l.b16 %v1402
        %v1447 = vunpack.c.l.b16 %v1406
        %v1448 = vunpack.c.l.b16 %v1409
        %v1449 = vunpack.c.l.b16 %v1413
        %v1450 = vunpack.c.l.b16 %v1416
        %v1451 = vpack.c.b16 %v1420, %v1419
        %v1452 = vpack.c.b16 %v1422, %v1421
        %v1453 = vpack.c.b16 %v1424, %v1423
        %v1454 = vpack.c.b16 %v1426, %v1425
        %v1455 = vpack.c.b16 %v1428, %v1427
        %v1456 = vpack.c.b16 %v1430, %v1429
        %v1457 = vpack.c.b16 %v1432, %v1431
        %v1458 = vpack.c.b16 %v1434, %v1433
        %v1459 = vpack.c.b16 %v1436, %v1435
        %v1460 = vpack.c.b16 %v1438, %v1437
        %v1461 = vpack.c.b16 %v1440, %v1439
        %v1462 = vpack.c.b16 %v1442, %v1441
        %v1463 = vpack.c.b16 %v1444, %v1443
        %v1464 = vpack.c.b16 %v1446, %v1445
        %v1465 = vpack.c.b16 %v1448, %v1447
        %v1466 = vpack.c.b16 %v1450, %v1449
        %v1468 = vsel %vm748, %v1451, 0
        %v1471 = vsel %vm748, %v1452, 0
        %v1474 = vsel %vm748, %v1453, 0
        %v1477 = vsel %vm748, %v1454, 0
        %v1480 = vsel %vm748, %v1455, 0
        %v1483 = vsel %vm748, %v1456, 0
        %v1486 = vsel %vm748, %v1457, 0
        %v1489 = vsel %vm748, %v1458, 0
        %v1492 = vsel %vm748, %v1459, 0
        %v1495 = vsel %vm748, %v1460, 0
        %v1498 = vsel %vm748, %v1461, 0
        %v1501 = vsel %vm748, %v1462, 0
        %v1504 = vsel %vm748, %v1463, 0
        %v1507 = vsel %vm748, %v1464, 0
        %v1510 = vsel %vm748, %v1465, 0
        %v1513 = vsel %vm748, %v1466, 0
        %v1516 = vsel %vm797, %v1418, 0
        %1518 = vmatprep.subr.bf16.mxu0 0
        %1519 = vmatpush1.bf16.msra.mxu0 0
        %1520 = vmatprep.subr.bf16.mxu0 0
        %1521 = vmatpush1.bf16.msra.mxu0 0
        %1522 = vmatprep.subr.bf16.mxu0 0
        %1523 = vmatpush1.bf16.msra.mxu0 0
        %1524 = vmatprep.subr.bf16.mxu0 0
        %1525 = vmatpush1.bf16.msra.mxu0 0
        %1526 = vmatprep.subr.bf16.mxu0 0
        %1527 = vmatpush1.bf16.msra.mxu0 0
        %1528 = vmatprep.subr.bf16.mxu0 0
        %1529 = vmatpush1.bf16.msra.mxu0 0
        %1530 = vmatprep.subr.bf16.mxu0 0
        %1531 = vmatpush1.bf16.msra.mxu0 0
        %1532 = vmatprep.subr.bf16.mxu0 0
        %1533 = vmatpush1.bf16.msra.mxu0 %v1516
        %1534 = vmatprep.subr.bf16.mxu0 0
        %1535 = vmatpush2.bf16.msra.mxu0 0
        %1536 = vmatprep.subr.bf16.mxu0 0
        %1537 = vmatpush2.bf16.msra.mxu0 0
        %1538 = vmatprep.subr.bf16.mxu0 0
        %1539 = vmatpush2.bf16.msra.mxu0 0
        %1540 = vmatprep.subr.bf16.mxu0 0
        %1541 = vmatpush2.bf16.msra.mxu0 0
        %1542 = vmatprep.subr.bf16.mxu0 0
        %1543 = vmatpush2.bf16.msra.mxu0 0
        %1544 = vmatprep.subr.bf16.mxu0 0
        %1545 = vmatpush2.bf16.msra.mxu0 0
        %1546 = vmatprep.subr.bf16.mxu0 0
        %1547 = vmatpush2.bf16.msra.mxu0 0
        %1548 = vmatprep.subr.bf16.mxu0 0
        %1549 = vmatpush2.bf16.msra.mxu0 0
        %1550 = vmatprep.mubr.bf16.mxu0 0
        %1551 = vmatmul.mubr.bf16.gmra.mxu0 %v1468
        %v1552 = vpop.f32.mrf.mxu0
        %v1553 = vadd.f32 0.0, %v1552
        %v1554 = vpop.f32.mrf.mxu0
        %v1555 = vpop.f32.mrf.mxu0
        %v1556 = vadd.f32 0.0, %v1555
        %v1557 = vpop.f32.mrf.mxu0
        %1558 = vmatprep.mubr.bf16.mxu0 0
        %1559 = vmatmul.mubr.bf16.gmra.mxu0 %v1471
        %v1560 = vpop.f32.mrf.mxu0
        %v1561 = vadd.f32 0.0, %v1560
        %v1562 = vpop.f32.mrf.mxu0
        %v1563 = vpop.f32.mrf.mxu0
        %v1564 = vadd.f32 0.0, %v1563
        %v1565 = vpop.f32.mrf.mxu0
        %1566 = vmatprep.mubr.bf16.mxu0 0
        %1567 = vmatmul.mubr.bf16.gmra.mxu0 %v1474
        %v1568 = vpop.f32.mrf.mxu0
        %v1569 = vadd.f32 0.0, %v1568
        %v1570 = vpop.f32.mrf.mxu0
        %v1571 = vpop.f32.mrf.mxu0
        %v1572 = vadd.f32 0.0, %v1571
        %v1573 = vpop.f32.mrf.mxu0
        %1574 = vmatprep.mubr.bf16.mxu0 0
        %1575 = vmatmul.mubr.bf16.gmra.mxu0 %v1477
        %v1576 = vpop.f32.mrf.mxu0
        %v1577 = vadd.f32 0.0, %v1576
        %v1578 = vpop.f32.mrf.mxu0
        %v1579 = vpop.f32.mrf.mxu0
        %v1580 = vadd.f32 0.0, %v1579
        %v1581 = vpop.f32.mrf.mxu0
        %1582 = vmatprep.mubr.bf16.mxu0 0
        %1583 = vmatmul.mubr.bf16.gmra.mxu0 %v1480
        %v1584 = vpop.f32.mrf.mxu0
        %v1585 = vadd.f32 0.0, %v1584
        %v1586 = vpop.f32.mrf.mxu0
        %v1587 = vpop.f32.mrf.mxu0
        %v1588 = vadd.f32 0.0, %v1587
        %v1589 = vpop.f32.mrf.mxu0
        %1590 = vmatprep.mubr.bf16.mxu0 0
        %1591 = vmatmul.mubr.bf16.gmra.mxu0 %v1483
        %v1592 = vpop.f32.mrf.mxu0
        %v1593 = vadd.f32 0.0, %v1592
        %v1594 = vpop.f32.mrf.mxu0
        %v1595 = vpop.f32.mrf.mxu0
        %v1596 = vadd.f32 0.0, %v1595
        %v1597 = vpop.f32.mrf.mxu0
        %1598 = vmatprep.mubr.bf16.mxu0 0
        %1599 = vmatmul.mubr.bf16.gmra.mxu0 %v1486
        %v1600 = vpop.f32.mrf.mxu0
        %v1601 = vadd.f32 0.0, %v1600
        %v1602 = vpop.f32.mrf.mxu0
        %v1603 = vpop.f32.mrf.mxu0
        %v1604 = vadd.f32 0.0, %v1603
        %v1605 = vpop.f32.mrf.mxu0
        %1606 = vmatprep.mubr.bf16.mxu0 0
        %1607 = vmatmul.mubr.bf16.gmra.mxu0 %v1489
        %v1608 = vpop.f32.mrf.mxu0
        %v1609 = vadd.f32 0.0, %v1608
        %v1610 = vpop.f32.mrf.mxu0
        %v1611 = vpop.f32.mrf.mxu0
        %v1612 = vadd.f32 0.0, %v1611
        %v1613 = vpop.f32.mrf.mxu0
        %1614 = vmatprep.mubr.bf16.mxu0 0
        %1615 = vmatmul.mubr.bf16.gmra.mxu0 %v1492
        %v1616 = vpop.f32.mrf.mxu0
        %v1617 = vadd.f32 0.0, %v1616
        %v1618 = vpop.f32.mrf.mxu0
        %v1619 = vpop.f32.mrf.mxu0
        %v1620 = vadd.f32 0.0, %v1619
        %v1621 = vpop.f32.mrf.mxu0
        %1622 = vmatprep.mubr.bf16.mxu0 0
        %1623 = vmatmul.mubr.bf16.gmra.mxu0 %v1495
        %v1624 = vpop.f32.mrf.mxu0
        %v1625 = vadd.f32 0.0, %v1624
        %v1626 = vpop.f32.mrf.mxu0
        %v1627 = vpop.f32.mrf.mxu0
        %v1628 = vadd.f32 0.0, %v1627
        %v1629 = vpop.f32.mrf.mxu0
        %1630 = vmatprep.mubr.bf16.mxu0 0
        %1631 = vmatmul.mubr.bf16.gmra.mxu0 %v1498
        %v1632 = vpop.f32.mrf.mxu0
        %v1633 = vadd.f32 0.0, %v1632
        %v1634 = vpop.f32.mrf.mxu0
        %v1635 = vpop.f32.mrf.mxu0
        %v1636 = vadd.f32 0.0, %v1635
        %v1637 = vpop.f32.mrf.mxu0
        %1638 = vmatprep.mubr.bf16.mxu0 0
        %1639 = vmatmul.mubr.bf16.gmra.mxu0 %v1501
        %v1640 = vpop.f32.mrf.mxu0
        %v1641 = vadd.f32 0.0, %v1640
        %v1642 = vpop.f32.mrf.mxu0
        %v1643 = vpop.f32.mrf.mxu0
        %v1644 = vadd.f32 0.0, %v1643
        %v1645 = vpop.f32.mrf.mxu0
        %1646 = vmatprep.mubr.bf16.mxu0 0
        %1647 = vmatmul.mubr.bf16.gmra.mxu0 %v1504
        %v1648 = vpop.f32.mrf.mxu0
        %v1649 = vadd.f32 0.0, %v1648
        %v1650 = vpop.f32.mrf.mxu0
        %v1651 = vpop.f32.mrf.mxu0
        %v1652 = vadd.f32 0.0, %v1651
        %v1653 = vpop.f32.mrf.mxu0
        %1654 = vmatprep.mubr.bf16.mxu0 0
        %1655 = vmatmul.mubr.bf16.gmra.mxu0 %v1507
        %v1656 = vpop.f32.mrf.mxu0
        %v1657 = vadd.f32 0.0, %v1656
        %v1658 = vpop.f32.mrf.mxu0
        %v1659 = vpop.f32.mrf.mxu0
        %v1660 = vadd.f32 0.0, %v1659
        %v1661 = vpop.f32.mrf.mxu0
        %1662 = vmatprep.mubr.bf16.mxu0 0
        %1663 = vmatmul.mubr.bf16.gmra.mxu0 %v1510
        %v1664 = vpop.f32.mrf.mxu0
        %v1665 = vadd.f32 0.0, %v1664
        %v1666 = vpop.f32.mrf.mxu0
        %v1667 = vpop.f32.mrf.mxu0
        %v1668 = vadd.f32 0.0, %v1667
        %v1669 = vpop.f32.mrf.mxu0
        %1670 = vmatprep.mubr.bf16.mxu0 0
        %1671 = vmatmul.mubr.bf16.gmra.mxu0 %v1513
        %v1672 = vpop.f32.mrf.mxu0
        %v1673 = vadd.f32 0.0, %v1672
        %v1674 = vpop.f32.mrf.mxu0
        %v1675 = vpop.f32.mrf.mxu0
        %v1676 = vadd.f32 0.0, %v1675
        %v1677 = vpop.f32.mrf.mxu0
        %1678 = vdwg.mxu0
        %v1679 = vadd.f32 %v1128, %v1553
        %v1680 = vadd.f32 %v1131, %v1556
        %v1681 = vadd.f32 %v1136, %v1561
        %v1682 = vadd.f32 %v1139, %v1564
        %v1683 = vadd.f32 %v1144, %v1569
        %v1684 = vadd.f32 %v1147, %v1572
        %v1685 = vadd.f32 %v1152, %v1577
        %v1686 = vadd.f32 %v1155, %v1580
        %v1687 = vadd.f32 %v1160, %v1585
        %v1688 = vadd.f32 %v1163, %v1588
        %v1689 = vadd.f32 %v1168, %v1593
        %v1690 = vadd.f32 %v1171, %v1596
        %v1691 = vadd.f32 %v1176, %v1601
        %v1692 = vadd.f32 %v1179, %v1604
        %v1693 = vadd.f32 %v1184, %v1609
        %v1694 = vadd.f32 %v1187, %v1612
        %v1695 = vadd.f32 %v1192, %v1617
        %v1696 = vadd.f32 %v1195, %v1620
        %v1697 = vadd.f32 %v1200, %v1625
        %v1698 = vadd.f32 %v1203, %v1628
        %v1699 = vadd.f32 %v1208, %v1633
        %v1700 = vadd.f32 %v1211, %v1636
        %v1701 = vadd.f32 %v1216, %v1641
        %v1702 = vadd.f32 %v1219, %v1644
        %v1703 = vadd.f32 %v1224, %v1649
        %v1704 = vadd.f32 %v1227, %v1652
        %v1705 = vadd.f32 %v1232, %v1657
        %v1706 = vadd.f32 %v1235, %v1660
        %v1707 = vadd.f32 %v1240, %v1665
        %v1708 = vadd.f32 %v1243, %v1668
        %v1709 = vadd.f32 %v1248, %v1673
        %v1710 = vadd.f32 %v1251, %v1676
        %s1711 = sadd.s32 %s258, 1
        %s1712 = smul.u32 %s1711, 3
        %s1713 = smul.addr %s1712, 4
        %s1714 = scalar_lea.vmem %s251, %s1713
        %v1715 = vld [vmem:[%s1714] sm:$0xf]
        %v1716 = vld [vmem:[%s1714 + $0x4] sm:$0xf]
        %v1717 = vld [vmem:[%s1714 + $0xc] sm:$0xf]
        %v1718 = vld [vmem:[%s1714 + $0x10] sm:$0xf]
        %v1719 = vld [vmem:[%s1714 + $0x18] sm:$0xf]
        %v1720 = vld [vmem:[%s1714 + $0x1c] sm:$0xf]
        %v1721 = vld [vmem:[%s1714 + $0x24] sm:$0xf]
        %v1722 = vld [vmem:[%s1714 + $0x28] sm:$0xf]
        %v1723 = vld [vmem:[%s1714 + $0x30] sm:$0xf]
        %v1724 = vld [vmem:[%s1714 + $0x34] sm:$0xf]
        %v1725 = vld [vmem:[%s1714 + $0x3c] sm:$0xf]
        %v1726 = vld [vmem:[%s1714 + $0x40] sm:$0xf]
        %v1727 = vld [vmem:[%s1714 + $0x48] sm:$0xf]
        %v1728 = vld [vmem:[%s1714 + $0x4c] sm:$0xf]
        %v1729 = vld [vmem:[%s1714 + $0x54] sm:$0xf]
        %v1730 = vld [vmem:[%s1714 + $0x58] sm:$0xf]
        %v1731 = vld [vmem:[%s1714 + $0x60] sm:$0xf]
        %v1732 = vld [vmem:[%s1714 + $0x64] sm:$0xf]
        %v1733 = vld [vmem:[%s1714 + $0x6c] sm:$0xf]
        %v1734 = vld [vmem:[%s1714 + $0x70] sm:$0xf]
        %v1735 = vld [vmem:[%s1714 + $0x78] sm:$0xf]
        %v1736 = vld [vmem:[%s1714 + $0x7c] sm:$0xf]
        %v1737 = vld [vmem:[%s1714 + $0x84] sm:$0xf]
        %v1738 = vld [vmem:[%s1714 + $0x88] sm:$0xf]
        %v1739 = vld [vmem:[%s1714 + $0x90] sm:$0xf]
        %v1740 = vld [vmem:[%s1714 + $0x94] sm:$0xf]
        %v1741 = vld [vmem:[%s1714 + $0x9c] sm:$0xf]
        %v1742 = vld [vmem:[%s1714 + $0xa0] sm:$0xf]
        %v1743 = vld [vmem:[%s1714 + $0xa8] sm:$0xf]
        %v1744 = vld [vmem:[%s1714 + $0xac] sm:$0xf]
        %v1745 = vld [vmem:[%s1714 + $0xb4] sm:$0xf]
        %v1746 = vld [vmem:[%s1714 + $0xb8] sm:$0xf]
        %s1747 = scalar_lea.vmem %s255, 6
        %v1748 = vld [vmem:[%s1747] sm:$0x3]
        %v1781 = vunpack.c.l.b16 %v1715
        %v1782 = vunpack.c.l.b16 %v1716
        %v1783 = vunpack.c.l.b16 %v1717
        %v1784 = vunpack.c.l.b16 %v1718
        %v1785 = vunpack.c.l.b16 %v1719
        %v1786 = vunpack.c.l.b16 %v1720
        %v1787 = vunpack.c.l.b16 %v1721
        %v1788 = vunpack.c.l.b16 %v1722
        %v1789 = vunpack.c.l.b16 %v1723
        %v1790 = vunpack.c.l.b16 %v1724
        %v1791 = vunpack.c.l.b16 %v1725
        %v1792 = vunpack.c.l.b16 %v1726
        %v1793 = vunpack.c.l.b16 %v1727
        %v1794 = vunpack.c.l.b16 %v1728
        %v1795 = vunpack.c.l.b16 %v1729
        %v1796 = vunpack.c.l.b16 %v1730
        %v1797 = vunpack.c.l.b16 %v1731
        %v1798 = vunpack.c.l.b16 %v1732
        %v1799 = vunpack.c.l.b16 %v1733
        %v1800 = vunpack.c.l.b16 %v1734
        %v1801 = vunpack.c.l.b16 %v1735
        %v1802 = vunpack.c.l.b16 %v1736
        %v1803 = vunpack.c.l.b16 %v1737
        %v1804 = vunpack.c.l.b16 %v1738
        %v1805 = vunpack.c.l.b16 %v1739
        %v1806 = vunpack.c.l.b16 %v1740
        %v1807 = vunpack.c.l.b16 %v1741
        %v1808 = vunpack.c.l.b16 %v1742
        %v1809 = vunpack.c.l.b16 %v1743
        %v1810 = vunpack.c.l.b16 %v1744
        %v1811 = vunpack.c.l.b16 %v1745
        %v1812 = vunpack.c.l.b16 %v1746
        %v1813 = vpack.c.b16 %v1782, %v1781
        %v1814 = vpack.c.b16 %v1784, %v1783
        %v1815 = vpack.c.b16 %v1786, %v1785
        %v1816 = vpack.c.b16 %v1788, %v1787
        %v1817 = vpack.c.b16 %v1790, %v1789
        %v1818 = vpack.c.b16 %v1792, %v1791
        %v1819 = vpack.c.b16 %v1794, %v1793
        %v1820 = vpack.c.b16 %v1796, %v1795
        %v1821 = vpack.c.b16 %v1798, %v1797
        %v1822 = vpack.c.b16 %v1800, %v1799
        %v1823 = vpack.c.b16 %v1802, %v1801
        %v1824 = vpack.c.b16 %v1804, %v1803
        %v1825 = vpack.c.b16 %v1806, %v1805
        %v1826 = vpack.c.b16 %v1808, %v1807
        %v1827 = vpack.c.b16 %v1810, %v1809
        %v1828 = vpack.c.b16 %v1812, %v1811
        %v1830 = vsel %vm748, %v1813, 0
        %v1833 = vsel %vm748, %v1814, 0
        %v1836 = vsel %vm748, %v1815, 0
        %v1839 = vsel %vm748, %v1816, 0
        %v1842 = vsel %vm748, %v1817, 0
        %v1845 = vsel %vm748, %v1818, 0
        %v1848 = vsel %vm748, %v1819, 0
        %v1851 = vsel %vm748, %v1820, 0
        %v1854 = vsel %vm748, %v1821, 0
        %v1857 = vsel %vm748, %v1822, 0
        %v1860 = vsel %vm748, %v1823, 0
        %v1863 = vsel %vm748, %v1824, 0
        %v1866 = vsel %vm748, %v1825, 0
        %v1869 = vsel %vm748, %v1826, 0
        %v1872 = vsel %vm748, %v1827, 0
        %v1875 = vsel %vm748, %v1828, 0
        %v1878 = vsel %vm797, %v1748, 0
        %1880 = vmatprep.subr.bf16.mxu0 0
        %1881 = vmatpush1.bf16.msra.mxu0 0
        %1882 = vmatprep.subr.bf16.mxu0 0
        %1883 = vmatpush1.bf16.msra.mxu0 0
        %1884 = vmatprep.subr.bf16.mxu0 0
        %1885 = vmatpush1.bf16.msra.mxu0 0
        %1886 = vmatprep.subr.bf16.mxu0 0
        %1887 = vmatpush1.bf16.msra.mxu0 0
        %1888 = vmatprep.subr.bf16.mxu0 0
        %1889 = vmatpush1.bf16.msra.mxu0 0
        %1890 = vmatprep.subr.bf16.mxu0 0
        %1891 = vmatpush1.bf16.msra.mxu0 0
        %1892 = vmatprep.subr.bf16.mxu0 0
        %1893 = vmatpush1.bf16.msra.mxu0 0
        %1894 = vmatprep.subr.bf16.mxu0 0
        %1895 = vmatpush1.bf16.msra.mxu0 %v1878
        %1896 = vmatprep.subr.bf16.mxu0 0
        %1897 = vmatpush2.bf16.msra.mxu0 0
        %1898 = vmatprep.subr.bf16.mxu0 0
        %1899 = vmatpush2.bf16.msra.mxu0 0
        %1900 = vmatprep.subr.bf16.mxu0 0
        %1901 = vmatpush2.bf16.msra.mxu0 0
        %1902 = vmatprep.subr.bf16.mxu0 0
        %1903 = vmatpush2.bf16.msra.mxu0 0
        %1904 = vmatprep.subr.bf16.mxu0 0
        %1905 = vmatpush2.bf16.msra.mxu0 0
        %1906 = vmatprep.subr.bf16.mxu0 0
        %1907 = vmatpush2.bf16.msra.mxu0 0
        %1908 = vmatprep.subr.bf16.mxu0 0
        %1909 = vmatpush2.bf16.msra.mxu0 0
        %1910 = vmatprep.subr.bf16.mxu0 0
        %1911 = vmatpush2.bf16.msra.mxu0 0
        %1912 = vmatprep.mubr.bf16.mxu0 0
        %1913 = vmatmul.mubr.bf16.gmra.mxu0 %v1830
        %v1914 = vpop.f32.mrf.mxu0
        %v1915 = vadd.f32 0.0, %v1914
        %v1916 = vpop.f32.mrf.mxu0
        %v1917 = vpop.f32.mrf.mxu0
        %v1918 = vadd.f32 0.0, %v1917
        %v1919 = vpop.f32.mrf.mxu0
        %1920 = vmatprep.mubr.bf16.mxu0 0
        %1921 = vmatmul.mubr.bf16.gmra.mxu0 %v1833
        %v1922 = vpop.f32.mrf.mxu0
        %v1923 = vadd.f32 0.0, %v1922
        %v1924 = vpop.f32.mrf.mxu0
        %v1925 = vpop.f32.mrf.mxu0
        %v1926 = vadd.f32 0.0, %v1925
        %v1927 = vpop.f32.mrf.mxu0
        %1928 = vmatprep.mubr.bf16.mxu0 0
        %1929 = vmatmul.mubr.bf16.gmra.mxu0 %v1836
        %v1930 = vpop.f32.mrf.mxu0
        %v1931 = vadd.f32 0.0, %v1930
        %v1932 = vpop.f32.mrf.mxu0
        %v1933 = vpop.f32.mrf.mxu0
        %v1934 = vadd.f32 0.0, %v1933
        %v1935 = vpop.f32.mrf.mxu0
        %1936 = vmatprep.mubr.bf16.mxu0 0
        %1937 = vmatmul.mubr.bf16.gmra.mxu0 %v1839
        %v1938 = vpop.f32.mrf.mxu0
        %v1939 = vadd.f32 0.0, %v1938
        %v1940 = vpop.f32.mrf.mxu0
        %v1941 = vpop.f32.mrf.mxu0
        %v1942 = vadd.f32 0.0, %v1941
        %v1943 = vpop.f32.mrf.mxu0
        %1944 = vmatprep.mubr.bf16.mxu0 0
        %1945 = vmatmul.mubr.bf16.gmra.mxu0 %v1842
        %v1946 = vpop.f32.mrf.mxu0
        %v1947 = vadd.f32 0.0, %v1946
        %v1948 = vpop.f32.mrf.mxu0
        %v1949 = vpop.f32.mrf.mxu0
        %v1950 = vadd.f32 0.0, %v1949
        %v1951 = vpop.f32.mrf.mxu0
        %1952 = vmatprep.mubr.bf16.mxu0 0
        %1953 = vmatmul.mubr.bf16.gmra.mxu0 %v1845
        %v1954 = vpop.f32.mrf.mxu0
        %v1955 = vadd.f32 0.0, %v1954
        %v1956 = vpop.f32.mrf.mxu0
        %v1957 = vpop.f32.mrf.mxu0
        %v1958 = vadd.f32 0.0, %v1957
        %v1959 = vpop.f32.mrf.mxu0
        %1960 = vmatprep.mubr.bf16.mxu0 0
        %1961 = vmatmul.mubr.bf16.gmra.mxu0 %v1848
        %v1962 = vpop.f32.mrf.mxu0
        %v1963 = vadd.f32 0.0, %v1962
        %v1964 = vpop.f32.mrf.mxu0
        %v1965 = vpop.f32.mrf.mxu0
        %v1966 = vadd.f32 0.0, %v1965
        %v1967 = vpop.f32.mrf.mxu0
        %1968 = vmatprep.mubr.bf16.mxu0 0
        %1969 = vmatmul.mubr.bf16.gmra.mxu0 %v1851
        %v1970 = vpop.f32.mrf.mxu0
        %v1971 = vadd.f32 0.0, %v1970
        %v1972 = vpop.f32.mrf.mxu0
        %v1973 = vpop.f32.mrf.mxu0
        %v1974 = vadd.f32 0.0, %v1973
        %v1975 = vpop.f32.mrf.mxu0
        %1976 = vmatprep.mubr.bf16.mxu0 0
        %1977 = vmatmul.mubr.bf16.gmra.mxu0 %v1854
        %v1978 = vpop.f32.mrf.mxu0
        %v1979 = vadd.f32 0.0, %v1978
        %v1980 = vpop.f32.mrf.mxu0
        %v1981 = vpop.f32.mrf.mxu0
        %v1982 = vadd.f32 0.0, %v1981
        %v1983 = vpop.f32.mrf.mxu0
        %1984 = vmatprep.mubr.bf16.mxu0 0
        %1985 = vmatmul.mubr.bf16.gmra.mxu0 %v1857
        %v1986 = vpop.f32.mrf.mxu0
        %v1987 = vadd.f32 0.0, %v1986
        %v1988 = vpop.f32.mrf.mxu0
        %v1989 = vpop.f32.mrf.mxu0
        %v1990 = vadd.f32 0.0, %v1989
        %v1991 = vpop.f32.mrf.mxu0
        %1992 = vmatprep.mubr.bf16.mxu0 0
        %1993 = vmatmul.mubr.bf16.gmra.mxu0 %v1860
        %v1994 = vpop.f32.mrf.mxu0
        %v1995 = vadd.f32 0.0, %v1994
        %v1996 = vpop.f32.mrf.mxu0
        %v1997 = vpop.f32.mrf.mxu0
        %v1998 = vadd.f32 0.0, %v1997
        %v1999 = vpop.f32.mrf.mxu0
        %2000 = vmatprep.mubr.bf16.mxu0 0
        %2001 = vmatmul.mubr.bf16.gmra.mxu0 %v1863
        %v2002 = vpop.f32.mrf.mxu0
        %v2003 = vadd.f32 0.0, %v2002
        %v2004 = vpop.f32.mrf.mxu0
        %v2005 = vpop.f32.mrf.mxu0
        %v2006 = vadd.f32 0.0, %v2005
        %v2007 = vpop.f32.mrf.mxu0
        %2008 = vmatprep.mubr.bf16.mxu0 0
        %2009 = vmatmul.mubr.bf16.gmra.mxu0 %v1866
        %v2010 = vpop.f32.mrf.mxu0
        %v2011 = vadd.f32 0.0, %v2010
        %v2012 = vpop.f32.mrf.mxu0
        %v2013 = vpop.f32.mrf.mxu0
        %v2014 = vadd.f32 0.0, %v2013
        %v2015 = vpop.f32.mrf.mxu0
        %2016 = vmatprep.mubr.bf16.mxu0 0
        %2017 = vmatmul.mubr.bf16.gmra.mxu0 %v1869
        %v2018 = vpop.f32.mrf.mxu0
        %v2019 = vadd.f32 0.0, %v2018
        %v2020 = vpop.f32.mrf.mxu0
        %v2021 = vpop.f32.mrf.mxu0
        %v2022 = vadd.f32 0.0, %v2021
        %v2023 = vpop.f32.mrf.mxu0
        %2024 = vmatprep.mubr.bf16.mxu0 0
        %2025 = vmatmul.mubr.bf16.gmra.mxu0 %v1872
        %v2026 = vpop.f32.mrf.mxu0
        %v2027 = vadd.f32 0.0, %v2026
        %v2028 = vpop.f32.mrf.mxu0
        %v2029 = vpop.f32.mrf.mxu0
        %v2030 = vadd.f32 0.0, %v2029
        %v2031 = vpop.f32.mrf.mxu0
        %2032 = vmatprep.mubr.bf16.mxu0 0
        %2033 = vmatmul.mubr.bf16.gmra.mxu0 %v1875
        %v2034 = vpop.f32.mrf.mxu0
        %v2035 = vadd.f32 0.0, %v2034
        %v2036 = vpop.f32.mrf.mxu0
        %v2037 = vpop.f32.mrf.mxu0
        %v2038 = vadd.f32 0.0, %v2037
        %v2039 = vpop.f32.mrf.mxu0
        %2040 = vdwg.mxu0
        %v2041 = vadd.f32 %v1679, %v1915
        %v2042 = vadd.f32 %v1680, %v1918
        %v2043 = vadd.f32 %v1681, %v1923
        %v2044 = vadd.f32 %v1682, %v1926
        %v2045 = vadd.f32 %v1683, %v1931
        %v2046 = vadd.f32 %v1684, %v1934
        %v2047 = vadd.f32 %v1685, %v1939
        %v2048 = vadd.f32 %v1686, %v1942
        %v2049 = vadd.f32 %v1687, %v1947
        %v2050 = vadd.f32 %v1688, %v1950
        %v2051 = vadd.f32 %v1689, %v1955
        %v2052 = vadd.f32 %v1690, %v1958
        %v2053 = vadd.f32 %v1691, %v1963
        %v2054 = vadd.f32 %v1692, %v1966
        %v2055 = vadd.f32 %v1693, %v1971
        %v2056 = vadd.f32 %v1694, %v1974
        %v2057 = vadd.f32 %v1695, %v1979
        %v2058 = vadd.f32 %v1696, %v1982
        %v2059 = vadd.f32 %v1697, %v1987
        %v2060 = vadd.f32 %v1698, %v1990
        %v2061 = vadd.f32 %v1699, %v1995
        %v2062 = vadd.f32 %v1700, %v1998
        %v2063 = vadd.f32 %v1701, %v2003
        %v2064 = vadd.f32 %v1702, %v2006
        %v2065 = vadd.f32 %v1703, %v2011
        %v2066 = vadd.f32 %v1704, %v2014
        %v2067 = vadd.f32 %v1705, %v2019
        %v2068 = vadd.f32 %v1706, %v2022
        %v2069 = vadd.f32 %v1707, %v2027
        %v2070 = vadd.f32 %v1708, %v2030
        %v2071 = vadd.f32 %v1709, %v2035
        %v2072 = vadd.f32 %v1710, %v2038
        %v2073 = vld [vmem:[%s1714] sm:$0xf]
        %v2074 = vld [vmem:[%s1714 + $0x4] sm:$0xf]
        %v2075 = vld [vmem:[%s1714 + $0x8] sm:$0x1]
        %v2076 = vld [vmem:[%s1714 + $0xc] sm:$0xf]
        %v2077 = vld [vmem:[%s1714 + $0x10] sm:$0xf]
        %v2078 = vld [vmem:[%s1714 + $0x14] sm:$0x1]
        %v2079 = vld [vmem:[%s1714 + $0x18] sm:$0xf]
        %v2080 = vld [vmem:[%s1714 + $0x1c] sm:$0xf]
        %v2081 = vld [vmem:[%s1714 + $0x20] sm:$0x1]
        %v2082 = vld [vmem:[%s1714 + $0x24] sm:$0xf]
        %v2083 = vld [vmem:[%s1714 + $0x28] sm:$0xf]
        %v2084 = vld [vmem:[%s1714 + $0x2c] sm:$0x1]
        %v2085 = vld [vmem:[%s1714 + $0x30] sm:$0xf]
        %v2086 = vld [vmem:[%s1714 + $0x34] sm:$0xf]
        %v2087 = vld [vmem:[%s1714 + $0x38] sm:$0x1]
        %v2088 = vld [vmem:[%s1714 + $0x3c] sm:$0xf]
        %v2089 = vld [vmem:[%s1714 + $0x40] sm:$0xf]
        %v2090 = vld [vmem:[%s1714 + $0x44] sm:$0x1]
        %v2091 = vld [vmem:[%s1714 + $0x48] sm:$0xf]
        %v2092 = vld [vmem:[%s1714 + $0x4c] sm:$0xf]
        %v2093 = vld [vmem:[%s1714 + $0x50] sm:$0x1]
        %v2094 = vld [vmem:[%s1714 + $0x54] sm:$0xf]
        %v2095 = vld [vmem:[%s1714 + $0x58] sm:$0xf]
        %v2096 = vld [vmem:[%s1714 + $0x5c] sm:$0x1]
        %v2097 = vld [vmem:[%s1714 + $0x60] sm:$0xf]
        %v2098 = vld [vmem:[%s1714 + $0x64] sm:$0xf]
        %v2099 = vld [vmem:[%s1714 + $0x68] sm:$0x1]
        %v2100 = vld [vmem:[%s1714 + $0x6c] sm:$0xf]
        %v2101 = vld [vmem:[%s1714 + $0x70] sm:$0xf]
        %v2102 = vld [vmem:[%s1714 + $0x74] sm:$0x1]
        %v2103 = vld [vmem:[%s1714 + $0x78] sm:$0xf]
        %v2104 = vld [vmem:[%s1714 + $0x7c] sm:$0xf]
        %v2105 = vld [vmem:[%s1714 + $0x80] sm:$0x1]
        %v2106 = vld [vmem:[%s1714 + $0x84] sm:$0xf]
        %v2107 = vld [vmem:[%s1714 + $0x88] sm:$0xf]
        %v2108 = vld [vmem:[%s1714 + $0x8c] sm:$0x1]
        %v2109 = vld [vmem:[%s1714 + $0x90] sm:$0xf]
        %v2110 = vld [vmem:[%s1714 + $0x94] sm:$0xf]
        %v2111 = vld [vmem:[%s1714 + $0x98] sm:$0x1]
        %v2112 = vld [vmem:[%s1714 + $0x9c] sm:$0xf]
        %v2113 = vld [vmem:[%s1714 + $0xa0] sm:$0xf]
        %v2114 = vld [vmem:[%s1714 + $0xa4] sm:$0x1]
        %v2115 = vld [vmem:[%s1714 + $0xa8] sm:$0xf]
        %v2116 = vld [vmem:[%s1714 + $0xac] sm:$0xf]
        %v2117 = vld [vmem:[%s1714 + $0xb0] sm:$0x1]
        %v2118 = vld [vmem:[%s1714 + $0xb4] sm:$0xf]
        %v2119 = vld [vmem:[%s1714 + $0xb8] sm:$0xf]
        %v2120 = vld [vmem:[%s1714 + $0xbc] sm:$0x1]
        %v2122 = vshrl.u32 %v2073, 16
        %v2124 = vrot.slane %v2122, 4
        %v2125 = vshll.u32 %v2073, 16
        %v2127 = vrot.slane %v2125, 5
        %v2128 = vor.u32 %v2124, %v2127
        %v2129 = vrot.slane %v2128, 4
        %v2131 = vshll.u32 %v2074, 16
        %v2133 = vrot.slane %v2131, 5
        %v2134 = vsel %vm313, %v2129, %v2133
        %v2135 = vshrl.u32 %v2074, 16
        %v2137 = vrot.slane %v2135, 4
        %v2138 = vor.u32 %v2137, %v2133
        %v2139 = vrot.slane %v2138, 4
        %v2141 = vshll.u32 %v2075, 16
        %v2143 = vrot.slane %v2141, 5
        %v2144 = vsel %vm313, %v2139, %v2143
        %v2146 = vshrl.u32 %v2076, 16
        %v2148 = vrot.slane %v2146, 4
        %v2149 = vshll.u32 %v2076, 16
        %v2151 = vrot.slane %v2149, 5
        %v2152 = vor.u32 %v2148, %v2151
        %v2153 = vrot.slane %v2152, 4
        %v2155 = vshll.u32 %v2077, 16
        %v2157 = vrot.slane %v2155, 5
        %v2158 = vsel %vm313, %v2153, %v2157
        %v2159 = vshrl.u32 %v2077, 16
        %v2161 = vrot.slane %v2159, 4
        %v2162 = vor.u32 %v2161, %v2157
        %v2163 = vrot.slane %v2162, 4
        %v2165 = vshll.u32 %v2078, 16
        %v2167 = vrot.slane %v2165, 5
        %v2168 = vsel %vm313, %v2163, %v2167
        %v2170 = vshrl.u32 %v2079, 16
        %v2172 = vrot.slane %v2170, 4
        %v2173 = vshll.u32 %v2079, 16
        %v2175 = vrot.slane %v2173, 5
        %v2176 = vor.u32 %v2172, %v2175
        %v2177 = vrot.slane %v2176, 4
        %v2179 = vshll.u32 %v2080, 16
        %v2181 = vrot.slane %v2179, 5
        %v2182 = vsel %vm313, %v2177, %v2181
        %v2183 = vshrl.u32 %v2080, 16
        %v2185 = vrot.slane %v2183, 4
        %v2186 = vor.u32 %v2185, %v2181
        %v2187 = vrot.slane %v2186, 4
        %v2189 = vshll.u32 %v2081, 16
        %v2191 = vrot.slane %v2189, 5
        %v2192 = vsel %vm313, %v2187, %v2191
        %v2194 = vshrl.u32 %v2082, 16
        %v2196 = vrot.slane %v2194, 4
        %v2197 = vshll.u32 %v2082, 16
        %v2199 = vrot.slane %v2197, 5
        %v2200 = vor.u32 %v2196, %v2199
        %v2201 = vrot.slane %v2200, 4
        %v2203 = vshll.u32 %v2083, 16
        %v2205 = vrot.slane %v2203, 5
        %v2206 = vsel %vm313, %v2201, %v2205
        %v2207 = vshrl.u32 %v2083, 16
        %v2209 = vrot.slane %v2207, 4
        %v2210 = vor.u32 %v2209, %v2205
        %v2211 = vrot.slane %v2210, 4
        %v2213 = vshll.u32 %v2084, 16
        %v2215 = vrot.slane %v2213, 5
        %v2216 = vsel %vm313, %v2211, %v2215
        %v2218 = vshrl.u32 %v2085, 16
        %v2220 = vrot.slane %v2218, 4
        %v2221 = vshll.u32 %v2085, 16
        %v2223 = vrot.slane %v2221, 5
        %v2224 = vor.u32 %v2220, %v2223
        %v2225 = vrot.slane %v2224, 4
        %v2227 = vshll.u32 %v2086, 16
        %v2229 = vrot.slane %v2227, 5
        %v2230 = vsel %vm313, %v2225, %v2229
        %v2231 = vshrl.u32 %v2086, 16
        %v2233 = vrot.slane %v2231, 4
        %v2234 = vor.u32 %v2233, %v2229
        %v2235 = vrot.slane %v2234, 4
        %v2237 = vshll.u32 %v2087, 16
        %v2239 = vrot.slane %v2237, 5
        %v2240 = vsel %vm313, %v2235, %v2239
        %v2242 = vshrl.u32 %v2088, 16
        %v2244 = vrot.slane %v2242, 4
        %v2245 = vshll.u32 %v2088, 16
        %v2247 = vrot.slane %v2245, 5
        %v2248 = vor.u32 %v2244, %v2247
        %v2249 = vrot.slane %v2248, 4
        %v2251 = vshll.u32 %v2089, 16
        %v2253 = vrot.slane %v2251, 5
        %v2254 = vsel %vm313, %v2249, %v2253
        %v2255 = vshrl.u32 %v2089, 16
        %v2257 = vrot.slane %v2255, 4
        %v2258 = vor.u32 %v2257, %v2253
        %v2259 = vrot.slane %v2258, 4
        %v2261 = vshll.u32 %v2090, 16
        %v2263 = vrot.slane %v2261, 5
        %v2264 = vsel %vm313, %v2259, %v2263
        %v2266 = vshrl.u32 %v2091, 16
        %v2268 = vrot.slane %v2266, 4
        %v2269 = vshll.u32 %v2091, 16
        %v2271 = vrot.slane %v2269, 5
        %v2272 = vor.u32 %v2268, %v2271
        %v2273 = vrot.slane %v2272, 4
        %v2275 = vshll.u32 %v2092, 16
        %v2277 = vrot.slane %v2275, 5
        %v2278 = vsel %vm313, %v2273, %v2277
        %v2279 = vshrl.u32 %v2092, 16
        %v2281 = vrot.slane %v2279, 4
        %v2282 = vor.u32 %v2281, %v2277
        %v2283 = vrot.slane %v2282, 4
        %v2285 = vshll.u32 %v2093, 16
        %v2287 = vrot.slane %v2285, 5
        %v2288 = vsel %vm313, %v2283, %v2287
        %v2290 = vshrl.u32 %v2094, 16
        %v2292 = vrot.slane %v2290, 4
        %v2293 = vshll.u32 %v2094, 16
        %v2295 = vrot.slane %v2293, 5
        %v2296 = vor.u32 %v2292, %v2295
        %v2297 = vrot.slane %v2296, 4
        %v2299 = vshll.u32 %v2095, 16
        %v2301 = vrot.slane %v2299, 5
        %v2302 = vsel %vm313, %v2297, %v2301
        %v2303 = vshrl.u32 %v2095, 16
        %v2305 = vrot.slane %v2303, 4
        %v2306 = vor.u32 %v2305, %v2301
        %v2307 = vrot.slane %v2306, 4
        %v2309 = vshll.u32 %v2096, 16
        %v2311 = vrot.slane %v2309, 5
        %v2312 = vsel %vm313, %v2307, %v2311
        %v2314 = vshrl.u32 %v2097, 16
        %v2316 = vrot.slane %v2314, 4
        %v2317 = vshll.u32 %v2097, 16
        %v2319 = vrot.slane %v2317, 5
        %v2320 = vor.u32 %v2316, %v2319
        %v2321 = vrot.slane %v2320, 4
        %v2323 = vshll.u32 %v2098, 16
        %v2325 = vrot.slane %v2323, 5
        %v2326 = vsel %vm313, %v2321, %v2325
        %v2327 = vshrl.u32 %v2098, 16
        %v2329 = vrot.slane %v2327, 4
        %v2330 = vor.u32 %v2329, %v2325
        %v2331 = vrot.slane %v2330, 4
        %v2333 = vshll.u32 %v2099, 16
        %v2335 = vrot.slane %v2333, 5
        %v2336 = vsel %vm313, %v2331, %v2335
        %v2338 = vshrl.u32 %v2100, 16
        %v2340 = vrot.slane %v2338, 4
        %v2341 = vshll.u32 %v2100, 16
        %v2343 = vrot.slane %v2341, 5
        %v2344 = vor.u32 %v2340, %v2343
        %v2345 = vrot.slane %v2344, 4
        %v2347 = vshll.u32 %v2101, 16
        %v2349 = vrot.slane %v2347, 5
        %v2350 = vsel %vm313, %v2345, %v2349
        %v2351 = vshrl.u32 %v2101, 16
        %v2353 = vrot.slane %v2351, 4
        %v2354 = vor.u32 %v2353, %v2349
        %v2355 = vrot.slane %v2354, 4
        %v2357 = vshll.u32 %v2102, 16
        %v2359 = vrot.slane %v2357, 5
        %v2360 = vsel %vm313, %v2355, %v2359
        %v2362 = vshrl.u32 %v2103, 16
        %v2364 = vrot.slane %v2362, 4
        %v2365 = vshll.u32 %v2103, 16
        %v2367 = vrot.slane %v2365, 5
        %v2368 = vor.u32 %v2364, %v2367
        %v2369 = vrot.slane %v2368, 4
        %v2371 = vshll.u32 %v2104, 16
        %v2373 = vrot.slane %v2371, 5
        %v2374 = vsel %vm313, %v2369, %v2373
        %v2375 = vshrl.u32 %v2104, 16
        %v2377 = vrot.slane %v2375, 4
        %v2378 = vor.u32 %v2377, %v2373
        %v2379 = vrot.slane %v2378, 4
        %v2381 = vshll.u32 %v2105, 16
        %v2383 = vrot.slane %v2381, 5
        %v2384 = vsel %vm313, %v2379, %v2383
        %v2386 = vshrl.u32 %v2106, 16
        %v2388 = vrot.slane %v2386, 4
        %v2389 = vshll.u32 %v2106, 16
        %v2391 = vrot.slane %v2389, 5
        %v2392 = vor.u32 %v2388, %v2391
        %v2393 = vrot.slane %v2392, 4
        %v2395 = vshll.u32 %v2107, 16
        %v2397 = vrot.slane %v2395, 5
        %v2398 = vsel %vm313, %v2393, %v2397
        %v2399 = vshrl.u32 %v2107, 16
        %v2401 = vrot.slane %v2399, 4
        %v2402 = vor.u32 %v2401, %v2397
        %v2403 = vrot.slane %v2402, 4
        %v2405 = vshll.u32 %v2108, 16
        %v2407 = vrot.slane %v2405, 5
        %v2408 = vsel %vm313, %v2403, %v2407
        %v2410 = vshrl.u32 %v2109, 16
        %v2412 = vrot.slane %v2410, 4
        %v2413 = vshll.u32 %v2109, 16
        %v2415 = vrot.slane %v2413, 5
        %v2416 = vor.u32 %v2412, %v2415
        %v2417 = vrot.slane %v2416, 4
        %v2419 = vshll.u32 %v2110, 16
        %v2421 = vrot.slane %v2419, 5
        %v2422 = vsel %vm313, %v2417, %v2421
        %v2423 = vshrl.u32 %v2110, 16
        %v2425 = vrot.slane %v2423, 4
        %v2426 = vor.u32 %v2425, %v2421
        %v2427 = vrot.slane %v2426, 4
        %v2429 = vshll.u32 %v2111, 16
        %v2431 = vrot.slane %v2429, 5
        %v2432 = vsel %vm313, %v2427, %v2431
        %v2434 = vshrl.u32 %v2112, 16
        %v2436 = vrot.slane %v2434, 4
        %v2437 = vshll.u32 %v2112, 16
        %v2439 = vrot.slane %v2437, 5
        %v2440 = vor.u32 %v2436, %v2439
        %v2441 = vrot.slane %v2440, 4
        %v2443 = vshll.u32 %v2113, 16
        %v2445 = vrot.slane %v2443, 5
        %v2446 = vsel %vm313, %v2441, %v2445
        %v2447 = vshrl.u32 %v2113, 16
        %v2449 = vrot.slane %v2447, 4
        %v2450 = vor.u32 %v2449, %v2445
        %v2451 = vrot.slane %v2450, 4
        %v2453 = vshll.u32 %v2114, 16
        %v2455 = vrot.slane %v2453, 5
        %v2456 = vsel %vm313, %v2451, %v2455
        %v2458 = vshrl.u32 %v2115, 16
        %v2460 = vrot.slane %v2458, 4
        %v2461 = vshll.u32 %v2115, 16
        %v2463 = vrot.slane %v2461, 5
        %v2464 = vor.u32 %v2460, %v2463
        %v2465 = vrot.slane %v2464, 4
        %v2467 = vshll.u32 %v2116, 16
        %v2469 = vrot.slane %v2467, 5
        %v2470 = vsel %vm313, %v2465, %v2469
        %v2471 = vshrl.u32 %v2116, 16
        %v2473 = vrot.slane %v2471, 4
        %v2474 = vor.u32 %v2473, %v2469
        %v2475 = vrot.slane %v2474, 4
        %v2477 = vshll.u32 %v2117, 16
        %v2479 = vrot.slane %v2477, 5
        %v2480 = vsel %vm313, %v2475, %v2479
        %v2482 = vshrl.u32 %v2118, 16
        %v2484 = vrot.slane %v2482, 4
        %v2485 = vshll.u32 %v2118, 16
        %v2487 = vrot.slane %v2485, 5
        %v2488 = vor.u32 %v2484, %v2487
        %v2489 = vrot.slane %v2488, 4
        %v2491 = vshll.u32 %v2119, 16
        %v2493 = vrot.slane %v2491, 5
        %v2494 = vsel %vm313, %v2489, %v2493
        %v2495 = vshrl.u32 %v2119, 16
        %v2497 = vrot.slane %v2495, 4
        %v2498 = vor.u32 %v2497, %v2493
        %v2499 = vrot.slane %v2498, 4
        %v2501 = vshll.u32 %v2120, 16
        %v2503 = vrot.slane %v2501, 5
        %v2504 = vsel %vm313, %v2499, %v2503
        %s2505 = scalar_lea.vmem %s255, 8
        %v2506 = vld [vmem:[%s2505] sm:$0x3]
        %v2507 = vunpack.c.l.b16 %v2134
        %v2508 = vunpack.c.l.b16 %v2144
        %v2509 = vunpack.c.l.b16 %v2158
        %v2510 = vunpack.c.l.b16 %v2168
        %v2511 = vunpack.c.l.b16 %v2182
        %v2512 = vunpack.c.l.b16 %v2192
        %v2513 = vunpack.c.l.b16 %v2206
        %v2514 = vunpack.c.l.b16 %v2216
        %v2515 = vunpack.c.l.b16 %v2230
        %v2516 = vunpack.c.l.b16 %v2240
        %v2517 = vunpack.c.l.b16 %v2254
        %v2518 = vunpack.c.l.b16 %v2264
        %v2519 = vunpack.c.l.b16 %v2278
        %v2520 = vunpack.c.l.b16 %v2288
        %v2521 = vunpack.c.l.b16 %v2302
        %v2522 = vunpack.c.l.b16 %v2312
        %v2523 = vunpack.c.l.b16 %v2326
        %v2524 = vunpack.c.l.b16 %v2336
        %v2525 = vunpack.c.l.b16 %v2350
        %v2526 = vunpack.c.l.b16 %v2360
        %v2527 = vunpack.c.l.b16 %v2374
        %v2528 = vunpack.c.l.b16 %v2384
        %v2529 = vunpack.c.l.b16 %v2398
        %v2530 = vunpack.c.l.b16 %v2408
        %v2531 = vunpack.c.l.b16 %v2422
        %v2532 = vunpack.c.l.b16 %v2432
        %v2533 = vunpack.c.l.b16 %v2446
        %v2534 = vunpack.c.l.b16 %v2456
        %v2535 = vunpack.c.l.b16 %v2470
        %v2536 = vunpack.c.l.b16 %v2480
        %v2537 = vunpack.c.l.b16 %v2494
        %v2538 = vunpack.c.l.b16 %v2504
        %v2539 = vpack.c.b16 %v2508, %v2507
        %v2540 = vpack.c.b16 %v2510, %v2509
        %v2541 = vpack.c.b16 %v2512, %v2511
        %v2542 = vpack.c.b16 %v2514, %v2513
        %v2543 = vpack.c.b16 %v2516, %v2515
        %v2544 = vpack.c.b16 %v2518, %v2517
        %v2545 = vpack.c.b16 %v2520, %v2519
        %v2546 = vpack.c.b16 %v2522, %v2521
        %v2547 = vpack.c.b16 %v2524, %v2523
        %v2548 = vpack.c.b16 %v2526, %v2525
        %v2549 = vpack.c.b16 %v2528, %v2527
        %v2550 = vpack.c.b16 %v2530, %v2529
        %v2551 = vpack.c.b16 %v2532, %v2531
        %v2552 = vpack.c.b16 %v2534, %v2533
        %v2553 = vpack.c.b16 %v2536, %v2535
        %v2554 = vpack.c.b16 %v2538, %v2537
        %v2556 = vsel %vm748, %v2539, 0
        %v2559 = vsel %vm748, %v2540, 0
        %v2562 = vsel %vm748, %v2541, 0
        %v2565 = vsel %vm748, %v2542, 0
        %v2568 = vsel %vm748, %v2543, 0
        %v2571 = vsel %vm748, %v2544, 0
        %v2574 = vsel %vm748, %v2545, 0
        %v2577 = vsel %vm748, %v2546, 0
        %v2580 = vsel %vm748, %v2547, 0
        %v2583 = vsel %vm748, %v2548, 0
        %v2586 = vsel %vm748, %v2549, 0
        %v2589 = vsel %vm748, %v2550, 0
        %v2592 = vsel %vm748, %v2551, 0
        %v2595 = vsel %vm748, %v2552, 0
        %v2598 = vsel %vm748, %v2553, 0
        %v2601 = vsel %vm748, %v2554, 0
        %v2604 = vsel %vm797, %v2506, 0
        %2606 = vmatprep.subr.bf16.mxu0 0
        %2607 = vmatpush1.bf16.msra.mxu0 0
        %2608 = vmatprep.subr.bf16.mxu0 0
        %2609 = vmatpush1.bf16.msra.mxu0 0
        %2610 = vmatprep.subr.bf16.mxu0 0
        %2611 = vmatpush1.bf16.msra.mxu0 0
        %2612 = vmatprep.subr.bf16.mxu0 0
        %2613 = vmatpush1.bf16.msra.mxu0 0
        %2614 = vmatprep.subr.bf16.mxu0 0
        %2615 = vmatpush1.bf16.msra.mxu0 0
        %2616 = vmatprep.subr.bf16.mxu0 0
        %2617 = vmatpush1.bf16.msra.mxu0 0
        %2618 = vmatprep.subr.bf16.mxu0 0
        %2619 = vmatpush1.bf16.msra.mxu0 0
        %2620 = vmatprep.subr.bf16.mxu0 0
        %2621 = vmatpush1.bf16.msra.mxu0 %v2604
        %2622 = vmatprep.subr.bf16.mxu0 0
        %2623 = vmatpush2.bf16.msra.mxu0 0
        %2624 = vmatprep.subr.bf16.mxu0 0
        %2625 = vmatpush2.bf16.msra.mxu0 0
        %2626 = vmatprep.subr.bf16.mxu0 0
        %2627 = vmatpush2.bf16.msra.mxu0 0
        %2628 = vmatprep.subr.bf16.mxu0 0
        %2629 = vmatpush2.bf16.msra.mxu0 0
        %2630 = vmatprep.subr.bf16.mxu0 0
        %2631 = vmatpush2.bf16.msra.mxu0 0
        %2632 = vmatprep.subr.bf16.mxu0 0
        %2633 = vmatpush2.bf16.msra.mxu0 0
        %2634 = vmatprep.subr.bf16.mxu0 0
        %2635 = vmatpush2.bf16.msra.mxu0 0
        %2636 = vmatprep.subr.bf16.mxu0 0
        %2637 = vmatpush2.bf16.msra.mxu0 0
        %2638 = vmatprep.mubr.bf16.mxu0 0
        %2639 = vmatmul.mubr.bf16.gmra.mxu0 %v2556
        %v2640 = vpop.f32.mrf.mxu0
        %v2641 = vadd.f32 0.0, %v2640
        %v2642 = vpop.f32.mrf.mxu0
        %v2643 = vpop.f32.mrf.mxu0
        %v2644 = vadd.f32 0.0, %v2643
        %v2645 = vpop.f32.mrf.mxu0
        %2646 = vmatprep.mubr.bf16.mxu0 0
        %2647 = vmatmul.mubr.bf16.gmra.mxu0 %v2559
        %v2648 = vpop.f32.mrf.mxu0
        %v2649 = vadd.f32 0.0, %v2648
        %v2650 = vpop.f32.mrf.mxu0
        %v2651 = vpop.f32.mrf.mxu0
        %v2652 = vadd.f32 0.0, %v2651
        %v2653 = vpop.f32.mrf.mxu0
        %2654 = vmatprep.mubr.bf16.mxu0 0
        %2655 = vmatmul.mubr.bf16.gmra.mxu0 %v2562
        %v2656 = vpop.f32.mrf.mxu0
        %v2657 = vadd.f32 0.0, %v2656
        %v2658 = vpop.f32.mrf.mxu0
        %v2659 = vpop.f32.mrf.mxu0
        %v2660 = vadd.f32 0.0, %v2659
        %v2661 = vpop.f32.mrf.mxu0
        %2662 = vmatprep.mubr.bf16.mxu0 0
        %2663 = vmatmul.mubr.bf16.gmra.mxu0 %v2565
        %v2664 = vpop.f32.mrf.mxu0
        %v2665 = vadd.f32 0.0, %v2664
        %v2666 = vpop.f32.mrf.mxu0
        %v2667 = vpop.f32.mrf.mxu0
        %v2668 = vadd.f32 0.0, %v2667
        %v2669 = vpop.f32.mrf.mxu0
        %2670 = vmatprep.mubr.bf16.mxu0 0
        %2671 = vmatmul.mubr.bf16.gmra.mxu0 %v2568
        %v2672 = vpop.f32.mrf.mxu0
        %v2673 = vadd.f32 0.0, %v2672
        %v2674 = vpop.f32.mrf.mxu0
        %v2675 = vpop.f32.mrf.mxu0
        %v2676 = vadd.f32 0.0, %v2675
        %v2677 = vpop.f32.mrf.mxu0
        %2678 = vmatprep.mubr.bf16.mxu0 0
        %2679 = vmatmul.mubr.bf16.gmra.mxu0 %v2571
        %v2680 = vpop.f32.mrf.mxu0
        %v2681 = vadd.f32 0.0, %v2680
        %v2682 = vpop.f32.mrf.mxu0
        %v2683 = vpop.f32.mrf.mxu0
        %v2684 = vadd.f32 0.0, %v2683
        %v2685 = vpop.f32.mrf.mxu0
        %2686 = vmatprep.mubr.bf16.mxu0 0
        %2687 = vmatmul.mubr.bf16.gmra.mxu0 %v2574
        %v2688 = vpop.f32.mrf.mxu0
        %v2689 = vadd.f32 0.0, %v2688
        %v2690 = vpop.f32.mrf.mxu0
        %v2691 = vpop.f32.mrf.mxu0
        %v2692 = vadd.f32 0.0, %v2691
        %v2693 = vpop.f32.mrf.mxu0
        %2694 = vmatprep.mubr.bf16.mxu0 0
        %2695 = vmatmul.mubr.bf16.gmra.mxu0 %v2577
        %v2696 = vpop.f32.mrf.mxu0
        %v2697 = vadd.f32 0.0, %v2696
        %v2698 = vpop.f32.mrf.mxu0
        %v2699 = vpop.f32.mrf.mxu0
        %v2700 = vadd.f32 0.0, %v2699
        %v2701 = vpop.f32.mrf.mxu0
        %2702 = vmatprep.mubr.bf16.mxu0 0
        %2703 = vmatmul.mubr.bf16.gmra.mxu0 %v2580
        %v2704 = vpop.f32.mrf.mxu0
        %v2705 = vadd.f32 0.0, %v2704
        %v2706 = vpop.f32.mrf.mxu0
        %v2707 = vpop.f32.mrf.mxu0
        %v2708 = vadd.f32 0.0, %v2707
        %v2709 = vpop.f32.mrf.mxu0
        %2710 = vmatprep.mubr.bf16.mxu0 0
        %2711 = vmatmul.mubr.bf16.gmra.mxu0 %v2583
        %v2712 = vpop.f32.mrf.mxu0
        %v2713 = vadd.f32 0.0, %v2712
        %v2714 = vpop.f32.mrf.mxu0
        %v2715 = vpop.f32.mrf.mxu0
        %v2716 = vadd.f32 0.0, %v2715
        %v2717 = vpop.f32.mrf.mxu0
        %2718 = vmatprep.mubr.bf16.mxu0 0
        %2719 = vmatmul.mubr.bf16.gmra.mxu0 %v2586
        %v2720 = vpop.f32.mrf.mxu0
        %v2721 = vadd.f32 0.0, %v2720
        %v2722 = vpop.f32.mrf.mxu0
        %v2723 = vpop.f32.mrf.mxu0
        %v2724 = vadd.f32 0.0, %v2723
        %v2725 = vpop.f32.mrf.mxu0
        %2726 = vmatprep.mubr.bf16.mxu0 0
        %2727 = vmatmul.mubr.bf16.gmra.mxu0 %v2589
        %v2728 = vpop.f32.mrf.mxu0
        %v2729 = vadd.f32 0.0, %v2728
        %v2730 = vpop.f32.mrf.mxu0
        %v2731 = vpop.f32.mrf.mxu0
        %v2732 = vadd.f32 0.0, %v2731
        %v2733 = vpop.f32.mrf.mxu0
        %2734 = vmatprep.mubr.bf16.mxu0 0
        %2735 = vmatmul.mubr.bf16.gmra.mxu0 %v2592
        %v2736 = vpop.f32.mrf.mxu0
        %v2737 = vadd.f32 0.0, %v2736
        %v2738 = vpop.f32.mrf.mxu0
        %v2739 = vpop.f32.mrf.mxu0
        %v2740 = vadd.f32 0.0, %v2739
        %v2741 = vpop.f32.mrf.mxu0
        %2742 = vmatprep.mubr.bf16.mxu0 0
        %2743 = vmatmul.mubr.bf16.gmra.mxu0 %v2595
        %v2744 = vpop.f32.mrf.mxu0
        %v2745 = vadd.f32 0.0, %v2744
        %v2746 = vpop.f32.mrf.mxu0
        %v2747 = vpop.f32.mrf.mxu0
        %v2748 = vadd.f32 0.0, %v2747
        %v2749 = vpop.f32.mrf.mxu0
        %2750 = vmatprep.mubr.bf16.mxu0 0
        %2751 = vmatmul.mubr.bf16.gmra.mxu0 %v2598
        %v2752 = vpop.f32.mrf.mxu0
        %v2753 = vadd.f32 0.0, %v2752
        %v2754 = vpop.f32.mrf.mxu0
        %v2755 = vpop.f32.mrf.mxu0
        %v2756 = vadd.f32 0.0, %v2755
        %v2757 = vpop.f32.mrf.mxu0
        %2758 = vmatprep.mubr.bf16.mxu0 0
        %2759 = vmatmul.mubr.bf16.gmra.mxu0 %v2601
        %v2760 = vpop.f32.mrf.mxu0
        %v2761 = vadd.f32 0.0, %v2760
        %v2762 = vpop.f32.mrf.mxu0
        %v2763 = vpop.f32.mrf.mxu0
        %v2764 = vadd.f32 0.0, %v2763
        %v2765 = vpop.f32.mrf.mxu0
        %2766 = vdwg.mxu0
        %v2767 = vadd.f32 %v2041, %v2641
        %v2768 = vadd.f32 %v2042, %v2644
        %v2769 = vadd.f32 %v2043, %v2649
        %v2770 = vadd.f32 %v2044, %v2652
        %v2771 = vadd.f32 %v2045, %v2657
        %v2772 = vadd.f32 %v2046, %v2660
        %v2773 = vadd.f32 %v2047, %v2665
        %v2774 = vadd.f32 %v2048, %v2668
        %v2775 = vadd.f32 %v2049, %v2673
        %v2776 = vadd.f32 %v2050, %v2676
        %v2777 = vadd.f32 %v2051, %v2681
        %v2778 = vadd.f32 %v2052, %v2684
        %v2779 = vadd.f32 %v2053, %v2689
        %v2780 = vadd.f32 %v2054, %v2692
        %v2781 = vadd.f32 %v2055, %v2697
        %v2782 = vadd.f32 %v2056, %v2700
        %v2783 = vadd.f32 %v2057, %v2705
        %v2784 = vadd.f32 %v2058, %v2708
        %v2785 = vadd.f32 %v2059, %v2713
        %v2786 = vadd.f32 %v2060, %v2716
        %v2787 = vadd.f32 %v2061, %v2721
        %v2788 = vadd.f32 %v2062, %v2724
        %v2789 = vadd.f32 %v2063, %v2729
        %v2790 = vadd.f32 %v2064, %v2732
        %v2791 = vadd.f32 %v2065, %v2737
        %v2792 = vadd.f32 %v2066, %v2740
        %v2793 = vadd.f32 %v2067, %v2745
        %v2794 = vadd.f32 %v2068, %v2748
        %v2795 = vadd.f32 %v2069, %v2753
        %v2796 = vadd.f32 %v2070, %v2756
        %v2797 = vadd.f32 %v2071, %v2761
        %v2798 = vadd.f32 %v2072, %v2764
        %v2799 = vld [vmem:[%s1714] sm:$0xe]
        %v2800 = vld [vmem:[%s1714 + $0xc] sm:$0xe]
        %v2801 = vld [vmem:[%s1714 + $0x18] sm:$0xe]
        %v2802 = vld [vmem:[%s1714 + $0x24] sm:$0xe]
        %v2803 = vld [vmem:[%s1714 + $0x30] sm:$0xe]
        %v2804 = vld [vmem:[%s1714 + $0x3c] sm:$0xe]
        %v2805 = vld [vmem:[%s1714 + $0x48] sm:$0xe]
        %v2806 = vld [vmem:[%s1714 + $0x54] sm:$0xe]
        %v2807 = vld [vmem:[%s1714 + $0x60] sm:$0xe]
        %v2808 = vld [vmem:[%s1714 + $0x6c] sm:$0xe]
        %v2809 = vld [vmem:[%s1714 + $0x78] sm:$0xe]
        %v2810 = vld [vmem:[%s1714 + $0x84] sm:$0xe]
        %v2811 = vld [vmem:[%s1714 + $0x90] sm:$0xe]
        %v2812 = vld [vmem:[%s1714 + $0x9c] sm:$0xe]
        %v2813 = vld [vmem:[%s1714 + $0xa8] sm:$0xe]
        %v2814 = vld [vmem:[%s1714 + $0xb4] sm:$0xe]
        %v2863 = vrot.slane %v2799, 5
        %v2864 = vrot.slane %v2863, 4
        %v2865 = vrot.slane %v2074, 5
        %v2866 = vsel %vm1304, %v2864, %v2865
        %v2867 = vrot.slane %v2865, 4
        %v2868 = vrot.slane %v2075, 5
        %v2869 = vsel %vm1304, %v2867, %v2868
        %v2870 = vrot.slane %v2800, 5
        %v2871 = vrot.slane %v2870, 4
        %v2872 = vrot.slane %v2077, 5
        %v2873 = vsel %vm1304, %v2871, %v2872
        %v2874 = vrot.slane %v2872, 4
        %v2875 = vrot.slane %v2078, 5
        %v2876 = vsel %vm1304, %v2874, %v2875
        %v2877 = vrot.slane %v2801, 5
        %v2878 = vrot.slane %v2877, 4
        %v2879 = vrot.slane %v2080, 5
        %v2880 = vsel %vm1304, %v2878, %v2879
        %v2881 = vrot.slane %v2879, 4
        %v2882 = vrot.slane %v2081, 5
        %v2883 = vsel %vm1304, %v2881, %v2882
        %v2884 = vrot.slane %v2802, 5
        %v2885 = vrot.slane %v2884, 4
        %v2886 = vrot.slane %v2083, 5
        %v2887 = vsel %vm1304, %v2885, %v2886
        %v2888 = vrot.slane %v2886, 4
        %v2889 = vrot.slane %v2084, 5
        %v2890 = vsel %vm1304, %v2888, %v2889
        %v2891 = vrot.slane %v2803, 5
        %v2892 = vrot.slane %v2891, 4
        %v2893 = vrot.slane %v2086, 5
        %v2894 = vsel %vm1304, %v2892, %v2893
        %v2895 = vrot.slane %v2893, 4
        %v2896 = vrot.slane %v2087, 5
        %v2897 = vsel %vm1304, %v2895, %v2896
        %v2898 = vrot.slane %v2804, 5
        %v2899 = vrot.slane %v2898, 4
        %v2900 = vrot.slane %v2089, 5
        %v2901 = vsel %vm1304, %v2899, %v2900
        %v2902 = vrot.slane %v2900, 4
        %v2903 = vrot.slane %v2090, 5
        %v2904 = vsel %vm1304, %v2902, %v2903
        %v2905 = vrot.slane %v2805, 5
        %v2906 = vrot.slane %v2905, 4
        %v2907 = vrot.slane %v2092, 5
        %v2908 = vsel %vm1304, %v2906, %v2907
        %v2909 = vrot.slane %v2907, 4
        %v2910 = vrot.slane %v2093, 5
        %v2911 = vsel %vm1304, %v2909, %v2910
        %v2912 = vrot.slane %v2806, 5
        %v2913 = vrot.slane %v2912, 4
        %v2914 = vrot.slane %v2095, 5
        %v2915 = vsel %vm1304, %v2913, %v2914
        %v2916 = vrot.slane %v2914, 4
        %v2917 = vrot.slane %v2096, 5
        %v2918 = vsel %vm1304, %v2916, %v2917
        %v2919 = vrot.slane %v2807, 5
        %v2920 = vrot.slane %v2919, 4
        %v2921 = vrot.slane %v2098, 5
        %v2922 = vsel %vm1304, %v2920, %v2921
        %v2923 = vrot.slane %v2921, 4
        %v2924 = vrot.slane %v2099, 5
        %v2925 = vsel %vm1304, %v2923, %v2924
        %v2926 = vrot.slane %v2808, 5
        %v2927 = vrot.slane %v2926, 4
        %v2928 = vrot.slane %v2101, 5
        %v2929 = vsel %vm1304, %v2927, %v2928
        %v2930 = vrot.slane %v2928, 4
        %v2931 = vrot.slane %v2102, 5
        %v2932 = vsel %vm1304, %v2930, %v2931
        %v2933 = vrot.slane %v2809, 5
        %v2934 = vrot.slane %v2933, 4
        %v2935 = vrot.slane %v2104, 5
        %v2936 = vsel %vm1304, %v2934, %v2935
        %v2937 = vrot.slane %v2935, 4
        %v2938 = vrot.slane %v2105, 5
        %v2939 = vsel %vm1304, %v2937, %v2938
        %v2940 = vrot.slane %v2810, 5
        %v2941 = vrot.slane %v2940, 4
        %v2942 = vrot.slane %v2107, 5
        %v2943 = vsel %vm1304, %v2941, %v2942
        %v2944 = vrot.slane %v2942, 4
        %v2945 = vrot.slane %v2108, 5
        %v2946 = vsel %vm1304, %v2944, %v2945
        %v2947 = vrot.slane %v2811, 5
        %v2948 = vrot.slane %v2947, 4
        %v2949 = vrot.slane %v2110, 5
        %v2950 = vsel %vm1304, %v2948, %v2949
        %v2951 = vrot.slane %v2949, 4
        %v2952 = vrot.slane %v2111, 5
        %v2953 = vsel %vm1304, %v2951, %v2952
        %v2954 = vrot.slane %v2812, 5
        %v2955 = vrot.slane %v2954, 4
        %v2956 = vrot.slane %v2113, 5
        %v2957 = vsel %vm1304, %v2955, %v2956
        %v2958 = vrot.slane %v2956, 4
        %v2959 = vrot.slane %v2114, 5
        %v2960 = vsel %vm1304, %v2958, %v2959
        %v2961 = vrot.slane %v2813, 5
        %v2962 = vrot.slane %v2961, 4
        %v2963 = vrot.slane %v2116, 5
        %v2964 = vsel %vm1304, %v2962, %v2963
        %v2965 = vrot.slane %v2963, 4
        %v2966 = vrot.slane %v2117, 5
        %v2967 = vsel %vm1304, %v2965, %v2966
        %v2968 = vrot.slane %v2814, 5
        %v2969 = vrot.slane %v2968, 4
        %v2970 = vrot.slane %v2119, 5
        %v2971 = vsel %vm1304, %v2969, %v2970
        %v2972 = vrot.slane %v2970, 4
        %v2973 = vrot.slane %v2120, 5
        %v2974 = vsel %vm1304, %v2972, %v2973
        %s2975 = scalar_lea.vmem %s255, 10
        %v2976 = vld [vmem:[%s2975] sm:$0x3]
        %v2977 = vunpack.c.l.b16 %v2866
        %v2978 = vunpack.c.l.b16 %v2869
        %v2979 = vunpack.c.l.b16 %v2873
        %v2980 = vunpack.c.l.b16 %v2876
        %v2981 = vunpack.c.l.b16 %v2880
        %v2982 = vunpack.c.l.b16 %v2883
        %v2983 = vunpack.c.l.b16 %v2887
        %v2984 = vunpack.c.l.b16 %v2890
        %v2985 = vunpack.c.l.b16 %v2894
        %v2986 = vunpack.c.l.b16 %v2897
        %v2987 = vunpack.c.l.b16 %v2901
        %v2988 = vunpack.c.l.b16 %v2904
        %v2989 = vunpack.c.l.b16 %v2908
        %v2990 = vunpack.c.l.b16 %v2911
        %v2991 = vunpack.c.l.b16 %v2915
        %v2992 = vunpack.c.l.b16 %v2918
        %v2993 = vunpack.c.l.b16 %v2922
        %v2994 = vunpack.c.l.b16 %v2925
        %v2995 = vunpack.c.l.b16 %v2929
        %v2996 = vunpack.c.l.b16 %v2932
        %v2997 = vunpack.c.l.b16 %v2936
        %v2998 = vunpack.c.l.b16 %v2939
        %v2999 = vunpack.c.l.b16 %v2943
        %v3000 = vunpack.c.l.b16 %v2946
        %v3001 = vunpack.c.l.b16 %v2950
        %v3002 = vunpack.c.l.b16 %v2953
        %v3003 = vunpack.c.l.b16 %v2957
        %v3004 = vunpack.c.l.b16 %v2960
        %v3005 = vunpack.c.l.b16 %v2964
        %v3006 = vunpack.c.l.b16 %v2967
        %v3007 = vunpack.c.l.b16 %v2971
        %v3008 = vunpack.c.l.b16 %v2974
        %v3009 = vpack.c.b16 %v2978, %v2977
        %v3010 = vpack.c.b16 %v2980, %v2979
        %v3011 = vpack.c.b16 %v2982, %v2981
        %v3012 = vpack.c.b16 %v2984, %v2983
        %v3013 = vpack.c.b16 %v2986, %v2985
        %v3014 = vpack.c.b16 %v2988, %v2987
        %v3015 = vpack.c.b16 %v2990, %v2989
        %v3016 = vpack.c.b16 %v2992, %v2991
        %v3017 = vpack.c.b16 %v2994, %v2993
        %v3018 = vpack.c.b16 %v2996, %v2995
        %v3019 = vpack.c.b16 %v2998, %v2997
        %v3020 = vpack.c.b16 %v3000, %v2999
        %v3021 = vpack.c.b16 %v3002, %v3001
        %v3022 = vpack.c.b16 %v3004, %v3003
        %v3023 = vpack.c.b16 %v3006, %v3005
        %v3024 = vpack.c.b16 %v3008, %v3007
        %v3026 = vsel %vm748, %v3009, 0
        %v3029 = vsel %vm748, %v3010, 0
        %v3032 = vsel %vm748, %v3011, 0
        %v3035 = vsel %vm748, %v3012, 0
        %v3038 = vsel %vm748, %v3013, 0
        %v3041 = vsel %vm748, %v3014, 0
        %v3044 = vsel %vm748, %v3015, 0
        %v3047 = vsel %vm748, %v3016, 0
        %v3050 = vsel %vm748, %v3017, 0
        %v3053 = vsel %vm748, %v3018, 0
        %v3056 = vsel %vm748, %v3019, 0
        %v3059 = vsel %vm748, %v3020, 0
        %v3062 = vsel %vm748, %v3021, 0
        %v3065 = vsel %vm748, %v3022, 0
        %v3068 = vsel %vm748, %v3023, 0
        %v3071 = vsel %vm748, %v3024, 0
        %v3074 = vsel %vm797, %v2976, 0
        %3076 = vmatprep.subr.bf16.mxu0 0
        %3077 = vmatpush1.bf16.msra.mxu0 0
        %3078 = vmatprep.subr.bf16.mxu0 0
        %3079 = vmatpush1.bf16.msra.mxu0 0
        %3080 = vmatprep.subr.bf16.mxu0 0
        %3081 = vmatpush1.bf16.msra.mxu0 0
        %3082 = vmatprep.subr.bf16.mxu0 0
        %3083 = vmatpush1.bf16.msra.mxu0 0
        %3084 = vmatprep.subr.bf16.mxu0 0
        %3085 = vmatpush1.bf16.msra.mxu0 0
        %3086 = vmatprep.subr.bf16.mxu0 0
        %3087 = vmatpush1.bf16.msra.mxu0 0
        %3088 = vmatprep.subr.bf16.mxu0 0
        %3089 = vmatpush1.bf16.msra.mxu0 0
        %3090 = vmatprep.subr.bf16.mxu0 0
        %3091 = vmatpush1.bf16.msra.mxu0 %v3074
        %3092 = vmatprep.subr.bf16.mxu0 0
        %3093 = vmatpush2.bf16.msra.mxu0 0
        %3094 = vmatprep.subr.bf16.mxu0 0
        %3095 = vmatpush2.bf16.msra.mxu0 0
        %3096 = vmatprep.subr.bf16.mxu0 0
        %3097 = vmatpush2.bf16.msra.mxu0 0
        %3098 = vmatprep.subr.bf16.mxu0 0
        %3099 = vmatpush2.bf16.msra.mxu0 0
        %3100 = vmatprep.subr.bf16.mxu0 0
        %3101 = vmatpush2.bf16.msra.mxu0 0
        %3102 = vmatprep.subr.bf16.mxu0 0
        %3103 = vmatpush2.bf16.msra.mxu0 0
        %3104 = vmatprep.subr.bf16.mxu0 0
        %3105 = vmatpush2.bf16.msra.mxu0 0
        %3106 = vmatprep.subr.bf16.mxu0 0
        %3107 = vmatpush2.bf16.msra.mxu0 0
        %3108 = vmatprep.mubr.bf16.mxu0 0
        %3109 = vmatmul.mubr.bf16.gmra.mxu0 %v3026
        %v3110 = vpop.f32.mrf.mxu0
        %v3111 = vadd.f32 0.0, %v3110
        %v3112 = vpop.f32.mrf.mxu0
        %v3113 = vpop.f32.mrf.mxu0
        %v3114 = vadd.f32 0.0, %v3113
        %v3115 = vpop.f32.mrf.mxu0
        %3116 = vmatprep.mubr.bf16.mxu0 0
        %3117 = vmatmul.mubr.bf16.gmra.mxu0 %v3029
        %v3118 = vpop.f32.mrf.mxu0
        %v3119 = vadd.f32 0.0, %v3118
        %v3120 = vpop.f32.mrf.mxu0
        %v3121 = vpop.f32.mrf.mxu0
        %v3122 = vadd.f32 0.0, %v3121
        %v3123 = vpop.f32.mrf.mxu0
        %3124 = vmatprep.mubr.bf16.mxu0 0
        %3125 = vmatmul.mubr.bf16.gmra.mxu0 %v3032
        %v3126 = vpop.f32.mrf.mxu0
        %v3127 = vadd.f32 0.0, %v3126
        %v3128 = vpop.f32.mrf.mxu0
        %v3129 = vpop.f32.mrf.mxu0
        %v3130 = vadd.f32 0.0, %v3129
        %v3131 = vpop.f32.mrf.mxu0
        %3132 = vmatprep.mubr.bf16.mxu0 0
        %3133 = vmatmul.mubr.bf16.gmra.mxu0 %v3035
        %v3134 = vpop.f32.mrf.mxu0
        %v3135 = vadd.f32 0.0, %v3134
        %v3136 = vpop.f32.mrf.mxu0
        %v3137 = vpop.f32.mrf.mxu0
        %v3138 = vadd.f32 0.0, %v3137
        %v3139 = vpop.f32.mrf.mxu0
        %3140 = vmatprep.mubr.bf16.mxu0 0
        %3141 = vmatmul.mubr.bf16.gmra.mxu0 %v3038
        %v3142 = vpop.f32.mrf.mxu0
        %v3143 = vadd.f32 0.0, %v3142
        %v3144 = vpop.f32.mrf.mxu0
        %v3145 = vpop.f32.mrf.mxu0
        %v3146 = vadd.f32 0.0, %v3145
        %v3147 = vpop.f32.mrf.mxu0
        %3148 = vmatprep.mubr.bf16.mxu0 0
        %3149 = vmatmul.mubr.bf16.gmra.mxu0 %v3041
        %v3150 = vpop.f32.mrf.mxu0
        %v3151 = vadd.f32 0.0, %v3150
        %v3152 = vpop.f32.mrf.mxu0
        %v3153 = vpop.f32.mrf.mxu0
        %v3154 = vadd.f32 0.0, %v3153
        %v3155 = vpop.f32.mrf.mxu0
        %3156 = vmatprep.mubr.bf16.mxu0 0
        %3157 = vmatmul.mubr.bf16.gmra.mxu0 %v3044
        %v3158 = vpop.f32.mrf.mxu0
        %v3159 = vadd.f32 0.0, %v3158
        %v3160 = vpop.f32.mrf.mxu0
        %v3161 = vpop.f32.mrf.mxu0
        %v3162 = vadd.f32 0.0, %v3161
        %v3163 = vpop.f32.mrf.mxu0
        %3164 = vmatprep.mubr.bf16.mxu0 0
        %3165 = vmatmul.mubr.bf16.gmra.mxu0 %v3047
        %v3166 = vpop.f32.mrf.mxu0
        %v3167 = vadd.f32 0.0, %v3166
        %v3168 = vpop.f32.mrf.mxu0
        %v3169 = vpop.f32.mrf.mxu0
        %v3170 = vadd.f32 0.0, %v3169
        %v3171 = vpop.f32.mrf.mxu0
        %3172 = vmatprep.mubr.bf16.mxu0 0
        %3173 = vmatmul.mubr.bf16.gmra.mxu0 %v3050
        %v3174 = vpop.f32.mrf.mxu0
        %v3175 = vadd.f32 0.0, %v3174
        %v3176 = vpop.f32.mrf.mxu0
        %v3177 = vpop.f32.mrf.mxu0
        %v3178 = vadd.f32 0.0, %v3177
        %v3179 = vpop.f32.mrf.mxu0
        %3180 = vmatprep.mubr.bf16.mxu0 0
        %3181 = vmatmul.mubr.bf16.gmra.mxu0 %v3053
        %v3182 = vpop.f32.mrf.mxu0
        %v3183 = vadd.f32 0.0, %v3182
        %v3184 = vpop.f32.mrf.mxu0
        %v3185 = vpop.f32.mrf.mxu0
        %v3186 = vadd.f32 0.0, %v3185
        %v3187 = vpop.f32.mrf.mxu0
        %3188 = vmatprep.mubr.bf16.mxu0 0
        %3189 = vmatmul.mubr.bf16.gmra.mxu0 %v3056
        %v3190 = vpop.f32.mrf.mxu0
        %v3191 = vadd.f32 0.0, %v3190
        %v3192 = vpop.f32.mrf.mxu0
        %v3193 = vpop.f32.mrf.mxu0
        %v3194 = vadd.f32 0.0, %v3193
        %v3195 = vpop.f32.mrf.mxu0
        %3196 = vmatprep.mubr.bf16.mxu0 0
        %3197 = vmatmul.mubr.bf16.gmra.mxu0 %v3059
        %v3198 = vpop.f32.mrf.mxu0
        %v3199 = vadd.f32 0.0, %v3198
        %v3200 = vpop.f32.mrf.mxu0
        %v3201 = vpop.f32.mrf.mxu0
        %v3202 = vadd.f32 0.0, %v3201
        %v3203 = vpop.f32.mrf.mxu0
        %3204 = vmatprep.mubr.bf16.mxu0 0
        %3205 = vmatmul.mubr.bf16.gmra.mxu0 %v3062
        %v3206 = vpop.f32.mrf.mxu0
        %v3207 = vadd.f32 0.0, %v3206
        %v3208 = vpop.f32.mrf.mxu0
        %v3209 = vpop.f32.mrf.mxu0
        %v3210 = vadd.f32 0.0, %v3209
        %v3211 = vpop.f32.mrf.mxu0
        %3212 = vmatprep.mubr.bf16.mxu0 0
        %3213 = vmatmul.mubr.bf16.gmra.mxu0 %v3065
        %v3214 = vpop.f32.mrf.mxu0
        %v3215 = vadd.f32 0.0, %v3214
        %v3216 = vpop.f32.mrf.mxu0
        %v3217 = vpop.f32.mrf.mxu0
        %v3218 = vadd.f32 0.0, %v3217
        %v3219 = vpop.f32.mrf.mxu0
        %3220 = vmatprep.mubr.bf16.mxu0 0
        %3221 = vmatmul.mubr.bf16.gmra.mxu0 %v3068
        %v3222 = vpop.f32.mrf.mxu0
        %v3223 = vadd.f32 0.0, %v3222
        %v3224 = vpop.f32.mrf.mxu0
        %v3225 = vpop.f32.mrf.mxu0
        %v3226 = vadd.f32 0.0, %v3225
        %v3227 = vpop.f32.mrf.mxu0
        %3228 = vmatprep.mubr.bf16.mxu0 0
        %3229 = vmatmul.mubr.bf16.gmra.mxu0 %v3071
        %v3230 = vpop.f32.mrf.mxu0
        %v3231 = vadd.f32 0.0, %v3230
        %v3232 = vpop.f32.mrf.mxu0
        %v3233 = vpop.f32.mrf.mxu0
        %v3234 = vadd.f32 0.0, %v3233
        %v3235 = vpop.f32.mrf.mxu0
        %3236 = vdwg.mxu0
        %v3237 = vadd.f32 %v2767, %v3111
        %v3238 = vadd.f32 %v2768, %v3114
        %v3239 = vadd.f32 %v2769, %v3119
        %v3240 = vadd.f32 %v2770, %v3122
        %v3241 = vadd.f32 %v2771, %v3127
        %v3242 = vadd.f32 %v2772, %v3130
        %v3243 = vadd.f32 %v2773, %v3135
        %v3244 = vadd.f32 %v2774, %v3138
        %v3245 = vadd.f32 %v2775, %v3143
        %v3246 = vadd.f32 %v2776, %v3146
        %v3247 = vadd.f32 %v2777, %v3151
        %v3248 = vadd.f32 %v2778, %v3154
        %v3249 = vadd.f32 %v2779, %v3159
        %v3250 = vadd.f32 %v2780, %v3162
        %v3251 = vadd.f32 %v2781, %v3167
        %v3252 = vadd.f32 %v2782, %v3170
        %v3253 = vadd.f32 %v2783, %v3175
        %v3254 = vadd.f32 %v2784, %v3178
        %v3255 = vadd.f32 %v2785, %v3183
        %v3256 = vadd.f32 %v2786, %v3186
        %v3257 = vadd.f32 %v2787, %v3191
        %v3258 = vadd.f32 %v2788, %v3194
        %v3259 = vadd.f32 %v2789, %v3199
        %v3260 = vadd.f32 %v2790, %v3202
        %v3261 = vadd.f32 %v2791, %v3207
        %v3262 = vadd.f32 %v2792, %v3210
        %v3263 = vadd.f32 %v2793, %v3215
        %v3264 = vadd.f32 %v2794, %v3218
        %v3265 = vadd.f32 %v2795, %v3223
        %v3266 = vadd.f32 %v2796, %v3226
        %v3267 = vadd.f32 %v2797, %v3231
        %v3268 = vadd.f32 %v2798, %v3234
        %s3269 = sadd.s32 %s258, 2
        %s3270 = smul.u32 %s3269, 3
        %s3271 = smul.addr %s3270, 4
        %s3272 = scalar_lea.vmem %s251, %s3271
        %v3273 = vld [vmem:[%s3272] sm:$0xf]
        %v3274 = vld [vmem:[%s3272 + $0x4] sm:$0xf]
        %v3275 = vld [vmem:[%s3272 + $0xc] sm:$0xf]
        %v3276 = vld [vmem:[%s3272 + $0x10] sm:$0xf]
        %v3277 = vld [vmem:[%s3272 + $0x18] sm:$0xf]
        %v3278 = vld [vmem:[%s3272 + $0x1c] sm:$0xf]
        %v3279 = vld [vmem:[%s3272 + $0x24] sm:$0xf]
        %v3280 = vld [vmem:[%s3272 + $0x28] sm:$0xf]
        %v3281 = vld [vmem:[%s3272 + $0x30] sm:$0xf]
        %v3282 = vld [vmem:[%s3272 + $0x34] sm:$0xf]
        %v3283 = vld [vmem:[%s3272 + $0x3c] sm:$0xf]
        %v3284 = vld [vmem:[%s3272 + $0x40] sm:$0xf]
        %v3285 = vld [vmem:[%s3272 + $0x48] sm:$0xf]
        %v3286 = vld [vmem:[%s3272 + $0x4c] sm:$0xf]
        %v3287 = vld [vmem:[%s3272 + $0x54] sm:$0xf]
        %v3288 = vld [vmem:[%s3272 + $0x58] sm:$0xf]
        %v3289 = vld [vmem:[%s3272 + $0x60] sm:$0xf]
        %v3290 = vld [vmem:[%s3272 + $0x64] sm:$0xf]
        %v3291 = vld [vmem:[%s3272 + $0x6c] sm:$0xf]
        %v3292 = vld [vmem:[%s3272 + $0x70] sm:$0xf]
        %v3293 = vld [vmem:[%s3272 + $0x78] sm:$0xf]
        %v3294 = vld [vmem:[%s3272 + $0x7c] sm:$0xf]
        %v3295 = vld [vmem:[%s3272 + $0x84] sm:$0xf]
        %v3296 = vld [vmem:[%s3272 + $0x88] sm:$0xf]
        %v3297 = vld [vmem:[%s3272 + $0x90] sm:$0xf]
        %v3298 = vld [vmem:[%s3272 + $0x94] sm:$0xf]
        %v3299 = vld [vmem:[%s3272 + $0x9c] sm:$0xf]
        %v3300 = vld [vmem:[%s3272 + $0xa0] sm:$0xf]
        %v3301 = vld [vmem:[%s3272 + $0xa8] sm:$0xf]
        %v3302 = vld [vmem:[%s3272 + $0xac] sm:$0xf]
        %v3303 = vld [vmem:[%s3272 + $0xb4] sm:$0xf]
        %v3304 = vld [vmem:[%s3272 + $0xb8] sm:$0xf]
        %s3305 = scalar_lea.vmem %s255, 12
        %v3306 = vld [vmem:[%s3305] sm:$0x3]
        %v3339 = vunpack.c.l.b16 %v3273
        %v3340 = vunpack.c.l.b16 %v3274
        %v3341 = vunpack.c.l.b16 %v3275
        %v3342 = vunpack.c.l.b16 %v3276
        %v3343 = vunpack.c.l.b16 %v3277
        %v3344 = vunpack.c.l.b16 %v3278
        %v3345 = vunpack.c.l.b16 %v3279
        %v3346 = vunpack.c.l.b16 %v3280
        %v3347 = vunpack.c.l.b16 %v3281
        %v3348 = vunpack.c.l.b16 %v3282
        %v3349 = vunpack.c.l.b16 %v3283
        %v3350 = vunpack.c.l.b16 %v3284
        %v3351 = vunpack.c.l.b16 %v3285
        %v3352 = vunpack.c.l.b16 %v3286
        %v3353 = vunpack.c.l.b16 %v3287
        %v3354 = vunpack.c.l.b16 %v3288
        %v3355 = vunpack.c.l.b16 %v3289
        %v3356 = vunpack.c.l.b16 %v3290
        %v3357 = vunpack.c.l.b16 %v3291
        %v3358 = vunpack.c.l.b16 %v3292
        %v3359 = vunpack.c.l.b16 %v3293
        %v3360 = vunpack.c.l.b16 %v3294
        %v3361 = vunpack.c.l.b16 %v3295
        %v3362 = vunpack.c.l.b16 %v3296
        %v3363 = vunpack.c.l.b16 %v3297
        %v3364 = vunpack.c.l.b16 %v3298
        %v3365 = vunpack.c.l.b16 %v3299
        %v3366 = vunpack.c.l.b16 %v3300
        %v3367 = vunpack.c.l.b16 %v3301
        %v3368 = vunpack.c.l.b16 %v3302
        %v3369 = vunpack.c.l.b16 %v3303
        %v3370 = vunpack.c.l.b16 %v3304
        %v3371 = vpack.c.b16 %v3340, %v3339
        %v3372 = vpack.c.b16 %v3342, %v3341
        %v3373 = vpack.c.b16 %v3344, %v3343
        %v3374 = vpack.c.b16 %v3346, %v3345
        %v3375 = vpack.c.b16 %v3348, %v3347
        %v3376 = vpack.c.b16 %v3350, %v3349
        %v3377 = vpack.c.b16 %v3352, %v3351
        %v3378 = vpack.c.b16 %v3354, %v3353
        %v3379 = vpack.c.b16 %v3356, %v3355
        %v3380 = vpack.c.b16 %v3358, %v3357
        %v3381 = vpack.c.b16 %v3360, %v3359
        %v3382 = vpack.c.b16 %v3362, %v3361
        %v3383 = vpack.c.b16 %v3364, %v3363
        %v3384 = vpack.c.b16 %v3366, %v3365
        %v3385 = vpack.c.b16 %v3368, %v3367
        %v3386 = vpack.c.b16 %v3370, %v3369
        %v3388 = vsel %vm748, %v3371, 0
        %v3391 = vsel %vm748, %v3372, 0
        %v3394 = vsel %vm748, %v3373, 0
        %v3397 = vsel %vm748, %v3374, 0
        %v3400 = vsel %vm748, %v3375, 0
        %v3403 = vsel %vm748, %v3376, 0
        %v3406 = vsel %vm748, %v3377, 0
        %v3409 = vsel %vm748, %v3378, 0
        %v3412 = vsel %vm748, %v3379, 0
        %v3415 = vsel %vm748, %v3380, 0
        %v3418 = vsel %vm748, %v3381, 0
        %v3421 = vsel %vm748, %v3382, 0
        %v3424 = vsel %vm748, %v3383, 0
        %v3427 = vsel %vm748, %v3384, 0
        %v3430 = vsel %vm748, %v3385, 0
        %v3433 = vsel %vm748, %v3386, 0
        %v3436 = vsel %vm797, %v3306, 0
        %3438 = vmatprep.subr.bf16.mxu0 0
        %3439 = vmatpush1.bf16.msra.mxu0 0
        %3440 = vmatprep.subr.bf16.mxu0 0
        %3441 = vmatpush1.bf16.msra.mxu0 0
        %3442 = vmatprep.subr.bf16.mxu0 0
        %3443 = vmatpush1.bf16.msra.mxu0 0
        %3444 = vmatprep.subr.bf16.mxu0 0
        %3445 = vmatpush1.bf16.msra.mxu0 0
        %3446 = vmatprep.subr.bf16.mxu0 0
        %3447 = vmatpush1.bf16.msra.mxu0 0
        %3448 = vmatprep.subr.bf16.mxu0 0
        %3449 = vmatpush1.bf16.msra.mxu0 0
        %3450 = vmatprep.subr.bf16.mxu0 0
        %3451 = vmatpush1.bf16.msra.mxu0 0
        %3452 = vmatprep.subr.bf16.mxu0 0
        %3453 = vmatpush1.bf16.msra.mxu0 %v3436
        %3454 = vmatprep.subr.bf16.mxu0 0
        %3455 = vmatpush2.bf16.msra.mxu0 0
        %3456 = vmatprep.subr.bf16.mxu0 0
        %3457 = vmatpush2.bf16.msra.mxu0 0
        %3458 = vmatprep.subr.bf16.mxu0 0
        %3459 = vmatpush2.bf16.msra.mxu0 0
        %3460 = vmatprep.subr.bf16.mxu0 0
        %3461 = vmatpush2.bf16.msra.mxu0 0
        %3462 = vmatprep.subr.bf16.mxu0 0
        %3463 = vmatpush2.bf16.msra.mxu0 0
        %3464 = vmatprep.subr.bf16.mxu0 0
        %3465 = vmatpush2.bf16.msra.mxu0 0
        %3466 = vmatprep.subr.bf16.mxu0 0
        %3467 = vmatpush2.bf16.msra.mxu0 0
        %3468 = vmatprep.subr.bf16.mxu0 0
        %3469 = vmatpush2.bf16.msra.mxu0 0
        %3470 = vmatprep.mubr.bf16.mxu0 0
        %3471 = vmatmul.mubr.bf16.gmra.mxu0 %v3388
        %v3472 = vpop.f32.mrf.mxu0
        %v3473 = vadd.f32 0.0, %v3472
        %v3474 = vpop.f32.mrf.mxu0
        %v3475 = vpop.f32.mrf.mxu0
        %v3476 = vadd.f32 0.0, %v3475
        %v3477 = vpop.f32.mrf.mxu0
        %3478 = vmatprep.mubr.bf16.mxu0 0
        %3479 = vmatmul.mubr.bf16.gmra.mxu0 %v3391
        %v3480 = vpop.f32.mrf.mxu0
        %v3481 = vadd.f32 0.0, %v3480
        %v3482 = vpop.f32.mrf.mxu0
        %v3483 = vpop.f32.mrf.mxu0
        %v3484 = vadd.f32 0.0, %v3483
        %v3485 = vpop.f32.mrf.mxu0
        %3486 = vmatprep.mubr.bf16.mxu0 0
        %3487 = vmatmul.mubr.bf16.gmra.mxu0 %v3394
        %v3488 = vpop.f32.mrf.mxu0
        %v3489 = vadd.f32 0.0, %v3488
        %v3490 = vpop.f32.mrf.mxu0
        %v3491 = vpop.f32.mrf.mxu0
        %v3492 = vadd.f32 0.0, %v3491
        %v3493 = vpop.f32.mrf.mxu0
        %3494 = vmatprep.mubr.bf16.mxu0 0
        %3495 = vmatmul.mubr.bf16.gmra.mxu0 %v3397
        %v3496 = vpop.f32.mrf.mxu0
        %v3497 = vadd.f32 0.0, %v3496
        %v3498 = vpop.f32.mrf.mxu0
        %v3499 = vpop.f32.mrf.mxu0
        %v3500 = vadd.f32 0.0, %v3499
        %v3501 = vpop.f32.mrf.mxu0
        %3502 = vmatprep.mubr.bf16.mxu0 0
        %3503 = vmatmul.mubr.bf16.gmra.mxu0 %v3400
        %v3504 = vpop.f32.mrf.mxu0
        %v3505 = vadd.f32 0.0, %v3504
        %v3506 = vpop.f32.mrf.mxu0
        %v3507 = vpop.f32.mrf.mxu0
        %v3508 = vadd.f32 0.0, %v3507
        %v3509 = vpop.f32.mrf.mxu0
        %3510 = vmatprep.mubr.bf16.mxu0 0
        %3511 = vmatmul.mubr.bf16.gmra.mxu0 %v3403
        %v3512 = vpop.f32.mrf.mxu0
        %v3513 = vadd.f32 0.0, %v3512
        %v3514 = vpop.f32.mrf.mxu0
        %v3515 = vpop.f32.mrf.mxu0
        %v3516 = vadd.f32 0.0, %v3515
        %v3517 = vpop.f32.mrf.mxu0
        %3518 = vmatprep.mubr.bf16.mxu0 0
        %3519 = vmatmul.mubr.bf16.gmra.mxu0 %v3406
        %v3520 = vpop.f32.mrf.mxu0
        %v3521 = vadd.f32 0.0, %v3520
        %v3522 = vpop.f32.mrf.mxu0
        %v3523 = vpop.f32.mrf.mxu0
        %v3524 = vadd.f32 0.0, %v3523
        %v3525 = vpop.f32.mrf.mxu0
        %3526 = vmatprep.mubr.bf16.mxu0 0
        %3527 = vmatmul.mubr.bf16.gmra.mxu0 %v3409
        %v3528 = vpop.f32.mrf.mxu0
        %v3529 = vadd.f32 0.0, %v3528
        %v3530 = vpop.f32.mrf.mxu0
        %v3531 = vpop.f32.mrf.mxu0
        %v3532 = vadd.f32 0.0, %v3531
        %v3533 = vpop.f32.mrf.mxu0
        %3534 = vmatprep.mubr.bf16.mxu0 0
        %3535 = vmatmul.mubr.bf16.gmra.mxu0 %v3412
        %v3536 = vpop.f32.mrf.mxu0
        %v3537 = vadd.f32 0.0, %v3536
        %v3538 = vpop.f32.mrf.mxu0
        %v3539 = vpop.f32.mrf.mxu0
        %v3540 = vadd.f32 0.0, %v3539
        %v3541 = vpop.f32.mrf.mxu0
        %3542 = vmatprep.mubr.bf16.mxu0 0
        %3543 = vmatmul.mubr.bf16.gmra.mxu0 %v3415
        %v3544 = vpop.f32.mrf.mxu0
        %v3545 = vadd.f32 0.0, %v3544
        %v3546 = vpop.f32.mrf.mxu0
        %v3547 = vpop.f32.mrf.mxu0
        %v3548 = vadd.f32 0.0, %v3547
        %v3549 = vpop.f32.mrf.mxu0
        %3550 = vmatprep.mubr.bf16.mxu0 0
        %3551 = vmatmul.mubr.bf16.gmra.mxu0 %v3418
        %v3552 = vpop.f32.mrf.mxu0
        %v3553 = vadd.f32 0.0, %v3552
        %v3554 = vpop.f32.mrf.mxu0
        %v3555 = vpop.f32.mrf.mxu0
        %v3556 = vadd.f32 0.0, %v3555
        %v3557 = vpop.f32.mrf.mxu0
        %3558 = vmatprep.mubr.bf16.mxu0 0
        %3559 = vmatmul.mubr.bf16.gmra.mxu0 %v3421
        %v3560 = vpop.f32.mrf.mxu0
        %v3561 = vadd.f32 0.0, %v3560
        %v3562 = vpop.f32.mrf.mxu0
        %v3563 = vpop.f32.mrf.mxu0
        %v3564 = vadd.f32 0.0, %v3563
        %v3565 = vpop.f32.mrf.mxu0
        %3566 = vmatprep.mubr.bf16.mxu0 0
        %3567 = vmatmul.mubr.bf16.gmra.mxu0 %v3424
        %v3568 = vpop.f32.mrf.mxu0
        %v3569 = vadd.f32 0.0, %v3568
        %v3570 = vpop.f32.mrf.mxu0
        %v3571 = vpop.f32.mrf.mxu0
        %v3572 = vadd.f32 0.0, %v3571
        %v3573 = vpop.f32.mrf.mxu0
        %3574 = vmatprep.mubr.bf16.mxu0 0
        %3575 = vmatmul.mubr.bf16.gmra.mxu0 %v3427
        %v3576 = vpop.f32.mrf.mxu0
        %v3577 = vadd.f32 0.0, %v3576
        %v3578 = vpop.f32.mrf.mxu0
        %v3579 = vpop.f32.mrf.mxu0
        %v3580 = vadd.f32 0.0, %v3579
        %v3581 = vpop.f32.mrf.mxu0
        %3582 = vmatprep.mubr.bf16.mxu0 0
        %3583 = vmatmul.mubr.bf16.gmra.mxu0 %v3430
        %v3584 = vpop.f32.mrf.mxu0
        %v3585 = vadd.f32 0.0, %v3584
        %v3586 = vpop.f32.mrf.mxu0
        %v3587 = vpop.f32.mrf.mxu0
        %v3588 = vadd.f32 0.0, %v3587
        %v3589 = vpop.f32.mrf.mxu0
        %3590 = vmatprep.mubr.bf16.mxu0 0
        %3591 = vmatmul.mubr.bf16.gmra.mxu0 %v3433
        %v3592 = vpop.f32.mrf.mxu0
        %v3593 = vadd.f32 0.0, %v3592
        %v3594 = vpop.f32.mrf.mxu0
        %v3595 = vpop.f32.mrf.mxu0
        %v3596 = vadd.f32 0.0, %v3595
        %v3597 = vpop.f32.mrf.mxu0
        %3598 = vdwg.mxu0
        %v3599 = vadd.f32 %v3237, %v3473
        %v3600 = vadd.f32 %v3238, %v3476
        %v3601 = vadd.f32 %v3239, %v3481
        %v3602 = vadd.f32 %v3240, %v3484
        %v3603 = vadd.f32 %v3241, %v3489
        %v3604 = vadd.f32 %v3242, %v3492
        %v3605 = vadd.f32 %v3243, %v3497
        %v3606 = vadd.f32 %v3244, %v3500
        %v3607 = vadd.f32 %v3245, %v3505
        %v3608 = vadd.f32 %v3246, %v3508
        %v3609 = vadd.f32 %v3247, %v3513
        %v3610 = vadd.f32 %v3248, %v3516
        %v3611 = vadd.f32 %v3249, %v3521
        %v3612 = vadd.f32 %v3250, %v3524
        %v3613 = vadd.f32 %v3251, %v3529
        %v3614 = vadd.f32 %v3252, %v3532
        %v3615 = vadd.f32 %v3253, %v3537
        %v3616 = vadd.f32 %v3254, %v3540
        %v3617 = vadd.f32 %v3255, %v3545
        %v3618 = vadd.f32 %v3256, %v3548
        %v3619 = vadd.f32 %v3257, %v3553
        %v3620 = vadd.f32 %v3258, %v3556
        %v3621 = vadd.f32 %v3259, %v3561
        %v3622 = vadd.f32 %v3260, %v3564
        %v3623 = vadd.f32 %v3261, %v3569
        %v3624 = vadd.f32 %v3262, %v3572
        %v3625 = vadd.f32 %v3263, %v3577
        %v3626 = vadd.f32 %v3264, %v3580
        %v3627 = vadd.f32 %v3265, %v3585
        %v3628 = vadd.f32 %v3266, %v3588
        %v3629 = vadd.f32 %v3267, %v3593
        %v3630 = vadd.f32 %v3268, %v3596
        %v3631 = vld [vmem:[%s3272] sm:$0xf]
        %v3632 = vld [vmem:[%s3272 + $0x4] sm:$0xf]
        %v3633 = vld [vmem:[%s3272 + $0x8] sm:$0x1]
        %v3634 = vld [vmem:[%s3272 + $0xc] sm:$0xf]
        %v3635 = vld [vmem:[%s3272 + $0x10] sm:$0xf]
        %v3636 = vld [vmem:[%s3272 + $0x14] sm:$0x1]
        %v3637 = vld [vmem:[%s3272 + $0x18] sm:$0xf]
        %v3638 = vld [vmem:[%s3272 + $0x1c] sm:$0xf]
        %v3639 = vld [vmem:[%s3272 + $0x20] sm:$0x1]
        %v3640 = vld [vmem:[%s3272 + $0x24] sm:$0xf]
        %v3641 = vld [vmem:[%s3272 + $0x28] sm:$0xf]
        %v3642 = vld [vmem:[%s3272 + $0x2c] sm:$0x1]
        %v3643 = vld [vmem:[%s3272 + $0x30] sm:$0xf]
        %v3644 = vld [vmem:[%s3272 + $0x34] sm:$0xf]
        %v3645 = vld [vmem:[%s3272 + $0x38] sm:$0x1]
        %v3646 = vld [vmem:[%s3272 + $0x3c] sm:$0xf]
        %v3647 = vld [vmem:[%s3272 + $0x40] sm:$0xf]
        %v3648 = vld [vmem:[%s3272 + $0x44] sm:$0x1]
        %v3649 = vld [vmem:[%s3272 + $0x48] sm:$0xf]
        %v3650 = vld [vmem:[%s3272 + $0x4c] sm:$0xf]
        %v3651 = vld [vmem:[%s3272 + $0x50] sm:$0x1]
        %v3652 = vld [vmem:[%s3272 + $0x54] sm:$0xf]
        %v3653 = vld [vmem:[%s3272 + $0x58] sm:$0xf]
        %v3654 = vld [vmem:[%s3272 + $0x5c] sm:$0x1]
        %v3655 = vld [vmem:[%s3272 + $0x60] sm:$0xf]
        %v3656 = vld [vmem:[%s3272 + $0x64] sm:$0xf]
        %v3657 = vld [vmem:[%s3272 + $0x68] sm:$0x1]
        %v3658 = vld [vmem:[%s3272 + $0x6c] sm:$0xf]
        %v3659 = vld [vmem:[%s3272 + $0x70] sm:$0xf]
        %v3660 = vld [vmem:[%s3272 + $0x74] sm:$0x1]
        %v3661 = vld [vmem:[%s3272 + $0x78] sm:$0xf]
        %v3662 = vld [vmem:[%s3272 + $0x7c] sm:$0xf]
        %v3663 = vld [vmem:[%s3272 + $0x80] sm:$0x1]
        %v3664 = vld [vmem:[%s3272 + $0x84] sm:$0xf]
        %v3665 = vld [vmem:[%s3272 + $0x88] sm:$0xf]
        %v3666 = vld [vmem:[%s3272 + $0x8c] sm:$0x1]
        %v3667 = vld [vmem:[%s3272 + $0x90] sm:$0xf]
        %v3668 = vld [vmem:[%s3272 + $0x94] sm:$0xf]
        %v3669 = vld [vmem:[%s3272 + $0x98] sm:$0x1]
        %v3670 = vld [vmem:[%s3272 + $0x9c] sm:$0xf]
        %v3671 = vld [vmem:[%s3272 + $0xa0] sm:$0xf]
        %v3672 = vld [vmem:[%s3272 + $0xa4] sm:$0x1]
        %v3673 = vld [vmem:[%s3272 + $0xa8] sm:$0xf]
        %v3674 = vld [vmem:[%s3272 + $0xac] sm:$0xf]
        %v3675 = vld [vmem:[%s3272 + $0xb0] sm:$0x1]
        %v3676 = vld [vmem:[%s3272 + $0xb4] sm:$0xf]
        %v3677 = vld [vmem:[%s3272 + $0xb8] sm:$0xf]
        %v3678 = vld [vmem:[%s3272 + $0xbc] sm:$0x1]
        %v3680 = vshrl.u32 %v3631, 16
        %v3682 = vrot.slane %v3680, 4
        %v3683 = vshll.u32 %v3631, 16
        %v3685 = vrot.slane %v3683, 5
        %v3686 = vor.u32 %v3682, %v3685
        %v3687 = vrot.slane %v3686, 4
        %v3689 = vshll.u32 %v3632, 16
        %v3691 = vrot.slane %v3689, 5
        %v3692 = vsel %vm313, %v3687, %v3691
        %v3693 = vshrl.u32 %v3632, 16
        %v3695 = vrot.slane %v3693, 4
        %v3696 = vor.u32 %v3695, %v3691
        %v3697 = vrot.slane %v3696, 4
        %v3699 = vshll.u32 %v3633, 16
        %v3701 = vrot.slane %v3699, 5
        %v3702 = vsel %vm313, %v3697, %v3701
        %v3704 = vshrl.u32 %v3634, 16
        %v3706 = vrot.slane %v3704, 4
        %v3707 = vshll.u32 %v3634, 16
        %v3709 = vrot.slane %v3707, 5
        %v3710 = vor.u32 %v3706, %v3709
        %v3711 = vrot.slane %v3710, 4
        %v3713 = vshll.u32 %v3635, 16
        %v3715 = vrot.slane %v3713, 5
        %v3716 = vsel %vm313, %v3711, %v3715
        %v3717 = vshrl.u32 %v3635, 16
        %v3719 = vrot.slane %v3717, 4
        %v3720 = vor.u32 %v3719, %v3715
        %v3721 = vrot.slane %v3720, 4
        %v3723 = vshll.u32 %v3636, 16
        %v3725 = vrot.slane %v3723, 5
        %v3726 = vsel %vm313, %v3721, %v3725
        %v3728 = vshrl.u32 %v3637, 16
        %v3730 = vrot.slane %v3728, 4
        %v3731 = vshll.u32 %v3637, 16
        %v3733 = vrot.slane %v3731, 5
        %v3734 = vor.u32 %v3730, %v3733
        %v3735 = vrot.slane %v3734, 4
        %v3737 = vshll.u32 %v3638, 16
        %v3739 = vrot.slane %v3737, 5
        %v3740 = vsel %vm313, %v3735, %v3739
        %v3741 = vshrl.u32 %v3638, 16
        %v3743 = vrot.slane %v3741, 4
        %v3744 = vor.u32 %v3743, %v3739
        %v3745 = vrot.slane %v3744, 4
        %v3747 = vshll.u32 %v3639, 16
        %v3749 = vrot.slane %v3747, 5
        %v3750 = vsel %vm313, %v3745, %v3749
        %v3752 = vshrl.u32 %v3640, 16
        %v3754 = vrot.slane %v3752, 4
        %v3755 = vshll.u32 %v3640, 16
        %v3757 = vrot.slane %v3755, 5
        %v3758 = vor.u32 %v3754, %v3757
        %v3759 = vrot.slane %v3758, 4
        %v3761 = vshll.u32 %v3641, 16
        %v3763 = vrot.slane %v3761, 5
        %v3764 = vsel %vm313, %v3759, %v3763
        %v3765 = vshrl.u32 %v3641, 16
        %v3767 = vrot.slane %v3765, 4
        %v3768 = vor.u32 %v3767, %v3763
        %v3769 = vrot.slane %v3768, 4
        %v3771 = vshll.u32 %v3642, 16
        %v3773 = vrot.slane %v3771, 5
        %v3774 = vsel %vm313, %v3769, %v3773
        %v3776 = vshrl.u32 %v3643, 16
        %v3778 = vrot.slane %v3776, 4
        %v3779 = vshll.u32 %v3643, 16
        %v3781 = vrot.slane %v3779, 5
        %v3782 = vor.u32 %v3778, %v3781
        %v3783 = vrot.slane %v3782, 4
        %v3785 = vshll.u32 %v3644, 16
        %v3787 = vrot.slane %v3785, 5
        %v3788 = vsel %vm313, %v3783, %v3787
        %v3789 = vshrl.u32 %v3644, 16
        %v3791 = vrot.slane %v3789, 4
        %v3792 = vor.u32 %v3791, %v3787
        %v3793 = vrot.slane %v3792, 4
        %v3795 = vshll.u32 %v3645, 16
        %v3797 = vrot.slane %v3795, 5
        %v3798 = vsel %vm313, %v3793, %v3797
        %v3800 = vshrl.u32 %v3646, 16
        %v3802 = vrot.slane %v3800, 4
        %v3803 = vshll.u32 %v3646, 16
        %v3805 = vrot.slane %v3803, 5
        %v3806 = vor.u32 %v3802, %v3805
        %v3807 = vrot.slane %v3806, 4
        %v3809 = vshll.u32 %v3647, 16
        %v3811 = vrot.slane %v3809, 5
        %v3812 = vsel %vm313, %v3807, %v3811
        %v3813 = vshrl.u32 %v3647, 16
        %v3815 = vrot.slane %v3813, 4
        %v3816 = vor.u32 %v3815, %v3811
        %v3817 = vrot.slane %v3816, 4
        %v3819 = vshll.u32 %v3648, 16
        %v3821 = vrot.slane %v3819, 5
        %v3822 = vsel %vm313, %v3817, %v3821
        %v3824 = vshrl.u32 %v3649, 16
        %v3826 = vrot.slane %v3824, 4
        %v3827 = vshll.u32 %v3649, 16
        %v3829 = vrot.slane %v3827, 5
        %v3830 = vor.u32 %v3826, %v3829
        %v3831 = vrot.slane %v3830, 4
        %v3833 = vshll.u32 %v3650, 16
        %v3835 = vrot.slane %v3833, 5
        %v3836 = vsel %vm313, %v3831, %v3835
        %v3837 = vshrl.u32 %v3650, 16
        %v3839 = vrot.slane %v3837, 4
        %v3840 = vor.u32 %v3839, %v3835
        %v3841 = vrot.slane %v3840, 4
        %v3843 = vshll.u32 %v3651, 16
        %v3845 = vrot.slane %v3843, 5
        %v3846 = vsel %vm313, %v3841, %v3845
        %v3848 = vshrl.u32 %v3652, 16
        %v3850 = vrot.slane %v3848, 4
        %v3851 = vshll.u32 %v3652, 16
        %v3853 = vrot.slane %v3851, 5
        %v3854 = vor.u32 %v3850, %v3853
        %v3855 = vrot.slane %v3854, 4
        %v3857 = vshll.u32 %v3653, 16
        %v3859 = vrot.slane %v3857, 5
        %v3860 = vsel %vm313, %v3855, %v3859
        %v3861 = vshrl.u32 %v3653, 16
        %v3863 = vrot.slane %v3861, 4
        %v3864 = vor.u32 %v3863, %v3859
        %v3865 = vrot.slane %v3864, 4
        %v3867 = vshll.u32 %v3654, 16
        %v3869 = vrot.slane %v3867, 5
        %v3870 = vsel %vm313, %v3865, %v3869
        %v3872 = vshrl.u32 %v3655, 16
        %v3874 = vrot.slane %v3872, 4
        %v3875 = vshll.u32 %v3655, 16
        %v3877 = vrot.slane %v3875, 5
        %v3878 = vor.u32 %v3874, %v3877
        %v3879 = vrot.slane %v3878, 4
        %v3881 = vshll.u32 %v3656, 16
        %v3883 = vrot.slane %v3881, 5
        %v3884 = vsel %vm313, %v3879, %v3883
        %v3885 = vshrl.u32 %v3656, 16
        %v3887 = vrot.slane %v3885, 4
        %v3888 = vor.u32 %v3887, %v3883
        %v3889 = vrot.slane %v3888, 4
        %v3891 = vshll.u32 %v3657, 16
        %v3893 = vrot.slane %v3891, 5
        %v3894 = vsel %vm313, %v3889, %v3893
        %v3896 = vshrl.u32 %v3658, 16
        %v3898 = vrot.slane %v3896, 4
        %v3899 = vshll.u32 %v3658, 16
        %v3901 = vrot.slane %v3899, 5
        %v3902 = vor.u32 %v3898, %v3901
        %v3903 = vrot.slane %v3902, 4
        %v3905 = vshll.u32 %v3659, 16
        %v3907 = vrot.slane %v3905, 5
        %v3908 = vsel %vm313, %v3903, %v3907
        %v3909 = vshrl.u32 %v3659, 16
        %v3911 = vrot.slane %v3909, 4
        %v3912 = vor.u32 %v3911, %v3907
        %v3913 = vrot.slane %v3912, 4
        %v3915 = vshll.u32 %v3660, 16
        %v3917 = vrot.slane %v3915, 5
        %v3918 = vsel %vm313, %v3913, %v3917
        %v3920 = vshrl.u32 %v3661, 16
        %v3922 = vrot.slane %v3920, 4
        %v3923 = vshll.u32 %v3661, 16
        %v3925 = vrot.slane %v3923, 5
        %v3926 = vor.u32 %v3922, %v3925
        %v3927 = vrot.slane %v3926, 4
        %v3929 = vshll.u32 %v3662, 16
        %v3931 = vrot.slane %v3929, 5
        %v3932 = vsel %vm313, %v3927, %v3931
        %v3933 = vshrl.u32 %v3662, 16
        %v3935 = vrot.slane %v3933, 4
        %v3936 = vor.u32 %v3935, %v3931
        %v3937 = vrot.slane %v3936, 4
        %v3939 = vshll.u32 %v3663, 16
        %v3941 = vrot.slane %v3939, 5
        %v3942 = vsel %vm313, %v3937, %v3941
        %v3944 = vshrl.u32 %v3664, 16
        %v3946 = vrot.slane %v3944, 4
        %v3947 = vshll.u32 %v3664, 16
        %v3949 = vrot.slane %v3947, 5
        %v3950 = vor.u32 %v3946, %v3949
        %v3951 = vrot.slane %v3950, 4
        %v3953 = vshll.u32 %v3665, 16
        %v3955 = vrot.slane %v3953, 5
        %v3956 = vsel %vm313, %v3951, %v3955
        %v3957 = vshrl.u32 %v3665, 16
        %v3959 = vrot.slane %v3957, 4
        %v3960 = vor.u32 %v3959, %v3955
        %v3961 = vrot.slane %v3960, 4
        %v3963 = vshll.u32 %v3666, 16
        %v3965 = vrot.slane %v3963, 5
        %v3966 = vsel %vm313, %v3961, %v3965
        %v3968 = vshrl.u32 %v3667, 16
        %v3970 = vrot.slane %v3968, 4
        %v3971 = vshll.u32 %v3667, 16
        %v3973 = vrot.slane %v3971, 5
        %v3974 = vor.u32 %v3970, %v3973
        %v3975 = vrot.slane %v3974, 4
        %v3977 = vshll.u32 %v3668, 16
        %v3979 = vrot.slane %v3977, 5
        %v3980 = vsel %vm313, %v3975, %v3979
        %v3981 = vshrl.u32 %v3668, 16
        %v3983 = vrot.slane %v3981, 4
        %v3984 = vor.u32 %v3983, %v3979
        %v3985 = vrot.slane %v3984, 4
        %v3987 = vshll.u32 %v3669, 16
        %v3989 = vrot.slane %v3987, 5
        %v3990 = vsel %vm313, %v3985, %v3989
        %v3992 = vshrl.u32 %v3670, 16
        %v3994 = vrot.slane %v3992, 4
        %v3995 = vshll.u32 %v3670, 16
        %v3997 = vrot.slane %v3995, 5
        %v3998 = vor.u32 %v3994, %v3997
        %v3999 = vrot.slane %v3998, 4
        %v4001 = vshll.u32 %v3671, 16
        %v4003 = vrot.slane %v4001, 5
        %v4004 = vsel %vm313, %v3999, %v4003
        %v4005 = vshrl.u32 %v3671, 16
        %v4007 = vrot.slane %v4005, 4
        %v4008 = vor.u32 %v4007, %v4003
        %v4009 = vrot.slane %v4008, 4
        %v4011 = vshll.u32 %v3672, 16
        %v4013 = vrot.slane %v4011, 5
        %v4014 = vsel %vm313, %v4009, %v4013
        %v4016 = vshrl.u32 %v3673, 16
        %v4018 = vrot.slane %v4016, 4
        %v4019 = vshll.u32 %v3673, 16
        %v4021 = vrot.slane %v4019, 5
        %v4022 = vor.u32 %v4018, %v4021
        %v4023 = vrot.slane %v4022, 4
        %v4025 = vshll.u32 %v3674, 16
        %v4027 = vrot.slane %v4025, 5
        %v4028 = vsel %vm313, %v4023, %v4027
        %v4029 = vshrl.u32 %v3674, 16
        %v4031 = vrot.slane %v4029, 4
        %v4032 = vor.u32 %v4031, %v4027
        %v4033 = vrot.slane %v4032, 4
        %v4035 = vshll.u32 %v3675, 16
        %v4037 = vrot.slane %v4035, 5
        %v4038 = vsel %vm313, %v4033, %v4037
        %v4040 = vshrl.u32 %v3676, 16
        %v4042 = vrot.slane %v4040, 4
        %v4043 = vshll.u32 %v3676, 16
        %v4045 = vrot.slane %v4043, 5
        %v4046 = vor.u32 %v4042, %v4045
        %v4047 = vrot.slane %v4046, 4
        %v4049 = vshll.u32 %v3677, 16
        %v4051 = vrot.slane %v4049, 5
        %v4052 = vsel %vm313, %v4047, %v4051
        %v4053 = vshrl.u32 %v3677, 16
        %v4055 = vrot.slane %v4053, 4
        %v4056 = vor.u32 %v4055, %v4051
        %v4057 = vrot.slane %v4056, 4
        %v4059 = vshll.u32 %v3678, 16
        %v4061 = vrot.slane %v4059, 5
        %v4062 = vsel %vm313, %v4057, %v4061
        %s4063 = scalar_lea.vmem %s255, 14
        %v4064 = vld [vmem:[%s4063] sm:$0x3]
        %v4065 = vunpack.c.l.b16 %v3692
        %v4066 = vunpack.c.l.b16 %v3702
        %v4067 = vunpack.c.l.b16 %v3716
        %v4068 = vunpack.c.l.b16 %v3726
        %v4069 = vunpack.c.l.b16 %v3740
        %v4070 = vunpack.c.l.b16 %v3750
        %v4071 = vunpack.c.l.b16 %v3764
        %v4072 = vunpack.c.l.b16 %v3774
        %v4073 = vunpack.c.l.b16 %v3788
        %v4074 = vunpack.c.l.b16 %v3798
        %v4075 = vunpack.c.l.b16 %v3812
        %v4076 = vunpack.c.l.b16 %v3822
        %v4077 = vunpack.c.l.b16 %v3836
        %v4078 = vunpack.c.l.b16 %v3846
        %v4079 = vunpack.c.l.b16 %v3860
        %v4080 = vunpack.c.l.b16 %v3870
        %v4081 = vunpack.c.l.b16 %v3884
        %v4082 = vunpack.c.l.b16 %v3894
        %v4083 = vunpack.c.l.b16 %v3908
        %v4084 = vunpack.c.l.b16 %v3918
        %v4085 = vunpack.c.l.b16 %v3932
        %v4086 = vunpack.c.l.b16 %v3942
        %v4087 = vunpack.c.l.b16 %v3956
        %v4088 = vunpack.c.l.b16 %v3966
        %v4089 = vunpack.c.l.b16 %v3980
        %v4090 = vunpack.c.l.b16 %v3990
        %v4091 = vunpack.c.l.b16 %v4004
        %v4092 = vunpack.c.l.b16 %v4014
        %v4093 = vunpack.c.l.b16 %v4028
        %v4094 = vunpack.c.l.b16 %v4038
        %v4095 = vunpack.c.l.b16 %v4052
        %v4096 = vunpack.c.l.b16 %v4062
        %v4097 = vpack.c.b16 %v4066, %v4065
        %v4098 = vpack.c.b16 %v4068, %v4067
        %v4099 = vpack.c.b16 %v4070, %v4069
        %v4100 = vpack.c.b16 %v4072, %v4071
        %v4101 = vpack.c.b16 %v4074, %v4073
        %v4102 = vpack.c.b16 %v4076, %v4075
        %v4103 = vpack.c.b16 %v4078, %v4077
        %v4104 = vpack.c.b16 %v4080, %v4079
        %v4105 = vpack.c.b16 %v4082, %v4081
        %v4106 = vpack.c.b16 %v4084, %v4083
        %v4107 = vpack.c.b16 %v4086, %v4085
        %v4108 = vpack.c.b16 %v4088, %v4087
        %v4109 = vpack.c.b16 %v4090, %v4089
        %v4110 = vpack.c.b16 %v4092, %v4091
        %v4111 = vpack.c.b16 %v4094, %v4093
        %v4112 = vpack.c.b16 %v4096, %v4095
        %v4114 = vsel %vm748, %v4097, 0
        %v4117 = vsel %vm748, %v4098, 0
        %v4120 = vsel %vm748, %v4099, 0
        %v4123 = vsel %vm748, %v4100, 0
        %v4126 = vsel %vm748, %v4101, 0
        %v4129 = vsel %vm748, %v4102, 0
        %v4132 = vsel %vm748, %v4103, 0
        %v4135 = vsel %vm748, %v4104, 0
        %v4138 = vsel %vm748, %v4105, 0
        %v4141 = vsel %vm748, %v4106, 0
        %v4144 = vsel %vm748, %v4107, 0
        %v4147 = vsel %vm748, %v4108, 0
        %v4150 = vsel %vm748, %v4109, 0
        %v4153 = vsel %vm748, %v4110, 0
        %v4156 = vsel %vm748, %v4111, 0
        %v4159 = vsel %vm748, %v4112, 0
        %v4162 = vsel %vm797, %v4064, 0
        %4164 = vmatprep.subr.bf16.mxu0 0
        %4165 = vmatpush1.bf16.msra.mxu0 0
        %4166 = vmatprep.subr.bf16.mxu0 0
        %4167 = vmatpush1.bf16.msra.mxu0 0
        %4168 = vmatprep.subr.bf16.mxu0 0
        %4169 = vmatpush1.bf16.msra.mxu0 0
        %4170 = vmatprep.subr.bf16.mxu0 0
        %4171 = vmatpush1.bf16.msra.mxu0 0
        %4172 = vmatprep.subr.bf16.mxu0 0
        %4173 = vmatpush1.bf16.msra.mxu0 0
        %4174 = vmatprep.subr.bf16.mxu0 0
        %4175 = vmatpush1.bf16.msra.mxu0 0
        %4176 = vmatprep.subr.bf16.mxu0 0
        %4177 = vmatpush1.bf16.msra.mxu0 0
        %4178 = vmatprep.subr.bf16.mxu0 0
        %4179 = vmatpush1.bf16.msra.mxu0 %v4162
        %4180 = vmatprep.subr.bf16.mxu0 0
        %4181 = vmatpush2.bf16.msra.mxu0 0
        %4182 = vmatprep.subr.bf16.mxu0 0
        %4183 = vmatpush2.bf16.msra.mxu0 0
        %4184 = vmatprep.subr.bf16.mxu0 0
        %4185 = vmatpush2.bf16.msra.mxu0 0
        %4186 = vmatprep.subr.bf16.mxu0 0
        %4187 = vmatpush2.bf16.msra.mxu0 0
        %4188 = vmatprep.subr.bf16.mxu0 0
        %4189 = vmatpush2.bf16.msra.mxu0 0
        %4190 = vmatprep.subr.bf16.mxu0 0
        %4191 = vmatpush2.bf16.msra.mxu0 0
        %4192 = vmatprep.subr.bf16.mxu0 0
        %4193 = vmatpush2.bf16.msra.mxu0 0
        %4194 = vmatprep.subr.bf16.mxu0 0
        %4195 = vmatpush2.bf16.msra.mxu0 0
        %4196 = vmatprep.mubr.bf16.mxu0 0
        %4197 = vmatmul.mubr.bf16.gmra.mxu0 %v4114
        %v4198 = vpop.f32.mrf.mxu0
        %v4199 = vadd.f32 0.0, %v4198
        %v4200 = vpop.f32.mrf.mxu0
        %v4201 = vpop.f32.mrf.mxu0
        %v4202 = vadd.f32 0.0, %v4201
        %v4203 = vpop.f32.mrf.mxu0
        %4204 = vmatprep.mubr.bf16.mxu0 0
        %4205 = vmatmul.mubr.bf16.gmra.mxu0 %v4117
        %v4206 = vpop.f32.mrf.mxu0
        %v4207 = vadd.f32 0.0, %v4206
        %v4208 = vpop.f32.mrf.mxu0
        %v4209 = vpop.f32.mrf.mxu0
        %v4210 = vadd.f32 0.0, %v4209
        %v4211 = vpop.f32.mrf.mxu0
        %4212 = vmatprep.mubr.bf16.mxu0 0
        %4213 = vmatmul.mubr.bf16.gmra.mxu0 %v4120
        %v4214 = vpop.f32.mrf.mxu0
        %v4215 = vadd.f32 0.0, %v4214
        %v4216 = vpop.f32.mrf.mxu0
        %v4217 = vpop.f32.mrf.mxu0
        %v4218 = vadd.f32 0.0, %v4217
        %v4219 = vpop.f32.mrf.mxu0
        %4220 = vmatprep.mubr.bf16.mxu0 0
        %4221 = vmatmul.mubr.bf16.gmra.mxu0 %v4123
        %v4222 = vpop.f32.mrf.mxu0
        %v4223 = vadd.f32 0.0, %v4222
        %v4224 = vpop.f32.mrf.mxu0
        %v4225 = vpop.f32.mrf.mxu0
        %v4226 = vadd.f32 0.0, %v4225
        %v4227 = vpop.f32.mrf.mxu0
        %4228 = vmatprep.mubr.bf16.mxu0 0
        %4229 = vmatmul.mubr.bf16.gmra.mxu0 %v4126
        %v4230 = vpop.f32.mrf.mxu0
        %v4231 = vadd.f32 0.0, %v4230
        %v4232 = vpop.f32.mrf.mxu0
        %v4233 = vpop.f32.mrf.mxu0
        %v4234 = vadd.f32 0.0, %v4233
        %v4235 = vpop.f32.mrf.mxu0
        %4236 = vmatprep.mubr.bf16.mxu0 0
        %4237 = vmatmul.mubr.bf16.gmra.mxu0 %v4129
        %v4238 = vpop.f32.mrf.mxu0
        %v4239 = vadd.f32 0.0, %v4238
        %v4240 = vpop.f32.mrf.mxu0
        %v4241 = vpop.f32.mrf.mxu0
        %v4242 = vadd.f32 0.0, %v4241
        %v4243 = vpop.f32.mrf.mxu0
        %4244 = vmatprep.mubr.bf16.mxu0 0
        %4245 = vmatmul.mubr.bf16.gmra.mxu0 %v4132
        %v4246 = vpop.f32.mrf.mxu0
        %v4247 = vadd.f32 0.0, %v4246
        %v4248 = vpop.f32.mrf.mxu0
        %v4249 = vpop.f32.mrf.mxu0
        %v4250 = vadd.f32 0.0, %v4249
        %v4251 = vpop.f32.mrf.mxu0
        %4252 = vmatprep.mubr.bf16.mxu0 0
        %4253 = vmatmul.mubr.bf16.gmra.mxu0 %v4135
        %v4254 = vpop.f32.mrf.mxu0
        %v4255 = vadd.f32 0.0, %v4254
        %v4256 = vpop.f32.mrf.mxu0
        %v4257 = vpop.f32.mrf.mxu0
        %v4258 = vadd.f32 0.0, %v4257
        %v4259 = vpop.f32.mrf.mxu0
        %4260 = vmatprep.mubr.bf16.mxu0 0
        %4261 = vmatmul.mubr.bf16.gmra.mxu0 %v4138
        %v4262 = vpop.f32.mrf.mxu0
        %v4263 = vadd.f32 0.0, %v4262
        %v4264 = vpop.f32.mrf.mxu0
        %v4265 = vpop.f32.mrf.mxu0
        %v4266 = vadd.f32 0.0, %v4265
        %v4267 = vpop.f32.mrf.mxu0
        %4268 = vmatprep.mubr.bf16.mxu0 0
        %4269 = vmatmul.mubr.bf16.gmra.mxu0 %v4141
        %v4270 = vpop.f32.mrf.mxu0
        %v4271 = vadd.f32 0.0, %v4270
        %v4272 = vpop.f32.mrf.mxu0
        %v4273 = vpop.f32.mrf.mxu0
        %v4274 = vadd.f32 0.0, %v4273
        %v4275 = vpop.f32.mrf.mxu0
        %4276 = vmatprep.mubr.bf16.mxu0 0
        %4277 = vmatmul.mubr.bf16.gmra.mxu0 %v4144
        %v4278 = vpop.f32.mrf.mxu0
        %v4279 = vadd.f32 0.0, %v4278
        %v4280 = vpop.f32.mrf.mxu0
        %v4281 = vpop.f32.mrf.mxu0
        %v4282 = vadd.f32 0.0, %v4281
        %v4283 = vpop.f32.mrf.mxu0
        %4284 = vmatprep.mubr.bf16.mxu0 0
        %4285 = vmatmul.mubr.bf16.gmra.mxu0 %v4147
        %v4286 = vpop.f32.mrf.mxu0
        %v4287 = vadd.f32 0.0, %v4286
        %v4288 = vpop.f32.mrf.mxu0
        %v4289 = vpop.f32.mrf.mxu0
        %v4290 = vadd.f32 0.0, %v4289
        %v4291 = vpop.f32.mrf.mxu0
        %4292 = vmatprep.mubr.bf16.mxu0 0
        %4293 = vmatmul.mubr.bf16.gmra.mxu0 %v4150
        %v4294 = vpop.f32.mrf.mxu0
        %v4295 = vadd.f32 0.0, %v4294
        %v4296 = vpop.f32.mrf.mxu0
        %v4297 = vpop.f32.mrf.mxu0
        %v4298 = vadd.f32 0.0, %v4297
        %v4299 = vpop.f32.mrf.mxu0
        %4300 = vmatprep.mubr.bf16.mxu0 0
        %4301 = vmatmul.mubr.bf16.gmra.mxu0 %v4153
        %v4302 = vpop.f32.mrf.mxu0
        %v4303 = vadd.f32 0.0, %v4302
        %v4304 = vpop.f32.mrf.mxu0
        %v4305 = vpop.f32.mrf.mxu0
        %v4306 = vadd.f32 0.0, %v4305
        %v4307 = vpop.f32.mrf.mxu0
        %4308 = vmatprep.mubr.bf16.mxu0 0
        %4309 = vmatmul.mubr.bf16.gmra.mxu0 %v4156
        %v4310 = vpop.f32.mrf.mxu0
        %v4311 = vadd.f32 0.0, %v4310
        %v4312 = vpop.f32.mrf.mxu0
        %v4313 = vpop.f32.mrf.mxu0
        %v4314 = vadd.f32 0.0, %v4313
        %v4315 = vpop.f32.mrf.mxu0
        %4316 = vmatprep.mubr.bf16.mxu0 0
        %4317 = vmatmul.mubr.bf16.gmra.mxu0 %v4159
        %v4318 = vpop.f32.mrf.mxu0
        %v4319 = vadd.f32 0.0, %v4318
        %v4320 = vpop.f32.mrf.mxu0
        %v4321 = vpop.f32.mrf.mxu0
        %v4322 = vadd.f32 0.0, %v4321
        %v4323 = vpop.f32.mrf.mxu0
        %4324 = vdwg.mxu0
        %v4325 = vadd.f32 %v3599, %v4199
        %v4326 = vadd.f32 %v3600, %v4202
        %v4327 = vadd.f32 %v3601, %v4207
        %v4328 = vadd.f32 %v3602, %v4210
        %v4329 = vadd.f32 %v3603, %v4215
        %v4330 = vadd.f32 %v3604, %v4218
        %v4331 = vadd.f32 %v3605, %v4223
        %v4332 = vadd.f32 %v3606, %v4226
        %v4333 = vadd.f32 %v3607, %v4231
        %v4334 = vadd.f32 %v3608, %v4234
        %v4335 = vadd.f32 %v3609, %v4239
        %v4336 = vadd.f32 %v3610, %v4242
        %v4337 = vadd.f32 %v3611, %v4247
        %v4338 = vadd.f32 %v3612, %v4250
        %v4339 = vadd.f32 %v3613, %v4255
        %v4340 = vadd.f32 %v3614, %v4258
        %v4341 = vadd.f32 %v3615, %v4263
        %v4342 = vadd.f32 %v3616, %v4266
        %v4343 = vadd.f32 %v3617, %v4271
        %v4344 = vadd.f32 %v3618, %v4274
        %v4345 = vadd.f32 %v3619, %v4279
        %v4346 = vadd.f32 %v3620, %v4282
        %v4347 = vadd.f32 %v3621, %v4287
        %v4348 = vadd.f32 %v3622, %v4290
        %v4349 = vadd.f32 %v3623, %v4295
        %v4350 = vadd.f32 %v3624, %v4298
        %v4351 = vadd.f32 %v3625, %v4303
        %v4352 = vadd.f32 %v3626, %v4306
        %v4353 = vadd.f32 %v3627, %v4311
        %v4354 = vadd.f32 %v3628, %v4314
        %v4355 = vadd.f32 %v3629, %v4319
        %v4356 = vadd.f32 %v3630, %v4322
        %v4357 = vld [vmem:[%s3272] sm:$0xe]
        %v4358 = vld [vmem:[%s3272 + $0xc] sm:$0xe]
        %v4359 = vld [vmem:[%s3272 + $0x18] sm:$0xe]
        %v4360 = vld [vmem:[%s3272 + $0x24] sm:$0xe]
        %v4361 = vld [vmem:[%s3272 + $0x30] sm:$0xe]
        %v4362 = vld [vmem:[%s3272 + $0x3c] sm:$0xe]
        %v4363 = vld [vmem:[%s3272 + $0x48] sm:$0xe]
        %v4364 = vld [vmem:[%s3272 + $0x54] sm:$0xe]
        %v4365 = vld [vmem:[%s3272 + $0x60] sm:$0xe]
        %v4366 = vld [vmem:[%s3272 + $0x6c] sm:$0xe]
        %v4367 = vld [vmem:[%s3272 + $0x78] sm:$0xe]
        %v4368 = vld [vmem:[%s3272 + $0x84] sm:$0xe]
        %v4369 = vld [vmem:[%s3272 + $0x90] sm:$0xe]
        %v4370 = vld [vmem:[%s3272 + $0x9c] sm:$0xe]
        %v4371 = vld [vmem:[%s3272 + $0xa8] sm:$0xe]
        %v4372 = vld [vmem:[%s3272 + $0xb4] sm:$0xe]
        %v4421 = vrot.slane %v4357, 5
        %v4422 = vrot.slane %v4421, 4
        %v4423 = vrot.slane %v3632, 5
        %v4424 = vsel %vm1304, %v4422, %v4423
        %v4425 = vrot.slane %v4423, 4
        %v4426 = vrot.slane %v3633, 5
        %v4427 = vsel %vm1304, %v4425, %v4426
        %v4428 = vrot.slane %v4358, 5
        %v4429 = vrot.slane %v4428, 4
        %v4430 = vrot.slane %v3635, 5
        %v4431 = vsel %vm1304, %v4429, %v4430
        %v4432 = vrot.slane %v4430, 4
        %v4433 = vrot.slane %v3636, 5
        %v4434 = vsel %vm1304, %v4432, %v4433
        %v4435 = vrot.slane %v4359, 5
        %v4436 = vrot.slane %v4435, 4
        %v4437 = vrot.slane %v3638, 5
        %v4438 = vsel %vm1304, %v4436, %v4437
        %v4439 = vrot.slane %v4437, 4
        %v4440 = vrot.slane %v3639, 5
        %v4441 = vsel %vm1304, %v4439, %v4440
        %v4442 = vrot.slane %v4360, 5
        %v4443 = vrot.slane %v4442, 4
        %v4444 = vrot.slane %v3641, 5
        %v4445 = vsel %vm1304, %v4443, %v4444
        %v4446 = vrot.slane %v4444, 4
        %v4447 = vrot.slane %v3642, 5
        %v4448 = vsel %vm1304, %v4446, %v4447
        %v4449 = vrot.slane %v4361, 5
        %v4450 = vrot.slane %v4449, 4
        %v4451 = vrot.slane %v3644, 5
        %v4452 = vsel %vm1304, %v4450, %v4451
        %v4453 = vrot.slane %v4451, 4
        %v4454 = vrot.slane %v3645, 5
        %v4455 = vsel %vm1304, %v4453, %v4454
        %v4456 = vrot.slane %v4362, 5
        %v4457 = vrot.slane %v4456, 4
        %v4458 = vrot.slane %v3647, 5
        %v4459 = vsel %vm1304, %v4457, %v4458
        %v4460 = vrot.slane %v4458, 4
        %v4461 = vrot.slane %v3648, 5
        %v4462 = vsel %vm1304, %v4460, %v4461
        %v4463 = vrot.slane %v4363, 5
        %v4464 = vrot.slane %v4463, 4
        %v4465 = vrot.slane %v3650, 5
        %v4466 = vsel %vm1304, %v4464, %v4465
        %v4467 = vrot.slane %v4465, 4
        %v4468 = vrot.slane %v3651, 5
        %v4469 = vsel %vm1304, %v4467, %v4468
        %v4470 = vrot.slane %v4364, 5
        %v4471 = vrot.slane %v4470, 4
        %v4472 = vrot.slane %v3653, 5
        %v4473 = vsel %vm1304, %v4471, %v4472
        %v4474 = vrot.slane %v4472, 4
        %v4475 = vrot.slane %v3654, 5
        %v4476 = vsel %vm1304, %v4474, %v4475
        %v4477 = vrot.slane %v4365, 5
        %v4478 = vrot.slane %v4477, 4
        %v4479 = vrot.slane %v3656, 5
        %v4480 = vsel %vm1304, %v4478, %v4479
        %v4481 = vrot.slane %v4479, 4
        %v4482 = vrot.slane %v3657, 5
        %v4483 = vsel %vm1304, %v4481, %v4482
        %v4484 = vrot.slane %v4366, 5
        %v4485 = vrot.slane %v4484, 4
        %v4486 = vrot.slane %v3659, 5
        %v4487 = vsel %vm1304, %v4485, %v4486
        %v4488 = vrot.slane %v4486, 4
        %v4489 = vrot.slane %v3660, 5
        %v4490 = vsel %vm1304, %v4488, %v4489
        %v4491 = vrot.slane %v4367, 5
        %v4492 = vrot.slane %v4491, 4
        %v4493 = vrot.slane %v3662, 5
        %v4494 = vsel %vm1304, %v4492, %v4493
        %v4495 = vrot.slane %v4493, 4
        %v4496 = vrot.slane %v3663, 5
        %v4497 = vsel %vm1304, %v4495, %v4496
        %v4498 = vrot.slane %v4368, 5
        %v4499 = vrot.slane %v4498, 4
        %v4500 = vrot.slane %v3665, 5
        %v4501 = vsel %vm1304, %v4499, %v4500
        %v4502 = vrot.slane %v4500, 4
        %v4503 = vrot.slane %v3666, 5
        %v4504 = vsel %vm1304, %v4502, %v4503
        %v4505 = vrot.slane %v4369, 5
        %v4506 = vrot.slane %v4505, 4
        %v4507 = vrot.slane %v3668, 5
        %v4508 = vsel %vm1304, %v4506, %v4507
        %v4509 = vrot.slane %v4507, 4
        %v4510 = vrot.slane %v3669, 5
        %v4511 = vsel %vm1304, %v4509, %v4510
        %v4512 = vrot.slane %v4370, 5
        %v4513 = vrot.slane %v4512, 4
        %v4514 = vrot.slane %v3671, 5
        %v4515 = vsel %vm1304, %v4513, %v4514
        %v4516 = vrot.slane %v4514, 4
        %v4517 = vrot.slane %v3672, 5
        %v4518 = vsel %vm1304, %v4516, %v4517
        %v4519 = vrot.slane %v4371, 5
        %v4520 = vrot.slane %v4519, 4
        %v4521 = vrot.slane %v3674, 5
        %v4522 = vsel %vm1304, %v4520, %v4521
        %v4523 = vrot.slane %v4521, 4
        %v4524 = vrot.slane %v3675, 5
        %v4525 = vsel %vm1304, %v4523, %v4524
        %v4526 = vrot.slane %v4372, 5
        %v4527 = vrot.slane %v4526, 4
        %v4528 = vrot.slane %v3677, 5
        %v4529 = vsel %vm1304, %v4527, %v4528
        %v4530 = vrot.slane %v4528, 4
        %v4531 = vrot.slane %v3678, 5
        %v4532 = vsel %vm1304, %v4530, %v4531
        %s4533 = scalar_lea.vmem %s255, 16
        %v4534 = vld [vmem:[%s4533] sm:$0x3]
        %v4535 = vunpack.c.l.b16 %v4424
        %v4536 = vunpack.c.l.b16 %v4427
        %v4537 = vunpack.c.l.b16 %v4431
        %v4538 = vunpack.c.l.b16 %v4434
        %v4539 = vunpack.c.l.b16 %v4438
        %v4540 = vunpack.c.l.b16 %v4441
        %v4541 = vunpack.c.l.b16 %v4445
        %v4542 = vunpack.c.l.b16 %v4448
        %v4543 = vunpack.c.l.b16 %v4452
        %v4544 = vunpack.c.l.b16 %v4455
        %v4545 = vunpack.c.l.b16 %v4459
        %v4546 = vunpack.c.l.b16 %v4462
        %v4547 = vunpack.c.l.b16 %v4466
        %v4548 = vunpack.c.l.b16 %v4469
        %v4549 = vunpack.c.l.b16 %v4473
        %v4550 = vunpack.c.l.b16 %v4476
        %v4551 = vunpack.c.l.b16 %v4480
        %v4552 = vunpack.c.l.b16 %v4483
        %v4553 = vunpack.c.l.b16 %v4487
        %v4554 = vunpack.c.l.b16 %v4490
        %v4555 = vunpack.c.l.b16 %v4494
        %v4556 = vunpack.c.l.b16 %v4497
        %v4557 = vunpack.c.l.b16 %v4501
        %v4558 = vunpack.c.l.b16 %v4504
        %v4559 = vunpack.c.l.b16 %v4508
        %v4560 = vunpack.c.l.b16 %v4511
        %v4561 = vunpack.c.l.b16 %v4515
        %v4562 = vunpack.c.l.b16 %v4518
        %v4563 = vunpack.c.l.b16 %v4522
        %v4564 = vunpack.c.l.b16 %v4525
        %v4565 = vunpack.c.l.b16 %v4529
        %v4566 = vunpack.c.l.b16 %v4532
        %v4567 = vpack.c.b16 %v4536, %v4535
        %v4568 = vpack.c.b16 %v4538, %v4537
        %v4569 = vpack.c.b16 %v4540, %v4539
        %v4570 = vpack.c.b16 %v4542, %v4541
        %v4571 = vpack.c.b16 %v4544, %v4543
        %v4572 = vpack.c.b16 %v4546, %v4545
        %v4573 = vpack.c.b16 %v4548, %v4547
        %v4574 = vpack.c.b16 %v4550, %v4549
        %v4575 = vpack.c.b16 %v4552, %v4551
        %v4576 = vpack.c.b16 %v4554, %v4553
        %v4577 = vpack.c.b16 %v4556, %v4555
        %v4578 = vpack.c.b16 %v4558, %v4557
        %v4579 = vpack.c.b16 %v4560, %v4559
        %v4580 = vpack.c.b16 %v4562, %v4561
        %v4581 = vpack.c.b16 %v4564, %v4563
        %v4582 = vpack.c.b16 %v4566, %v4565
        %v4584 = vsel %vm748, %v4567, 0
        %v4587 = vsel %vm748, %v4568, 0
        %v4590 = vsel %vm748, %v4569, 0
        %v4593 = vsel %vm748, %v4570, 0
        %v4596 = vsel %vm748, %v4571, 0
        %v4599 = vsel %vm748, %v4572, 0
        %v4602 = vsel %vm748, %v4573, 0
        %v4605 = vsel %vm748, %v4574, 0
        %v4608 = vsel %vm748, %v4575, 0
        %v4611 = vsel %vm748, %v4576, 0
        %v4614 = vsel %vm748, %v4577, 0
        %v4617 = vsel %vm748, %v4578, 0
        %v4620 = vsel %vm748, %v4579, 0
        %v4623 = vsel %vm748, %v4580, 0
        %v4626 = vsel %vm748, %v4581, 0
        %v4629 = vsel %vm748, %v4582, 0
        %v4632 = vsel %vm797, %v4534, 0
        %4634 = vmatprep.subr.bf16.mxu0 0
        %4635 = vmatpush1.bf16.msra.mxu0 0
        %4636 = vmatprep.subr.bf16.mxu0 0
        %4637 = vmatpush1.bf16.msra.mxu0 0
        %4638 = vmatprep.subr.bf16.mxu0 0
        %4639 = vmatpush1.bf16.msra.mxu0 0
        %4640 = vmatprep.subr.bf16.mxu0 0
        %4641 = vmatpush1.bf16.msra.mxu0 0
        %4642 = vmatprep.subr.bf16.mxu0 0
        %4643 = vmatpush1.bf16.msra.mxu0 0
        %4644 = vmatprep.subr.bf16.mxu0 0
        %4645 = vmatpush1.bf16.msra.mxu0 0
        %4646 = vmatprep.subr.bf16.mxu0 0
        %4647 = vmatpush1.bf16.msra.mxu0 0
        %4648 = vmatprep.subr.bf16.mxu0 0
        %4649 = vmatpush1.bf16.msra.mxu0 %v4632
        %4650 = vmatprep.subr.bf16.mxu0 0
        %4651 = vmatpush2.bf16.msra.mxu0 0
        %4652 = vmatprep.subr.bf16.mxu0 0
        %4653 = vmatpush2.bf16.msra.mxu0 0
        %4654 = vmatprep.subr.bf16.mxu0 0
        %4655 = vmatpush2.bf16.msra.mxu0 0
        %4656 = vmatprep.subr.bf16.mxu0 0
        %4657 = vmatpush2.bf16.msra.mxu0 0
        %4658 = vmatprep.subr.bf16.mxu0 0
        %4659 = vmatpush2.bf16.msra.mxu0 0
        %4660 = vmatprep.subr.bf16.mxu0 0
        %4661 = vmatpush2.bf16.msra.mxu0 0
        %4662 = vmatprep.subr.bf16.mxu0 0
        %4663 = vmatpush2.bf16.msra.mxu0 0
        %4664 = vmatprep.subr.bf16.mxu0 0
        %4665 = vmatpush2.bf16.msra.mxu0 0
        %4666 = vmatprep.mubr.bf16.mxu0 0
        %4667 = vmatmul.mubr.bf16.gmra.mxu0 %v4584
        %v4668 = vpop.f32.mrf.mxu0
        %v4669 = vadd.f32 0.0, %v4668
        %v4670 = vpop.f32.mrf.mxu0
        %v4671 = vpop.f32.mrf.mxu0
        %v4672 = vadd.f32 0.0, %v4671
        %v4673 = vpop.f32.mrf.mxu0
        %4674 = vmatprep.mubr.bf16.mxu0 0
        %4675 = vmatmul.mubr.bf16.gmra.mxu0 %v4587
        %v4676 = vpop.f32.mrf.mxu0
        %v4677 = vadd.f32 0.0, %v4676
        %v4678 = vpop.f32.mrf.mxu0
        %v4679 = vpop.f32.mrf.mxu0
        %v4680 = vadd.f32 0.0, %v4679
        %v4681 = vpop.f32.mrf.mxu0
        %4682 = vmatprep.mubr.bf16.mxu0 0
        %4683 = vmatmul.mubr.bf16.gmra.mxu0 %v4590
        %v4684 = vpop.f32.mrf.mxu0
        %v4685 = vadd.f32 0.0, %v4684
        %v4686 = vpop.f32.mrf.mxu0
        %v4687 = vpop.f32.mrf.mxu0
        %v4688 = vadd.f32 0.0, %v4687
        %v4689 = vpop.f32.mrf.mxu0
        %4690 = vmatprep.mubr.bf16.mxu0 0
        %4691 = vmatmul.mubr.bf16.gmra.mxu0 %v4593
        %v4692 = vpop.f32.mrf.mxu0
        %v4693 = vadd.f32 0.0, %v4692
        %v4694 = vpop.f32.mrf.mxu0
        %v4695 = vpop.f32.mrf.mxu0
        %v4696 = vadd.f32 0.0, %v4695
        %v4697 = vpop.f32.mrf.mxu0
        %4698 = vmatprep.mubr.bf16.mxu0 0
        %4699 = vmatmul.mubr.bf16.gmra.mxu0 %v4596
        %v4700 = vpop.f32.mrf.mxu0
        %v4701 = vadd.f32 0.0, %v4700
        %v4702 = vpop.f32.mrf.mxu0
        %v4703 = vpop.f32.mrf.mxu0
        %v4704 = vadd.f32 0.0, %v4703
        %v4705 = vpop.f32.mrf.mxu0
        %4706 = vmatprep.mubr.bf16.mxu0 0
        %4707 = vmatmul.mubr.bf16.gmra.mxu0 %v4599
        %v4708 = vpop.f32.mrf.mxu0
        %v4709 = vadd.f32 0.0, %v4708
        %v4710 = vpop.f32.mrf.mxu0
        %v4711 = vpop.f32.mrf.mxu0
        %v4712 = vadd.f32 0.0, %v4711
        %v4713 = vpop.f32.mrf.mxu0
        %4714 = vmatprep.mubr.bf16.mxu0 0
        %4715 = vmatmul.mubr.bf16.gmra.mxu0 %v4602
        %v4716 = vpop.f32.mrf.mxu0
        %v4717 = vadd.f32 0.0, %v4716
        %v4718 = vpop.f32.mrf.mxu0
        %v4719 = vpop.f32.mrf.mxu0
        %v4720 = vadd.f32 0.0, %v4719
        %v4721 = vpop.f32.mrf.mxu0
        %4722 = vmatprep.mubr.bf16.mxu0 0
        %4723 = vmatmul.mubr.bf16.gmra.mxu0 %v4605
        %v4724 = vpop.f32.mrf.mxu0
        %v4725 = vadd.f32 0.0, %v4724
        %v4726 = vpop.f32.mrf.mxu0
        %v4727 = vpop.f32.mrf.mxu0
        %v4728 = vadd.f32 0.0, %v4727
        %v4729 = vpop.f32.mrf.mxu0
        %4730 = vmatprep.mubr.bf16.mxu0 0
        %4731 = vmatmul.mubr.bf16.gmra.mxu0 %v4608
        %v4732 = vpop.f32.mrf.mxu0
        %v4733 = vadd.f32 0.0, %v4732
        %v4734 = vpop.f32.mrf.mxu0
        %v4735 = vpop.f32.mrf.mxu0
        %v4736 = vadd.f32 0.0, %v4735
        %v4737 = vpop.f32.mrf.mxu0
        %4738 = vmatprep.mubr.bf16.mxu0 0
        %4739 = vmatmul.mubr.bf16.gmra.mxu0 %v4611
        %v4740 = vpop.f32.mrf.mxu0
        %v4741 = vadd.f32 0.0, %v4740
        %v4742 = vpop.f32.mrf.mxu0
        %v4743 = vpop.f32.mrf.mxu0
        %v4744 = vadd.f32 0.0, %v4743
        %v4745 = vpop.f32.mrf.mxu0
        %4746 = vmatprep.mubr.bf16.mxu0 0
        %4747 = vmatmul.mubr.bf16.gmra.mxu0 %v4614
        %v4748 = vpop.f32.mrf.mxu0
        %v4749 = vadd.f32 0.0, %v4748
        %v4750 = vpop.f32.mrf.mxu0
        %v4751 = vpop.f32.mrf.mxu0
        %v4752 = vadd.f32 0.0, %v4751
        %v4753 = vpop.f32.mrf.mxu0
        %4754 = vmatprep.mubr.bf16.mxu0 0
        %4755 = vmatmul.mubr.bf16.gmra.mxu0 %v4617
        %v4756 = vpop.f32.mrf.mxu0
        %v4757 = vadd.f32 0.0, %v4756
        %v4758 = vpop.f32.mrf.mxu0
        %v4759 = vpop.f32.mrf.mxu0
        %v4760 = vadd.f32 0.0, %v4759
        %v4761 = vpop.f32.mrf.mxu0
        %4762 = vmatprep.mubr.bf16.mxu0 0
        %4763 = vmatmul.mubr.bf16.gmra.mxu0 %v4620
        %v4764 = vpop.f32.mrf.mxu0
        %v4765 = vadd.f32 0.0, %v4764
        %v4766 = vpop.f32.mrf.mxu0
        %v4767 = vpop.f32.mrf.mxu0
        %v4768 = vadd.f32 0.0, %v4767
        %v4769 = vpop.f32.mrf.mxu0
        %4770 = vmatprep.mubr.bf16.mxu0 0
        %4771 = vmatmul.mubr.bf16.gmra.mxu0 %v4623
        %v4772 = vpop.f32.mrf.mxu0
        %v4773 = vadd.f32 0.0, %v4772
        %v4774 = vpop.f32.mrf.mxu0
        %v4775 = vpop.f32.mrf.mxu0
        %v4776 = vadd.f32 0.0, %v4775
        %v4777 = vpop.f32.mrf.mxu0
        %4778 = vmatprep.mubr.bf16.mxu0 0
        %4779 = vmatmul.mubr.bf16.gmra.mxu0 %v4626
        %v4780 = vpop.f32.mrf.mxu0
        %v4781 = vadd.f32 0.0, %v4780
        %v4782 = vpop.f32.mrf.mxu0
        %v4783 = vpop.f32.mrf.mxu0
        %v4784 = vadd.f32 0.0, %v4783
        %v4785 = vpop.f32.mrf.mxu0
        %4786 = vmatprep.mubr.bf16.mxu0 0
        %4787 = vmatmul.mubr.bf16.gmra.mxu0 %v4629
        %v4788 = vpop.f32.mrf.mxu0
        %v4789 = vadd.f32 0.0, %v4788
        %v4790 = vpop.f32.mrf.mxu0
        %v4791 = vpop.f32.mrf.mxu0
        %v4792 = vadd.f32 0.0, %v4791
        %v4793 = vpop.f32.mrf.mxu0
        %4794 = vdwg.mxu0
        %v4795 = vadd.f32 %v4325, %v4669
        %v4796 = vadd.f32 %v4326, %v4672
        %v4797 = vadd.f32 %v4327, %v4677
        %v4798 = vadd.f32 %v4328, %v4680
        %v4799 = vadd.f32 %v4329, %v4685
        %v4800 = vadd.f32 %v4330, %v4688
        %v4801 = vadd.f32 %v4331, %v4693
        %v4802 = vadd.f32 %v4332, %v4696
        %v4803 = vadd.f32 %v4333, %v4701
        %v4804 = vadd.f32 %v4334, %v4704
        %v4805 = vadd.f32 %v4335, %v4709
        %v4806 = vadd.f32 %v4336, %v4712
        %v4807 = vadd.f32 %v4337, %v4717
        %v4808 = vadd.f32 %v4338, %v4720
        %v4809 = vadd.f32 %v4339, %v4725
        %v4810 = vadd.f32 %v4340, %v4728
        %v4811 = vadd.f32 %v4341, %v4733
        %v4812 = vadd.f32 %v4342, %v4736
        %v4813 = vadd.f32 %v4343, %v4741
        %v4814 = vadd.f32 %v4344, %v4744
        %v4815 = vadd.f32 %v4345, %v4749
        %v4816 = vadd.f32 %v4346, %v4752
        %v4817 = vadd.f32 %v4347, %v4757
        %v4818 = vadd.f32 %v4348, %v4760
        %v4819 = vadd.f32 %v4349, %v4765
        %v4820 = vadd.f32 %v4350, %v4768
        %v4821 = vadd.f32 %v4351, %v4773
        %v4822 = vadd.f32 %v4352, %v4776
        %v4823 = vadd.f32 %v4353, %v4781
        %v4824 = vadd.f32 %v4354, %v4784
        %v4825 = vadd.f32 %v4355, %v4789
        %v4826 = vadd.f32 %v4356, %v4792
        %v4827 = vpack.c.bf16 %v4796, %v4795
        %v4828 = vpack.c.bf16 %v4798, %v4797
        %v4829 = vpack.c.bf16 %v4800, %v4799
        %v4830 = vpack.c.bf16 %v4802, %v4801
        %v4831 = vpack.c.bf16 %v4804, %v4803
        %v4832 = vpack.c.bf16 %v4806, %v4805
        %v4833 = vpack.c.bf16 %v4808, %v4807
        %v4834 = vpack.c.bf16 %v4810, %v4809
        %v4835 = vpack.c.bf16 %v4812, %v4811
        %v4836 = vpack.c.bf16 %v4814, %v4813
        %v4837 = vpack.c.bf16 %v4816, %v4815
        %v4838 = vpack.c.bf16 %v4818, %v4817
        %v4839 = vpack.c.bf16 %v4820, %v4819
        %v4840 = vpack.c.bf16 %v4822, %v4821
        %v4841 = vpack.c.bf16 %v4824, %v4823
        %v4842 = vpack.c.bf16 %v4826, %v4825
        %v4859 = vunpack.c.l.b16 %v4827
        %v4860 = vunpack.c.h.b16 %v4827
        %v4861 = vunpack.c.l.b16 %v4828
        %v4862 = vunpack.c.h.b16 %v4828
        %v4863 = vunpack.c.l.b16 %v4829
        %v4864 = vunpack.c.h.b16 %v4829
        %v4865 = vunpack.c.l.b16 %v4830
        %v4866 = vunpack.c.h.b16 %v4830
        %v4867 = vunpack.c.l.b16 %v4831
        %v4868 = vunpack.c.h.b16 %v4831
        %v4869 = vunpack.c.l.b16 %v4832
        %v4870 = vunpack.c.h.b16 %v4832
        %v4871 = vunpack.c.l.b16 %v4833
        %v4872 = vunpack.c.h.b16 %v4833
        %v4873 = vunpack.c.l.b16 %v4834
        %v4874 = vunpack.c.h.b16 %v4834
        %v4875 = vunpack.c.l.b16 %v4835
        %v4876 = vunpack.c.h.b16 %v4835
        %v4877 = vunpack.c.l.b16 %v4836
        %v4878 = vunpack.c.h.b16 %v4836
        %v4879 = vunpack.c.l.b16 %v4837
        %v4880 = vunpack.c.h.b16 %v4837
        %v4881 = vunpack.c.l.b16 %v4838
        %v4882 = vunpack.c.h.b16 %v4838
        %v4883 = vunpack.c.l.b16 %v4839
        %v4884 = vunpack.c.h.b16 %v4839
        %v4885 = vunpack.c.l.b16 %v4840
        %v4886 = vunpack.c.h.b16 %v4840
        %v4887 = vunpack.c.l.b16 %v4841
        %v4888 = vunpack.c.h.b16 %v4841
        %v4889 = vunpack.c.l.b16 %v4842
        %v4890 = vunpack.c.h.b16 %v4842
        %v4891 = vpack.c.b16 %v4859, %v4859
        %v4892 = vpack.c.b16 %v4860, %v4860
        %v4893 = vpack.c.b16 %v4861, %v4861
        %v4894 = vpack.c.b16 %v4862, %v4862
        %v4895 = vpack.c.b16 %v4863, %v4863
        %v4896 = vpack.c.b16 %v4864, %v4864
        %v4897 = vpack.c.b16 %v4865, %v4865
        %v4898 = vpack.c.b16 %v4866, %v4866
        %v4899 = vpack.c.b16 %v4867, %v4867
        %v4900 = vpack.c.b16 %v4868, %v4868
        %v4901 = vpack.c.b16 %v4869, %v4869
        %v4902 = vpack.c.b16 %v4870, %v4870
        %v4903 = vpack.c.b16 %v4871, %v4871
        %v4904 = vpack.c.b16 %v4872, %v4872
        %v4905 = vpack.c.b16 %v4873, %v4873
        %v4906 = vpack.c.b16 %v4874, %v4874
        %v4907 = vpack.c.b16 %v4875, %v4875
        %v4908 = vpack.c.b16 %v4876, %v4876
        %v4909 = vpack.c.b16 %v4877, %v4877
        %v4910 = vpack.c.b16 %v4878, %v4878
        %v4911 = vpack.c.b16 %v4879, %v4879
        %v4912 = vpack.c.b16 %v4880, %v4880
        %v4913 = vpack.c.b16 %v4881, %v4881
        %v4914 = vpack.c.b16 %v4882, %v4882
        %v4915 = vpack.c.b16 %v4883, %v4883
        %v4916 = vpack.c.b16 %v4884, %v4884
        %v4917 = vpack.c.b16 %v4885, %v4885
        %v4918 = vpack.c.b16 %v4886, %v4886
        %v4919 = vpack.c.b16 %v4887, %v4887
        %v4920 = vpack.c.b16 %v4888, %v4888
        %v4921 = vpack.c.b16 %v4889, %v4889
        %v4922 = vpack.c.b16 %v4890, %v4890
        %4955 = vst [vmem:[%s234] sm:$0xf] %v4891
        %4956 = vst [vmem:[%s234 + $0x4] sm:$0xf] %v4892
        %4957 = vst [vmem:[%s234 + $0x8] sm:$0xf] %v4893
        %4958 = vst [vmem:[%s234 + $0xc] sm:$0xf] %v4894
        %4959 = vst [vmem:[%s234 + $0x10] sm:$0xf] %v4895
        %4960 = vst [vmem:[%s234 + $0x14] sm:$0xf] %v4896
        %4961 = vst [vmem:[%s234 + $0x18] sm:$0xf] %v4897
        %4962 = vst [vmem:[%s234 + $0x1c] sm:$0xf] %v4898
        %4963 = vst [vmem:[%s234 + $0x20] sm:$0xf] %v4899
        %4964 = vst [vmem:[%s234 + $0x24] sm:$0xf] %v4900
        %4965 = vst [vmem:[%s234 + $0x28] sm:$0xf] %v4901
        %4966 = vst [vmem:[%s234 + $0x2c] sm:$0xf] %v4902
        %4967 = vst [vmem:[%s234 + $0x30] sm:$0xf] %v4903
        %4968 = vst [vmem:[%s234 + $0x34] sm:$0xf] %v4904
        %4969 = vst [vmem:[%s234 + $0x38] sm:$0xf] %v4905
        %4970 = vst [vmem:[%s234 + $0x3c] sm:$0xf] %v4906
        %4971 = vst [vmem:[%s234 + $0x40] sm:$0xf] %v4907
        %4972 = vst [vmem:[%s234 + $0x44] sm:$0xf] %v4908
        %4973 = vst [vmem:[%s234 + $0x48] sm:$0xf] %v4909
        %4974 = vst [vmem:[%s234 + $0x4c] sm:$0xf] %v4910
        %4975 = vst [vmem:[%s234 + $0x50] sm:$0xf] %v4911
        %4976 = vst [vmem:[%s234 + $0x54] sm:$0xf] %v4912
        %4977 = vst [vmem:[%s234 + $0x58] sm:$0xf] %v4913
        %4978 = vst [vmem:[%s234 + $0x5c] sm:$0xf] %v4914
        %4979 = vst [vmem:[%s234 + $0x60] sm:$0xf] %v4915
        %4980 = vst [vmem:[%s234 + $0x64] sm:$0xf] %v4916
        %4981 = vst [vmem:[%s234 + $0x68] sm:$0xf] %v4917
        %4982 = vst [vmem:[%s234 + $0x6c] sm:$0xf] %v4918
        %4983 = vst [vmem:[%s234 + $0x70] sm:$0xf] %v4919
        %4984 = vst [vmem:[%s234 + $0x74] sm:$0xf] %v4920
        %4985 = vst [vmem:[%s234 + $0x78] sm:$0xf] %v4921
        %4986 = vst [vmem:[%s234 + $0x7c] sm:$0xf] %v4922
        %p4987 = scmp.eq.s32.totalorder %s29, 0
        // Predicated region
        $region29: #{tpu_custom_call.1} parent=27 // pred_check
          %p4988 = pneg %p4987
        $region30: #{tpu_custom_call.1} parent=27 // pred_check_branch
          %4990 = sbr.rel (%p4988) target = $region32
        $region31: #{tpu_custom_call.1} parent=27 // pred_region
          %4991 = vst [vmem:[%s240] sm:$0x1] 0.0
          %4992 = vst [vmem:[%s246] sm:$0x1] 0.0
        $region32: #{tpu_custom_call.1} parent=27 // pred_fallthru
          _
        %v4993 = vld [vmem:[%s240] sm:$0x1]
        %v4994 = vadd.f32 %v4795, %v4796
        %v4995 = vadd.f32 %v4994, %v4797
        %v4996 = vadd.f32 %v4995, %v4798
        %v4997 = vadd.f32 %v4996, %v4799
        %v4998 = vadd.f32 %v4997, %v4800
        %v4999 = vadd.f32 %v4998, %v4801
        %v5000 = vadd.f32 %v4999, %v4802
        %v5001 = vadd.f32 %v5000, %v4803
        %v5002 = vadd.f32 %v5001, %v4804
        %v5003 = vadd.f32 %v5002, %v4805
        %v5004 = vadd.f32 %v5003, %v4806
        %v5005 = vadd.f32 %v5004, %v4807
        %v5006 = vadd.f32 %v5005, %v4808
        %v5007 = vadd.f32 %v5006, %v4809
        %v5008 = vadd.f32 %v5007, %v4810
        %v5009 = vadd.f32 %v5008, %v4811
        %v5010 = vadd.f32 %v5009, %v4812
        %v5011 = vadd.f32 %v5010, %v4813
        %v5012 = vadd.f32 %v5011, %v4814
        %v5013 = vadd.f32 %v5012, %v4815
        %v5014 = vadd.f32 %v5013, %v4816
        %v5015 = vadd.f32 %v5014, %v4817
        %v5016 = vadd.f32 %v5015, %v4818
        %v5017 = vadd.f32 %v5016, %v4819
        %v5018 = vadd.f32 %v5017, %v4820
        %v5019 = vadd.f32 %v5018, %v4821
        %v5020 = vadd.f32 %v5019, %v4822
        %v5021 = vadd.f32 %v5020, %v4823
        %v5022 = vadd.f32 %v5021, %v4824
        %v5023 = vadd.f32 %v5022, %v4825
        %v5024 = vadd.f32 %v5023, %v4826
        %v5025 = vrot.slane %v5024, 4
        %v5026 = vadd.f32 %v5024, %v5025
        %v5027 = vrot.slane %v5026, 2
        %v5028 = vadd.f32 %v5026, %v5027
        %v5029 = vrot.slane %v5028, 1
        %v5030 = vadd.f32 %v5028, %v5029
        %v5031 = vadd.f32 %v4993, %v5030
        %5032 = vst [vmem:[%s240] sm:$0x1] %v5031
        %v5033 = vld [vmem:[%s246] sm:$0x1]
        %v5034 = vmul.f32 %v4795, %v4795
        %v5035 = vmul.f32 %v4796, %v4796
        %v5036 = vmul.f32 %v4797, %v4797
        %v5037 = vmul.f32 %v4798, %v4798
        %v5038 = vmul.f32 %v4799, %v4799
        %v5039 = vmul.f32 %v4800, %v4800
        %v5040 = vmul.f32 %v4801, %v4801
        %v5041 = vmul.f32 %v4802, %v4802
        %v5042 = vmul.f32 %v4803, %v4803
        %v5043 = vmul.f32 %v4804, %v4804
        %v5044 = vmul.f32 %v4805, %v4805
        %v5045 = vmul.f32 %v4806, %v4806
        %v5046 = vmul.f32 %v4807, %v4807
        %v5047 = vmul.f32 %v4808, %v4808
        %v5048 = vmul.f32 %v4809, %v4809
        %v5049 = vmul.f32 %v4810, %v4810
        %v5050 = vmul.f32 %v4811, %v4811
        %v5051 = vmul.f32 %v4812, %v4812
        %v5052 = vmul.f32 %v4813, %v4813
        %v5053 = vmul.f32 %v4814, %v4814
        %v5054 = vmul.f32 %v4815, %v4815
        %v5055 = vmul.f32 %v4816, %v4816
        %v5056 = vmul.f32 %v4817, %v4817
        %v5057 = vmul.f32 %v4818, %v4818
        %v5058 = vmul.f32 %v4819, %v4819
        %v5059 = vmul.f32 %v4820, %v4820
        %v5060 = vmul.f32 %v4821, %v4821
        %v5061 = vmul.f32 %v4822, %v4822
        %v5062 = vmul.f32 %v4823, %v4823
        %v5063 = vmul.f32 %v4824, %v4824
        %v5064 = vmul.f32 %v4825, %v4825
        %v5065 = vmul.f32 %v4826, %v4826
        %v5066 = vadd.f32 %v5034, %v5035
        %v5067 = vadd.f32 %v5066, %v5036
        %v5068 = vadd.f32 %v5067, %v5037
        %v5069 = vadd.f32 %v5068, %v5038
        %v5070 = vadd.f32 %v5069, %v5039
        %v5071 = vadd.f32 %v5070, %v5040
        %v5072 = vadd.f32 %v5071, %v5041
        %v5073 = vadd.f32 %v5072, %v5042
        %v5074 = vadd.f32 %v5073, %v5043
        %v5075 = vadd.f32 %v5074, %v5044
        %v5076 = vadd.f32 %v5075, %v5045
        %v5077 = vadd.f32 %v5076, %v5046
        %v5078 = vadd.f32 %v5077, %v5047
        %v5079 = vadd.f32 %v5078, %v5048
        %v5080 = vadd.f32 %v5079, %v5049
        %v5081 = vadd.f32 %v5080, %v5050
        %v5082 = vadd.f32 %v5081, %v5051
        %v5083 = vadd.f32 %v5082, %v5052
        %v5084 = vadd.f32 %v5083, %v5053
        %v5085 = vadd.f32 %v5084, %v5054
        %v5086 = vadd.f32 %v5085, %v5055
        %v5087 = vadd.f32 %v5086, %v5056
        %v5088 = vadd.f32 %v5087, %v5057
        %v5089 = vadd.f32 %v5088, %v5058
        %v5090 = vadd.f32 %v5089, %v5059
        %v5091 = vadd.f32 %v5090, %v5060
        %v5092 = vadd.f32 %v5091, %v5061
        %v5093 = vadd.f32 %v5092, %v5062
        %v5094 = vadd.f32 %v5093, %v5063
        %v5095 = vadd.f32 %v5094, %v5064
        %v5096 = vadd.f32 %v5095, %v5065
        %v5097 = vrot.slane %v5096, 4
        %v5098 = vadd.f32 %v5096, %v5097
        %v5099 = vrot.slane %v5098, 2
        %v5100 = vadd.f32 %v5098, %v5099
        %v5101 = vrot.slane %v5100, 1
        %v5102 = vadd.f32 %v5100, %v5101
        %v5103 = vadd.f32 %v5033, %v5102
        %5104 = vst [vmem:[%s246] sm:$0x1] %v5103
        %s5105 = sand.u32 %s105, 1
        %s5106 = scalar_lea.sflag [#allocation3], %s5105
        %s5107 = sand.u32 %s105, 1
        %s5108 = smul.addr %s5107, 128
        %s5109 = scalar_lea.vmem [#allocation2], %s5108
        %s5110 = sand.u32 %s22, 1
        %s5111 = scalar_lea.sflag [#allocation5], %s5110
        %s5112 = sand.u32 %s133, 1
        %s5113 = scalar_lea.vmem [#allocation4], %s5112
        %s5114 = sand.u32 %s22, 1
        %s5115 = scalar_lea.sflag [#allocation5], %s5114
        %s5116 = sand.u32 %s161, 1
        %s5117 = scalar_lea.vmem [#allocation6], %s5116
        // Predicated region
        $region33: #{tpu_custom_call.1} parent=27 // pred_check
          %p5118 = pneg %p115
        $region34: #{tpu_custom_call.1} parent=27 // pred_check_branch
          %5120 = sbr.rel (%p5118) target = $region36
        $region35: #{tpu_custom_call.1} parent=27 // pred_region
          %s5121 = smul.u32 32, %s29
          %s5123 = ssub.s32 2048, 2048
          %5124 = vsyncadd %s5106, %s5123
          %s5125 = sadd.s32 %s28, %s5121
          %s5126 = smul.addr %s27, 32
          %s5127 = sadd.s32 %s5125, %s5126
          %s5128 = smul.addr %s5127, 64
          %s5129 = scalar_lea.hbm %s2, %s5128
          %s5130 = sshll.u32 %s5109, 4
          %s5131 = int_to_ptr.vmem [resolvable:$true] %s5130
          %5136 = dma.vmem_to_hbm [thread:$0]  %s5131, 2048, %s5129, %s5106, 64, 64, 4
        $region36: #{tpu_custom_call.1} parent=27 // pred_fallthru
          _
        // Predicated region
        $region37: #{tpu_custom_call.1} parent=27 // pred_check
          %p5137 = pneg %p143
        $region38: #{tpu_custom_call.1} parent=27 // pred_check_branch
          %5139 = sbr.rel (%p5137) target = $region40
        $region39: #{tpu_custom_call.1} parent=27 // pred_region
          %s5141 = ssub.s32 16, 16
          %5142 = vsyncadd %s5111, %s5141
          %s5143 = sadd.s32 %s28, %s27
          %s5144 = smul.addr %s5143, 16
          %s5145 = scalar_lea.hbm %s3, %s5144
          %s5147 = sshll.u32 %s5113, 4
          %s5148 = int_to_ptr.vmem [resolvable:$true] %s5147
          %5150 = dma.vmem_to_hbm [thread:$0]  %s5148, 16, %s5145, %s5111
        $region40: #{tpu_custom_call.1} parent=27 // pred_fallthru
          _
        // Predicated region
        $region41: #{tpu_custom_call.1} parent=27 // pred_check
          %p5151 = pneg %p171
        $region42: #{tpu_custom_call.1} parent=27 // pred_check_branch
          %5153 = sbr.rel (%p5151) target = $region44
        $region43: #{tpu_custom_call.1} parent=27 // pred_region
          %s5155 = ssub.s32 16, 16
          %5156 = vsyncadd %s5115, %s5155
          %s5157 = sadd.s32 %s28, %s27
          %s5158 = smul.addr %s5157, 16
          %s5159 = scalar_lea.hbm %s4, %s5158
          %s5161 = sshll.u32 %s5117, 4
          %s5162 = int_to_ptr.vmem [resolvable:$true] %s5161
          %5164 = dma.vmem_to_hbm [thread:$0]  %s5162, 16, %s5159, %s5115
        $region44: #{tpu_custom_call.1} parent=27 // pred_fallthru
          _
      $region28: #{tpu_custom_call.1} parent=5 // pred_fallthru
        _
      %p5165 = scmp.le.s32.totalorder 2, %s17
      // Predicated region
      $region45: #{tpu_custom_call.1} parent=5 // pred_check
        %p5166 = pneg %p5165
      $region46: #{tpu_custom_call.1} parent=5 // pred_check_branch
        %5168 = sbr.rel (%p5166) target = $region48
      $region47: #{tpu_custom_call.1} parent=5 // pred_region
        %s5169 = ssub.s32 %s17, 2
        // Predicated region
        $region49: #{tpu_custom_call.1} parent=47 // pred_check
          %p5170 = pneg %p121
        $region50: #{tpu_custom_call.1} parent=47 // pred_check_branch
          %5172 = sbr.rel (%p5170) target = $region52
        $region51: #{tpu_custom_call.1} parent=47 // pred_region
          %s5173 = sand.u32 %s106, 1
          %s5174 = scalar_lea.sflag [#allocation3], %s5173
          %s5175 = sand.u32 %s106, 1
          %s5176 = smul.addr %s5175, 128
          %s5177 = scalar_lea.vmem [#allocation2], %s5176
          %5178 = dma.done %s5174, 2048
        $region52: #{tpu_custom_call.1} parent=47 // pred_fallthru
          _
        // Predicated region
        $region53: #{tpu_custom_call.1} parent=47 // pred_check
          %p5179 = pneg %p149
        $region54: #{tpu_custom_call.1} parent=47 // pred_check_branch
          %5181 = sbr.rel (%p5179) target = $region56
        $region55: #{tpu_custom_call.1} parent=47 // pred_region
          %s5182 = sand.u32 %s23, 1
          %s5183 = scalar_lea.sflag [#allocation5], %s5182
          %s5184 = sand.u32 %s134, 1
          %s5185 = scalar_lea.vmem [#allocation4], %s5184
          %5186 = dma.done %s5183, 16
        $region56: #{tpu_custom_call.1} parent=47 // pred_fallthru
          _
        // Predicated region
        $region57: #{tpu_custom_call.1} parent=47 // pred_check
          %p5187 = pneg %p177
        $region58: #{tpu_custom_call.1} parent=47 // pred_check_branch
          %5189 = sbr.rel (%p5187) target = $region60
        $region59: #{tpu_custom_call.1} parent=47 // pred_region
          %s5190 = sand.u32 %s23, 1
          %s5191 = scalar_lea.sflag [#allocation5], %s5190
          %s5192 = sand.u32 %s162, 1
          %s5193 = scalar_lea.vmem [#allocation6], %s5192
          %5194 = dma.done %s5191, 16
        $region60: #{tpu_custom_call.1} parent=47 // pred_fallthru
          _
      $region48: #{tpu_custom_call.1} parent=5 // pred_fallthru
        _
    $region6: #{tpu_custom_call.1} parent=1 // loop_footer
      %s21 = sadd.s32 1, %s17
    $region7: #{tpu_custom_call.1} parent=1 // loop_footer_branch
      %16 = sbr.rel target = $region3
    $region8: #{tpu_custom_call.1} parent=1 // loop_exit
      _
    %5195 = vsyncpa [#allocation3], 1
    %s5196 = scalar_lea.sflag [#allocation3], 1
    %5197 = vsyncpa %s5196, 1
    %5198 = vsyncpa [#allocation5], 1
    %s5199 = scalar_lea.sflag [#allocation5], 1
    %5200 = vsyncpa %s5199, 1

</llo_original>
